<compile_context>
chip_gen: v6e
topology: v6e:2x2x1
jax: 0.10.0
libtpu: 0.0.40
codegen_flags: <defaults>
</compile_context>

<pallas_src>
import jax
import jax.numpy as jnp
from jax import lax
from jax.experimental import pallas as pl
from jax.experimental.pallas import tpu as pltpu

EPS = 1e-5


# --------------------------------------------------------------------------
# Kernels
# --------------------------------------------------------------------------
def _conv1_kernel(x_ref, w1_ref, o1_ref, st_ref):
    """1x1 conv on one (image, row-tile); per-tile (sum, sum_sq) BN partials."""
    _, TH, W, Cin = x_ref.shape
    P = w1_ref.shape[-1]
    xf = x_ref[...].reshape(TH * W, Cin)
    o1 = jnp.dot(xf.astype(w1_ref.dtype), w1_ref[...],
                 preferred_element_type=jnp.float32)
    o1_ref[...] = o1.reshape(1, TH, W, P).astype(o1_ref.dtype)   # bf16 store
    st_ref[0, 0, 0:1, :] = jnp.sum(o1, axis=0, keepdims=True)    # f32 stats
    st_ref[0, 0, 1:2, :] = jnp.sum(o1 * o1, axis=0, keepdims=True)


def _conv2_kernel(o1_ref, sc_ref, sh_ref, w2_ref, o2_ref, st_ref,
                  pad_ref, slab_ref):
    """bn1(scale/shift)+relu -> 3x3 conv (pad=1) as a single im2col matmul."""
    _, H, W, P = o1_ref.shape
    Pout = w2_ref.shape[-1]
    Wp = W + 2
    rows = H * Wp                       # == slab_ref.shape[0]

    # bn1 + relu in f32, cast once to the MXU dtype.
    a1 = jnp.maximum(
        o1_ref[...].astype(jnp.float32).reshape(H * W, P) * sc_ref[...]
        + sh_ref[...], 0.0)
    a1b = a1.astype(pad_ref.dtype)

    # Flat, zero-padded image (row-major over (H+2, W+2)).  Re-zeroed every
    # step (megacore-safe), then one contiguous store per image row.
    pad_ref[...] = jnp.zeros(pad_ref.shape, pad_ref.dtype)
    for h in range(H):
        pad_ref[pl.ds((h + 1) * Wp + 1, W), :] = a1b[h * W:(h + 1) * W, :]

    # im2col: each tap is a contiguous flat-offset slice of the padded buffer
    # (no shifted-window relayout).  Lay the 9 taps side by side -> K = 9P.
    for t in range(9):
        dh, dw = divmod(t, 3)
        slab_ref[:, t * P:(t + 1) * P] = pad_ref[pl.ds(dh * Wp + dw, rows), :]

    acc = jnp.dot(slab_ref[...], w2_ref[...],
                  preferred_element_type=jnp.float32)            # (rows, Pout)

    # Drop the junk halo columns (slab rows with w >= W), emit output + stats.
    o2v = jnp.concatenate([acc[h * Wp:h * Wp + W, :] for h in range(H)],
                          axis=0)                                # (H*W, Pout)
    o2_ref[...] = o2v.reshape(1, H, W, Pout).astype(o2_ref.dtype)
    st_ref[0, 0:1, :] = jnp.sum(o2v, axis=0, keepdims=True)
    st_ref[0, 1:2, :] = jnp.sum(o2v * o2v, axis=0, keepdims=True)


def _conv3_kernel(o2_ref, sc_ref, sh_ref, w3_ref, o3_ref, st_ref):
    """bn2(scale/shift)+relu -> 1x1 conv; per-tile BN partials."""
    _, TH, W, P = o2_ref.shape
    C4 = w3_ref.shape[-1]
    a2 = jnp.maximum(
        o2_ref[...].astype(jnp.float32).reshape(TH * W, P) * sc_ref[...]
        + sh_ref[...], 0.0)
    o3 = jnp.dot(a2.astype(w3_ref.dtype), w3_ref[...],
                 preferred_element_type=jnp.float32)
    o3_ref[...] = o3.reshape(1, TH, W, C4).astype(o3_ref.dtype)
    st_ref[0, 0, 0:1, :] = jnp.sum(o3, axis=0, keepdims=True)
    st_ref[0, 0, 1:2, :] = jnp.sum(o3 * o3, axis=0, keepdims=True)


def _residual_kernel(o3_ref, x_ref, sc_ref, sh_ref, out_ref):
    """bn3(scale/shift) + identity add + relu."""
    _, TH, W, C = o3_ref.shape
    y = (o3_ref[...].astype(jnp.float32).reshape(TH * W, C) * sc_ref[...]
         + sh_ref[...])
    y = jnp.maximum(y + x_ref[...].reshape(TH * W, C), 0.0)
    out_ref[...] = y.reshape(1, TH, W, C).astype(out_ref.dtype)


# --------------------------------------------------------------------------
# Small host-side helpers
# --------------------------------------------------------------------------
def _bn_scale_shift(stats, gamma, beta, count):
    """Fold global training-mode BN into per-channel scale/shift (tiny)."""
    c = stats.shape[-1]
    s = jnp.sum(stats.reshape(-1, 2, c).astype(jnp.float32), axis=0)  # (2, C)
    mean = s[0] / count
    var = jnp.maximum(s[1] / count - mean * mean, 0.0)     # biased variance
    scale = gamma.reshape(-1) * lax.rsqrt(var + EPS)
    shift = beta.reshape(-1) - mean * scale
    return scale.reshape(1, -1), shift.reshape(1, -1)


def _pick_row_tile(H):
    """Largest of {32,16,8} that divides H (and is < H); else the full H."""
    for th in (32, 16, 8):
        if H % th == 0 and th < H:
            return th
    return H


def _default_vmem_limit():
    """Generation-aware scoped-VMEM limit (96 MiB on 128-MiB chips, else 48)."""
    try:
        cap = getattr(pltpu.get_tpu_info(), "vmem_capacity_bytes", None)
    except Exception:
        cap = None
    if cap is not None and cap >= 100 * 1024 * 1024:
        return 96 * 1024 * 1024       # v5e / v6e (128 MiB physical)
    return 48 * 1024 * 1024           # v7x (64 MiB per TC) / unknown


# --------------------------------------------------------------------------
# Wrapper
# --------------------------------------------------------------------------
def bottleneck_pallas(x_nchw, params, *, mxu_dtype=jnp.bfloat16,
                      act_dtype=jnp.bfloat16, vmem_limit_bytes=None):
    """x_nchw: (N, Cin, H, W) float32.  Returns (N, Cin, H, W) float32."""
    w1, w2, w3, g1, b1, g2, b2, g3, b3 = params
    N, Cin, H, W = x_nchw.shape
    P = w1.shape[1]
    C4 = w3.shape[1]
    assert Cin == C4, "stride=1 / downsample=None requires inplanes == 4*planes"

    if vmem_limit_bytes is None:
        vmem_limit_bytes = _default_vmem_limit()

    TH = _pick_row_tile(H)
    HT = H // TH

    # NCHW <-> NHWC only at the PyTorch-interface boundary.  In an end-to-end
    # NHWC pipeline these two transposes disappear entirely.
    x = jnp.transpose(x_nchw, (0, 2, 3, 1)).astype(jnp.float32)

    w1c = w1.astype(mxu_dtype)                       # (Cin, P)
    w2c = w2.reshape(9 * P, P).astype(mxu_dtype)     # (dh,dw,cin)-major x cout
    w3c = w3.astype(mxu_dtype)                       # (P, C4)

    cp2d = pltpu.CompilerParams(dimension_semantics=("parallel", "parallel"),
                                vmem_limit_bytes=vmem_limit_bytes)
    cp1d = pltpu.CompilerParams(dimension_semantics=("parallel",),
                                vmem_limit_bytes=vmem_limit_bytes)
    nhw = float(N * H * W)

    def tile_spec(c):        # (image, row-tile) NHWC activation block
        return pl.BlockSpec((1, TH, W, c), lambda n, h: (n, h, 0, 0))

    def img_spec(c):         # full-image NHWC activation block (conv2 only)
        return pl.BlockSpec((1, H, W, c), lambda n: (n, 0, 0, 0))

    def full2(shape):
        return pl.BlockSpec(shape, lambda n, h: (0,) * len(shape))

    def full1(shape):
        return pl.BlockSpec(shape, lambda n: (0,) * len(shape))

    def stat2_spec(c):       # per (image, row-tile) BN partials
        return pl.BlockSpec((1, 1, 2, c), lambda n, h: (n, h, 0, 0))

    # --- stage 1: conv1 (1x1) + bn1 partial stats --------------------------
    o1, st1 = pl.pallas_call(
        _conv1_kernel,
        grid=(N, HT),
        in_specs=[tile_spec(Cin), full2((Cin, P))],
        out_specs=(tile_spec(P), stat2_spec(P)),
        out_shape=(jax.ShapeDtypeStruct((N, H, W, P), act_dtype),
                   jax.ShapeDtypeStruct((N, HT, 2, P), jnp.float32)),
        compiler_params=cp2d,
    )(x, w1c)
    sc1, sh1 = _bn_scale_shift(st1, g1, b1, nhw)

    # --- stage 2: bn1+relu -> conv2 (3x3, pad=1, im2col) + bn2 partials ----
    pad_rows = (H + 2) * (W + 2) + 8   # +slack so every tap slice is in-bounds
    o2, st2 = pl.pallas_call(
        _conv2_kernel,
        grid=(N,),
        in_specs=[img_spec(P), full1((1, P)), full1((1, P)),
                  full1((9 * P, P))],
        out_specs=(img_spec(P), pl.BlockSpec((1, 2, P), lambda n: (n, 0, 0))),
        out_shape=(jax.ShapeDtypeStruct((N, H, W, P), act_dtype),
                   jax.ShapeDtypeStruct((N, 2, P), jnp.float32)),
        scratch_shapes=[pltpu.VMEM((pad_rows, P), mxu_dtype),
                        pltpu.VMEM((H * (W + 2), 9 * P), mxu_dtype)],
        compiler_params=cp1d,
    )(o1, sc1, sh1, w2c)
    sc2, sh2 = _bn_scale_shift(st2, g2, b2, nhw)

    # --- stage 3: bn2+relu -> conv3 (1x1) + bn3 partials --------------------
    o3, st3 = pl.pallas_call(
        _conv3_kernel,
        grid=(N, HT),
        in_specs=[tile_spec(P), full2((1, P)), full2((1, P)), full2((P, C4))],
        out_specs=(tile_spec(C4), stat2_spec(C4)),
        out_shape=(jax.ShapeDtypeStruct((N, H, W, C4), act_dtype),
                   jax.ShapeDtypeStruct((N, HT, 2, C4), jnp.float32)),
        compiler_params=cp2d,
    )(o2, sc2, sh2, w3c)
    sc3, sh3 = _bn_scale_shift(st3, g3, b3, nhw)

    # --- stage 4: bn3 -> +identity -> relu ----------------------------------
    out = pl.pallas_call(
        _residual_kernel,
        grid=(N, HT),
        in_specs=[tile_spec(C4), tile_spec(Cin), full2((1, C4)),
                  full2((1, C4))],
        out_specs=tile_spec(C4),
        out_shape=jax.ShapeDtypeStruct((N, H, W, C4), x_nchw.dtype),
        compiler_params=cp2d,
    )(o3, x, sc3, sh3)

    return jnp.transpose(out, (0, 3, 1, 2))


# --------------------------------------------------------------------------
# Pure-JAX reference (mirrors the kernel's precision choices: bf16 at the MXU,
# bf16 inter-stage storage, f32 BN statistics taken before the storage cast)
# --------------------------------------------------------------------------
def bottleneck_ref(x_nchw, params, mxu_dtype=jnp.bfloat16,
                   act_dtype=jnp.bfloat16):
    w1, w2, w3, g1, b1, g2, b2, g3, b3 = params
    x = jnp.transpose(x_nchw, (0, 2, 3, 1)).astype(jnp.float32)
    dn = ('NHWC', 'HWIO', 'NHWC')

    def conv(a, w, pad):
        return lax.conv_general_dilated(
            a.astype(mxu_dtype), w.astype(mxu_dtype), (1, 1), pad,
            dimension_numbers=dn, preferred_element_type=jnp.float32)

    def bn(o, gamma, beta):
        mean = jnp.mean(o, axis=(0, 1, 2), keepdims=True)
        var = jnp.mean((o - mean) ** 2, axis=(0, 1, 2), keepdims=True)
        o_store = o.astype(act_dtype).astype(jnp.float32)  # storage rounding
        return (o_store - mean) / jnp.sqrt(var + EPS) * gamma + beta

    o = jnp.maximum(bn(conv(x, w1[None, None], 'VALID'), g1, b1), 0.0)
    o = jnp.maximum(bn(conv(o, w2, ((1, 1), (1, 1))), g2, b2), 0.0)
    o = bn(conv(o, w3[None, None], 'VALID'), g3, b3)
    o = jnp.maximum(o + x, 0.0)
    return jnp.transpose(o, (0, 3, 1, 2))


if __name__ == "__main__":
    # Bottleneck(inplanes=32, planes=8): expansion 4 -> output channels 32.
    N, Cin, H, W = 2, 32, 16, 16
    P = 8

    key = jax.random.PRNGKey(0)
    kx, k1, k2, k3, kg1, kg2, kg3, kb1, kb2, kb3 = jax.random.split(key, 10)

    x = jax.random.normal(kx, (N, Cin, H, W), jnp.float32)

    # Conv weights in matmul-friendly layouts:
    #   conv1x1 -> (Cin, Cout); conv3x3 -> (3, 3, Cin, Cout) (HWIO).
    w1 = jax.random.normal(k1, (Cin, P), jnp.float32) / (Cin ** 0.5)
    w2 = jax.random.normal(k2, (3, 3, P, P), jnp.float32) / ((9 * P) ** 0.5)
    w3 = jax.random.normal(k3, (P, P * 4), jnp.float32) / (P ** 0.5)

    # BatchNorm affine params as (1, C) rows.
    g1 = 1.0 + 0.01 * jax.random.normal(kg1, (1, P), jnp.float32)
    b1 = 0.01 * jax.random.normal(kb1, (1, P), jnp.float32)
    g2 = 1.0 + 0.01 * jax.random.normal(kg2, (1, P), jnp.float32)
    b2 = 0.01 * jax.random.normal(kb2, (1, P), jnp.float32)
    g3 = 1.0 + 0.01 * jax.random.normal(kg3, (1, P * 4), jnp.float32)
    b3 = 0.01 * jax.random.normal(kb3, (1, P * 4), jnp.float32)

    params = (w1, w2, w3, g1, b1, g2, b2, g3, b3)

    fwd = jax.jit(lambda xx: bottleneck_pallas(xx, params))
    out = fwd(x)
    jax.block_until_ready(out)

    ref = bottleneck_ref(x, params)
    assert out.shape == (N, Cin, H, W)
    err = jnp.max(jnp.abs(out - ref))
    assert jnp.allclose(out, ref, atol=2e-2, rtol=2e-2), f"max abs err {err}"

    print("KERNEL_OK")
</pallas_src>

<mosaic_0001>
module attributes {stable_mosaic.version = 11 : i64} {
  func.func @_conv2_kernel(%arg0: i32, %arg1: memref<1x16x16x8xbf16, #tpu.memory_space<vmem>>, %arg2: memref<1x8xf32, #tpu.memory_space<vmem>>, %arg3: memref<1x8xf32, #tpu.memory_space<vmem>>, %arg4: memref<72x8xbf16, #tpu.memory_space<vmem>>, %arg5: memref<1x16x16x8xbf16, #tpu.memory_space<vmem>>, %arg6: memref<1x2x8xf32, #tpu.memory_space<vmem>>, %arg7: memref<332x8xbf16, #tpu.memory_space<vmem>>, %arg8: memref<288x72xbf16, #tpu.memory_space<vmem>>) attributes {dimension_semantics = [#tpu.dimension_semantics<parallel>], iteration_bounds = array<i64: 2>, scalar_prefetch = 0 : i64, scratch_operands = 2 : i64, tpu.core_type = #tpu.core_type<tc>, window_params = [{transform_indices = @transform_0, window_bounds = array<i64: 1, 16, 16, 8>}, {pipeline_mode = #tpu.pipeline_mode<synchronous>, transform_indices = @transform_1, window_bounds = array<i64: 1, 8>}, {pipeline_mode = #tpu.pipeline_mode<synchronous>, transform_indices = @transform_2, window_bounds = array<i64: 1, 8>}, {pipeline_mode = #tpu.pipeline_mode<synchronous>, transform_indices = @transform_3, window_bounds = array<i64: 72, 8>}, {transform_indices = @transform_4, window_bounds = array<i64: 1, 16, 16, 8>}, {transform_indices = @transform_5, window_bounds = array<i64: 1, 2, 8>}]} {
    %c0 = arith.constant 0 : index
    %c0_0 = arith.constant 0 : index
    %c0_1 = arith.constant 0 : index
    %c0_2 = arith.constant 0 : index
    %0 = vector.load %arg1[%c0, %c0_0, %c0_1, %c0_2] : memref<1x16x16x8xbf16, #tpu.memory_space<vmem>>, vector<1x16x16x8xbf16>
    %1 = arith.extf %0 : vector<1x16x16x8xbf16> to vector<1x16x16x8xf32>
    %2 = vector.shape_cast %1 : vector<1x16x16x8xf32> to vector<256x8xf32>
    %c0_3 = arith.constant 0 : index
    %c0_4 = arith.constant 0 : index
    %3 = vector.load %arg2[%c0_3, %c0_4] : memref<1x8xf32, #tpu.memory_space<vmem>>, vector<1x8xf32>
    %4 = vector.broadcast %3 : vector<1x8xf32> to vector<256x8xf32>
    %5 = arith.mulf %2, %4 : vector<256x8xf32>
    %c0_5 = arith.constant 0 : index
    %c0_6 = arith.constant 0 : index
    %6 = vector.load %arg3[%c0_5, %c0_6] : memref<1x8xf32, #tpu.memory_space<vmem>>, vector<1x8xf32>
    %7 = vector.broadcast %6 : vector<1x8xf32> to vector<256x8xf32>
    %8 = arith.addf %5, %7 : vector<256x8xf32>
    %cst = arith.constant 0.000000e+00 : f32
    %9 = vector.broadcast %cst : f32 to vector<256x8xf32>
    %10 = arith.maximumf %8, %9 : vector<256x8xf32>
    %11 = arith.truncf %10 : vector<256x8xf32> to vector<256x8xbf16>
    %cst_7 = arith.constant 0.000000e+00 : bf16
    %12 = vector.broadcast %cst_7 : bf16 to vector<332x8xbf16>
    %c0_8 = arith.constant 0 : index
    %c0_9 = arith.constant 0 : index
    %13 = vector.load %arg7[%c0_8, %c0_9] : memref<332x8xbf16, #tpu.memory_space<vmem>>, vector<332x8xbf16>
    tpu.vector_store %arg7[%c0_8, %c0_9], %12 {strides = array<i32>} : memref<332x8xbf16, #tpu.memory_space<vmem>>, vector<332x8xbf16>,
    %14 = vector.extract_strided_slice %11 {offsets = [0, 0], sizes = [16, 8], strides = [1, 1]} : vector<256x8xbf16> to vector<16x8xbf16>
    %c19 = arith.constant 19 : index
    %c0_10 = arith.constant 0 : index
    %15 = vector.load %arg7[%c19, %c0_10] : memref<332x8xbf16, #tpu.memory_space<vmem>>, vector<16x8xbf16>
    tpu.vector_store %arg7[%c19, %c0_10], %14 {strides = array<i32>} : memref<332x8xbf16, #tpu.memory_space<vmem>>, vector<16x8xbf16>,
    %16 = vector.extract_strided_slice %11 {offsets = [16, 0], sizes = [16, 8], strides = [1, 1]} : vector<256x8xbf16> to vector<16x8xbf16>
    %c37 = arith.constant 37 : index
    %c0_11 = arith.constant 0 : index
    %17 = vector.load %arg7[%c37, %c0_11] : memref<332x8xbf16, #tpu.memory_space<vmem>>, vector<16x8xbf16>
    tpu.vector_store %arg7[%c37, %c0_11], %16 {strides = array<i32>} : memref<332x8xbf16, #tpu.memory_space<vmem>>, vector<16x8xbf16>,
    %18 = vector.extract_strided_slice %11 {offsets = [32, 0], sizes = [16, 8], strides = [1, 1]} : vector<256x8xbf16> to vector<16x8xbf16>
    %c55 = arith.constant 55 : index
    %c0_12 = arith.constant 0 : index
    %19 = vector.load %arg7[%c55, %c0_12] : memref<332x8xbf16, #tpu.memory_space<vmem>>, vector<16x8xbf16>
    tpu.vector_store %arg7[%c55, %c0_12], %18 {strides = array<i32>} : memref<332x8xbf16, #tpu.memory_space<vmem>>, vector<16x8xbf16>,
    %20 = vector.extract_strided_slice %11 {offsets = [48, 0], sizes = [16, 8], strides = [1, 1]} : vector<256x8xbf16> to vector<16x8xbf16>
    %c73 = arith.constant 73 : index
    %c0_13 = arith.constant 0 : index
    %21 = vector.load %arg7[%c73, %c0_13] : memref<332x8xbf16, #tpu.memory_space<vmem>>, vector<16x8xbf16>
    tpu.vector_store %arg7[%c73, %c0_13], %20 {strides = array<i32>} : memref<332x8xbf16, #tpu.memory_space<vmem>>, vector<16x8xbf16>,
    %22 = vector.extract_strided_slice %11 {offsets = [64, 0], sizes = [16, 8], strides = [1, 1]} : vector<256x8xbf16> to vector<16x8xbf16>
    %c91 = arith.constant 91 : index
    %c0_14 = arith.constant 0 : index
    %23 = vector.load %arg7[%c91, %c0_14] : memref<332x8xbf16, #tpu.memory_space<vmem>>, vector<16x8xbf16>
    tpu.vector_store %arg7[%c91, %c0_14], %22 {strides = array<i32>} : memref<332x8xbf16, #tpu.memory_space<vmem>>, vector<16x8xbf16>,
    %24 = vector.extract_strided_slice %11 {offsets = [80, 0], sizes = [16, 8], strides = [1, 1]} : vector<256x8xbf16> to vector<16x8xbf16>
    %c109 = arith.constant 109 : index
    %c0_15 = arith.constant 0 : index
    %25 = vector.load %arg7[%c109, %c0_15] : memref<332x8xbf16, #tpu.memory_space<vmem>>, vector<16x8xbf16>
    tpu.vector_store %arg7[%c109, %c0_15], %24 {strides = array<i32>} : memref<332x8xbf16, #tpu.memory_space<vmem>>, vector<16x8xbf16>,
    %26 = vector.extract_strided_slice %11 {offsets = [96, 0], sizes = [16, 8], strides = [1, 1]} : vector<256x8xbf16> to vector<16x8xbf16>
    %c127 = arith.constant 127 : index
    %c0_16 = arith.constant 0 : index
    %27 = vector.load %arg7[%c127, %c0_16] : memref<332x8xbf16, #tpu.memory_space<vmem>>, vector<16x8xbf16>
    tpu.vector_store %arg7[%c127, %c0_16], %26 {strides = array<i32>} : memref<332x8xbf16, #tpu.memory_space<vmem>>, vector<16x8xbf16>,
    %28 = vector.extract_strided_slice %11 {offsets = [112, 0], sizes = [16, 8], strides = [1, 1]} : vector<256x8xbf16> to vector<16x8xbf16>
    %c145 = arith.constant 145 : index
    %c0_17 = arith.constant 0 : index
    %29 = vector.load %arg7[%c145, %c0_17] : memref<332x8xbf16, #tpu.memory_space<vmem>>, vector<16x8xbf16>
    tpu.vector_store %arg7[%c145, %c0_17], %28 {strides = array<i32>} : memref<332x8xbf16, #tpu.memory_space<vmem>>, vector<16x8xbf16>,
    %30 = vector.extract_strided_slice %11 {offsets = [128, 0], sizes = [16, 8], strides = [1, 1]} : vector<256x8xbf16> to vector<16x8xbf16>
    %c163 = arith.constant 163 : index
    %c0_18 = arith.constant 0 : index
    %31 = vector.load %arg7[%c163, %c0_18] : memref<332x8xbf16, #tpu.memory_space<vmem>>, vector<16x8xbf16>
    tpu.vector_store %arg7[%c163, %c0_18], %30 {strides = array<i32>} : memref<332x8xbf16, #tpu.memory_space<vmem>>, vector<16x8xbf16>,
    %32 = vector.extract_strided_slice %11 {offsets = [144, 0], sizes = [16, 8], strides = [1, 1]} : vector<256x8xbf16> to vector<16x8xbf16>
    %c181 = arith.constant 181 : index
    %c0_19 = arith.constant 0 : index
    %33 = vector.load %arg7[%c181, %c0_19] : memref<332x8xbf16, #tpu.memory_space<vmem>>, vector<16x8xbf16>
    tpu.vector_store %arg7[%c181, %c0_19], %32 {strides = array<i32>} : memref<332x8xbf16, #tpu.memory_space<vmem>>, vector<16x8xbf16>,
    %34 = vector.extract_strided_slice %11 {offsets = [160, 0], sizes = [16, 8], strides = [1, 1]} : vector<256x8xbf16> to vector<16x8xbf16>
    %c199 = arith.constant 199 : index
    %c0_20 = arith.constant 0 : index
    %35 = vector.load %arg7[%c199, %c0_20] : memref<332x8xbf16, #tpu.memory_space<vmem>>, vector<16x8xbf16>
    tpu.vector_store %arg7[%c199, %c0_20], %34 {strides = array<i32>} : memref<332x8xbf16, #tpu.memory_space<vmem>>, vector<16x8xbf16>,
    %36 = vector.extract_strided_slice %11 {offsets = [176, 0], sizes = [16, 8], strides = [1, 1]} : vector<256x8xbf16> to vector<16x8xbf16>
    %c217 = arith.constant 217 : index
    %c0_21 = arith.constant 0 : index
    %37 = vector.load %arg7[%c217, %c0_21] : memref<332x8xbf16, #tpu.memory_space<vmem>>, vector<16x8xbf16>
    tpu.vector_store %arg7[%c217, %c0_21], %36 {strides = array<i32>} : memref<332x8xbf16, #tpu.memory_space<vmem>>, vector<16x8xbf16>,
    %38 = vector.extract_strided_slice %11 {offsets = [192, 0], sizes = [16, 8], strides = [1, 1]} : vector<256x8xbf16> to vector<16x8xbf16>
    %c235 = arith.constant 235 : index
    %c0_22 = arith.constant 0 : index
    %39 = vector.load %arg7[%c235, %c0_22] : memref<332x8xbf16, #tpu.memory_space<vmem>>, vector<16x8xbf16>
    tpu.vector_store %arg7[%c235, %c0_22], %38 {strides = array<i32>} : memref<332x8xbf16, #tpu.memory_space<vmem>>, vector<16x8xbf16>,
    %40 = vector.extract_strided_slice %11 {offsets = [208, 0], sizes = [16, 8], strides = [1, 1]} : vector<256x8xbf16> to vector<16x8xbf16>
    %c253 = arith.constant 253 : index
    %c0_23 = arith.constant 0 : index
    %41 = vector.load %arg7[%c253, %c0_23] : memref<332x8xbf16, #tpu.memory_space<vmem>>, vector<16x8xbf16>
    tpu.vector_store %arg7[%c253, %c0_23], %40 {strides = array<i32>} : memref<332x8xbf16, #tpu.memory_space<vmem>>, vector<16x8xbf16>,
    %42 = vector.extract_strided_slice %11 {offsets = [224, 0], sizes = [16, 8], strides = [1, 1]} : vector<256x8xbf16> to vector<16x8xbf16>
    %c271 = arith.constant 271 : index
    %c0_24 = arith.constant 0 : index
    %43 = vector.load %arg7[%c271, %c0_24] : memref<332x8xbf16, #tpu.memory_space<vmem>>, vector<16x8xbf16>
    tpu.vector_store %arg7[%c271, %c0_24], %42 {strides = array<i32>} : memref<332x8xbf16, #tpu.memory_space<vmem>>, vector<16x8xbf16>,
    %44 = vector.extract_strided_slice %11 {offsets = [240, 0], sizes = [16, 8], strides = [1, 1]} : vector<256x8xbf16> to vector<16x8xbf16>
    %c289 = arith.constant 289 : index
    %c0_25 = arith.constant 0 : index
    %45 = vector.load %arg7[%c289, %c0_25] : memref<332x8xbf16, #tpu.memory_space<vmem>>, vector<16x8xbf16>
    tpu.vector_store %arg7[%c289, %c0_25], %44 {strides = array<i32>} : memref<332x8xbf16, #tpu.memory_space<vmem>>, vector<16x8xbf16>,
    %c0_26 = arith.constant 0 : index
    %c0_27 = arith.constant 0 : index
    %46 = vector.load %arg7[%c0_26, %c0_27] : memref<332x8xbf16, #tpu.memory_space<vmem>>, vector<288x8xbf16>
    %c0_28 = arith.constant 0 : index
    %c0_29 = arith.constant 0 : index
    %47 = vector.load %arg8[%c0_28, %c0_29] : memref<288x72xbf16, #tpu.memory_space<vmem>>, vector<288x8xbf16>
    tpu.vector_store %arg8[%c0_28, %c0_29], %46 {strides = array<i32>} : memref<288x72xbf16, #tpu.memory_space<vmem>>, vector<288x8xbf16>,
    %c1 = arith.constant 1 : index
    %c0_30 = arith.constant 0 : index
    %48 = vector.load %arg7[%c1, %c0_30] : memref<332x8xbf16, #tpu.memory_space<vmem>>, vector<288x8xbf16>
    %c0_31 = arith.constant 0 : index
    %c8 = arith.constant 8 : index
    %49 = vector.load %arg8[%c0_31, %c8] : memref<288x72xbf16, #tpu.memory_space<vmem>>, vector<288x8xbf16>
    tpu.vector_store %arg8[%c0_31, %c8], %48 {strides = array<i32>} : memref<288x72xbf16, #tpu.memory_space<vmem>>, vector<288x8xbf16>,
    %c2 = arith.constant 2 : index
    %c0_32 = arith.constant 0 : index
    %50 = vector.load %arg7[%c2, %c0_32] : memref<332x8xbf16, #tpu.memory_space<vmem>>, vector<288x8xbf16>
    %c0_33 = arith.constant 0 : index
    %c16 = arith.constant 16 : index
    %51 = vector.load %arg8[%c0_33, %c16] : memref<288x72xbf16, #tpu.memory_space<vmem>>, vector<288x8xbf16>
    tpu.vector_store %arg8[%c0_33, %c16], %50 {strides = array<i32>} : memref<288x72xbf16, #tpu.memory_space<vmem>>, vector<288x8xbf16>,
    %c18 = arith.constant 18 : index
    %c0_34 = arith.constant 0 : index
    %52 = vector.load %arg7[%c18, %c0_34] : memref<332x8xbf16, #tpu.memory_space<vmem>>, vector<288x8xbf16>
    %c0_35 = arith.constant 0 : index
    %c24 = arith.constant 24 : index
    %53 = vector.load %arg8[%c0_35, %c24] : memref<288x72xbf16, #tpu.memory_space<vmem>>, vector<288x8xbf16>
    tpu.vector_store %arg8[%c0_35, %c24], %52 {strides = array<i32>} : memref<288x72xbf16, #tpu.memory_space<vmem>>, vector<288x8xbf16>,
    %c19_36 = arith.constant 19 : index
    %c0_37 = arith.constant 0 : index
    %54 = vector.load %arg7[%c19_36, %c0_37] : memref<332x8xbf16, #tpu.memory_space<vmem>>, vector<288x8xbf16>
    %c0_38 = arith.constant 0 : index
    %c32 = arith.constant 32 : index
    %55 = vector.load %arg8[%c0_38, %c32] : memref<288x72xbf16, #tpu.memory_space<vmem>>, vector<288x8xbf16>
    tpu.vector_store %arg8[%c0_38, %c32], %54 {strides = array<i32>} : memref<288x72xbf16, #tpu.memory_space<vmem>>, vector<288x8xbf16>,
    %c20 = arith.constant 20 : index
    %c0_39 = arith.constant 0 : index
    %56 = vector.load %arg7[%c20, %c0_39] : memref<332x8xbf16, #tpu.memory_space<vmem>>, vector<288x8xbf16>
    %c0_40 = arith.constant 0 : index
    %c40 = arith.constant 40 : index
    %57 = vector.load %arg8[%c0_40, %c40] : memref<288x72xbf16, #tpu.memory_space<vmem>>, vector<288x8xbf16>
    tpu.vector_store %arg8[%c0_40, %c40], %56 {strides = array<i32>} : memref<288x72xbf16, #tpu.memory_space<vmem>>, vector<288x8xbf16>,
    %c36 = arith.constant 36 : index
    %c0_41 = arith.constant 0 : index
    %58 = vector.load %arg7[%c36, %c0_41] : memref<332x8xbf16, #tpu.memory_space<vmem>>, vector<288x8xbf16>
    %c0_42 = arith.constant 0 : index
    %c48 = arith.constant 48 : index
    %59 = vector.load %arg8[%c0_42, %c48] : memref<288x72xbf16, #tpu.memory_space<vmem>>, vector<288x8xbf16>
    tpu.vector_store %arg8[%c0_42, %c48], %58 {strides = array<i32>} : memref<288x72xbf16, #tpu.memory_space<vmem>>, vector<288x8xbf16>,
    %c37_43 = arith.constant 37 : index
    %c0_44 = arith.constant 0 : index
    %60 = vector.load %arg7[%c37_43, %c0_44] : memref<332x8xbf16, #tpu.memory_space<vmem>>, vector<288x8xbf16>
    %c0_45 = arith.constant 0 : index
    %c56 = arith.constant 56 : index
    %61 = vector.load %arg8[%c0_45, %c56] : memref<288x72xbf16, #tpu.memory_space<vmem>>, vector<288x8xbf16>
    tpu.vector_store %arg8[%c0_45, %c56], %60 {strides = array<i32>} : memref<288x72xbf16, #tpu.memory_space<vmem>>, vector<288x8xbf16>,
    %c38 = arith.constant 38 : index
    %c0_46 = arith.constant 0 : index
    %62 = vector.load %arg7[%c38, %c0_46] : memref<332x8xbf16, #tpu.memory_space<vmem>>, vector<288x8xbf16>
    %c0_47 = arith.constant 0 : index
    %c64 = arith.constant 64 : index
    %63 = vector.load %arg8[%c0_47, %c64] : memref<288x72xbf16, #tpu.memory_space<vmem>>, vector<288x8xbf16>
    tpu.vector_store %arg8[%c0_47, %c64], %62 {strides = array<i32>} : memref<288x72xbf16, #tpu.memory_space<vmem>>, vector<288x8xbf16>,
    %c0_48 = arith.constant 0 : index
    %c0_49 = arith.constant 0 : index
    %64 = vector.load %arg8[%c0_48, %c0_49] : memref<288x72xbf16, #tpu.memory_space<vmem>>, vector<288x72xbf16>
    %c0_50 = arith.constant 0 : index
    %c0_51 = arith.constant 0 : index
    %65 = vector.load %arg4[%c0_50, %c0_51] : memref<72x8xbf16, #tpu.memory_space<vmem>>, vector<72x8xbf16>
    %cst_52 = arith.constant dense<0.000000e+00> : vector<288x8xf32>
    %66 = tpu.matmul %64, %65, %cst_52 {dimension_numbers = #tpu.dot_dimension_numbers<[1], [0], [0], [1], [0, 0, 1, 1], [], []>} : vector<288x72xbf16>, vector<72x8xbf16>, vector<288x8xf32> -> vector<288x8xf32>
    %67 = vector.extract_strided_slice %66 {offsets = [0, 0], sizes = [16, 8], strides = [1, 1]} : vector<288x8xf32> to vector<16x8xf32>
    %68 = vector.extract_strided_slice %66 {offsets = [18, 0], sizes = [16, 8], strides = [1, 1]} : vector<288x8xf32> to vector<16x8xf32>
    %69 = vector.extract_strided_slice %66 {offsets = [36, 0], sizes = [16, 8], strides = [1, 1]} : vector<288x8xf32> to vector<16x8xf32>
    %70 = vector.extract_strided_slice %66 {offsets = [54, 0], sizes = [16, 8], strides = [1, 1]} : vector<288x8xf32> to vector<16x8xf32>
    %71 = vector.extract_strided_slice %66 {offsets = [72, 0], sizes = [16, 8], strides = [1, 1]} : vector<288x8xf32> to vector<16x8xf32>
    %72 = vector.extract_strided_slice %66 {offsets = [90, 0], sizes = [16, 8], strides = [1, 1]} : vector<288x8xf32> to vector<16x8xf32>
    %73 = vector.extract_strided_slice %66 {offsets = [108, 0], sizes = [16, 8], strides = [1, 1]} : vector<288x8xf32> to vector<16x8xf32>
    %74 = vector.extract_strided_slice %66 {offsets = [126, 0], sizes = [16, 8], strides = [1, 1]} : vector<288x8xf32> to vector<16x8xf32>
    %75 = vector.extract_strided_slice %66 {offsets = [144, 0], sizes = [16, 8], strides = [1, 1]} : vector<288x8xf32> to vector<16x8xf32>
    %76 = vector.extract_strided_slice %66 {offsets = [162, 0], sizes = [16, 8], strides = [1, 1]} : vector<288x8xf32> to vector<16x8xf32>
    %77 = vector.extract_strided_slice %66 {offsets = [180, 0], sizes = [16, 8], strides = [1, 1]} : vector<288x8xf32> to vector<16x8xf32>
    %78 = vector.extract_strided_slice %66 {offsets = [198, 0], sizes = [16, 8], strides = [1, 1]} : vector<288x8xf32> to vector<16x8xf32>
    %79 = vector.extract_strided_slice %66 {offsets = [216, 0], sizes = [16, 8], strides = [1, 1]} : vector<288x8xf32> to vector<16x8xf32>
    %80 = vector.extract_strided_slice %66 {offsets = [234, 0], sizes = [16, 8], strides = [1, 1]} : vector<288x8xf32> to vector<16x8xf32>
    %81 = vector.extract_strided_slice %66 {offsets = [252, 0], sizes = [16, 8], strides = [1, 1]} : vector<288x8xf32> to vector<16x8xf32>
    %82 = vector.extract_strided_slice %66 {offsets = [270, 0], sizes = [16, 8], strides = [1, 1]} : vector<288x8xf32> to vector<16x8xf32>
    %83 = tpu.concatenate %67, %68, %69, %70, %71, %72, %73, %74, %75, %76, %77, %78, %79, %80, %81, %82 in 0 : vector<16x8xf32>, vector<16x8xf32>, vector<16x8xf32>, vector<16x8xf32>, vector<16x8xf32>, vector<16x8xf32>, vector<16x8xf32>, vector<16x8xf32>, vector<16x8xf32>, vector<16x8xf32>, vector<16x8xf32>, vector<16x8xf32>, vector<16x8xf32>, vector<16x8xf32>, vector<16x8xf32>, vector<16x8xf32> -> vector<256x8xf32>
    %84 = vector.shape_cast %83 : vector<256x8xf32> to vector<1x16x16x8xf32>
    %85 = arith.truncf %84 : vector<1x16x16x8xf32> to vector<1x16x16x8xbf16>
    %c0_53 = arith.constant 0 : index
    %c0_54 = arith.constant 0 : index
    %c0_55 = arith.constant 0 : index
    %c0_56 = arith.constant 0 : index
    %86 = vector.load %arg5[%c0_53, %c0_54, %c0_55, %c0_56] : memref<1x16x16x8xbf16, #tpu.memory_space<vmem>>, vector<1x16x16x8xbf16>
    tpu.vector_store %arg5[%c0_53, %c0_54, %c0_55, %c0_56], %85 {strides = array<i32>} : memref<1x16x16x8xbf16, #tpu.memory_space<vmem>>, vector<1x16x16x8xbf16>,
    %cst_57 = arith.constant dense<0.000000e+00> : vector<8xf32>
    %87 = vector.multi_reduction <add>, %83, %cst_57 [0] : vector<256x8xf32> to vector<8xf32>
    %88 = vector.shape_cast %87 : vector<8xf32> to vector<1x8xf32>
    %c0_58 = arith.constant 0 : index
    %c0_59 = arith.constant 0 : index
    %c0_60 = arith.constant 0 : index
    %89 = vector.load %arg6[%c0_58, %c0_59, %c0_60] : memref<1x2x8xf32, #tpu.memory_space<vmem>>, vector<1x1x8xf32>
    %90 = vector.shape_cast %89 : vector<1x1x8xf32> to vector<1x8xf32>
    %91 = vector.shape_cast %88 : vector<1x8xf32> to vector<1x1x8xf32>
    tpu.vector_store %arg6[%c0_58, %c0_59, %c0_60], %91 {strides = array<i32>} : memref<1x2x8xf32, #tpu.memory_space<vmem>>, vector<1x1x8xf32>,
    %92 = arith.mulf %83, %83 : vector<256x8xf32>
    %cst_61 = arith.constant dense<0.000000e+00> : vector<8xf32>
    %93 = vector.multi_reduction <add>, %92, %cst_61 [0] : vector<256x8xf32> to vector<8xf32>
    %94 = vector.shape_cast %93 : vector<8xf32> to vector<1x8xf32>
    %c0_62 = arith.constant 0 : index
    %c1_63 = arith.constant 1 : index
    %c0_64 = arith.constant 0 : index
    %95 = vector.load %arg6[%c0_62, %c1_63, %c0_64] : memref<1x2x8xf32, #tpu.memory_space<vmem>>, vector<1x1x8xf32>
    %96 = vector.shape_cast %95 : vector<1x1x8xf32> to vector<1x8xf32>
    %97 = vector.shape_cast %94 : vector<1x8xf32> to vector<1x1x8xf32>
    tpu.vector_store %arg6[%c0_62, %c1_63, %c0_64], %97 {strides = array<i32>} : memref<1x2x8xf32, #tpu.memory_space<vmem>>, vector<1x1x8xf32>,
    return
  }
  func.func @transform_0(%arg0: i32) -> (i32, i32, i32, i32) {
    %c0_i32 = arith.constant 0 : i32
    %c0_i32_0 = arith.constant 0 : i32
    %c0_i32_1 = arith.constant 0 : i32
    %c0_i32_2 = arith.constant 0 : i32
    return %arg0, %c0_i32, %c0_i32_0, %c0_i32_1 : i32, i32, i32, i32
  }
  func.func @transform_1(%arg0: i32) -> (i32, i32) {
    %c0_i32 = arith.constant 0 : i32
    %c0_i32_0 = arith.constant 0 : i32
    %c0_i32_1 = arith.constant 0 : i32
    return %c0_i32, %c0_i32_0 : i32, i32
  }
  func.func @transform_2(%arg0: i32) -> (i32, i32) {
    %c0_i32 = arith.constant 0 : i32
    %c0_i32_0 = arith.constant 0 : i32
    %c0_i32_1 = arith.constant 0 : i32
    return %c0_i32, %c0_i32_0 : i32, i32
  }
  func.func @transform_3(%arg0: i32) -> (i32, i32) {
    %c0_i32 = arith.constant 0 : i32
    %c0_i32_0 = arith.constant 0 : i32
    %c0_i32_1 = arith.constant 0 : i32
    return %c0_i32, %c0_i32_0 : i32, i32
  }
  func.func @transform_4(%arg0: i32) -> (i32, i32, i32, i32) {
    %c0_i32 = arith.constant 0 : i32
    %c0_i32_0 = arith.constant 0 : i32
    %c0_i32_1 = arith.constant 0 : i32
    %c0_i32_2 = arith.constant 0 : i32
    return %arg0, %c0_i32, %c0_i32_0, %c0_i32_1 : i32, i32, i32, i32
  }
  func.func @transform_5(%arg0: i32) -> (i32, i32, i32) {
    %c0_i32 = arith.constant 0 : i32
    %c0_i32_0 = arith.constant 0 : i32
    %c0_i32_1 = arith.constant 0 : i32
    return %arg0, %c0_i32, %c0_i32_0 : i32, i32, i32
  }
}

module attributes {stable_mosaic.version = 11 : i64} {
  func.func @_conv1_kernel(%arg0: i32, %arg1: i32, %arg2: memref<1x8x16x32xf32, #tpu.memory_space<vmem>>, %arg3: memref<32x8xbf16, #tpu.memory_space<vmem>>, %arg4: memref<1x8x16x8xbf16, #tpu.memory_space<vmem>>, %arg5: memref<1x1x2x8xf32, #tpu.memory_space<vmem>>) attributes {dimension_semantics = [#tpu.dimension_semantics<parallel>, #tpu.dimension_semantics<parallel>], iteration_bounds = array<i64: 2, 2>, scalar_prefetch = 0 : i64, scratch_operands = 0 : i64, tpu.core_type = #tpu.core_type<tc>, window_params = [{transform_indices = @transform_0, window_bounds = array<i64: 1, 8, 16, 32>}, {pipeline_mode = #tpu.pipeline_mode<synchronous>, transform_indices = @transform_1, window_bounds = array<i64: 32, 8>}, {transform_indices = @transform_2, window_bounds = array<i64: 1, 8, 16, 8>}, {transform_indices = @transform_3, window_bounds = array<i64: 1, 1, 2, 8>}]} {
    %c0 = arith.constant 0 : index
    %c0_0 = arith.constant 0 : index
    %c0_1 = arith.constant 0 : index
    %c0_2 = arith.constant 0 : index
    %0 = vector.load %arg2[%c0, %c0_0, %c0_1, %c0_2] : memref<1x8x16x32xf32, #tpu.memory_space<vmem>>, vector<1x8x16x32xf32>
    %1 = vector.shape_cast %0 : vector<1x8x16x32xf32> to vector<128x32xf32>
    %2 = arith.truncf %1 : vector<128x32xf32> to vector<128x32xbf16>
    %c0_3 = arith.constant 0 : index
    %c0_4 = arith.constant 0 : index
    %3 = vector.load %arg3[%c0_3, %c0_4] : memref<32x8xbf16, #tpu.memory_space<vmem>>, vector<32x8xbf16>
    %cst = arith.constant dense<0.000000e+00> : vector<128x8xf32>
    %4 = tpu.matmul %2, %3, %cst {dimension_numbers = #tpu.dot_dimension_numbers<[1], [0], [0], [1], [0, 0, 1, 1], [], []>} : vector<128x32xbf16>, vector<32x8xbf16>, vector<128x8xf32> -> vector<128x8xf32>
    %5 = vector.shape_cast %4 : vector<128x8xf32> to vector<1x8x16x8xf32>
    %6 = arith.truncf %5 : vector<1x8x16x8xf32> to vector<1x8x16x8xbf16>
    %c0_5 = arith.constant 0 : index
    %c0_6 = arith.constant 0 : index
    %c0_7 = arith.constant 0 : index
    %c0_8 = arith.constant 0 : index
    %7 = vector.load %arg4[%c0_5, %c0_6, %c0_7, %c0_8] : memref<1x8x16x8xbf16, #tpu.memory_space<vmem>>, vector<1x8x16x8xbf16>
    tpu.vector_store %arg4[%c0_5, %c0_6, %c0_7, %c0_8], %6 {strides = array<i32>} : memref<1x8x16x8xbf16, #tpu.memory_space<vmem>>, vector<1x8x16x8xbf16>,
    %cst_9 = arith.constant dense<0.000000e+00> : vector<8xf32>
    %8 = vector.multi_reduction <add>, %4, %cst_9 [0] : vector<128x8xf32> to vector<8xf32>
    %9 = vector.shape_cast %8 : vector<8xf32> to vector<1x8xf32>
    %c0_10 = arith.constant 0 : index
    %c0_11 = arith.constant 0 : index
    %c0_12 = arith.constant 0 : index
    %c0_13 = arith.constant 0 : index
    %10 = vector.load %arg5[%c0_10, %c0_11, %c0_12, %c0_13] : memref<1x1x2x8xf32, #tpu.memory_space<vmem>>, vector<1x1x1x8xf32>
    %11 = vector.shape_cast %10 : vector<1x1x1x8xf32> to vector<1x8xf32>
    %12 = vector.shape_cast %9 : vector<1x8xf32> to vector<1x1x1x8xf32>
    tpu.vector_store %arg5[%c0_10, %c0_11, %c0_12, %c0_13], %12 {strides = array<i32>} : memref<1x1x2x8xf32, #tpu.memory_space<vmem>>, vector<1x1x1x8xf32>,
    %13 = arith.mulf %4, %4 : vector<128x8xf32>
    %cst_14 = arith.constant dense<0.000000e+00> : vector<8xf32>
    %14 = vector.multi_reduction <add>, %13, %cst_14 [0] : vector<128x8xf32> to vector<8xf32>
    %15 = vector.shape_cast %14 : vector<8xf32> to vector<1x8xf32>
    %c0_15 = arith.constant 0 : index
    %c0_16 = arith.constant 0 : index
    %c1 = arith.constant 1 : index
    %c0_17 = arith.constant 0 : index
    %16 = vector.load %arg5[%c0_15, %c0_16, %c1, %c0_17] : memref<1x1x2x8xf32, #tpu.memory_space<vmem>>, vector<1x1x1x8xf32>
    %17 = vector.shape_cast %16 : vector<1x1x1x8xf32> to vector<1x8xf32>
    %18 = vector.shape_cast %15 : vector<1x8xf32> to vector<1x1x1x8xf32>
    tpu.vector_store %arg5[%c0_15, %c0_16, %c1, %c0_17], %18 {strides = array<i32>} : memref<1x1x2x8xf32, #tpu.memory_space<vmem>>, vector<1x1x1x8xf32>,
    return
  }
  func.func @transform_0(%arg0: i32, %arg1: i32) -> (i32, i32, i32, i32) {
    %c0_i32 = arith.constant 0 : i32
    %c0_i32_0 = arith.constant 0 : i32
    %c0_i32_1 = arith.constant 0 : i32
    return %arg0, %arg1, %c0_i32, %c0_i32_0 : i32, i32, i32, i32
  }
  func.func @transform_1(%arg0: i32, %arg1: i32) -> (i32, i32) {
    %c0_i32 = arith.constant 0 : i32
    %c0_i32_0 = arith.constant 0 : i32
    %c0_i32_1 = arith.constant 0 : i32
    return %c0_i32, %c0_i32_0 : i32, i32
  }
  func.func @transform_2(%arg0: i32, %arg1: i32) -> (i32, i32, i32, i32) {
    %c0_i32 = arith.constant 0 : i32
    %c0_i32_0 = arith.constant 0 : i32
    %c0_i32_1 = arith.constant 0 : i32
    return %arg0, %arg1, %c0_i32, %c0_i32_0 : i32, i32, i32, i32
  }
  func.func @transform_3(%arg0: i32, %arg1: i32) -> (i32, i32, i32, i32) {
    %c0_i32 = arith.constant 0 : i32
    %c0_i32_0 = arith.constant 0 : i32
    %c0_i32_1 = arith.constant 0 : i32
    return %arg0, %arg1, %c0_i32, %c0_i32_0 : i32, i32, i32, i32
  }
}

module attributes {stable_mosaic.version = 11 : i64} {
  func.func @_conv3_kernel(%arg0: i32, %arg1: i32, %arg2: memref<1x8x16x8xbf16, #tpu.memory_space<vmem>>, %arg3: memref<1x8xf32, #tpu.memory_space<vmem>>, %arg4: memref<1x8xf32, #tpu.memory_space<vmem>>, %arg5: memref<8x32xbf16, #tpu.memory_space<vmem>>, %arg6: memref<1x8x16x32xbf16, #tpu.memory_space<vmem>>, %arg7: memref<1x1x2x32xf32, #tpu.memory_space<vmem>>) attributes {dimension_semantics = [#tpu.dimension_semantics<parallel>, #tpu.dimension_semantics<parallel>], iteration_bounds = array<i64: 2, 2>, scalar_prefetch = 0 : i64, scratch_operands = 0 : i64, tpu.core_type = #tpu.core_type<tc>, window_params = [{transform_indices = @transform_0, window_bounds = array<i64: 1, 8, 16, 8>}, {pipeline_mode = #tpu.pipeline_mode<synchronous>, transform_indices = @transform_1, window_bounds = array<i64: 1, 8>}, {pipeline_mode = #tpu.pipeline_mode<synchronous>, transform_indices = @transform_2, window_bounds = array<i64: 1, 8>}, {pipeline_mode = #tpu.pipeline_mode<synchronous>, transform_indices = @transform_3, window_bounds = array<i64: 8, 32>}, {transform_indices = @transform_4, window_bounds = array<i64: 1, 8, 16, 32>}, {transform_indices = @transform_5, window_bounds = array<i64: 1, 1, 2, 32>}]} {
    %c0 = arith.constant 0 : index
    %c0_0 = arith.constant 0 : index
    %c0_1 = arith.constant 0 : index
    %c0_2 = arith.constant 0 : index
    %0 = vector.load %arg2[%c0, %c0_0, %c0_1, %c0_2] : memref<1x8x16x8xbf16, #tpu.memory_space<vmem>>, vector<1x8x16x8xbf16>
    %1 = arith.extf %0 : vector<1x8x16x8xbf16> to vector<1x8x16x8xf32>
    %2 = vector.shape_cast %1 : vector<1x8x16x8xf32> to vector<128x8xf32>
    %c0_3 = arith.constant 0 : index
    %c0_4 = arith.constant 0 : index
    %3 = vector.load %arg3[%c0_3, %c0_4] : memref<1x8xf32, #tpu.memory_space<vmem>>, vector<1x8xf32>
    %4 = vector.broadcast %3 : vector<1x8xf32> to vector<128x8xf32>
    %5 = arith.mulf %2, %4 : vector<128x8xf32>
    %c0_5 = arith.constant 0 : index
    %c0_6 = arith.constant 0 : index
    %6 = vector.load %arg4[%c0_5, %c0_6] : memref<1x8xf32, #tpu.memory_space<vmem>>, vector<1x8xf32>
    %7 = vector.broadcast %6 : vector<1x8xf32> to vector<128x8xf32>
    %8 = arith.addf %5, %7 : vector<128x8xf32>
    %cst = arith.constant 0.000000e+00 : f32
    %9 = vector.broadcast %cst : f32 to vector<128x8xf32>
    %10 = arith.maximumf %8, %9 : vector<128x8xf32>
    %11 = arith.truncf %10 : vector<128x8xf32> to vector<128x8xbf16>
    %c0_7 = arith.constant 0 : index
    %c0_8 = arith.constant 0 : index
    %12 = vector.load %arg5[%c0_7, %c0_8] : memref<8x32xbf16, #tpu.memory_space<vmem>>, vector<8x32xbf16>
    %cst_9 = arith.constant dense<0.000000e+00> : vector<128x32xf32>
    %13 = tpu.matmul %11, %12, %cst_9 {dimension_numbers = #tpu.dot_dimension_numbers<[1], [0], [0], [1], [0, 0, 1, 1], [], []>} : vector<128x8xbf16>, vector<8x32xbf16>, vector<128x32xf32> -> vector<128x32xf32>
    %14 = vector.shape_cast %13 : vector<128x32xf32> to vector<1x8x16x32xf32>
    %15 = arith.truncf %14 : vector<1x8x16x32xf32> to vector<1x8x16x32xbf16>
    %c0_10 = arith.constant 0 : index
    %c0_11 = arith.constant 0 : index
    %c0_12 = arith.constant 0 : index
    %c0_13 = arith.constant 0 : index
    %16 = vector.load %arg6[%c0_10, %c0_11, %c0_12, %c0_13] : memref<1x8x16x32xbf16, #tpu.memory_space<vmem>>, vector<1x8x16x32xbf16>
    tpu.vector_store %arg6[%c0_10, %c0_11, %c0_12, %c0_13], %15 {strides = array<i32>} : memref<1x8x16x32xbf16, #tpu.memory_space<vmem>>, vector<1x8x16x32xbf16>,
    %cst_14 = arith.constant dense<0.000000e+00> : vector<32xf32>
    %17 = vector.multi_reduction <add>, %13, %cst_14 [0] : vector<128x32xf32> to vector<32xf32>
    %18 = vector.shape_cast %17 : vector<32xf32> to vector<1x32xf32>
    %c0_15 = arith.constant 0 : index
    %c0_16 = arith.constant 0 : index
    %c0_17 = arith.constant 0 : index
    %c0_18 = arith.constant 0 : index
    %19 = vector.load %arg7[%c0_15, %c0_16, %c0_17, %c0_18] : memref<1x1x2x32xf32, #tpu.memory_space<vmem>>, vector<1x1x1x32xf32>
    %20 = vector.shape_cast %19 : vector<1x1x1x32xf32> to vector<1x32xf32>
    %21 = vector.shape_cast %18 : vector<1x32xf32> to vector<1x1x1x32xf32>
    tpu.vector_store %arg7[%c0_15, %c0_16, %c0_17, %c0_18], %21 {strides = array<i32>} : memref<1x1x2x32xf32, #tpu.memory_space<vmem>>, vector<1x1x1x32xf32>,
    %22 = arith.mulf %13, %13 : vector<128x32xf32>
    %cst_19 = arith.constant dense<0.000000e+00> : vector<32xf32>
    %23 = vector.multi_reduction <add>, %22, %cst_19 [0] : vector<128x32xf32> to vector<32xf32>
    %24 = vector.shape_cast %23 : vector<32xf32> to vector<1x32xf32>
    %c0_20 = arith.constant 0 : index
    %c0_21 = arith.constant 0 : index
    %c1 = arith.constant 1 : index
    %c0_22 = arith.constant 0 : index
    %25 = vector.load %arg7[%c0_20, %c0_21, %c1, %c0_22] : memref<1x1x2x32xf32, #tpu.memory_space<vmem>>, vector<1x1x1x32xf32>
    %26 = vector.shape_cast %25 : vector<1x1x1x32xf32> to vector<1x32xf32>
    %27 = vector.shape_cast %24 : vector<1x32xf32> to vector<1x1x1x32xf32>
    tpu.vector_store %arg7[%c0_20, %c0_21, %c1, %c0_22], %27 {strides = array<i32>} : memref<1x1x2x32xf32, #tpu.memory_space<vmem>>, vector<1x1x1x32xf32>,
    return
  }
  func.func @transform_0(%arg0: i32, %arg1: i32) -> (i32, i32, i32, i32) {
    %c0_i32 = arith.constant 0 : i32
    %c0_i32_0 = arith.constant 0 : i32
    %c0_i32_1 = arith.constant 0 : i32
    return %arg0, %arg1, %c0_i32, %c0_i32_0 : i32, i32, i32, i32
  }
  func.func @transform_1(%arg0: i32, %arg1: i32) -> (i32, i32) {
    %c0_i32 = arith.constant 0 : i32
    %c0_i32_0 = arith.constant 0 : i32
    %c0_i32_1 = arith.constant 0 : i32
    return %c0_i32, %c0_i32_0 : i32, i32
  }
  func.func @transform_2(%arg0: i32, %arg1: i32) -> (i32, i32) {
    %c0_i32 = arith.constant 0 : i32
    %c0_i32_0 = arith.constant 0 : i32
    %c0_i32_1 = arith.constant 0 : i32
    return %c0_i32, %c0_i32_0 : i32, i32
  }
  func.func @transform_3(%arg0: i32, %arg1: i32) -> (i32, i32) {
    %c0_i32 = arith.constant 0 : i32
    %c0_i32_0 = arith.constant 0 : i32
    %c0_i32_1 = arith.constant 0 : i32
    return %c0_i32, %c0_i32_0 : i32, i32
  }
  func.func @transform_4(%arg0: i32, %arg1: i32) -> (i32, i32, i32, i32) {
    %c0_i32 = arith.constant 0 : i32
    %c0_i32_0 = arith.constant 0 : i32
    %c0_i32_1 = arith.constant 0 : i32
    return %arg0, %arg1, %c0_i32, %c0_i32_0 : i32, i32, i32, i32
  }
  func.func @transform_5(%arg0: i32, %arg1: i32) -> (i32, i32, i32, i32) {
    %c0_i32 = arith.constant 0 : i32
    %c0_i32_0 = arith.constant 0 : i32
    %c0_i32_1 = arith.constant 0 : i32
    return %arg0, %arg1, %c0_i32, %c0_i32_0 : i32, i32, i32, i32
  }
}

module attributes {stable_mosaic.version = 11 : i64} {
  func.func @_residual_kernel(%arg0: i32, %arg1: i32, %arg2: memref<1x8x16x32xbf16, #tpu.memory_space<vmem>>, %arg3: memref<1x8x16x32xf32, #tpu.memory_space<vmem>>, %arg4: memref<1x32xf32, #tpu.memory_space<vmem>>, %arg5: memref<1x32xf32, #tpu.memory_space<vmem>>, %arg6: memref<1x8x16x32xf32, #tpu.memory_space<vmem>>) attributes {dimension_semantics = [#tpu.dimension_semantics<parallel>, #tpu.dimension_semantics<parallel>], iteration_bounds = array<i64: 2, 2>, scalar_prefetch = 0 : i64, scratch_operands = 0 : i64, tpu.core_type = #tpu.core_type<tc>, window_params = [{transform_indices = @transform_0, window_bounds = array<i64: 1, 8, 16, 32>}, {transform_indices = @transform_1, window_bounds = array<i64: 1, 8, 16, 32>}, {pipeline_mode = #tpu.pipeline_mode<synchronous>, transform_indices = @transform_2, window_bounds = array<i64: 1, 32>}, {pipeline_mode = #tpu.pipeline_mode<synchronous>, transform_indices = @transform_3, window_bounds = array<i64: 1, 32>}, {transform_indices = @transform_4, window_bounds = array<i64: 1, 8, 16, 32>}]} {
    %c0 = arith.constant 0 : index
    %c0_0 = arith.constant 0 : index
    %c0_1 = arith.constant 0 : index
    %c0_2 = arith.constant 0 : index
    %0 = vector.load %arg2[%c0, %c0_0, %c0_1, %c0_2] : memref<1x8x16x32xbf16, #tpu.memory_space<vmem>>, vector<1x8x16x32xbf16>
    %1 = arith.extf %0 : vector<1x8x16x32xbf16> to vector<1x8x16x32xf32>
    %2 = vector.shape_cast %1 : vector<1x8x16x32xf32> to vector<128x32xf32>
    %c0_3 = arith.constant 0 : index
    %c0_4 = arith.constant 0 : index
    %3 = vector.load %arg4[%c0_3, %c0_4] : memref<1x32xf32, #tpu.memory_space<vmem>>, vector<1x32xf32>
    %4 = vector.broadcast %3 : vector<1x32xf32> to vector<128x32xf32>
    %5 = arith.mulf %2, %4 : vector<128x32xf32>
    %c0_5 = arith.constant 0 : index
    %c0_6 = arith.constant 0 : index
    %6 = vector.load %arg5[%c0_5, %c0_6] : memref<1x32xf32, #tpu.memory_space<vmem>>, vector<1x32xf32>
    %7 = vector.broadcast %6 : vector<1x32xf32> to vector<128x32xf32>
    %8 = arith.addf %5, %7 : vector<128x32xf32>
    %c0_7 = arith.constant 0 : index
    %c0_8 = arith.constant 0 : index
    %c0_9 = arith.constant 0 : index
    %c0_10 = arith.constant 0 : index
    %9 = vector.load %arg3[%c0_7, %c0_8, %c0_9, %c0_10] : memref<1x8x16x32xf32, #tpu.memory_space<vmem>>, vector<1x8x16x32xf32>
    %10 = vector.shape_cast %9 : vector<1x8x16x32xf32> to vector<128x32xf32>
    %11 = arith.addf %8, %10 : vector<128x32xf32>
    %cst = arith.constant 0.000000e+00 : f32
    %12 = vector.broadcast %cst : f32 to vector<128x32xf32>
    %13 = arith.maximumf %11, %12 : vector<128x32xf32>
    %14 = vector.shape_cast %13 : vector<128x32xf32> to vector<1x8x16x32xf32>
    %c0_11 = arith.constant 0 : index
    %c0_12 = arith.constant 0 : index
    %c0_13 = arith.constant 0 : index
    %c0_14 = arith.constant 0 : index
    %15 = vector.load %arg6[%c0_11, %c0_12, %c0_13, %c0_14] : memref<1x8x16x32xf32, #tpu.memory_space<vmem>>, vector<1x8x16x32xf32>
    tpu.vector_store %arg6[%c0_11, %c0_12, %c0_13, %c0_14], %14 {strides = array<i32>} : memref<1x8x16x32xf32, #tpu.memory_space<vmem>>, vector<1x8x16x32xf32>,
    return
  }
  func.func @transform_0(%arg0: i32, %arg1: i32) -> (i32, i32, i32, i32) {
    %c0_i32 = arith.constant 0 : i32
    %c0_i32_0 = arith.constant 0 : i32
    %c0_i32_1 = arith.constant 0 : i32
    return %arg0, %arg1, %c0_i32, %c0_i32_0 : i32, i32, i32, i32
  }
  func.func @transform_1(%arg0: i32, %arg1: i32) -> (i32, i32, i32, i32) {
    %c0_i32 = arith.constant 0 : i32
    %c0_i32_0 = arith.constant 0 : i32
    %c0_i32_1 = arith.constant 0 : i32
    return %arg0, %arg1, %c0_i32, %c0_i32_0 : i32, i32, i32, i32
  }
  func.func @transform_2(%arg0: i32, %arg1: i32) -> (i32, i32) {
    %c0_i32 = arith.constant 0 : i32
    %c0_i32_0 = arith.constant 0 : i32
    %c0_i32_1 = arith.constant 0 : i32
    return %c0_i32, %c0_i32_0 : i32, i32
  }
  func.func @transform_3(%arg0: i32, %arg1: i32) -> (i32, i32) {
    %c0_i32 = arith.constant 0 : i32
    %c0_i32_0 = arith.constant 0 : i32
    %c0_i32_1 = arith.constant 0 : i32
    return %c0_i32, %c0_i32_0 : i32, i32
  }
  func.func @transform_4(%arg0: i32, %arg1: i32) -> (i32, i32, i32, i32) {
    %c0_i32 = arith.constant 0 : i32
    %c0_i32_0 = arith.constant 0 : i32
    %c0_i32_1 = arith.constant 0 : i32
    return %arg0, %arg1, %c0_i32, %c0_i32_0 : i32, i32, i32, i32
  }
}

</mosaic_0001>

<llo_original>
// kernel: _lambda_.4
$region0: #{_lambda_.4}
  #allocation0 [shape = 'u32[]', space=smem, size = 0x4, offset = 0x4, fixed_abs, tag = 'smem constant byte address 0x4 - core index']
  #allocation1 [shape = 'u32[144,128]{1,0:T(1,128)}', space=vmem, size = 0x12000, scoped, tag = 'internal scratch']
  %s0 = inlined_call_operand.hbm [shape: f32[2,16,16,32], index: 0, kind: input, shape index: {}]
  %s1 = inlined_call_operand.vmem [shape: bf16[32,8], index: 1, kind: input, shape index: {}]
  %s2 = inlined_call_operand.vmem [shape: bf16[2,16,16,8], index: 2, kind: output, shape index: {0}]
  %s3 = inlined_call_operand.vmem [shape: f32[2,2,2,8], index: 3, kind: output, shape index: {1}]
  %4 = xla_tuple %s2, %s3
  %s5 = sld [smem:[#allocation0]]
  $region53: #{_lambda_.4} parent=0
    _
  %s7 = ssub.s32 1, %s5
  %s8 = scalar_select 0, %s7, %s5
  $region1: #{_lambda_.4} parent=0
    #allocation2 [shape = 'u8[131072]{0}', space=vmem, size = 0x20000, scoped, tag = 'input window, operand 0']
    #allocation3 [shape = 's32[2]{0}', space=sflag, size = 0x8, scoped, tag = 'scoped memory for _lambda_.4']
    %9 = vsyncpa [#allocation3], 0
    %s10 = scalar_lea.sflag [#allocation3], 1
    %11 = vsyncpa %s10, 0
    loop: start=0, step=1, limit=6
    $region2: #{_lambda_.4} parent=1 // loop_pre_header
      _
    $region3: #{_lambda_.4} parent=1 // loop_header
      %s13 = sphi 0, %s17
      %p14 = scmp.ge.s32.totalorder %s13, 6
      %s20 = sphi 0, %s32
      %s21 = sphi 0, %s28
      %s22 = sphi 0, %s20
      %s23 = sphi 0, %s21
      %s24 = sphi 0, %s22
      %s25 = sphi 0, %s23
      %s37 = sphi 0, %s39
      %s40 = sphi 0, %s37
      %s41 = sphi 0, %s40
      %s57 = sphi 0, %s41
      %s61 = sphi 0, %s61
      %s63 = sphi 0, %s61
      %s64 = sphi 0, %s63
      %s78 = sphi 0, %s64
      %s86 = sphi 0, %s88
      %s89 = sphi 0, %s86
      %s90 = sphi 0, %s89
      %s106 = sphi 0, %s90
      %s114 = sphi 0, %s116
      %s117 = sphi 0, %s114
      %s118 = sphi 0, %s117
      %s134 = sphi 0, %s118
    $region4: #{_lambda_.4} parent=1 // loop_header_branch
      %16 = sbr.rel (%p14) target = $region8
    $region5: #{_lambda_.4} parent=1 // loop_body
      %s18 = ssub.s32 %s13, 1
      %s19 = ssub.s32 %s13, 2
      %s26 = sadd.s32 1, %s21
      %p27 = scmp.ge.s32.totalorder %s26, 2
      %s28 = scalar_select %p27, 0, %s26
      %s29 = sadd.s32 1, %s20
      %s30 = scalar_select %p27, %s29, %s20
      %p31 = scmp.ge.s32.totalorder %s30, 2
      %s32 = scalar_select %p31, 0, %s30
      %s33 = ssub.s32 %s20, %s32
      %s34 = ssub.s32 %s21, %s28
      %s35 = sor.u32 %s33, %s34
      %p36 = scmp.eq.s32.totalorder %s35, 0
      %s38 = sadd.s32 %s37, 1
      %s39 = scalar_select %p36, %s37, %s38
      %p42 = pneg %p36
      %p43 = scmp.eq.s32.totalorder %s13, 3
      %p44 = por %p42, %p43
      %p45 = scmp.ne.s32.totalorder %s37, %s40
      %p46 = scmp.eq.s32.totalorder %s13, 0
      %p47 = por %p45, %p46
      %p48 = scmp.ne.s32.totalorder %s37, %s40
      %p49 = scmp.eq.s32.totalorder %s18, 3
      %p50 = por %p48, %p49
      %p51 = scmp.ne.s32.totalorder %s40, %s41
      %p52 = scmp.eq.s32.totalorder %s18, 0
      %p53 = por %p51, %p52
      %p54 = scmp.ne.s32.totalorder %s40, %s41
      %p55 = scmp.eq.s32.totalorder %s19, 3
      %p56 = por %p54, %p55
      %p58 = scmp.ne.s32.totalorder %s41, %s57
      %p59 = scmp.eq.s32.totalorder %s19, 0
      %p60 = por %p58, %p59
      %s62 = sadd.s32 %s61, 1
      %p65 = scmp.eq.s32.totalorder %s13, 3
      %p66 = scmp.ne.s32.totalorder %s61, %s63
      %p67 = scmp.eq.s32.totalorder %s13, 0
      %p68 = por %p66, %p67
      %p69 = scmp.ne.s32.totalorder %s61, %s63
      %p70 = scmp.eq.s32.totalorder %s18, 3
      %p71 = por %p69, %p70
      %p72 = scmp.ne.s32.totalorder %s63, %s64
      %p73 = scmp.eq.s32.totalorder %s18, 0
      %p74 = por %p72, %p73
      %p75 = scmp.ne.s32.totalorder %s63, %s64
      %p76 = scmp.eq.s32.totalorder %s19, 3
      %p77 = por %p75, %p76
      %p79 = scmp.ne.s32.totalorder %s64, %s78
      %p80 = scmp.eq.s32.totalorder %s19, 0
      %p81 = por %p79, %p80
      %s82 = ssub.s32 %s20, %s32
      %s83 = ssub.s32 %s21, %s28
      %s84 = sor.u32 %s82, %s83
      %p85 = scmp.eq.s32.totalorder %s84, 0
      %s87 = sadd.s32 %s86, 1
      %s88 = scalar_select %p85, %s86, %s87
      %p91 = pneg %p85
      %p92 = scmp.eq.s32.totalorder %s13, 3
      %p93 = por %p91, %p92
      %p94 = scmp.ne.s32.totalorder %s86, %s89
      %p95 = scmp.eq.s32.totalorder %s13, 0
      %p96 = por %p94, %p95
      %p97 = scmp.ne.s32.totalorder %s86, %s89
      %p98 = scmp.eq.s32.totalorder %s18, 3
      %p99 = por %p97, %p98
      %p100 = scmp.ne.s32.totalorder %s89, %s90
      %p101 = scmp.eq.s32.totalorder %s18, 0
      %p102 = por %p100, %p101
      %p103 = scmp.ne.s32.totalorder %s89, %s90
      %p104 = scmp.eq.s32.totalorder %s19, 3
      %p105 = por %p103, %p104
      %p107 = scmp.ne.s32.totalorder %s90, %s106
      %p108 = scmp.eq.s32.totalorder %s19, 0
      %p109 = por %p107, %p108
      %s110 = ssub.s32 %s20, %s32
      %s111 = ssub.s32 %s21, %s28
      %s112 = sor.u32 %s110, %s111
      %p113 = scmp.eq.s32.totalorder %s112, 0
      %s115 = sadd.s32 %s114, 1
      %s116 = scalar_select %p113, %s114, %s115
      %p119 = pneg %p113
      %p120 = scmp.eq.s32.totalorder %s13, 3
      %p121 = por %p119, %p120
      %p122 = scmp.ne.s32.totalorder %s114, %s117
      %p123 = scmp.eq.s32.totalorder %s13, 0
      %p124 = por %p122, %p123
      %p125 = scmp.ne.s32.totalorder %s114, %s117
      %p126 = scmp.eq.s32.totalorder %s18, 3
      %p127 = por %p125, %p126
      %p128 = scmp.ne.s32.totalorder %s117, %s118
      %p129 = scmp.eq.s32.totalorder %s18, 0
      %p130 = por %p128, %p129
      %p131 = scmp.ne.s32.totalorder %s117, %s118
      %p132 = scmp.eq.s32.totalorder %s19, 3
      %p133 = por %p131, %p132
      %p135 = scmp.ne.s32.totalorder %s118, %s134
      %p136 = scmp.eq.s32.totalorder %s19, 0
      %p137 = por %p135, %p136
      %p138 = scmp.le.s32.totalorder 1, %s13
      %p139 = scmp.lt.s32.totalorder %s13, 5
      %p140 = pnand %p138, %p139
      %p141 = pneg %p140
      // Predicated region
      $region9: #{_lambda_.4} parent=5 // pred_check
        _
      $region10: #{_lambda_.4} parent=5 // pred_check_branch
        %143 = sbr.rel (%p140) target = $region12
      $region11: #{_lambda_.4} parent=5 // pred_region
        %s144 = ssub.s32 %s13, 1
        // Predicated region
        $region13: #{_lambda_.4} parent=11 // pred_check
          %p145 = pneg %p74
        $region14: #{_lambda_.4} parent=11 // pred_check_branch
          %147 = sbr.rel (%p145) target = $region16
        $region15: #{_lambda_.4} parent=11 // pred_region
          _
        $region16: #{_lambda_.4} parent=11 // pred_fallthru
          _
      $region12: #{_lambda_.4} parent=5 // pred_fallthru
        _
      %p148 = scmp.lt.s32.totalorder %s13, 4
      // Predicated region
      $region17: #{_lambda_.4} parent=5 // pred_check
        %p149 = pneg %p148
      $region18: #{_lambda_.4} parent=5 // pred_check_branch
        %151 = sbr.rel (%p149) target = $region20
      $region19: #{_lambda_.4} parent=5 // pred_region
        // Predicated region
        $region21: #{_lambda_.4} parent=19 // pred_check
          %p152 = pneg %p47
        $region22: #{_lambda_.4} parent=19 // pred_check_branch
          %154 = sbr.rel (%p152) target = $region24
        $region23: #{_lambda_.4} parent=19 // pred_region
          %s155 = sand.u32 %s37, 1
          %s156 = scalar_lea.sflag [#allocation3], %s155
          %s157 = sand.u32 %s37, 1
          %s158 = smul.addr %s157, 128
          %s159 = scalar_lea.vmem [#allocation2], %s158
          %s160 = smul.u32 8, %s21
          %s162 = ssub.s32 2048, 2048
          %163 = vsyncadd %s156, %s162
          %s164 = smul.addr %s160, 2
          %s165 = smul.addr %s20, 32
          %s166 = sadd.s32 %s164, %s165
          %s167 = smul.addr %s166, 128
          %s168 = scalar_lea.hbm %s0, %s167
          %s169 = sshll.u32 %s159, 4
          %s170 = int_to_ptr.vmem [resolvable:$true] %s169
          %175 = dma.hbm_to_vmem [thread:$0]  %s168, 2048, %s170, %s156, 128, 128, 8
        $region24: #{_lambda_.4} parent=19 // pred_fallthru
          _
      $region20: #{_lambda_.4} parent=5 // pred_fallthru
        _
      %p176 = scmp.le.s32.totalorder 1, %s13
      %p177 = scmp.lt.s32.totalorder %s13, 5
      %p178 = pnand %p176, %p177
      %p179 = pneg %p178
      // Predicated region
      $region25: #{_lambda_.4} parent=5 // pred_check
        _
      $region26: #{_lambda_.4} parent=5 // pred_check_branch
        %181 = sbr.rel (%p178) target = $region28
      $region27: #{_lambda_.4} parent=5 // pred_region
        %s182 = ssub.s32 %s13, 1
        %s183 = sand.u32 %s40, 1
        %s184 = scalar_lea.sflag [#allocation3], %s183
        %s185 = sand.u32 %s40, 1
        %s186 = smul.addr %s185, 128
        %s187 = scalar_lea.vmem [#allocation2], %s186
        // Predicated region
        $region29: #{_lambda_.4} parent=27 // pred_check
          %p188 = pneg %p53
        $region30: #{_lambda_.4} parent=27 // pred_check_branch
          %190 = sbr.rel (%p188) target = $region32
        $region31: #{_lambda_.4} parent=27 // pred_region
          %191 = dma.done %s184, 2048
        $region32: #{_lambda_.4} parent=27 // pred_fallthru
          _
        %s192 = sand.u32 %s40, 1
        %s193 = scalar_lea.sflag [#allocation3], %s192
        %s194 = sand.u32 %s40, 1
        %s195 = smul.addr %s194, 128
        %s196 = scalar_lea.vmem [#allocation2], %s195
        %p197 = pneg %p53
        %p198 = pneg %p50
        %p199 = pneg %p74
        %p200 = pneg %p71
        %p201 = pneg %p102
        %p202 = pneg %p99
        %s203 = smul.u32 8, %s23
        %p204 = scmp.lt.s32.totalorder %s22, 1
        %s205 = scalar_select %p204, %s22, 1
        %p206 = scmp.lt.s32.totalorder %s203, 15
        %s207 = scalar_select %p206, %s203, 15
        %s208 = smul.addr %s207, 2
        %s209 = smul.addr %s205, 32
        %s210 = sadd.s32 %s208, %s209
        %s211 = smul.addr %s210, 4
        %s212 = scalar_lea.vmem %s2, %s211
        %p213 = pneg %p130
        %p214 = pneg %p127
        %p215 = scmp.lt.s32.totalorder %s22, 1
        %s216 = scalar_select %p215, %s22, 1
        %p217 = scmp.lt.s32.totalorder %s23, 1
        %s218 = scalar_select %p217, %s23, 1
        %s219 = smul.addr %s216, 2
        %s220 = sadd.s32 %s218, %s219
        %s221 = smul.addr %s220, 2
        %s222 = scalar_lea.vmem %s3, %s221
        %s223 = smul.u32 8, %s23
        %s224 = smul.u32 8, %s23
        %p225 = scmp.lt.s32.totalorder %s22, 1
        %s226 = scalar_select %p225, %s22, 1
        %p227 = scmp.lt.s32.totalorder %s224, 15
        %s228 = scalar_select %p227, %s224, 15
        %s229 = smul.addr %s228, 2
        %s230 = smul.addr %s226, 32
        %s231 = sadd.s32 %s229, %s230
        %s232 = smul.addr %s231, 4
        %s233 = scalar_lea.vmem %s2, %s232
        %s234 = smul.u32 8, %s23
        %p235 = scmp.lt.s32.totalorder %s22, 1
        %s236 = scalar_select %p235, %s22, 1
        %p237 = scmp.lt.s32.totalorder %s23, 1
        %s238 = scalar_select %p237, %s23, 1
        %s239 = smul.addr %s236, 2
        %s240 = sadd.s32 %s238, %s239
        %s241 = smul.addr %s240, 2
        %s242 = scalar_lea.vmem %s3, %s241
        %v244 = vld [vmem:[%s187] sm:$0xff]
        %v245 = vld [vmem:[%s187 + $0x8] sm:$0xff]
        %v246 = vld [vmem:[%s187 + $0x10] sm:$0xff]
        %v247 = vld [vmem:[%s187 + $0x18] sm:$0xff]
        %v248 = vld [vmem:[%s187 + $0x20] sm:$0xff]
        %v249 = vld [vmem:[%s187 + $0x28] sm:$0xff]
        %v250 = vld [vmem:[%s187 + $0x30] sm:$0xff]
        %v251 = vld [vmem:[%s187 + $0x38] sm:$0xff]
        %v252 = vld [vmem:[%s187 + $0x40] sm:$0xff]
        %v253 = vld [vmem:[%s187 + $0x48] sm:$0xff]
        %v254 = vld [vmem:[%s187 + $0x50] sm:$0xff]
        %v255 = vld [vmem:[%s187 + $0x58] sm:$0xff]
        %v256 = vld [vmem:[%s187 + $0x60] sm:$0xff]
        %v257 = vld [vmem:[%s187 + $0x68] sm:$0xff]
        %v258 = vld [vmem:[%s187 + $0x70] sm:$0xff]
        %v259 = vld [vmem:[%s187 + $0x78] sm:$0xff]
        %v260 = vpack.c.bf16 %v245, %v244
        %v261 = vpack.c.bf16 %v247, %v246
        %v262 = vpack.c.bf16 %v249, %v248
        %v263 = vpack.c.bf16 %v251, %v250
        %v264 = vpack.c.bf16 %v253, %v252
        %v265 = vpack.c.bf16 %v255, %v254
        %v266 = vpack.c.bf16 %v257, %v256
        %v267 = vpack.c.bf16 %v259, %v258
        %v268 = vld [vmem:[%s1] sm:$0xf]
        %v269 = vld [vmem:[%s1 + $0x4] sm:$0xf]
        %v270 = vld [vmem:[%s1 + $0x8] sm:$0xf]
        %v271 = vld [vmem:[%s1 + $0xc] sm:$0xf]
        %v276 = vunpack.c.l.b16 %v268
        %v277 = vunpack.c.l.b16 %v269
        %v278 = vunpack.c.l.b16 %v270
        %v279 = vunpack.c.l.b16 %v271
        %v280 = vpack.c.b16 %v277, %v276
        %v281 = vpack.c.b16 %v279, %v278
        %vm284 = vcmask 261120
        %v286 = vsel %vm284, %v260, 0
        %v289 = vsel %vm284, %v261, 0
        %v292 = vsel %vm284, %v262, 0
        %v295 = vsel %vm284, %v263, 0
        %v298 = vsel %vm284, %v264, 0
        %v301 = vsel %vm284, %v265, 0
        %v304 = vsel %vm284, %v266, 0
        %v307 = vsel %vm284, %v267, 0
        %309 = vmatprep.subr.bf16.mxu0 0
        %310 = vmatpush1.bf16.msra.mxu0 0
        %311 = vmatprep.subr.bf16.mxu0 0
        %312 = vmatpush1.bf16.msra.mxu0 0
        %313 = vmatprep.subr.bf16.mxu0 0
        %314 = vmatpush1.bf16.msra.mxu0 0
        %315 = vmatprep.subr.bf16.mxu0 0
        %316 = vmatpush1.bf16.msra.mxu0 0
        %317 = vmatprep.subr.bf16.mxu0 0
        %318 = vmatpush1.bf16.msra.mxu0 0
        %319 = vmatprep.subr.bf16.mxu0 0
        %320 = vmatpush1.bf16.msra.mxu0 0
        %321 = vmatprep.subr.bf16.mxu0 0
        %322 = vmatpush1.bf16.msra.mxu0 %v281
        %323 = vmatprep.subr.bf16.mxu0 0
        %324 = vmatpush1.bf16.msra.mxu0 %v280
        %325 = vmatprep.subr.bf16.mxu0 0
        %326 = vmatpush2.bf16.msra.mxu0 0
        %327 = vmatprep.subr.bf16.mxu0 0
        %328 = vmatpush2.bf16.msra.mxu0 0
        %329 = vmatprep.subr.bf16.mxu0 0
        %330 = vmatpush2.bf16.msra.mxu0 0
        %331 = vmatprep.subr.bf16.mxu0 0
        %332 = vmatpush2.bf16.msra.mxu0 0
        %333 = vmatprep.subr.bf16.mxu0 0
        %334 = vmatpush2.bf16.msra.mxu0 0
        %335 = vmatprep.subr.bf16.mxu0 0
        %336 = vmatpush2.bf16.msra.mxu0 0
        %337 = vmatprep.subr.bf16.mxu0 0
        %338 = vmatpush2.bf16.msra.mxu0 0
        %339 = vmatprep.subr.bf16.mxu0 0
        %340 = vmatpush2.bf16.msra.mxu0 0
        %341 = vmatprep.mubr.bf16.mxu0 0
        %342 = vmatmul.mubr.bf16.gmra.mxu0 %v286
        %v343 = vpop.f32.mrf.mxu0
        %v344 = vadd.f32 0.0, %v343
        %v345 = vpop.f32.mrf.mxu0
        %v346 = vpop.f32.mrf.mxu0
        %v347 = vadd.f32 0.0, %v346
        %v348 = vpop.f32.mrf.mxu0
        %349 = vmatprep.mubr.bf16.mxu0 0
        %350 = vmatmul.mubr.bf16.gmra.mxu0 %v289
        %v351 = vpop.f32.mrf.mxu0
        %v352 = vadd.f32 0.0, %v351
        %v353 = vpop.f32.mrf.mxu0
        %v354 = vpop.f32.mrf.mxu0
        %v355 = vadd.f32 0.0, %v354
        %v356 = vpop.f32.mrf.mxu0
        %357 = vmatprep.mubr.bf16.mxu0 0
        %358 = vmatmul.mubr.bf16.gmra.mxu0 %v292
        %v359 = vpop.f32.mrf.mxu0
        %v360 = vadd.f32 0.0, %v359
        %v361 = vpop.f32.mrf.mxu0
        %v362 = vpop.f32.mrf.mxu0
        %v363 = vadd.f32 0.0, %v362
        %v364 = vpop.f32.mrf.mxu0
        %365 = vmatprep.mubr.bf16.mxu0 0
        %366 = vmatmul.mubr.bf16.gmra.mxu0 %v295
        %v367 = vpop.f32.mrf.mxu0
        %v368 = vadd.f32 0.0, %v367
        %v369 = vpop.f32.mrf.mxu0
        %v370 = vpop.f32.mrf.mxu0
        %v371 = vadd.f32 0.0, %v370
        %v372 = vpop.f32.mrf.mxu0
        %373 = vmatprep.mubr.bf16.mxu0 0
        %374 = vmatmul.mubr.bf16.gmra.mxu0 %v298
        %v375 = vpop.f32.mrf.mxu0
        %v376 = vadd.f32 0.0, %v375
        %v377 = vpop.f32.mrf.mxu0
        %v378 = vpop.f32.mrf.mxu0
        %v379 = vadd.f32 0.0, %v378
        %v380 = vpop.f32.mrf.mxu0
        %381 = vmatprep.mubr.bf16.mxu0 0
        %382 = vmatmul.mubr.bf16.gmra.mxu0 %v301
        %v383 = vpop.f32.mrf.mxu0
        %v384 = vadd.f32 0.0, %v383
        %v385 = vpop.f32.mrf.mxu0
        %v386 = vpop.f32.mrf.mxu0
        %v387 = vadd.f32 0.0, %v386
        %v388 = vpop.f32.mrf.mxu0
        %389 = vmatprep.mubr.bf16.mxu0 0
        %390 = vmatmul.mubr.bf16.gmra.mxu0 %v304
        %v391 = vpop.f32.mrf.mxu0
        %v392 = vadd.f32 0.0, %v391
        %v393 = vpop.f32.mrf.mxu0
        %v394 = vpop.f32.mrf.mxu0
        %v395 = vadd.f32 0.0, %v394
        %v396 = vpop.f32.mrf.mxu0
        %397 = vmatprep.mubr.bf16.mxu0 0
        %398 = vmatmul.mubr.bf16.gmra.mxu0 %v307
        %v399 = vpop.f32.mrf.mxu0
        %v400 = vadd.f32 0.0, %v399
        %v401 = vpop.f32.mrf.mxu0
        %v402 = vpop.f32.mrf.mxu0
        %v403 = vadd.f32 0.0, %v402
        %v404 = vpop.f32.mrf.mxu0
        %405 = vdwg.mxu0
        %v406 = vpack.c.bf16 %v347, %v344
        %v407 = vpack.c.bf16 %v355, %v352
        %v408 = vpack.c.bf16 %v363, %v360
        %v409 = vpack.c.bf16 %v371, %v368
        %v410 = vpack.c.bf16 %v379, %v376
        %v411 = vpack.c.bf16 %v387, %v384
        %v412 = vpack.c.bf16 %v395, %v392
        %v413 = vpack.c.bf16 %v403, %v400
        %v422 = vunpack.c.l.b16 %v406
        %v423 = vunpack.c.h.b16 %v406
        %v424 = vunpack.c.l.b16 %v407
        %v425 = vunpack.c.h.b16 %v407
        %v426 = vunpack.c.l.b16 %v408
        %v427 = vunpack.c.h.b16 %v408
        %v428 = vunpack.c.l.b16 %v409
        %v429 = vunpack.c.h.b16 %v409
        %v430 = vunpack.c.l.b16 %v410
        %v431 = vunpack.c.h.b16 %v410
        %v432 = vunpack.c.l.b16 %v411
        %v433 = vunpack.c.h.b16 %v411
        %v434 = vunpack.c.l.b16 %v412
        %v435 = vunpack.c.h.b16 %v412
        %v436 = vunpack.c.l.b16 %v413
        %v437 = vunpack.c.h.b16 %v413
        %v438 = vpack.c.b16 %v422, %v422
        %v439 = vpack.c.b16 %v423, %v423
        %v440 = vpack.c.b16 %v424, %v424
        %v441 = vpack.c.b16 %v425, %v425
        %v442 = vpack.c.b16 %v426, %v426
        %v443 = vpack.c.b16 %v427, %v427
        %v444 = vpack.c.b16 %v428, %v428
        %v445 = vpack.c.b16 %v429, %v429
        %v446 = vpack.c.b16 %v430, %v430
        %v447 = vpack.c.b16 %v431, %v431
        %v448 = vpack.c.b16 %v432, %v432
        %v449 = vpack.c.b16 %v433, %v433
        %v450 = vpack.c.b16 %v434, %v434
        %v451 = vpack.c.b16 %v435, %v435
        %v452 = vpack.c.b16 %v436, %v436
        %v453 = vpack.c.b16 %v437, %v437
        %vm470 = vcmask 60416
        %471 = vst.msk [vmem:[%s233] sm:$0xf] %vm470, %v438
        %472 = vst.msk [vmem:[%s233 + $0x4] sm:$0xf] %vm470, %v439
        %473 = vst.msk [vmem:[%s233 + $0x8] sm:$0xf] %vm470, %v440
        %474 = vst.msk [vmem:[%s233 + $0xc] sm:$0xf] %vm470, %v441
        %475 = vst.msk [vmem:[%s233 + $0x10] sm:$0xf] %vm470, %v442
        %476 = vst.msk [vmem:[%s233 + $0x14] sm:$0xf] %vm470, %v443
        %477 = vst.msk [vmem:[%s233 + $0x18] sm:$0xf] %vm470, %v444
        %478 = vst.msk [vmem:[%s233 + $0x1c] sm:$0xf] %vm470, %v445
        %479 = vst.msk [vmem:[%s233 + $0x20] sm:$0xf] %vm470, %v446
        %480 = vst.msk [vmem:[%s233 + $0x24] sm:$0xf] %vm470, %v447
        %481 = vst.msk [vmem:[%s233 + $0x28] sm:$0xf] %vm470, %v448
        %482 = vst.msk [vmem:[%s233 + $0x2c] sm:$0xf] %vm470, %v449
        %483 = vst.msk [vmem:[%s233 + $0x30] sm:$0xf] %vm470, %v450
        %484 = vst.msk [vmem:[%s233 + $0x34] sm:$0xf] %vm470, %v451
        %485 = vst.msk [vmem:[%s233 + $0x38] sm:$0xf] %vm470, %v452
        %486 = vst.msk [vmem:[%s233 + $0x3c] sm:$0xf] %vm470, %v453
        %vm487 = vcmask 64512
        %v488 = vsel %vm487, %v344, 0.0
        %v489 = vsel %vm487, %v347, 0.0
        %v490 = vadd.f32 %v488, %v489
        %v491 = vsel %vm487, %v352, 0.0
        %v492 = vadd.f32 %v490, %v491
        %v493 = vsel %vm487, %v355, 0.0
        %v494 = vadd.f32 %v492, %v493
        %v495 = vsel %vm487, %v360, 0.0
        %v496 = vadd.f32 %v494, %v495
        %v497 = vsel %vm487, %v363, 0.0
        %v498 = vadd.f32 %v496, %v497
        %v499 = vsel %vm487, %v368, 0.0
        %v500 = vadd.f32 %v498, %v499
        %v501 = vsel %vm487, %v371, 0.0
        %v502 = vadd.f32 %v500, %v501
        %v503 = vsel %vm487, %v376, 0.0
        %v504 = vadd.f32 %v502, %v503
        %v505 = vsel %vm487, %v379, 0.0
        %v506 = vadd.f32 %v504, %v505
        %v507 = vsel %vm487, %v384, 0.0
        %v508 = vadd.f32 %v506, %v507
        %v509 = vsel %vm487, %v387, 0.0
        %v510 = vadd.f32 %v508, %v509
        %v511 = vsel %vm487, %v392, 0.0
        %v512 = vadd.f32 %v510, %v511
        %v513 = vsel %vm487, %v395, 0.0
        %v514 = vadd.f32 %v512, %v513
        %v515 = vsel %vm487, %v400, 0.0
        %v516 = vadd.f32 %v514, %v515
        %v517 = vsel %vm487, %v403, 0.0
        %v518 = vadd.f32 %v516, %v517
        %v519 = vrot.slane %v518, 4
        %v520 = vadd.f32 %v518, %v519
        %v521 = vrot.slane %v520, 2
        %v522 = vadd.f32 %v520, %v521
        %v523 = vrot.slane %v522, 1
        %v524 = vadd.f32 %v522, %v523
        %vm525 = vcmask 57344
        %526 = vst.msk [vmem:[%s242] sm:$0x1] %vm525, %v524
        %v527 = vmul.f32 %v344, %v344
        %v528 = vmul.f32 %v347, %v347
        %v529 = vmul.f32 %v352, %v352
        %v530 = vmul.f32 %v355, %v355
        %v531 = vmul.f32 %v360, %v360
        %v532 = vmul.f32 %v363, %v363
        %v533 = vmul.f32 %v368, %v368
        %v534 = vmul.f32 %v371, %v371
        %v535 = vmul.f32 %v376, %v376
        %v536 = vmul.f32 %v379, %v379
        %v537 = vmul.f32 %v384, %v384
        %v538 = vmul.f32 %v387, %v387
        %v539 = vmul.f32 %v392, %v392
        %v540 = vmul.f32 %v395, %v395
        %v541 = vmul.f32 %v400, %v400
        %v542 = vmul.f32 %v403, %v403
        %v543 = vsel %vm487, %v527, 0.0
        %v544 = vsel %vm487, %v528, 0.0
        %v545 = vadd.f32 %v543, %v544
        %v546 = vsel %vm487, %v529, 0.0
        %v547 = vadd.f32 %v545, %v546
        %v548 = vsel %vm487, %v530, 0.0
        %v549 = vadd.f32 %v547, %v548
        %v550 = vsel %vm487, %v531, 0.0
        %v551 = vadd.f32 %v549, %v550
        %v552 = vsel %vm487, %v532, 0.0
        %v553 = vadd.f32 %v551, %v552
        %v554 = vsel %vm487, %v533, 0.0
        %v555 = vadd.f32 %v553, %v554
        %v556 = vsel %vm487, %v534, 0.0
        %v557 = vadd.f32 %v555, %v556
        %v558 = vsel %vm487, %v535, 0.0
        %v559 = vadd.f32 %v557, %v558
        %v560 = vsel %vm487, %v536, 0.0
        %v561 = vadd.f32 %v559, %v560
        %v562 = vsel %vm487, %v537, 0.0
        %v563 = vadd.f32 %v561, %v562
        %v564 = vsel %vm487, %v538, 0.0
        %v565 = vadd.f32 %v563, %v564
        %v566 = vsel %vm487, %v539, 0.0
        %v567 = vadd.f32 %v565, %v566
        %v568 = vsel %vm487, %v540, 0.0
        %v569 = vadd.f32 %v567, %v568
        %v570 = vsel %vm487, %v541, 0.0
        %v571 = vadd.f32 %v569, %v570
        %v572 = vsel %vm487, %v542, 0.0
        %v573 = vadd.f32 %v571, %v572
        %v574 = vrot.slane %v573, 4
        %v575 = vadd.f32 %v573, %v574
        %v576 = vrot.slane %v575, 2
        %v577 = vadd.f32 %v575, %v576
        %v578 = vrot.slane %v577, 1
        %v579 = vadd.f32 %v577, %v578
        %580 = vst.msk [vmem:[%s242 + $0x1] sm:$0x1] %vm525, %v579
        %s581 = smul.u32 8, %s23
        %p582 = scmp.lt.s32.totalorder %s22, 1
        %s583 = scalar_select %p582, %s22, 1
        %p584 = scmp.lt.s32.totalorder %s581, 15
        %s585 = scalar_select %p584, %s581, 15
        %s586 = smul.addr %s585, 2
        %s587 = smul.addr %s583, 32
        %s588 = sadd.s32 %s586, %s587
        %s589 = smul.addr %s588, 4
        %s590 = scalar_lea.vmem %s2, %s589
        %p591 = scmp.lt.s32.totalorder %s22, 1
        %s592 = scalar_select %p591, %s22, 1
        %p593 = scmp.lt.s32.totalorder %s23, 1
        %s594 = scalar_select %p593, %s23, 1
        %s595 = smul.addr %s592, 2
        %s596 = sadd.s32 %s594, %s595
        %s597 = smul.addr %s596, 2
        %s598 = scalar_lea.vmem %s3, %s597
        // Predicated region
        $region33: #{_lambda_.4} parent=27 // pred_check
          %p599 = pneg %p99
        $region34: #{_lambda_.4} parent=27 // pred_check_branch
          %601 = sbr.rel (%p599) target = $region36
        $region35: #{_lambda_.4} parent=27 // pred_region
          %s602 = smul.u32 8, %s23
        $region36: #{_lambda_.4} parent=27 // pred_fallthru
          _
        // Predicated region
        $region37: #{_lambda_.4} parent=27 // pred_check
          %p603 = pneg %p127
        $region38: #{_lambda_.4} parent=27 // pred_check_branch
          %605 = sbr.rel (%p603) target = $region40
        $region39: #{_lambda_.4} parent=27 // pred_region
          _
        $region40: #{_lambda_.4} parent=27 // pred_fallthru
          _
      $region28: #{_lambda_.4} parent=5 // pred_fallthru
        _
      %p606 = scmp.le.s32.totalorder 2, %s13
      // Predicated region
      $region41: #{_lambda_.4} parent=5 // pred_check
        %p607 = pneg %p606
      $region42: #{_lambda_.4} parent=5 // pred_check_branch
        %609 = sbr.rel (%p607) target = $region44
      $region43: #{_lambda_.4} parent=5 // pred_region
        %s610 = ssub.s32 %s13, 2
        // Predicated region
        $region45: #{_lambda_.4} parent=43 // pred_check
          %p611 = pneg %p105
        $region46: #{_lambda_.4} parent=43 // pred_check_branch
          %613 = sbr.rel (%p611) target = $region48
        $region47: #{_lambda_.4} parent=43 // pred_region
          %s614 = smul.u32 8, %s25
          %p615 = scmp.lt.s32.totalorder %s24, 1
          %s616 = scalar_select %p615, %s24, 1
          %p617 = scmp.lt.s32.totalorder %s614, 15
          %s618 = scalar_select %p617, %s614, 15
          %s619 = smul.addr %s618, 2
          %s620 = smul.addr %s616, 32
          %s621 = sadd.s32 %s619, %s620
          %s622 = smul.addr %s621, 4
          %s623 = scalar_lea.vmem %s2, %s622
        $region48: #{_lambda_.4} parent=43 // pred_fallthru
          _
        // Predicated region
        $region49: #{_lambda_.4} parent=43 // pred_check
          %p624 = pneg %p133
        $region50: #{_lambda_.4} parent=43 // pred_check_branch
          %626 = sbr.rel (%p624) target = $region52
        $region51: #{_lambda_.4} parent=43 // pred_region
          %p627 = scmp.lt.s32.totalorder %s24, 1
          %s628 = scalar_select %p627, %s24, 1
          %p629 = scmp.lt.s32.totalorder %s25, 1
          %s630 = scalar_select %p629, %s25, 1
          %s631 = smul.addr %s628, 2
          %s632 = sadd.s32 %s630, %s631
          %s633 = smul.addr %s632, 2
          %s634 = scalar_lea.vmem %s3, %s633
        $region52: #{_lambda_.4} parent=43 // pred_fallthru
          _
      $region44: #{_lambda_.4} parent=5 // pred_fallthru
        _
    $region6: #{_lambda_.4} parent=1 // loop_footer
      %s17 = sadd.s32 1, %s13
    $region7: #{_lambda_.4} parent=1 // loop_footer_branch
      %12 = sbr.rel target = $region3
    $region8: #{_lambda_.4} parent=1 // loop_exit
      _
    %635 = vsyncpa [#allocation3], 1
    %s636 = scalar_lea.sflag [#allocation3], 1
    %637 = vsyncpa %s636, 1

// kernel: _lambda_.7
$region0: #{_lambda_.7}
  #allocation0 [shape = 'u32[]', space=smem, size = 0x4, offset = 0x4, fixed_abs, tag = 'smem constant byte address 0x4 - core index']
  #allocation1 [shape = 'u32[144,128]{1,0:T(1,128)}', space=vmem, size = 0x12000, scoped, tag = 'internal scratch']
  %s0 = inlined_call_operand.vmem [shape: bf16[2,16,16,32], index: 0, kind: input, shape index: {}]
  %s1 = inlined_call_operand.vmem [shape: f32[2,16,16,32], index: 1, kind: input, shape index: {}]
  %s2 = inlined_call_operand.vmem [shape: f32[1,32], index: 2, kind: input, shape index: {}]
  %s3 = inlined_call_operand.vmem [shape: f32[1,32], index: 3, kind: input, shape index: {}]
  %s4 = inlined_call_operand.hbm [shape: f32[2,16,16,32], index: 4, kind: output, shape index: {}]
  %s5 = sld [smem:[#allocation0]]
  $region49: #{_lambda_.7} parent=0
    _
  %s7 = ssub.s32 1, %s5
  %s8 = scalar_select 0, %s7, %s5
  $region1: #{_lambda_.7} parent=0
    #allocation2 [shape = 'u8[131072]{0}', space=vmem, size = 0x20000, scoped, tag = 'output window, operand 0']
    #allocation3 [shape = 's32[2]{0}', space=sflag, size = 0x8, scoped, tag = 'scoped memory for _lambda_.7']
    %9 = vsyncpa [#allocation3], 0
    %s10 = scalar_lea.sflag [#allocation3], 1
    %11 = vsyncpa %s10, 0
    loop: start=0, step=1, limit=6
    $region2: #{_lambda_.7} parent=1 // loop_pre_header
      _
    $region3: #{_lambda_.7} parent=1 // loop_header
      %s13 = sphi 0, %s17
      %p14 = scmp.ge.s32.totalorder %s13, 6
      %s20 = sphi 0, %s32
      %s21 = sphi 0, %s28
      %s22 = sphi 0, %s20
      %s23 = sphi 0, %s21
      %s24 = sphi 0, %s22
      %s25 = sphi 0, %s23
      %s37 = sphi 0, %s39
      %s40 = sphi 0, %s37
      %s41 = sphi 0, %s40
      %s57 = sphi 0, %s41
      %s65 = sphi 0, %s67
      %s68 = sphi 0, %s65
      %s69 = sphi 0, %s68
      %s85 = sphi 0, %s69
      %s89 = sphi 0, %s89
      %s91 = sphi 0, %s89
      %s92 = sphi 0, %s91
      %s106 = sphi 0, %s92
      %s110 = sphi 0, %s110
      %s112 = sphi 0, %s110
      %s113 = sphi 0, %s112
      %s127 = sphi 0, %s113
      %s135 = sphi 0, %s137
      %s138 = sphi 0, %s135
      %s139 = sphi 0, %s138
      %s155 = sphi 0, %s139
    $region4: #{_lambda_.7} parent=1 // loop_header_branch
      %16 = sbr.rel (%p14) target = $region8
    $region5: #{_lambda_.7} parent=1 // loop_body
      %s18 = ssub.s32 %s13, 1
      %s19 = ssub.s32 %s13, 2
      %s26 = sadd.s32 1, %s21
      %p27 = scmp.ge.s32.totalorder %s26, 2
      %s28 = scalar_select %p27, 0, %s26
      %s29 = sadd.s32 1, %s20
      %s30 = scalar_select %p27, %s29, %s20
      %p31 = scmp.ge.s32.totalorder %s30, 2
      %s32 = scalar_select %p31, 0, %s30
      %s33 = ssub.s32 %s20, %s32
      %s34 = ssub.s32 %s21, %s28
      %s35 = sor.u32 %s33, %s34
      %p36 = scmp.eq.s32.totalorder %s35, 0
      %s38 = sadd.s32 %s37, 1
      %s39 = scalar_select %p36, %s37, %s38
      %p42 = pneg %p36
      %p43 = scmp.eq.s32.totalorder %s13, 3
      %p44 = por %p42, %p43
      %p45 = scmp.ne.s32.totalorder %s37, %s40
      %p46 = scmp.eq.s32.totalorder %s13, 0
      %p47 = por %p45, %p46
      %p48 = scmp.ne.s32.totalorder %s37, %s40
      %p49 = scmp.eq.s32.totalorder %s18, 3
      %p50 = por %p48, %p49
      %p51 = scmp.ne.s32.totalorder %s40, %s41
      %p52 = scmp.eq.s32.totalorder %s18, 0
      %p53 = por %p51, %p52
      %p54 = scmp.ne.s32.totalorder %s40, %s41
      %p55 = scmp.eq.s32.totalorder %s19, 3
      %p56 = por %p54, %p55
      %p58 = scmp.ne.s32.totalorder %s41, %s57
      %p59 = scmp.eq.s32.totalorder %s19, 0
      %p60 = por %p58, %p59
      %s61 = ssub.s32 %s20, %s32
      %s62 = ssub.s32 %s21, %s28
      %s63 = sor.u32 %s61, %s62
      %p64 = scmp.eq.s32.totalorder %s63, 0
      %s66 = sadd.s32 %s65, 1
      %s67 = scalar_select %p64, %s65, %s66
      %p70 = pneg %p64
      %p71 = scmp.eq.s32.totalorder %s13, 3
      %p72 = por %p70, %p71
      %p73 = scmp.ne.s32.totalorder %s65, %s68
      %p74 = scmp.eq.s32.totalorder %s13, 0
      %p75 = por %p73, %p74
      %p76 = scmp.ne.s32.totalorder %s65, %s68
      %p77 = scmp.eq.s32.totalorder %s18, 3
      %p78 = por %p76, %p77
      %p79 = scmp.ne.s32.totalorder %s68, %s69
      %p80 = scmp.eq.s32.totalorder %s18, 0
      %p81 = por %p79, %p80
      %p82 = scmp.ne.s32.totalorder %s68, %s69
      %p83 = scmp.eq.s32.totalorder %s19, 3
      %p84 = por %p82, %p83
      %p86 = scmp.ne.s32.totalorder %s69, %s85
      %p87 = scmp.eq.s32.totalorder %s19, 0
      %p88 = por %p86, %p87
      %s90 = sadd.s32 %s89, 1
      %p93 = scmp.eq.s32.totalorder %s13, 3
      %p94 = scmp.ne.s32.totalorder %s89, %s91
      %p95 = scmp.eq.s32.totalorder %s13, 0
      %p96 = por %p94, %p95
      %p97 = scmp.ne.s32.totalorder %s89, %s91
      %p98 = scmp.eq.s32.totalorder %s18, 3
      %p99 = por %p97, %p98
      %p100 = scmp.ne.s32.totalorder %s91, %s92
      %p101 = scmp.eq.s32.totalorder %s18, 0
      %p102 = por %p100, %p101
      %p103 = scmp.ne.s32.totalorder %s91, %s92
      %p104 = scmp.eq.s32.totalorder %s19, 3
      %p105 = por %p103, %p104
      %p107 = scmp.ne.s32.totalorder %s92, %s106
      %p108 = scmp.eq.s32.totalorder %s19, 0
      %p109 = por %p107, %p108
      %s111 = sadd.s32 %s110, 1
      %p114 = scmp.eq.s32.totalorder %s13, 3
      %p115 = scmp.ne.s32.totalorder %s110, %s112
      %p116 = scmp.eq.s32.totalorder %s13, 0
      %p117 = por %p115, %p116
      %p118 = scmp.ne.s32.totalorder %s110, %s112
      %p119 = scmp.eq.s32.totalorder %s18, 3
      %p120 = por %p118, %p119
      %p121 = scmp.ne.s32.totalorder %s112, %s113
      %p122 = scmp.eq.s32.totalorder %s18, 0
      %p123 = por %p121, %p122
      %p124 = scmp.ne.s32.totalorder %s112, %s113
      %p125 = scmp.eq.s32.totalorder %s19, 3
      %p126 = por %p124, %p125
      %p128 = scmp.ne.s32.totalorder %s113, %s127
      %p129 = scmp.eq.s32.totalorder %s19, 0
      %p130 = por %p128, %p129
      %s131 = ssub.s32 %s20, %s32
      %s132 = ssub.s32 %s21, %s28
      %s133 = sor.u32 %s131, %s132
      %p134 = scmp.eq.s32.totalorder %s133, 0
      %s136 = sadd.s32 %s135, 1
      %s137 = scalar_select %p134, %s135, %s136
      %p140 = pneg %p134
      %p141 = scmp.eq.s32.totalorder %s13, 3
      %p142 = por %p140, %p141
      %p143 = scmp.ne.s32.totalorder %s135, %s138
      %p144 = scmp.eq.s32.totalorder %s13, 0
      %p145 = por %p143, %p144
      %p146 = scmp.ne.s32.totalorder %s135, %s138
      %p147 = scmp.eq.s32.totalorder %s18, 3
      %p148 = por %p146, %p147
      %p149 = scmp.ne.s32.totalorder %s138, %s139
      %p150 = scmp.eq.s32.totalorder %s18, 0
      %p151 = por %p149, %p150
      %p152 = scmp.ne.s32.totalorder %s138, %s139
      %p153 = scmp.eq.s32.totalorder %s19, 3
      %p154 = por %p152, %p153
      %p156 = scmp.ne.s32.totalorder %s139, %s155
      %p157 = scmp.eq.s32.totalorder %s19, 0
      %p158 = por %p156, %p157
      %p159 = scmp.le.s32.totalorder 1, %s13
      %p160 = scmp.lt.s32.totalorder %s13, 5
      %p161 = pnand %p159, %p160
      %p162 = pneg %p161
      // Predicated region
      $region9: #{_lambda_.7} parent=5 // pred_check
        _
      $region10: #{_lambda_.7} parent=5 // pred_check_branch
        %164 = sbr.rel (%p161) target = $region12
      $region11: #{_lambda_.7} parent=5 // pred_region
        %s165 = ssub.s32 %s13, 1
        // Predicated region
        $region13: #{_lambda_.7} parent=11 // pred_check
          %p166 = pneg %p102
        $region14: #{_lambda_.7} parent=11 // pred_check_branch
          %168 = sbr.rel (%p166) target = $region16
        $region15: #{_lambda_.7} parent=11 // pred_region
          _
        $region16: #{_lambda_.7} parent=11 // pred_fallthru
          _
        // Predicated region
        $region17: #{_lambda_.7} parent=11 // pred_check
          %p169 = pneg %p123
        $region18: #{_lambda_.7} parent=11 // pred_check_branch
          %171 = sbr.rel (%p169) target = $region20
        $region19: #{_lambda_.7} parent=11 // pred_region
          _
        $region20: #{_lambda_.7} parent=11 // pred_fallthru
          _
      $region12: #{_lambda_.7} parent=5 // pred_fallthru
        _
      %p172 = scmp.lt.s32.totalorder %s13, 4
      // Predicated region
      $region21: #{_lambda_.7} parent=5 // pred_check
        %p173 = pneg %p172
      $region22: #{_lambda_.7} parent=5 // pred_check_branch
        %175 = sbr.rel (%p173) target = $region24
      $region23: #{_lambda_.7} parent=5 // pred_region
        // Predicated region
        $region25: #{_lambda_.7} parent=23 // pred_check
          %p176 = pneg %p47
        $region26: #{_lambda_.7} parent=23 // pred_check_branch
          %178 = sbr.rel (%p176) target = $region28
        $region27: #{_lambda_.7} parent=23 // pred_region
          %s179 = smul.u32 8, %s21
          %p180 = scmp.lt.s32.totalorder %s20, 1
          %s181 = scalar_select %p180, %s20, 1
          %p182 = scmp.lt.s32.totalorder %s179, 15
          %s183 = scalar_select %p182, %s179, 15
          %s184 = smul.addr %s183, 2
          %s185 = smul.addr %s181, 32
          %s186 = sadd.s32 %s184, %s185
          %s187 = smul.addr %s186, 4
          %s188 = scalar_lea.vmem %s0, %s187
          %s189 = smul.u32 8, %s21
        $region28: #{_lambda_.7} parent=23 // pred_fallthru
          _
        // Predicated region
        $region29: #{_lambda_.7} parent=23 // pred_check
          %p190 = pneg %p75
        $region30: #{_lambda_.7} parent=23 // pred_check_branch
          %192 = sbr.rel (%p190) target = $region32
        $region31: #{_lambda_.7} parent=23 // pred_region
          %s193 = smul.u32 8, %s21
          %p194 = scmp.lt.s32.totalorder %s20, 1
          %s195 = scalar_select %p194, %s20, 1
          %p196 = scmp.lt.s32.totalorder %s193, 15
          %s197 = scalar_select %p196, %s193, 15
          %s198 = smul.addr %s197, 2
          %s199 = smul.addr %s195, 32
          %s200 = sadd.s32 %s198, %s199
          %s201 = smul.addr %s200, 8
          %s202 = scalar_lea.vmem %s1, %s201
          %s203 = smul.u32 8, %s21
        $region32: #{_lambda_.7} parent=23 // pred_fallthru
          _
      $region24: #{_lambda_.7} parent=5 // pred_fallthru
        _
      %p204 = scmp.le.s32.totalorder 1, %s13
      %p205 = scmp.lt.s32.totalorder %s13, 5
      %p206 = pnand %p204, %p205
      %p207 = pneg %p206
      // Predicated region
      $region33: #{_lambda_.7} parent=5 // pred_check
        _
      $region34: #{_lambda_.7} parent=5 // pred_check_branch
        %209 = sbr.rel (%p206) target = $region36
      $region35: #{_lambda_.7} parent=5 // pred_region
        %s210 = ssub.s32 %s13, 1
        %s211 = smul.u32 8, %s23
        %p212 = scmp.lt.s32.totalorder %s22, 1
        %s213 = scalar_select %p212, %s22, 1
        %p214 = scmp.lt.s32.totalorder %s211, 15
        %s215 = scalar_select %p214, %s211, 15
        %s216 = smul.addr %s215, 2
        %s217 = smul.addr %s213, 32
        %s218 = sadd.s32 %s216, %s217
        %s219 = smul.addr %s218, 4
        %s220 = scalar_lea.vmem %s0, %s219
        %p221 = pneg %p53
        %p222 = pneg %p50
        %s223 = smul.u32 8, %s23
        %p224 = scmp.lt.s32.totalorder %s22, 1
        %s225 = scalar_select %p224, %s22, 1
        %p226 = scmp.lt.s32.totalorder %s223, 15
        %s227 = scalar_select %p226, %s223, 15
        %s228 = smul.addr %s227, 2
        %s229 = smul.addr %s225, 32
        %s230 = sadd.s32 %s228, %s229
        %s231 = smul.addr %s230, 8
        %s232 = scalar_lea.vmem %s1, %s231
        %p233 = pneg %p81
        %p234 = pneg %p78
        %p235 = pneg %p102
        %p236 = pneg %p99
        %p237 = pneg %p123
        %p238 = pneg %p120
        %p239 = pneg %p151
        %p240 = pneg %p148
        %s241 = sand.u32 %s138, 1
        %s242 = scalar_lea.sflag [#allocation3], %s241
        %s243 = sand.u32 %s138, 1
        %s244 = smul.addr %s243, 128
        %s245 = scalar_lea.vmem [#allocation2], %s244
        %s246 = smul.u32 8, %s23
        %p247 = scmp.lt.s32.totalorder %s22, 1
        %s248 = scalar_select %p247, %s22, 1
        %p249 = scmp.lt.s32.totalorder %s246, 15
        %s250 = scalar_select %p249, %s246, 15
        %s251 = smul.addr %s250, 2
        %s252 = smul.addr %s248, 32
        %s253 = sadd.s32 %s251, %s252
        %s254 = smul.addr %s253, 4
        %s255 = scalar_lea.vmem %s0, %s254
        %s256 = smul.u32 8, %s23
        %s257 = smul.u32 8, %s23
        %p258 = scmp.lt.s32.totalorder %s22, 1
        %s259 = scalar_select %p258, %s22, 1
        %p260 = scmp.lt.s32.totalorder %s257, 15
        %s261 = scalar_select %p260, %s257, 15
        %s262 = smul.addr %s261, 2
        %s263 = smul.addr %s259, 32
        %s264 = sadd.s32 %s262, %s263
        %s265 = smul.addr %s264, 8
        %s266 = scalar_lea.vmem %s1, %s265
        %s267 = smul.u32 8, %s23
        %s268 = smul.u32 8, %s23
        %v269 = vld [vmem:[%s255] sm:$0xf]
        %v270 = vld [vmem:[%s255 + $0x4] sm:$0xf]
        %v271 = vld [vmem:[%s255 + $0x8] sm:$0xf]
        %v272 = vld [vmem:[%s255 + $0xc] sm:$0xf]
        %v273 = vld [vmem:[%s255 + $0x10] sm:$0xf]
        %v274 = vld [vmem:[%s255 + $0x14] sm:$0xf]
        %v275 = vld [vmem:[%s255 + $0x18] sm:$0xf]
        %v276 = vld [vmem:[%s255 + $0x1c] sm:$0xf]
        %v277 = vld [vmem:[%s255 + $0x20] sm:$0xf]
        %v278 = vld [vmem:[%s255 + $0x24] sm:$0xf]
        %v279 = vld [vmem:[%s255 + $0x28] sm:$0xf]
        %v280 = vld [vmem:[%s255 + $0x2c] sm:$0xf]
        %v281 = vld [vmem:[%s255 + $0x30] sm:$0xf]
        %v282 = vld [vmem:[%s255 + $0x34] sm:$0xf]
        %v283 = vld [vmem:[%s255 + $0x38] sm:$0xf]
        %v284 = vld [vmem:[%s255 + $0x3c] sm:$0xf]
        %v285 = vunpack.c.l.bf16 %v269
        %v286 = vunpack.c.l.bf16 %v270
        %v287 = vunpack.c.l.bf16 %v271
        %v288 = vunpack.c.l.bf16 %v272
        %v289 = vunpack.c.l.bf16 %v273
        %v290 = vunpack.c.l.bf16 %v274
        %v291 = vunpack.c.l.bf16 %v275
        %v292 = vunpack.c.l.bf16 %v276
        %v293 = vunpack.c.l.bf16 %v277
        %v294 = vunpack.c.l.bf16 %v278
        %v295 = vunpack.c.l.bf16 %v279
        %v296 = vunpack.c.l.bf16 %v280
        %v297 = vunpack.c.l.bf16 %v281
        %v298 = vunpack.c.l.bf16 %v282
        %v299 = vunpack.c.l.bf16 %v283
        %v300 = vunpack.c.l.bf16 %v284
        %v301 = vld [vmem:[%s2] sm:$0x1]
        %v303 = vlaneseq
        %v304 = vshrl.u32 %v303, 7
        %v305 = vsub.s32 0, %v304
        %v306 = vrot.slane %v301, %v305
        %v308 = vmul.f32 %v285, %v306
        %v309 = vmul.f32 %v286, %v306
        %v310 = vmul.f32 %v287, %v306
        %v311 = vmul.f32 %v288, %v306
        %v312 = vmul.f32 %v289, %v306
        %v313 = vmul.f32 %v290, %v306
        %v314 = vmul.f32 %v291, %v306
        %v315 = vmul.f32 %v292, %v306
        %v316 = vmul.f32 %v293, %v306
        %v317 = vmul.f32 %v294, %v306
        %v318 = vmul.f32 %v295, %v306
        %v319 = vmul.f32 %v296, %v306
        %v320 = vmul.f32 %v297, %v306
        %v321 = vmul.f32 %v298, %v306
        %v322 = vmul.f32 %v299, %v306
        %v323 = vmul.f32 %v300, %v306
        %v324 = vld [vmem:[%s3] sm:$0x1]
        %v326 = vlaneseq
        %v327 = vshrl.u32 %v326, 7
        %v328 = vsub.s32 0, %v327
        %v329 = vrot.slane %v324, %v328
        %v331 = vadd.f32 %v308, %v329
        %v332 = vadd.f32 %v309, %v329
        %v333 = vadd.f32 %v310, %v329
        %v334 = vadd.f32 %v311, %v329
        %v335 = vadd.f32 %v312, %v329
        %v336 = vadd.f32 %v313, %v329
        %v337 = vadd.f32 %v314, %v329
        %v338 = vadd.f32 %v315, %v329
        %v339 = vadd.f32 %v316, %v329
        %v340 = vadd.f32 %v317, %v329
        %v341 = vadd.f32 %v318, %v329
        %v342 = vadd.f32 %v319, %v329
        %v343 = vadd.f32 %v320, %v329
        %v344 = vadd.f32 %v321, %v329
        %v345 = vadd.f32 %v322, %v329
        %v346 = vadd.f32 %v323, %v329
        %v347 = vld [vmem:[%s266] sm:$0xff]
        %v348 = vld [vmem:[%s266 + $0x8] sm:$0xff]
        %v349 = vld [vmem:[%s266 + $0x10] sm:$0xff]
        %v350 = vld [vmem:[%s266 + $0x18] sm:$0xff]
        %v351 = vld [vmem:[%s266 + $0x20] sm:$0xff]
        %v352 = vld [vmem:[%s266 + $0x28] sm:$0xff]
        %v353 = vld [vmem:[%s266 + $0x30] sm:$0xff]
        %v354 = vld [vmem:[%s266 + $0x38] sm:$0xff]
        %v355 = vld [vmem:[%s266 + $0x40] sm:$0xff]
        %v356 = vld [vmem:[%s266 + $0x48] sm:$0xff]
        %v357 = vld [vmem:[%s266 + $0x50] sm:$0xff]
        %v358 = vld [vmem:[%s266 + $0x58] sm:$0xff]
        %v359 = vld [vmem:[%s266 + $0x60] sm:$0xff]
        %v360 = vld [vmem:[%s266 + $0x68] sm:$0xff]
        %v361 = vld [vmem:[%s266 + $0x70] sm:$0xff]
        %v362 = vld [vmem:[%s266 + $0x78] sm:$0xff]
        %v363 = vadd.f32 %v331, %v347
        %v364 = vadd.f32 %v332, %v348
        %v365 = vadd.f32 %v333, %v349
        %v366 = vadd.f32 %v334, %v350
        %v367 = vadd.f32 %v335, %v351
        %v368 = vadd.f32 %v336, %v352
        %v369 = vadd.f32 %v337, %v353
        %v370 = vadd.f32 %v338, %v354
        %v371 = vadd.f32 %v339, %v355
        %v372 = vadd.f32 %v340, %v356
        %v373 = vadd.f32 %v341, %v357
        %v374 = vadd.f32 %v342, %v358
        %v375 = vadd.f32 %v343, %v359
        %v376 = vadd.f32 %v344, %v360
        %v377 = vadd.f32 %v345, %v361
        %v378 = vadd.f32 %v346, %v362
        %v379 = vmax.f32 %v363, 0.0
        %v380 = vmax.f32 %v364, 0.0
        %v381 = vmax.f32 %v365, 0.0
        %v382 = vmax.f32 %v366, 0.0
        %v383 = vmax.f32 %v367, 0.0
        %v384 = vmax.f32 %v368, 0.0
        %v385 = vmax.f32 %v369, 0.0
        %v386 = vmax.f32 %v370, 0.0
        %v387 = vmax.f32 %v371, 0.0
        %v388 = vmax.f32 %v372, 0.0
        %v389 = vmax.f32 %v373, 0.0
        %v390 = vmax.f32 %v374, 0.0
        %v391 = vmax.f32 %v375, 0.0
        %v392 = vmax.f32 %v376, 0.0
        %v393 = vmax.f32 %v377, 0.0
        %v394 = vmax.f32 %v378, 0.0
        %vm395 = vcmask 261120
        %396 = vst.msk [vmem:[%s245] sm:$0xff] %vm395, %v379
        %397 = vst.msk [vmem:[%s245 + $0x8] sm:$0xff] %vm395, %v380
        %398 = vst.msk [vmem:[%s245 + $0x10] sm:$0xff] %vm395, %v381
        %399 = vst.msk [vmem:[%s245 + $0x18] sm:$0xff] %vm395, %v382
        %400 = vst.msk [vmem:[%s245 + $0x20] sm:$0xff] %vm395, %v383
        %401 = vst.msk [vmem:[%s245 + $0x28] sm:$0xff] %vm395, %v384
        %402 = vst.msk [vmem:[%s245 + $0x30] sm:$0xff] %vm395, %v385
        %403 = vst.msk [vmem:[%s245 + $0x38] sm:$0xff] %vm395, %v386
        %404 = vst.msk [vmem:[%s245 + $0x40] sm:$0xff] %vm395, %v387
        %405 = vst.msk [vmem:[%s245 + $0x48] sm:$0xff] %vm395, %v388
        %406 = vst.msk [vmem:[%s245 + $0x50] sm:$0xff] %vm395, %v389
        %407 = vst.msk [vmem:[%s245 + $0x58] sm:$0xff] %vm395, %v390
        %408 = vst.msk [vmem:[%s245 + $0x60] sm:$0xff] %vm395, %v391
        %409 = vst.msk [vmem:[%s245 + $0x68] sm:$0xff] %vm395, %v392
        %410 = vst.msk [vmem:[%s245 + $0x70] sm:$0xff] %vm395, %v393
        %411 = vst.msk [vmem:[%s245 + $0x78] sm:$0xff] %vm395, %v394
        %s412 = sand.u32 %s138, 1
        %s413 = scalar_lea.sflag [#allocation3], %s412
        %s414 = sand.u32 %s138, 1
        %s415 = smul.addr %s414, 128
        %s416 = scalar_lea.vmem [#allocation2], %s415
        // Predicated region
        $region37: #{_lambda_.7} parent=35 // pred_check
          %p417 = pneg %p148
        $region38: #{_lambda_.7} parent=35 // pred_check_branch
          %419 = sbr.rel (%p417) target = $region40
        $region39: #{_lambda_.7} parent=35 // pred_region
          %s420 = smul.u32 8, %s23
          %s422 = ssub.s32 2048, 2048
          %423 = vsyncadd %s413, %s422
          %s424 = smul.addr %s420, 2
          %s425 = smul.addr %s22, 32
          %s426 = sadd.s32 %s424, %s425
          %s427 = smul.addr %s426, 128
          %s428 = scalar_lea.hbm %s4, %s427
          %s429 = sshll.u32 %s416, 4
          %s430 = int_to_ptr.vmem [resolvable:$true] %s429
          %435 = dma.vmem_to_hbm [thread:$0]  %s430, 2048, %s428, %s413, 128, 128, 8
        $region40: #{_lambda_.7} parent=35 // pred_fallthru
          _
      $region36: #{_lambda_.7} parent=5 // pred_fallthru
        _
      %p436 = scmp.le.s32.totalorder 2, %s13
      // Predicated region
      $region41: #{_lambda_.7} parent=5 // pred_check
        %p437 = pneg %p436
      $region42: #{_lambda_.7} parent=5 // pred_check_branch
        %439 = sbr.rel (%p437) target = $region44
      $region43: #{_lambda_.7} parent=5 // pred_region
        %s440 = ssub.s32 %s13, 2
        // Predicated region
        $region45: #{_lambda_.7} parent=43 // pred_check
          %p441 = pneg %p154
        $region46: #{_lambda_.7} parent=43 // pred_check_branch
          %443 = sbr.rel (%p441) target = $region48
        $region47: #{_lambda_.7} parent=43 // pred_region
          %s444 = sand.u32 %s139, 1
          %s445 = scalar_lea.sflag [#allocation3], %s444
          %s446 = sand.u32 %s139, 1
          %s447 = smul.addr %s446, 128
          %s448 = scalar_lea.vmem [#allocation2], %s447
          %449 = dma.done %s445, 2048
        $region48: #{_lambda_.7} parent=43 // pred_fallthru
          _
      $region44: #{_lambda_.7} parent=5 // pred_fallthru
        _
    $region6: #{_lambda_.7} parent=1 // loop_footer
      %s17 = sadd.s32 1, %s13
    $region7: #{_lambda_.7} parent=1 // loop_footer_branch
      %12 = sbr.rel target = $region3
    $region8: #{_lambda_.7} parent=1 // loop_exit
      _
    %450 = vsyncpa [#allocation3], 1
    %s451 = scalar_lea.sflag [#allocation3], 1
    %452 = vsyncpa %s451, 1

// kernel: _lambda_.6
$region0: #{_lambda_.6}
  #allocation0 [shape = 'u32[]', space=smem, size = 0x4, offset = 0x4, fixed_abs, tag = 'smem constant byte address 0x4 - core index']
  #allocation1 [shape = 'u32[144,128]{1,0:T(1,128)}', space=vmem, size = 0x12000, scoped, tag = 'internal scratch']
  %s0 = inlined_call_operand.vmem [shape: bf16[2,16,16,8], index: 0, kind: input, shape index: {}]
  %s1 = inlined_call_operand.vmem [shape: f32[1,8], index: 1, kind: input, shape index: {}]
  %s2 = inlined_call_operand.vmem [shape: f32[1,8], index: 2, kind: input, shape index: {}]
  %s3 = inlined_call_operand.vmem [shape: bf16[8,32], index: 3, kind: input, shape index: {}]
  %s4 = inlined_call_operand.vmem [shape: bf16[2,16,16,32], index: 4, kind: output, shape index: {0}]
  %s5 = inlined_call_operand.vmem [shape: f32[2,2,2,32], index: 5, kind: output, shape index: {1}]
  %6 = xla_tuple %s4, %s5
  %s7 = sld [smem:[#allocation0]]
  $region57: #{_lambda_.6} parent=0
    _
  %s9 = ssub.s32 1, %s7
  %s10 = scalar_select 0, %s9, %s7
  loop: start=0, step=1, limit=6
  $region2: #{_lambda_.6} parent=0 // loop_pre_header
    _
  $region3: #{_lambda_.6} parent=0 // loop_header
    %s12 = sphi 0, %s16
    %p13 = scmp.ge.s32.totalorder %s12, 6
    %s19 = sphi 0, %s31
    %s20 = sphi 0, %s27
    %s21 = sphi 0, %s19
    %s22 = sphi 0, %s20
    %s23 = sphi 0, %s21
    %s24 = sphi 0, %s22
    %s36 = sphi 0, %s38
    %s39 = sphi 0, %s36
    %s40 = sphi 0, %s39
    %s56 = sphi 0, %s40
    %s60 = sphi 0, %s60
    %s62 = sphi 0, %s60
    %s63 = sphi 0, %s62
    %s77 = sphi 0, %s63
    %s81 = sphi 0, %s81
    %s83 = sphi 0, %s81
    %s84 = sphi 0, %s83
    %s98 = sphi 0, %s84
    %s102 = sphi 0, %s102
    %s104 = sphi 0, %s102
    %s105 = sphi 0, %s104
    %s119 = sphi 0, %s105
    %s127 = sphi 0, %s129
    %s130 = sphi 0, %s127
    %s131 = sphi 0, %s130
    %s147 = sphi 0, %s131
    %s155 = sphi 0, %s157
    %s158 = sphi 0, %s155
    %s159 = sphi 0, %s158
    %s175 = sphi 0, %s159
  $region4: #{_lambda_.6} parent=0 // loop_header_branch
    %15 = sbr.rel (%p13) target = $region8
  $region5: #{_lambda_.6} parent=0 // loop_body
    %s17 = ssub.s32 %s12, 1
    %s18 = ssub.s32 %s12, 2
    %s25 = sadd.s32 1, %s20
    %p26 = scmp.ge.s32.totalorder %s25, 2
    %s27 = scalar_select %p26, 0, %s25
    %s28 = sadd.s32 1, %s19
    %s29 = scalar_select %p26, %s28, %s19
    %p30 = scmp.ge.s32.totalorder %s29, 2
    %s31 = scalar_select %p30, 0, %s29
    %s32 = ssub.s32 %s19, %s31
    %s33 = ssub.s32 %s20, %s27
    %s34 = sor.u32 %s32, %s33
    %p35 = scmp.eq.s32.totalorder %s34, 0
    %s37 = sadd.s32 %s36, 1
    %s38 = scalar_select %p35, %s36, %s37
    %p41 = pneg %p35
    %p42 = scmp.eq.s32.totalorder %s12, 3
    %p43 = por %p41, %p42
    %p44 = scmp.ne.s32.totalorder %s36, %s39
    %p45 = scmp.eq.s32.totalorder %s12, 0
    %p46 = por %p44, %p45
    %p47 = scmp.ne.s32.totalorder %s36, %s39
    %p48 = scmp.eq.s32.totalorder %s17, 3
    %p49 = por %p47, %p48
    %p50 = scmp.ne.s32.totalorder %s39, %s40
    %p51 = scmp.eq.s32.totalorder %s17, 0
    %p52 = por %p50, %p51
    %p53 = scmp.ne.s32.totalorder %s39, %s40
    %p54 = scmp.eq.s32.totalorder %s18, 3
    %p55 = por %p53, %p54
    %p57 = scmp.ne.s32.totalorder %s40, %s56
    %p58 = scmp.eq.s32.totalorder %s18, 0
    %p59 = por %p57, %p58
    %s61 = sadd.s32 %s60, 1
    %p64 = scmp.eq.s32.totalorder %s12, 3
    %p65 = scmp.ne.s32.totalorder %s60, %s62
    %p66 = scmp.eq.s32.totalorder %s12, 0
    %p67 = por %p65, %p66
    %p68 = scmp.ne.s32.totalorder %s60, %s62
    %p69 = scmp.eq.s32.totalorder %s17, 3
    %p70 = por %p68, %p69
    %p71 = scmp.ne.s32.totalorder %s62, %s63
    %p72 = scmp.eq.s32.totalorder %s17, 0
    %p73 = por %p71, %p72
    %p74 = scmp.ne.s32.totalorder %s62, %s63
    %p75 = scmp.eq.s32.totalorder %s18, 3
    %p76 = por %p74, %p75
    %p78 = scmp.ne.s32.totalorder %s63, %s77
    %p79 = scmp.eq.s32.totalorder %s18, 0
    %p80 = por %p78, %p79
    %s82 = sadd.s32 %s81, 1
    %p85 = scmp.eq.s32.totalorder %s12, 3
    %p86 = scmp.ne.s32.totalorder %s81, %s83
    %p87 = scmp.eq.s32.totalorder %s12, 0
    %p88 = por %p86, %p87
    %p89 = scmp.ne.s32.totalorder %s81, %s83
    %p90 = scmp.eq.s32.totalorder %s17, 3
    %p91 = por %p89, %p90
    %p92 = scmp.ne.s32.totalorder %s83, %s84
    %p93 = scmp.eq.s32.totalorder %s17, 0
    %p94 = por %p92, %p93
    %p95 = scmp.ne.s32.totalorder %s83, %s84
    %p96 = scmp.eq.s32.totalorder %s18, 3
    %p97 = por %p95, %p96
    %p99 = scmp.ne.s32.totalorder %s84, %s98
    %p100 = scmp.eq.s32.totalorder %s18, 0
    %p101 = por %p99, %p100
    %s103 = sadd.s32 %s102, 1
    %p106 = scmp.eq.s32.totalorder %s12, 3
    %p107 = scmp.ne.s32.totalorder %s102, %s104
    %p108 = scmp.eq.s32.totalorder %s12, 0
    %p109 = por %p107, %p108
    %p110 = scmp.ne.s32.totalorder %s102, %s104
    %p111 = scmp.eq.s32.totalorder %s17, 3
    %p112 = por %p110, %p111
    %p113 = scmp.ne.s32.totalorder %s104, %s105
    %p114 = scmp.eq.s32.totalorder %s17, 0
    %p115 = por %p113, %p114
    %p116 = scmp.ne.s32.totalorder %s104, %s105
    %p117 = scmp.eq.s32.totalorder %s18, 3
    %p118 = por %p116, %p117
    %p120 = scmp.ne.s32.totalorder %s105, %s119
    %p121 = scmp.eq.s32.totalorder %s18, 0
    %p122 = por %p120, %p121
    %s123 = ssub.s32 %s19, %s31
    %s124 = ssub.s32 %s20, %s27
    %s125 = sor.u32 %s123, %s124
    %p126 = scmp.eq.s32.totalorder %s125, 0
    %s128 = sadd.s32 %s127, 1
    %s129 = scalar_select %p126, %s127, %s128
    %p132 = pneg %p126
    %p133 = scmp.eq.s32.totalorder %s12, 3
    %p134 = por %p132, %p133
    %p135 = scmp.ne.s32.totalorder %s127, %s130
    %p136 = scmp.eq.s32.totalorder %s12, 0
    %p137 = por %p135, %p136
    %p138 = scmp.ne.s32.totalorder %s127, %s130
    %p139 = scmp.eq.s32.totalorder %s17, 3
    %p140 = por %p138, %p139
    %p141 = scmp.ne.s32.totalorder %s130, %s131
    %p142 = scmp.eq.s32.totalorder %s17, 0
    %p143 = por %p141, %p142
    %p144 = scmp.ne.s32.totalorder %s130, %s131
    %p145 = scmp.eq.s32.totalorder %s18, 3
    %p146 = por %p144, %p145
    %p148 = scmp.ne.s32.totalorder %s131, %s147
    %p149 = scmp.eq.s32.totalorder %s18, 0
    %p150 = por %p148, %p149
    %s151 = ssub.s32 %s19, %s31
    %s152 = ssub.s32 %s20, %s27
    %s153 = sor.u32 %s151, %s152
    %p154 = scmp.eq.s32.totalorder %s153, 0
    %s156 = sadd.s32 %s155, 1
    %s157 = scalar_select %p154, %s155, %s156
    %p160 = pneg %p154
    %p161 = scmp.eq.s32.totalorder %s12, 3
    %p162 = por %p160, %p161
    %p163 = scmp.ne.s32.totalorder %s155, %s158
    %p164 = scmp.eq.s32.totalorder %s12, 0
    %p165 = por %p163, %p164
    %p166 = scmp.ne.s32.totalorder %s155, %s158
    %p167 = scmp.eq.s32.totalorder %s17, 3
    %p168 = por %p166, %p167
    %p169 = scmp.ne.s32.totalorder %s158, %s159
    %p170 = scmp.eq.s32.totalorder %s17, 0
    %p171 = por %p169, %p170
    %p172 = scmp.ne.s32.totalorder %s158, %s159
    %p173 = scmp.eq.s32.totalorder %s18, 3
    %p174 = por %p172, %p173
    %p176 = scmp.ne.s32.totalorder %s159, %s175
    %p177 = scmp.eq.s32.totalorder %s18, 0
    %p178 = por %p176, %p177
    %p179 = scmp.le.s32.totalorder 1, %s12
    %p180 = scmp.lt.s32.totalorder %s12, 5
    %p181 = pnand %p179, %p180
    %p182 = pneg %p181
    // Predicated region
    $region9: #{_lambda_.6} parent=5 // pred_check
      _
    $region10: #{_lambda_.6} parent=5 // pred_check_branch
      %184 = sbr.rel (%p181) target = $region12
    $region11: #{_lambda_.6} parent=5 // pred_region
      %s185 = ssub.s32 %s12, 1
      // Predicated region
      $region13: #{_lambda_.6} parent=11 // pred_check
        %p186 = pneg %p73
      $region14: #{_lambda_.6} parent=11 // pred_check_branch
        %188 = sbr.rel (%p186) target = $region16
      $region15: #{_lambda_.6} parent=11 // pred_region
        _
      $region16: #{_lambda_.6} parent=11 // pred_fallthru
        _
      // Predicated region
      $region17: #{_lambda_.6} parent=11 // pred_check
        %p189 = pneg %p94
      $region18: #{_lambda_.6} parent=11 // pred_check_branch
        %191 = sbr.rel (%p189) target = $region20
      $region19: #{_lambda_.6} parent=11 // pred_region
        _
      $region20: #{_lambda_.6} parent=11 // pred_fallthru
        _
      // Predicated region
      $region21: #{_lambda_.6} parent=11 // pred_check
        %p192 = pneg %p115
      $region22: #{_lambda_.6} parent=11 // pred_check_branch
        %194 = sbr.rel (%p192) target = $region24
      $region23: #{_lambda_.6} parent=11 // pred_region
        _
      $region24: #{_lambda_.6} parent=11 // pred_fallthru
        _
    $region12: #{_lambda_.6} parent=5 // pred_fallthru
      _
    %p195 = scmp.lt.s32.totalorder %s12, 4
    // Predicated region
    $region25: #{_lambda_.6} parent=5 // pred_check
      %p196 = pneg %p195
    $region26: #{_lambda_.6} parent=5 // pred_check_branch
      %198 = sbr.rel (%p196) target = $region28
    $region27: #{_lambda_.6} parent=5 // pred_region
      // Predicated region
      $region29: #{_lambda_.6} parent=27 // pred_check
        %p199 = pneg %p46
      $region30: #{_lambda_.6} parent=27 // pred_check_branch
        %201 = sbr.rel (%p199) target = $region32
      $region31: #{_lambda_.6} parent=27 // pred_region
        %s202 = smul.u32 8, %s20
        %p203 = scmp.lt.s32.totalorder %s19, 1
        %s204 = scalar_select %p203, %s19, 1
        %p205 = scmp.lt.s32.totalorder %s202, 15
        %s206 = scalar_select %p205, %s202, 15
        %s207 = smul.addr %s206, 2
        %s208 = smul.addr %s204, 32
        %s209 = sadd.s32 %s207, %s208
        %s210 = smul.addr %s209, 4
        %s211 = scalar_lea.vmem %s0, %s210
        %s212 = smul.u32 8, %s20
      $region32: #{_lambda_.6} parent=27 // pred_fallthru
        _
    $region28: #{_lambda_.6} parent=5 // pred_fallthru
      _
    %p213 = scmp.le.s32.totalorder 1, %s12
    %p214 = scmp.lt.s32.totalorder %s12, 5
    %p215 = pnand %p213, %p214
    %p216 = pneg %p215
    // Predicated region
    $region33: #{_lambda_.6} parent=5 // pred_check
      _
    $region34: #{_lambda_.6} parent=5 // pred_check_branch
      %218 = sbr.rel (%p215) target = $region36
    $region35: #{_lambda_.6} parent=5 // pred_region
      %s219 = ssub.s32 %s12, 1
      %s220 = smul.u32 8, %s22
      %p221 = scmp.lt.s32.totalorder %s21, 1
      %s222 = scalar_select %p221, %s21, 1
      %p223 = scmp.lt.s32.totalorder %s220, 15
      %s224 = scalar_select %p223, %s220, 15
      %s225 = smul.addr %s224, 2
      %s226 = smul.addr %s222, 32
      %s227 = sadd.s32 %s225, %s226
      %s228 = smul.addr %s227, 4
      %s229 = scalar_lea.vmem %s0, %s228
      %p230 = pneg %p52
      %p231 = pneg %p49
      %p232 = pneg %p73
      %p233 = pneg %p70
      %p234 = pneg %p94
      %p235 = pneg %p91
      %p236 = pneg %p115
      %p237 = pneg %p112
      %p238 = pneg %p143
      %p239 = pneg %p140
      %s240 = smul.u32 8, %s22
      %p241 = scmp.lt.s32.totalorder %s21, 1
      %s242 = scalar_select %p241, %s21, 1
      %p243 = scmp.lt.s32.totalorder %s240, 15
      %s244 = scalar_select %p243, %s240, 15
      %s245 = smul.addr %s244, 2
      %s246 = smul.addr %s242, 32
      %s247 = sadd.s32 %s245, %s246
      %s248 = smul.addr %s247, 4
      %s249 = scalar_lea.vmem %s4, %s248
      %p250 = pneg %p171
      %p251 = pneg %p168
      %p252 = scmp.lt.s32.totalorder %s21, 1
      %s253 = scalar_select %p252, %s21, 1
      %p254 = scmp.lt.s32.totalorder %s22, 1
      %s255 = scalar_select %p254, %s22, 1
      %s256 = smul.addr %s253, 2
      %s257 = sadd.s32 %s255, %s256
      %s258 = smul.addr %s257, 2
      %s259 = scalar_lea.vmem %s5, %s258
      %s260 = smul.u32 8, %s22
      %p261 = scmp.lt.s32.totalorder %s21, 1
      %s262 = scalar_select %p261, %s21, 1
      %p263 = scmp.lt.s32.totalorder %s260, 15
      %s264 = scalar_select %p263, %s260, 15
      %s265 = smul.addr %s264, 2
      %s266 = smul.addr %s262, 32
      %s267 = sadd.s32 %s265, %s266
      %s268 = smul.addr %s267, 4
      %s269 = scalar_lea.vmem %s0, %s268
      %s270 = smul.u32 8, %s22
      %s271 = smul.u32 8, %s22
      %p272 = scmp.lt.s32.totalorder %s21, 1
      %s273 = scalar_select %p272, %s21, 1
      %p274 = scmp.lt.s32.totalorder %s271, 15
      %s275 = scalar_select %p274, %s271, 15
      %s276 = smul.addr %s275, 2
      %s277 = smul.addr %s273, 32
      %s278 = sadd.s32 %s276, %s277
      %s279 = smul.addr %s278, 4
      %s280 = scalar_lea.vmem %s4, %s279
      %s281 = smul.u32 8, %s22
      %p282 = scmp.lt.s32.totalorder %s21, 1
      %s283 = scalar_select %p282, %s21, 1
      %p284 = scmp.lt.s32.totalorder %s22, 1
      %s285 = scalar_select %p284, %s22, 1
      %s286 = smul.addr %s283, 2
      %s287 = sadd.s32 %s285, %s286
      %s288 = smul.addr %s287, 2
      %s289 = scalar_lea.vmem %s5, %s288
      %v291 = vld [vmem:[%s269] sm:$0xf]
      %v292 = vld [vmem:[%s269 + $0x4] sm:$0xf]
      %v293 = vld [vmem:[%s269 + $0x8] sm:$0xf]
      %v294 = vld [vmem:[%s269 + $0xc] sm:$0xf]
      %v295 = vld [vmem:[%s269 + $0x10] sm:$0xf]
      %v296 = vld [vmem:[%s269 + $0x14] sm:$0xf]
      %v297 = vld [vmem:[%s269 + $0x18] sm:$0xf]
      %v298 = vld [vmem:[%s269 + $0x1c] sm:$0xf]
      %v299 = vld [vmem:[%s269 + $0x20] sm:$0xf]
      %v300 = vld [vmem:[%s269 + $0x24] sm:$0xf]
      %v301 = vld [vmem:[%s269 + $0x28] sm:$0xf]
      %v302 = vld [vmem:[%s269 + $0x2c] sm:$0xf]
      %v303 = vld [vmem:[%s269 + $0x30] sm:$0xf]
      %v304 = vld [vmem:[%s269 + $0x34] sm:$0xf]
      %v305 = vld [vmem:[%s269 + $0x38] sm:$0xf]
      %v306 = vld [vmem:[%s269 + $0x3c] sm:$0xf]
      %v307 = vunpack.c.l.bf16 %v291
      %v308 = vunpack.c.l.bf16 %v292
      %v309 = vunpack.c.l.bf16 %v293
      %v310 = vunpack.c.l.bf16 %v294
      %v311 = vunpack.c.l.bf16 %v295
      %v312 = vunpack.c.l.bf16 %v296
      %v313 = vunpack.c.l.bf16 %v297
      %v314 = vunpack.c.l.bf16 %v298
      %v315 = vunpack.c.l.bf16 %v299
      %v316 = vunpack.c.l.bf16 %v300
      %v317 = vunpack.c.l.bf16 %v301
      %v318 = vunpack.c.l.bf16 %v302
      %v319 = vunpack.c.l.bf16 %v303
      %v320 = vunpack.c.l.bf16 %v304
      %v321 = vunpack.c.l.bf16 %v305
      %v322 = vunpack.c.l.bf16 %v306
      %v323 = vld [vmem:[%s1] sm:$0x1]
      %v325 = vlaneseq
      %v326 = vshrl.u32 %v325, 7
      %v327 = vsub.s32 0, %v326
      %v328 = vrot.slane %v323, %v327
      %v330 = vmul.f32 %v307, %v328
      %v331 = vmul.f32 %v308, %v328
      %v332 = vmul.f32 %v309, %v328
      %v333 = vmul.f32 %v310, %v328
      %v334 = vmul.f32 %v311, %v328
      %v335 = vmul.f32 %v312, %v328
      %v336 = vmul.f32 %v313, %v328
      %v337 = vmul.f32 %v314, %v328
      %v338 = vmul.f32 %v315, %v328
      %v339 = vmul.f32 %v316, %v328
      %v340 = vmul.f32 %v317, %v328
      %v341 = vmul.f32 %v318, %v328
      %v342 = vmul.f32 %v319, %v328
      %v343 = vmul.f32 %v320, %v328
      %v344 = vmul.f32 %v321, %v328
      %v345 = vmul.f32 %v322, %v328
      %v346 = vld [vmem:[%s2] sm:$0x1]
      %v348 = vlaneseq
      %v349 = vshrl.u32 %v348, 7
      %v350 = vsub.s32 0, %v349
      %v351 = vrot.slane %v346, %v350
      %v353 = vadd.f32 %v330, %v351
      %v354 = vadd.f32 %v331, %v351
      %v355 = vadd.f32 %v332, %v351
      %v356 = vadd.f32 %v333, %v351
      %v357 = vadd.f32 %v334, %v351
      %v358 = vadd.f32 %v335, %v351
      %v359 = vadd.f32 %v336, %v351
      %v360 = vadd.f32 %v337, %v351
      %v361 = vadd.f32 %v338, %v351
      %v362 = vadd.f32 %v339, %v351
      %v363 = vadd.f32 %v340, %v351
      %v364 = vadd.f32 %v341, %v351
      %v365 = vadd.f32 %v342, %v351
      %v366 = vadd.f32 %v343, %v351
      %v367 = vadd.f32 %v344, %v351
      %v368 = vadd.f32 %v345, %v351
      %v369 = vmax.f32 %v353, 0.0
      %v370 = vmax.f32 %v354, 0.0
      %v371 = vmax.f32 %v355, 0.0
      %v372 = vmax.f32 %v356, 0.0
      %v373 = vmax.f32 %v357, 0.0
      %v374 = vmax.f32 %v358, 0.0
      %v375 = vmax.f32 %v359, 0.0
      %v376 = vmax.f32 %v360, 0.0
      %v377 = vmax.f32 %v361, 0.0
      %v378 = vmax.f32 %v362, 0.0
      %v379 = vmax.f32 %v363, 0.0
      %v380 = vmax.f32 %v364, 0.0
      %v381 = vmax.f32 %v365, 0.0
      %v382 = vmax.f32 %v366, 0.0
      %v383 = vmax.f32 %v367, 0.0
      %v384 = vmax.f32 %v368, 0.0
      %v385 = vpack.c.bf16 %v370, %v369
      %v386 = vpack.c.bf16 %v372, %v371
      %v387 = vpack.c.bf16 %v374, %v373
      %v388 = vpack.c.bf16 %v376, %v375
      %v389 = vpack.c.bf16 %v378, %v377
      %v390 = vpack.c.bf16 %v380, %v379
      %v391 = vpack.c.bf16 %v382, %v381
      %v392 = vpack.c.bf16 %v384, %v383
      %v393 = vld [vmem:[%s3] sm:$0xf]
      %vm394 = vcmask 64512
      %v396 = vsel %vm394, %v385, 0
      %v399 = vsel %vm394, %v386, 0
      %v402 = vsel %vm394, %v387, 0
      %v405 = vsel %vm394, %v388, 0
      %v408 = vsel %vm394, %v389, 0
      %v411 = vsel %vm394, %v390, 0
      %v414 = vsel %vm394, %v391, 0
      %v417 = vsel %vm394, %v392, 0
      %vm419 = vcmask 1043456
      %v421 = vsel %vm419, %v393, 0
      %423 = vmatprep.subr.bf16.mxu0 0
      %424 = vmatpush1.bf16.msra.mxu0 0
      %425 = vmatprep.subr.bf16.mxu0 0
      %426 = vmatpush1.bf16.msra.mxu0 0
      %427 = vmatprep.subr.bf16.mxu0 0
      %428 = vmatpush1.bf16.msra.mxu0 0
      %429 = vmatprep.subr.bf16.mxu0 0
      %430 = vmatpush1.bf16.msra.mxu0 0
      %431 = vmatprep.subr.bf16.mxu0 0
      %432 = vmatpush1.bf16.msra.mxu0 0
      %433 = vmatprep.subr.bf16.mxu0 0
      %434 = vmatpush1.bf16.msra.mxu0 0
      %435 = vmatprep.subr.bf16.mxu0 0
      %436 = vmatpush1.bf16.msra.mxu0 0
      %437 = vmatprep.subr.bf16.mxu0 0
      %438 = vmatpush1.bf16.msra.mxu0 %v421
      %439 = vmatprep.subr.bf16.mxu0 0
      %440 = vmatpush2.bf16.msra.mxu0 0
      %441 = vmatprep.subr.bf16.mxu0 0
      %442 = vmatpush2.bf16.msra.mxu0 0
      %443 = vmatprep.subr.bf16.mxu0 0
      %444 = vmatpush2.bf16.msra.mxu0 0
      %445 = vmatprep.subr.bf16.mxu0 0
      %446 = vmatpush2.bf16.msra.mxu0 0
      %447 = vmatprep.subr.bf16.mxu0 0
      %448 = vmatpush2.bf16.msra.mxu0 0
      %449 = vmatprep.subr.bf16.mxu0 0
      %450 = vmatpush2.bf16.msra.mxu0 0
      %451 = vmatprep.subr.bf16.mxu0 0
      %452 = vmatpush2.bf16.msra.mxu0 0
      %453 = vmatprep.subr.bf16.mxu0 0
      %454 = vmatpush2.bf16.msra.mxu0 0
      %455 = vmatprep.mubr.bf16.mxu0 0
      %456 = vmatmul.mubr.bf16.gmra.mxu0 %v396
      %v457 = vpop.f32.mrf.mxu0
      %v458 = vadd.f32 0.0, %v457
      %v459 = vpop.f32.mrf.mxu0
      %v460 = vpop.f32.mrf.mxu0
      %v461 = vadd.f32 0.0, %v460
      %v462 = vpop.f32.mrf.mxu0
      %463 = vmatprep.mubr.bf16.mxu0 0
      %464 = vmatmul.mubr.bf16.gmra.mxu0 %v399
      %v465 = vpop.f32.mrf.mxu0
      %v466 = vadd.f32 0.0, %v465
      %v467 = vpop.f32.mrf.mxu0
      %v468 = vpop.f32.mrf.mxu0
      %v469 = vadd.f32 0.0, %v468
      %v470 = vpop.f32.mrf.mxu0
      %471 = vmatprep.mubr.bf16.mxu0 0
      %472 = vmatmul.mubr.bf16.gmra.mxu0 %v402
      %v473 = vpop.f32.mrf.mxu0
      %v474 = vadd.f32 0.0, %v473
      %v475 = vpop.f32.mrf.mxu0
      %v476 = vpop.f32.mrf.mxu0
      %v477 = vadd.f32 0.0, %v476
      %v478 = vpop.f32.mrf.mxu0
      %479 = vmatprep.mubr.bf16.mxu0 0
      %480 = vmatmul.mubr.bf16.gmra.mxu0 %v405
      %v481 = vpop.f32.mrf.mxu0
      %v482 = vadd.f32 0.0, %v481
      %v483 = vpop.f32.mrf.mxu0
      %v484 = vpop.f32.mrf.mxu0
      %v485 = vadd.f32 0.0, %v484
      %v486 = vpop.f32.mrf.mxu0
      %487 = vmatprep.mubr.bf16.mxu0 0
      %488 = vmatmul.mubr.bf16.gmra.mxu0 %v408
      %v489 = vpop.f32.mrf.mxu0
      %v490 = vadd.f32 0.0, %v489
      %v491 = vpop.f32.mrf.mxu0
      %v492 = vpop.f32.mrf.mxu0
      %v493 = vadd.f32 0.0, %v492
      %v494 = vpop.f32.mrf.mxu0
      %495 = vmatprep.mubr.bf16.mxu0 0
      %496 = vmatmul.mubr.bf16.gmra.mxu0 %v411
      %v497 = vpop.f32.mrf.mxu0
      %v498 = vadd.f32 0.0, %v497
      %v499 = vpop.f32.mrf.mxu0
      %v500 = vpop.f32.mrf.mxu0
      %v501 = vadd.f32 0.0, %v500
      %v502 = vpop.f32.mrf.mxu0
      %503 = vmatprep.mubr.bf16.mxu0 0
      %504 = vmatmul.mubr.bf16.gmra.mxu0 %v414
      %v505 = vpop.f32.mrf.mxu0
      %v506 = vadd.f32 0.0, %v505
      %v507 = vpop.f32.mrf.mxu0
      %v508 = vpop.f32.mrf.mxu0
      %v509 = vadd.f32 0.0, %v508
      %v510 = vpop.f32.mrf.mxu0
      %511 = vmatprep.mubr.bf16.mxu0 0
      %512 = vmatmul.mubr.bf16.gmra.mxu0 %v417
      %v513 = vpop.f32.mrf.mxu0
      %v514 = vadd.f32 0.0, %v513
      %v515 = vpop.f32.mrf.mxu0
      %v516 = vpop.f32.mrf.mxu0
      %v517 = vadd.f32 0.0, %v516
      %v518 = vpop.f32.mrf.mxu0
      %519 = vdwg.mxu0
      %v520 = vpack.c.bf16 %v461, %v458
      %v521 = vpack.c.bf16 %v469, %v466
      %v522 = vpack.c.bf16 %v477, %v474
      %v523 = vpack.c.bf16 %v485, %v482
      %v524 = vpack.c.bf16 %v493, %v490
      %v525 = vpack.c.bf16 %v501, %v498
      %v526 = vpack.c.bf16 %v509, %v506
      %v527 = vpack.c.bf16 %v517, %v514
      %v536 = vunpack.c.l.b16 %v520
      %v537 = vunpack.c.h.b16 %v520
      %v538 = vunpack.c.l.b16 %v521
      %v539 = vunpack.c.h.b16 %v521
      %v540 = vunpack.c.l.b16 %v522
      %v541 = vunpack.c.h.b16 %v522
      %v542 = vunpack.c.l.b16 %v523
      %v543 = vunpack.c.h.b16 %v523
      %v544 = vunpack.c.l.b16 %v524
      %v545 = vunpack.c.h.b16 %v524
      %v546 = vunpack.c.l.b16 %v525
      %v547 = vunpack.c.h.b16 %v525
      %v548 = vunpack.c.l.b16 %v526
      %v549 = vunpack.c.h.b16 %v526
      %v550 = vunpack.c.l.b16 %v527
      %v551 = vunpack.c.h.b16 %v527
      %v552 = vpack.c.b16 %v536, %v536
      %v553 = vpack.c.b16 %v537, %v537
      %v554 = vpack.c.b16 %v538, %v538
      %v555 = vpack.c.b16 %v539, %v539
      %v556 = vpack.c.b16 %v540, %v540
      %v557 = vpack.c.b16 %v541, %v541
      %v558 = vpack.c.b16 %v542, %v542
      %v559 = vpack.c.b16 %v543, %v543
      %v560 = vpack.c.b16 %v544, %v544
      %v561 = vpack.c.b16 %v545, %v545
      %v562 = vpack.c.b16 %v546, %v546
      %v563 = vpack.c.b16 %v547, %v547
      %v564 = vpack.c.b16 %v548, %v548
      %v565 = vpack.c.b16 %v549, %v549
      %v566 = vpack.c.b16 %v550, %v550
      %v567 = vpack.c.b16 %v551, %v551
      %vm584 = vcmask 257024
      %585 = vst.msk [vmem:[%s280] sm:$0xf] %vm584, %v552
      %586 = vst.msk [vmem:[%s280 + $0x4] sm:$0xf] %vm584, %v553
      %587 = vst.msk [vmem:[%s280 + $0x8] sm:$0xf] %vm584, %v554
      %588 = vst.msk [vmem:[%s280 + $0xc] sm:$0xf] %vm584, %v555
      %589 = vst.msk [vmem:[%s280 + $0x10] sm:$0xf] %vm584, %v556
      %590 = vst.msk [vmem:[%s280 + $0x14] sm:$0xf] %vm584, %v557
      %591 = vst.msk [vmem:[%s280 + $0x18] sm:$0xf] %vm584, %v558
      %592 = vst.msk [vmem:[%s280 + $0x1c] sm:$0xf] %vm584, %v559
      %593 = vst.msk [vmem:[%s280 + $0x20] sm:$0xf] %vm584, %v560
      %594 = vst.msk [vmem:[%s280 + $0x24] sm:$0xf] %vm584, %v561
      %595 = vst.msk [vmem:[%s280 + $0x28] sm:$0xf] %vm584, %v562
      %596 = vst.msk [vmem:[%s280 + $0x2c] sm:$0xf] %vm584, %v563
      %597 = vst.msk [vmem:[%s280 + $0x30] sm:$0xf] %vm584, %v564
      %598 = vst.msk [vmem:[%s280 + $0x34] sm:$0xf] %vm584, %v565
      %599 = vst.msk [vmem:[%s280 + $0x38] sm:$0xf] %vm584, %v566
      %600 = vst.msk [vmem:[%s280 + $0x3c] sm:$0xf] %vm584, %v567
      %vm601 = vcmask 261120
      %v602 = vsel %vm601, %v458, 0.0
      %v603 = vsel %vm601, %v461, 0.0
      %v604 = vadd.f32 %v602, %v603
      %v605 = vsel %vm601, %v466, 0.0
      %v606 = vadd.f32 %v604, %v605
      %v607 = vsel %vm601, %v469, 0.0
      %v608 = vadd.f32 %v606, %v607
      %v609 = vsel %vm601, %v474, 0.0
      %v610 = vadd.f32 %v608, %v609
      %v611 = vsel %vm601, %v477, 0.0
      %v612 = vadd.f32 %v610, %v611
      %v613 = vsel %vm601, %v482, 0.0
      %v614 = vadd.f32 %v612, %v613
      %v615 = vsel %vm601, %v485, 0.0
      %v616 = vadd.f32 %v614, %v615
      %v617 = vsel %vm601, %v490, 0.0
      %v618 = vadd.f32 %v616, %v617
      %v619 = vsel %vm601, %v493, 0.0
      %v620 = vadd.f32 %v618, %v619
      %v621 = vsel %vm601, %v498, 0.0
      %v622 = vadd.f32 %v620, %v621
      %v623 = vsel %vm601, %v501, 0.0
      %v624 = vadd.f32 %v622, %v623
      %v625 = vsel %vm601, %v506, 0.0
      %v626 = vadd.f32 %v624, %v625
      %v627 = vsel %vm601, %v509, 0.0
      %v628 = vadd.f32 %v626, %v627
      %v629 = vsel %vm601, %v514, 0.0
      %v630 = vadd.f32 %v628, %v629
      %v631 = vsel %vm601, %v517, 0.0
      %v632 = vadd.f32 %v630, %v631
      %v633 = vrot.slane %v632, 4
      %v634 = vadd.f32 %v632, %v633
      %v635 = vrot.slane %v634, 2
      %v636 = vadd.f32 %v634, %v635
      %v637 = vrot.slane %v636, 1
      %v638 = vadd.f32 %v636, %v637
      %vm639 = vcmask 253952
      %640 = vst.msk [vmem:[%s289] sm:$0x1] %vm639, %v638
      %v641 = vmul.f32 %v458, %v458
      %v642 = vmul.f32 %v461, %v461
      %v643 = vmul.f32 %v466, %v466
      %v644 = vmul.f32 %v469, %v469
      %v645 = vmul.f32 %v474, %v474
      %v646 = vmul.f32 %v477, %v477
      %v647 = vmul.f32 %v482, %v482
      %v648 = vmul.f32 %v485, %v485
      %v649 = vmul.f32 %v490, %v490
      %v650 = vmul.f32 %v493, %v493
      %v651 = vmul.f32 %v498, %v498
      %v652 = vmul.f32 %v501, %v501
      %v653 = vmul.f32 %v506, %v506
      %v654 = vmul.f32 %v509, %v509
      %v655 = vmul.f32 %v514, %v514
      %v656 = vmul.f32 %v517, %v517
      %v657 = vsel %vm601, %v641, 0.0
      %v658 = vsel %vm601, %v642, 0.0
      %v659 = vadd.f32 %v657, %v658
      %v660 = vsel %vm601, %v643, 0.0
      %v661 = vadd.f32 %v659, %v660
      %v662 = vsel %vm601, %v644, 0.0
      %v663 = vadd.f32 %v661, %v662
      %v664 = vsel %vm601, %v645, 0.0
      %v665 = vadd.f32 %v663, %v664
      %v666 = vsel %vm601, %v646, 0.0
      %v667 = vadd.f32 %v665, %v666
      %v668 = vsel %vm601, %v647, 0.0
      %v669 = vadd.f32 %v667, %v668
      %v670 = vsel %vm601, %v648, 0.0
      %v671 = vadd.f32 %v669, %v670
      %v672 = vsel %vm601, %v649, 0.0
      %v673 = vadd.f32 %v671, %v672
      %v674 = vsel %vm601, %v650, 0.0
      %v675 = vadd.f32 %v673, %v674
      %v676 = vsel %vm601, %v651, 0.0
      %v677 = vadd.f32 %v675, %v676
      %v678 = vsel %vm601, %v652, 0.0
      %v679 = vadd.f32 %v677, %v678
      %v680 = vsel %vm601, %v653, 0.0
      %v681 = vadd.f32 %v679, %v680
      %v682 = vsel %vm601, %v654, 0.0
      %v683 = vadd.f32 %v681, %v682
      %v684 = vsel %vm601, %v655, 0.0
      %v685 = vadd.f32 %v683, %v684
      %v686 = vsel %vm601, %v656, 0.0
      %v687 = vadd.f32 %v685, %v686
      %v688 = vrot.slane %v687, 4
      %v689 = vadd.f32 %v687, %v688
      %v690 = vrot.slane %v689, 2
      %v691 = vadd.f32 %v689, %v690
      %v692 = vrot.slane %v691, 1
      %v693 = vadd.f32 %v691, %v692
      %694 = vst.msk [vmem:[%s289 + $0x1] sm:$0x1] %vm639, %v693
      %s695 = smul.u32 8, %s22
      %p696 = scmp.lt.s32.totalorder %s21, 1
      %s697 = scalar_select %p696, %s21, 1
      %p698 = scmp.lt.s32.totalorder %s695, 15
      %s699 = scalar_select %p698, %s695, 15
      %s700 = smul.addr %s699, 2
      %s701 = smul.addr %s697, 32
      %s702 = sadd.s32 %s700, %s701
      %s703 = smul.addr %s702, 4
      %s704 = scalar_lea.vmem %s4, %s703
      %p705 = scmp.lt.s32.totalorder %s21, 1
      %s706 = scalar_select %p705, %s21, 1
      %p707 = scmp.lt.s32.totalorder %s22, 1
      %s708 = scalar_select %p707, %s22, 1
      %s709 = smul.addr %s706, 2
      %s710 = sadd.s32 %s708, %s709
      %s711 = smul.addr %s710, 2
      %s712 = scalar_lea.vmem %s5, %s711
      // Predicated region
      $region37: #{_lambda_.6} parent=35 // pred_check
        %p713 = pneg %p140
      $region38: #{_lambda_.6} parent=35 // pred_check_branch
        %715 = sbr.rel (%p713) target = $region40
      $region39: #{_lambda_.6} parent=35 // pred_region
        %s716 = smul.u32 8, %s22
      $region40: #{_lambda_.6} parent=35 // pred_fallthru
        _
      // Predicated region
      $region41: #{_lambda_.6} parent=35 // pred_check
        %p717 = pneg %p168
      $region42: #{_lambda_.6} parent=35 // pred_check_branch
        %719 = sbr.rel (%p717) target = $region44
      $region43: #{_lambda_.6} parent=35 // pred_region
        _
      $region44: #{_lambda_.6} parent=35 // pred_fallthru
        _
    $region36: #{_lambda_.6} parent=5 // pred_fallthru
      _
    %p720 = scmp.le.s32.totalorder 2, %s12
    // Predicated region
    $region45: #{_lambda_.6} parent=5 // pred_check
      %p721 = pneg %p720
    $region46: #{_lambda_.6} parent=5 // pred_check_branch
      %723 = sbr.rel (%p721) target = $region48
    $region47: #{_lambda_.6} parent=5 // pred_region
      %s724 = ssub.s32 %s12, 2
      // Predicated region
      $region49: #{_lambda_.6} parent=47 // pred_check
        %p725 = pneg %p146
      $region50: #{_lambda_.6} parent=47 // pred_check_branch
        %727 = sbr.rel (%p725) target = $region52
      $region51: #{_lambda_.6} parent=47 // pred_region
        %s728 = smul.u32 8, %s24
        %p729 = scmp.lt.s32.totalorder %s23, 1
        %s730 = scalar_select %p729, %s23, 1
        %p731 = scmp.lt.s32.totalorder %s728, 15
        %s732 = scalar_select %p731, %s728, 15
        %s733 = smul.addr %s732, 2
        %s734 = smul.addr %s730, 32
        %s735 = sadd.s32 %s733, %s734
        %s736 = smul.addr %s735, 4
        %s737 = scalar_lea.vmem %s4, %s736
      $region52: #{_lambda_.6} parent=47 // pred_fallthru
        _
      // Predicated region
      $region53: #{_lambda_.6} parent=47 // pred_check
        %p738 = pneg %p174
      $region54: #{_lambda_.6} parent=47 // pred_check_branch
        %740 = sbr.rel (%p738) target = $region56
      $region55: #{_lambda_.6} parent=47 // pred_region
        %p741 = scmp.lt.s32.totalorder %s23, 1
        %s742 = scalar_select %p741, %s23, 1
        %p743 = scmp.lt.s32.totalorder %s24, 1
        %s744 = scalar_select %p743, %s24, 1
        %s745 = smul.addr %s742, 2
        %s746 = sadd.s32 %s744, %s745
        %s747 = smul.addr %s746, 2
        %s748 = scalar_lea.vmem %s5, %s747
      $region56: #{_lambda_.6} parent=47 // pred_fallthru
        _
    $region48: #{_lambda_.6} parent=5 // pred_fallthru
      _
  $region6: #{_lambda_.6} parent=0 // loop_footer
    %s16 = sadd.s32 1, %s12
  $region7: #{_lambda_.6} parent=0 // loop_footer_branch
    %11 = sbr.rel target = $region3
  $region8: #{_lambda_.6} parent=0 // loop_exit
    _

// kernel: _lambda_.5
$region0: #{_lambda_.5}
  #allocation0 [shape = 'u32[]', space=smem, size = 0x4, offset = 0x4, fixed_abs, tag = 'smem constant byte address 0x4 - core index']
  #allocation1 [shape = 'u32[144,128]{1,0:T(1,128)}', space=vmem, size = 0x12000, scoped, tag = 'internal scratch']
  #allocation2 [shape = 'bf16[332,8]{1,0:T(8,128)(2,1)}', space=vmem, size = 0x15000, scoped, tag = 'scratch operand']
  #allocation3 [shape = 'bf16[288,72]{1,0:T(8,128)(2,1)}', space=vmem, size = 0x12000, scoped, tag = 'scratch operand']
  %s0 = inlined_call_operand.vmem [shape: bf16[2,16,16,8], index: 0, kind: input, shape index: {}]
  %s1 = inlined_call_operand.vmem [shape: f32[1,8], index: 1, kind: input, shape index: {}]
  %s2 = inlined_call_operand.vmem [shape: f32[1,8], index: 2, kind: input, shape index: {}]
  %s3 = inlined_call_operand.vmem [shape: bf16[72,8], index: 3, kind: input, shape index: {}]
  %s4 = inlined_call_operand.vmem [shape: bf16[2,16,16,8], index: 4, kind: output, shape index: {0}]
  %s5 = inlined_call_operand.vmem [shape: f32[2,2,8], index: 5, kind: output, shape index: {1}]
  %6 = xla_tuple %s4, %s5
  %s7 = sld [smem:[#allocation0]]
  $region57: #{_lambda_.5} parent=0
    _
  %s9 = ssub.s32 1, %s7
  %s10 = scalar_select 0, %s9, %s7
  loop: start=0, step=1, limit=4
  $region2: #{_lambda_.5} parent=0 // loop_pre_header
    _
  $region3: #{_lambda_.5} parent=0 // loop_header
    %s12 = sphi 0, %s16
    %p13 = scmp.ge.s32.totalorder %s12, 4
    %s22 = sphi 0, %s24
    %s25 = sphi 0, %s22
    %s26 = sphi 0, %s25
    %s42 = sphi 0, %s26
    %s46 = sphi 0, %s46
    %s48 = sphi 0, %s46
    %s49 = sphi 0, %s48
    %s63 = sphi 0, %s49
    %s67 = sphi 0, %s67
    %s69 = sphi 0, %s67
    %s70 = sphi 0, %s69
    %s84 = sphi 0, %s70
    %s88 = sphi 0, %s88
    %s90 = sphi 0, %s88
    %s91 = sphi 0, %s90
    %s105 = sphi 0, %s91
    %s111 = sphi 0, %s113
    %s114 = sphi 0, %s111
    %s115 = sphi 0, %s114
    %s131 = sphi 0, %s115
    %s137 = sphi 0, %s139
    %s140 = sphi 0, %s137
    %s141 = sphi 0, %s140
    %s157 = sphi 0, %s141
  $region4: #{_lambda_.5} parent=0 // loop_header_branch
    %15 = sbr.rel (%p13) target = $region8
  $region5: #{_lambda_.5} parent=0 // loop_body
    %s17 = ssub.s32 %s12, 1
    %s18 = ssub.s32 %s12, 2
    %s19 = sadd.s32 %s12, 1
    %s20 = ssub.s32 %s12, %s19
    %p21 = scmp.eq.s32.totalorder %s20, 0
    %s23 = sadd.s32 %s22, 1
    %s24 = scalar_select %p21, %s22, %s23
    %p27 = pneg %p21
    %p28 = scmp.eq.s32.totalorder %s12, 1
    %p29 = por %p27, %p28
    %p30 = scmp.ne.s32.totalorder %s22, %s25
    %p31 = scmp.eq.s32.totalorder %s12, 0
    %p32 = por %p30, %p31
    %p33 = scmp.ne.s32.totalorder %s22, %s25
    %p34 = scmp.eq.s32.totalorder %s17, 1
    %p35 = por %p33, %p34
    %p36 = scmp.ne.s32.totalorder %s25, %s26
    %p37 = scmp.eq.s32.totalorder %s17, 0
    %p38 = por %p36, %p37
    %p39 = scmp.ne.s32.totalorder %s25, %s26
    %p40 = scmp.eq.s32.totalorder %s18, 1
    %p41 = por %p39, %p40
    %p43 = scmp.ne.s32.totalorder %s26, %s42
    %p44 = scmp.eq.s32.totalorder %s18, 0
    %p45 = por %p43, %p44
    %s47 = sadd.s32 %s46, 1
    %p50 = scmp.eq.s32.totalorder %s12, 1
    %p51 = scmp.ne.s32.totalorder %s46, %s48
    %p52 = scmp.eq.s32.totalorder %s12, 0
    %p53 = por %p51, %p52
    %p54 = scmp.ne.s32.totalorder %s46, %s48
    %p55 = scmp.eq.s32.totalorder %s17, 1
    %p56 = por %p54, %p55
    %p57 = scmp.ne.s32.totalorder %s48, %s49
    %p58 = scmp.eq.s32.totalorder %s17, 0
    %p59 = por %p57, %p58
    %p60 = scmp.ne.s32.totalorder %s48, %s49
    %p61 = scmp.eq.s32.totalorder %s18, 1
    %p62 = por %p60, %p61
    %p64 = scmp.ne.s32.totalorder %s49, %s63
    %p65 = scmp.eq.s32.totalorder %s18, 0
    %p66 = por %p64, %p65
    %s68 = sadd.s32 %s67, 1
    %p71 = scmp.eq.s32.totalorder %s12, 1
    %p72 = scmp.ne.s32.totalorder %s67, %s69
    %p73 = scmp.eq.s32.totalorder %s12, 0
    %p74 = por %p72, %p73
    %p75 = scmp.ne.s32.totalorder %s67, %s69
    %p76 = scmp.eq.s32.totalorder %s17, 1
    %p77 = por %p75, %p76
    %p78 = scmp.ne.s32.totalorder %s69, %s70
    %p79 = scmp.eq.s32.totalorder %s17, 0
    %p80 = por %p78, %p79
    %p81 = scmp.ne.s32.totalorder %s69, %s70
    %p82 = scmp.eq.s32.totalorder %s18, 1
    %p83 = por %p81, %p82
    %p85 = scmp.ne.s32.totalorder %s70, %s84
    %p86 = scmp.eq.s32.totalorder %s18, 0
    %p87 = por %p85, %p86
    %s89 = sadd.s32 %s88, 1
    %p92 = scmp.eq.s32.totalorder %s12, 1
    %p93 = scmp.ne.s32.totalorder %s88, %s90
    %p94 = scmp.eq.s32.totalorder %s12, 0
    %p95 = por %p93, %p94
    %p96 = scmp.ne.s32.totalorder %s88, %s90
    %p97 = scmp.eq.s32.totalorder %s17, 1
    %p98 = por %p96, %p97
    %p99 = scmp.ne.s32.totalorder %s90, %s91
    %p100 = scmp.eq.s32.totalorder %s17, 0
    %p101 = por %p99, %p100
    %p102 = scmp.ne.s32.totalorder %s90, %s91
    %p103 = scmp.eq.s32.totalorder %s18, 1
    %p104 = por %p102, %p103
    %p106 = scmp.ne.s32.totalorder %s91, %s105
    %p107 = scmp.eq.s32.totalorder %s18, 0
    %p108 = por %p106, %p107
    %s109 = ssub.s32 %s12, %s19
    %p110 = scmp.eq.s32.totalorder %s109, 0
    %s112 = sadd.s32 %s111, 1
    %s113 = scalar_select %p110, %s111, %s112
    %p116 = pneg %p110
    %p117 = scmp.eq.s32.totalorder %s12, 1
    %p118 = por %p116, %p117
    %p119 = scmp.ne.s32.totalorder %s111, %s114
    %p120 = scmp.eq.s32.totalorder %s12, 0
    %p121 = por %p119, %p120
    %p122 = scmp.ne.s32.totalorder %s111, %s114
    %p123 = scmp.eq.s32.totalorder %s17, 1
    %p124 = por %p122, %p123
    %p125 = scmp.ne.s32.totalorder %s114, %s115
    %p126 = scmp.eq.s32.totalorder %s17, 0
    %p127 = por %p125, %p126
    %p128 = scmp.ne.s32.totalorder %s114, %s115
    %p129 = scmp.eq.s32.totalorder %s18, 1
    %p130 = por %p128, %p129
    %p132 = scmp.ne.s32.totalorder %s115, %s131
    %p133 = scmp.eq.s32.totalorder %s18, 0
    %p134 = por %p132, %p133
    %s135 = ssub.s32 %s12, %s19
    %p136 = scmp.eq.s32.totalorder %s135, 0
    %s138 = sadd.s32 %s137, 1
    %s139 = scalar_select %p136, %s137, %s138
    %p142 = pneg %p136
    %p143 = scmp.eq.s32.totalorder %s12, 1
    %p144 = por %p142, %p143
    %p145 = scmp.ne.s32.totalorder %s137, %s140
    %p146 = scmp.eq.s32.totalorder %s12, 0
    %p147 = por %p145, %p146
    %p148 = scmp.ne.s32.totalorder %s137, %s140
    %p149 = scmp.eq.s32.totalorder %s17, 1
    %p150 = por %p148, %p149
    %p151 = scmp.ne.s32.totalorder %s140, %s141
    %p152 = scmp.eq.s32.totalorder %s17, 0
    %p153 = por %p151, %p152
    %p154 = scmp.ne.s32.totalorder %s140, %s141
    %p155 = scmp.eq.s32.totalorder %s18, 1
    %p156 = por %p154, %p155
    %p158 = scmp.ne.s32.totalorder %s141, %s157
    %p159 = scmp.eq.s32.totalorder %s18, 0
    %p160 = por %p158, %p159
    %p161 = scmp.le.s32.totalorder 1, %s12
    %p162 = scmp.lt.s32.totalorder %s12, 3
    %p163 = pnand %p161, %p162
    %p164 = pneg %p163
    // Predicated region
    $region9: #{_lambda_.5} parent=5 // pred_check
      _
    $region10: #{_lambda_.5} parent=5 // pred_check_branch
      %166 = sbr.rel (%p163) target = $region12
    $region11: #{_lambda_.5} parent=5 // pred_region
      %s167 = ssub.s32 %s12, 1
      // Predicated region
      $region13: #{_lambda_.5} parent=11 // pred_check
        %p168 = pneg %p59
      $region14: #{_lambda_.5} parent=11 // pred_check_branch
        %170 = sbr.rel (%p168) target = $region16
      $region15: #{_lambda_.5} parent=11 // pred_region
        _
      $region16: #{_lambda_.5} parent=11 // pred_fallthru
        _
      // Predicated region
      $region17: #{_lambda_.5} parent=11 // pred_check
        %p171 = pneg %p80
      $region18: #{_lambda_.5} parent=11 // pred_check_branch
        %173 = sbr.rel (%p171) target = $region20
      $region19: #{_lambda_.5} parent=11 // pred_region
        _
      $region20: #{_lambda_.5} parent=11 // pred_fallthru
        _
      // Predicated region
      $region21: #{_lambda_.5} parent=11 // pred_check
        %p174 = pneg %p101
      $region22: #{_lambda_.5} parent=11 // pred_check_branch
        %176 = sbr.rel (%p174) target = $region24
      $region23: #{_lambda_.5} parent=11 // pred_region
        _
      $region24: #{_lambda_.5} parent=11 // pred_fallthru
        _
    $region12: #{_lambda_.5} parent=5 // pred_fallthru
      _
    %p177 = scmp.lt.s32.totalorder %s12, 2
    // Predicated region
    $region25: #{_lambda_.5} parent=5 // pred_check
      %p178 = pneg %p177
    $region26: #{_lambda_.5} parent=5 // pred_check_branch
      %180 = sbr.rel (%p178) target = $region28
    $region27: #{_lambda_.5} parent=5 // pred_region
      // Predicated region
      $region29: #{_lambda_.5} parent=27 // pred_check
        %p181 = pneg %p32
      $region30: #{_lambda_.5} parent=27 // pred_check_branch
        %183 = sbr.rel (%p181) target = $region32
      $region31: #{_lambda_.5} parent=27 // pred_region
        %p184 = scmp.lt.s32.totalorder %s12, 1
        %s185 = scalar_select %p184, %s12, 1
        %s186 = smul.addr %s185, 32
        %s187 = smul.addr %s186, 4
        %s188 = scalar_lea.vmem %s0, %s187
      $region32: #{_lambda_.5} parent=27 // pred_fallthru
        _
    $region28: #{_lambda_.5} parent=5 // pred_fallthru
      _
    %p189 = scmp.le.s32.totalorder 1, %s12
    %p190 = scmp.lt.s32.totalorder %s12, 3
    %p191 = pnand %p189, %p190
    %p192 = pneg %p191
    // Predicated region
    $region33: #{_lambda_.5} parent=5 // pred_check
      _
    $region34: #{_lambda_.5} parent=5 // pred_check_branch
      %194 = sbr.rel (%p191) target = $region36
    $region35: #{_lambda_.5} parent=5 // pred_region
      %s195 = ssub.s32 %s12, 1
      %p196 = scmp.lt.s32.totalorder %s17, 1
      %s197 = scalar_select %p196, %s17, 1
      %s198 = smul.addr %s197, 32
      %s199 = smul.addr %s198, 4
      %s200 = scalar_lea.vmem %s0, %s199
      %p201 = pneg %p38
      %p202 = pneg %p35
      %p203 = pneg %p59
      %p204 = pneg %p56
      %p205 = pneg %p80
      %p206 = pneg %p77
      %p207 = pneg %p101
      %p208 = pneg %p98
      %p209 = pneg %p127
      %p210 = pneg %p124
      %p211 = scmp.lt.s32.totalorder %s17, 1
      %s212 = scalar_select %p211, %s17, 1
      %s213 = smul.addr %s212, 32
      %s214 = smul.addr %s213, 4
      %s215 = scalar_lea.vmem %s4, %s214
      %p216 = pneg %p153
      %p217 = pneg %p150
      %p218 = scmp.lt.s32.totalorder %s17, 1
      %s219 = scalar_select %p218, %s17, 1
      %s220 = smul.addr %s219, 2
      %s221 = scalar_lea.vmem %s5, %s220
      %p222 = scmp.lt.s32.totalorder %s17, 1
      %s223 = scalar_select %p222, %s17, 1
      %s224 = smul.addr %s223, 32
      %s225 = smul.addr %s224, 4
      %s226 = scalar_lea.vmem %s0, %s225
      %p227 = scmp.lt.s32.totalorder %s17, 1
      %s228 = scalar_select %p227, %s17, 1
      %s229 = smul.addr %s228, 32
      %s230 = smul.addr %s229, 4
      %s231 = scalar_lea.vmem %s4, %s230
      %p232 = scmp.lt.s32.totalorder %s17, 1
      %s233 = scalar_select %p232, %s17, 1
      %s234 = smul.addr %s233, 2
      %s235 = scalar_lea.vmem %s5, %s234
      %v237 = vld [vmem:[%s226] sm:$0xf]
      %v238 = vld [vmem:[%s226 + $0x4] sm:$0xf]
      %v239 = vld [vmem:[%s226 + $0x8] sm:$0xf]
      %v240 = vld [vmem:[%s226 + $0xc] sm:$0xf]
      %v241 = vld [vmem:[%s226 + $0x10] sm:$0xf]
      %v242 = vld [vmem:[%s226 + $0x14] sm:$0xf]
      %v243 = vld [vmem:[%s226 + $0x18] sm:$0xf]
      %v244 = vld [vmem:[%s226 + $0x1c] sm:$0xf]
      %v245 = vld [vmem:[%s226 + $0x20] sm:$0xf]
      %v246 = vld [vmem:[%s226 + $0x24] sm:$0xf]
      %v247 = vld [vmem:[%s226 + $0x28] sm:$0xf]
      %v248 = vld [vmem:[%s226 + $0x2c] sm:$0xf]
      %v249 = vld [vmem:[%s226 + $0x30] sm:$0xf]
      %v250 = vld [vmem:[%s226 + $0x34] sm:$0xf]
      %v251 = vld [vmem:[%s226 + $0x38] sm:$0xf]
      %v252 = vld [vmem:[%s226 + $0x3c] sm:$0xf]
      %v253 = vld [vmem:[%s226 + $0x40] sm:$0xf]
      %v254 = vld [vmem:[%s226 + $0x44] sm:$0xf]
      %v255 = vld [vmem:[%s226 + $0x48] sm:$0xf]
      %v256 = vld [vmem:[%s226 + $0x4c] sm:$0xf]
      %v257 = vld [vmem:[%s226 + $0x50] sm:$0xf]
      %v258 = vld [vmem:[%s226 + $0x54] sm:$0xf]
      %v259 = vld [vmem:[%s226 + $0x58] sm:$0xf]
      %v260 = vld [vmem:[%s226 + $0x5c] sm:$0xf]
      %v261 = vld [vmem:[%s226 + $0x60] sm:$0xf]
      %v262 = vld [vmem:[%s226 + $0x64] sm:$0xf]
      %v263 = vld [vmem:[%s226 + $0x68] sm:$0xf]
      %v264 = vld [vmem:[%s226 + $0x6c] sm:$0xf]
      %v265 = vld [vmem:[%s226 + $0x70] sm:$0xf]
      %v266 = vld [vmem:[%s226 + $0x74] sm:$0xf]
      %v267 = vld [vmem:[%s226 + $0x78] sm:$0xf]
      %v268 = vld [vmem:[%s226 + $0x7c] sm:$0xf]
      %v269 = vunpack.c.l.bf16 %v237
      %v270 = vunpack.c.l.bf16 %v238
      %v271 = vunpack.c.l.bf16 %v239
      %v272 = vunpack.c.l.bf16 %v240
      %v273 = vunpack.c.l.bf16 %v241
      %v274 = vunpack.c.l.bf16 %v242
      %v275 = vunpack.c.l.bf16 %v243
      %v276 = vunpack.c.l.bf16 %v244
      %v277 = vunpack.c.l.bf16 %v245
      %v278 = vunpack.c.l.bf16 %v246
      %v279 = vunpack.c.l.bf16 %v247
      %v280 = vunpack.c.l.bf16 %v248
      %v281 = vunpack.c.l.bf16 %v249
      %v282 = vunpack.c.l.bf16 %v250
      %v283 = vunpack.c.l.bf16 %v251
      %v284 = vunpack.c.l.bf16 %v252
      %v285 = vunpack.c.l.bf16 %v253
      %v286 = vunpack.c.l.bf16 %v254
      %v287 = vunpack.c.l.bf16 %v255
      %v288 = vunpack.c.l.bf16 %v256
      %v289 = vunpack.c.l.bf16 %v257
      %v290 = vunpack.c.l.bf16 %v258
      %v291 = vunpack.c.l.bf16 %v259
      %v292 = vunpack.c.l.bf16 %v260
      %v293 = vunpack.c.l.bf16 %v261
      %v294 = vunpack.c.l.bf16 %v262
      %v295 = vunpack.c.l.bf16 %v263
      %v296 = vunpack.c.l.bf16 %v264
      %v297 = vunpack.c.l.bf16 %v265
      %v298 = vunpack.c.l.bf16 %v266
      %v299 = vunpack.c.l.bf16 %v267
      %v300 = vunpack.c.l.bf16 %v268
      %v301 = vld [vmem:[%s1] sm:$0x1]
      %v303 = vlaneseq
      %v304 = vshrl.u32 %v303, 7
      %v305 = vsub.s32 0, %v304
      %v306 = vrot.slane %v301, %v305
      %v308 = vmul.f32 %v269, %v306
      %v309 = vmul.f32 %v270, %v306
      %v310 = vmul.f32 %v271, %v306
      %v311 = vmul.f32 %v272, %v306
      %v312 = vmul.f32 %v273, %v306
      %v313 = vmul.f32 %v274, %v306
      %v314 = vmul.f32 %v275, %v306
      %v315 = vmul.f32 %v276, %v306
      %v316 = vmul.f32 %v277, %v306
      %v317 = vmul.f32 %v278, %v306
      %v318 = vmul.f32 %v279, %v306
      %v319 = vmul.f32 %v280, %v306
      %v320 = vmul.f32 %v281, %v306
      %v321 = vmul.f32 %v282, %v306
      %v322 = vmul.f32 %v283, %v306
      %v323 = vmul.f32 %v284, %v306
      %v324 = vmul.f32 %v285, %v306
      %v325 = vmul.f32 %v286, %v306
      %v326 = vmul.f32 %v287, %v306
      %v327 = vmul.f32 %v288, %v306
      %v328 = vmul.f32 %v289, %v306
      %v329 = vmul.f32 %v290, %v306
      %v330 = vmul.f32 %v291, %v306
      %v331 = vmul.f32 %v292, %v306
      %v332 = vmul.f32 %v293, %v306
      %v333 = vmul.f32 %v294, %v306
      %v334 = vmul.f32 %v295, %v306
      %v335 = vmul.f32 %v296, %v306
      %v336 = vmul.f32 %v297, %v306
      %v337 = vmul.f32 %v298, %v306
      %v338 = vmul.f32 %v299, %v306
      %v339 = vmul.f32 %v300, %v306
      %v340 = vld [vmem:[%s2] sm:$0x1]
      %v342 = vlaneseq
      %v343 = vshrl.u32 %v342, 7
      %v344 = vsub.s32 0, %v343
      %v345 = vrot.slane %v340, %v344
      %v347 = vadd.f32 %v308, %v345
      %v348 = vadd.f32 %v309, %v345
      %v349 = vadd.f32 %v310, %v345
      %v350 = vadd.f32 %v311, %v345
      %v351 = vadd.f32 %v312, %v345
      %v352 = vadd.f32 %v313, %v345
      %v353 = vadd.f32 %v314, %v345
      %v354 = vadd.f32 %v315, %v345
      %v355 = vadd.f32 %v316, %v345
      %v356 = vadd.f32 %v317, %v345
      %v357 = vadd.f32 %v318, %v345
      %v358 = vadd.f32 %v319, %v345
      %v359 = vadd.f32 %v320, %v345
      %v360 = vadd.f32 %v321, %v345
      %v361 = vadd.f32 %v322, %v345
      %v362 = vadd.f32 %v323, %v345
      %v363 = vadd.f32 %v324, %v345
      %v364 = vadd.f32 %v325, %v345
      %v365 = vadd.f32 %v326, %v345
      %v366 = vadd.f32 %v327, %v345
      %v367 = vadd.f32 %v328, %v345
      %v368 = vadd.f32 %v329, %v345
      %v369 = vadd.f32 %v330, %v345
      %v370 = vadd.f32 %v331, %v345
      %v371 = vadd.f32 %v332, %v345
      %v372 = vadd.f32 %v333, %v345
      %v373 = vadd.f32 %v334, %v345
      %v374 = vadd.f32 %v335, %v345
      %v375 = vadd.f32 %v336, %v345
      %v376 = vadd.f32 %v337, %v345
      %v377 = vadd.f32 %v338, %v345
      %v378 = vadd.f32 %v339, %v345
      %v379 = vmax.f32 %v347, 0.0
      %v380 = vmax.f32 %v348, 0.0
      %v381 = vmax.f32 %v349, 0.0
      %v382 = vmax.f32 %v350, 0.0
      %v383 = vmax.f32 %v351, 0.0
      %v384 = vmax.f32 %v352, 0.0
      %v385 = vmax.f32 %v353, 0.0
      %v386 = vmax.f32 %v354, 0.0
      %v387 = vmax.f32 %v355, 0.0
      %v388 = vmax.f32 %v356, 0.0
      %v389 = vmax.f32 %v357, 0.0
      %v390 = vmax.f32 %v358, 0.0
      %v391 = vmax.f32 %v359, 0.0
      %v392 = vmax.f32 %v360, 0.0
      %v393 = vmax.f32 %v361, 0.0
      %v394 = vmax.f32 %v362, 0.0
      %v395 = vmax.f32 %v363, 0.0
      %v396 = vmax.f32 %v364, 0.0
      %v397 = vmax.f32 %v365, 0.0
      %v398 = vmax.f32 %v366, 0.0
      %v399 = vmax.f32 %v367, 0.0
      %v400 = vmax.f32 %v368, 0.0
      %v401 = vmax.f32 %v369, 0.0
      %v402 = vmax.f32 %v370, 0.0
      %v403 = vmax.f32 %v371, 0.0
      %v404 = vmax.f32 %v372, 0.0
      %v405 = vmax.f32 %v373, 0.0
      %v406 = vmax.f32 %v374, 0.0
      %v407 = vmax.f32 %v375, 0.0
      %v408 = vmax.f32 %v376, 0.0
      %v409 = vmax.f32 %v377, 0.0
      %v410 = vmax.f32 %v378, 0.0
      %v411 = vpack.c.bf16 %v380, %v379
      %v412 = vpack.c.bf16 %v382, %v381
      %v413 = vpack.c.bf16 %v384, %v383
      %v414 = vpack.c.bf16 %v386, %v385
      %v415 = vpack.c.bf16 %v388, %v387
      %v416 = vpack.c.bf16 %v390, %v389
      %v417 = vpack.c.bf16 %v392, %v391
      %v418 = vpack.c.bf16 %v394, %v393
      %v419 = vpack.c.bf16 %v396, %v395
      %v420 = vpack.c.bf16 %v398, %v397
      %v421 = vpack.c.bf16 %v400, %v399
      %v422 = vpack.c.bf16 %v402, %v401
      %v423 = vpack.c.bf16 %v404, %v403
      %v424 = vpack.c.bf16 %v406, %v405
      %v425 = vpack.c.bf16 %v408, %v407
      %v426 = vpack.c.bf16 %v410, %v409
      %vm427 = vcmask 60416
      %428 = vst.msk [vmem:[#allocation2] sm:$0xf] %vm427, 0
      %429 = vst.msk [vmem:[#allocation2 + $0x4] sm:$0xf] %vm427, 0
      %430 = vst.msk [vmem:[#allocation2 + $0x8] sm:$0xf] %vm427, 0
      %431 = vst.msk [vmem:[#allocation2 + $0xc] sm:$0xf] %vm427, 0
      %432 = vst.msk [vmem:[#allocation2 + $0x10] sm:$0xf] %vm427, 0
      %433 = vst.msk [vmem:[#allocation2 + $0x14] sm:$0xf] %vm427, 0
      %434 = vst.msk [vmem:[#allocation2 + $0x18] sm:$0xf] %vm427, 0
      %435 = vst.msk [vmem:[#allocation2 + $0x1c] sm:$0xf] %vm427, 0
      %436 = vst.msk [vmem:[#allocation2 + $0x20] sm:$0xf] %vm427, 0
      %437 = vst.msk [vmem:[#allocation2 + $0x24] sm:$0xf] %vm427, 0
      %438 = vst.msk [vmem:[#allocation2 + $0x28] sm:$0xf] %vm427, 0
      %439 = vst.msk [vmem:[#allocation2 + $0x2c] sm:$0xf] %vm427, 0
      %440 = vst.msk [vmem:[#allocation2 + $0x30] sm:$0xf] %vm427, 0
      %441 = vst.msk [vmem:[#allocation2 + $0x34] sm:$0xf] %vm427, 0
      %442 = vst.msk [vmem:[#allocation2 + $0x38] sm:$0xf] %vm427, 0
      %443 = vst.msk [vmem:[#allocation2 + $0x3c] sm:$0xf] %vm427, 0
      %444 = vst.msk [vmem:[#allocation2 + $0x40] sm:$0xf] %vm427, 0
      %445 = vst.msk [vmem:[#allocation2 + $0x44] sm:$0xf] %vm427, 0
      %446 = vst.msk [vmem:[#allocation2 + $0x48] sm:$0xf] %vm427, 0
      %447 = vst.msk [vmem:[#allocation2 + $0x4c] sm:$0xf] %vm427, 0
      %448 = vst.msk [vmem:[#allocation2 + $0x50] sm:$0xf] %vm427, 0
      %449 = vst.msk [vmem:[#allocation2 + $0x54] sm:$0xf] %vm427, 0
      %450 = vst.msk [vmem:[#allocation2 + $0x58] sm:$0xf] %vm427, 0
      %451 = vst.msk [vmem:[#allocation2 + $0x5c] sm:$0xf] %vm427, 0
      %452 = vst.msk [vmem:[#allocation2 + $0x60] sm:$0xf] %vm427, 0
      %453 = vst.msk [vmem:[#allocation2 + $0x64] sm:$0xf] %vm427, 0
      %454 = vst.msk [vmem:[#allocation2 + $0x68] sm:$0xf] %vm427, 0
      %455 = vst.msk [vmem:[#allocation2 + $0x6c] sm:$0xf] %vm427, 0
      %456 = vst.msk [vmem:[#allocation2 + $0x70] sm:$0xf] %vm427, 0
      %457 = vst.msk [vmem:[#allocation2 + $0x74] sm:$0xf] %vm427, 0
      %458 = vst.msk [vmem:[#allocation2 + $0x78] sm:$0xf] %vm427, 0
      %459 = vst.msk [vmem:[#allocation2 + $0x7c] sm:$0xf] %vm427, 0
      %460 = vst.msk [vmem:[#allocation2 + $0x80] sm:$0xf] %vm427, 0
      %461 = vst.msk [vmem:[#allocation2 + $0x84] sm:$0xf] %vm427, 0
      %462 = vst.msk [vmem:[#allocation2 + $0x88] sm:$0xf] %vm427, 0
      %463 = vst.msk [vmem:[#allocation2 + $0x8c] sm:$0xf] %vm427, 0
      %464 = vst.msk [vmem:[#allocation2 + $0x90] sm:$0xf] %vm427, 0
      %465 = vst.msk [vmem:[#allocation2 + $0x94] sm:$0xf] %vm427, 0
      %466 = vst.msk [vmem:[#allocation2 + $0x98] sm:$0xf] %vm427, 0
      %467 = vst.msk [vmem:[#allocation2 + $0x9c] sm:$0xf] %vm427, 0
      %468 = vst.msk [vmem:[#allocation2 + $0xa0] sm:$0xf] %vm427, 0
      %vm469 = vcmask 58368
      %470 = vst.msk [vmem:[#allocation2 + $0xa4] sm:$0x3] %vm469, 0
      %v472 = vunpack.c.l.b16 %v411
      %v473 = vunpack.c.h.b16 %v411
      %v474 = vpack.c.b16 %v472, %v472
      %v475 = vpack.c.b16 %v473, %v473
      %vm476 = vsmask.f32 1280
      %vm477 = vsmask.f32 5392
      %vm478 = vmor %vm476, %vm477
      %v480 = vshrl.u32 %v474, 16
      %v482 = vrot.slane %v480, 6
      %v483 = vshll.u32 %v474, 16
      %v485 = vrot.slane %v483, 7
      %v486 = vor.u32 %v482, %v485
      %v487 = vrot.slane %v486, 4
      %v489 = vshrl.u32 %v475, 16
      %v491 = vrot.slane %v489, 6
      %v492 = vshll.u32 %v475, 16
      %v494 = vrot.slane %v492, 7
      %v495 = vor.u32 %v491, %v494
      %v496 = vsel %vm478, %v487, %v495
      %v497 = vrot.slane %v495, 4
      %vm501 = vcmask 60417
      %vm502 = vsmask.f32 7942
      %vm503 = vmand %vm501, %vm502
      %v504 = vld [vmem:[#allocation2 + $0x8] sm:$0xe]
      %v505 = vsel %vm503, %v486, %v504
      %506 = vst [vmem:[#allocation2 + $0x8] sm:$0xe] %v505
      %507 = vst.msk [vmem:[#allocation2 + $0xc] sm:$0xf] %vm427, %v496
      %vm508 = vcmask 58368
      %vm509 = vmand %vm508, %vm476
      %v510 = vld [vmem:[#allocation2 + $0x10] sm:$0x3]
      %v511 = vsel %vm509, %v497, %v510
      %512 = vst [vmem:[#allocation2 + $0x10] sm:$0x3] %v511
      %v514 = vunpack.c.l.b16 %v412
      %v515 = vunpack.c.h.b16 %v412
      %v516 = vpack.c.b16 %v514, %v514
      %v517 = vpack.c.b16 %v515, %v515
      %vm518 = vsmask.f32 2304
      %vm519 = vsmask.f32 6416
      %vm520 = vmor %vm518, %vm519
      %v522 = vshrl.u32 %v516, 16
      %v524 = vrot.slane %v522, 5
      %v525 = vshll.u32 %v516, 16
      %v527 = vrot.slane %v525, 6
      %v528 = vor.u32 %v524, %v527
      %v529 = vrot.slane %v528, 4
      %v531 = vshrl.u32 %v517, 16
      %v533 = vrot.slane %v531, 5
      %v534 = vshll.u32 %v517, 16
      %v536 = vrot.slane %v534, 6
      %v537 = vor.u32 %v533, %v536
      %v538 = vsel %vm520, %v529, %v537
      %v539 = vrot.slane %v537, 4
      %vm543 = vcmask 60418
      %vm544 = vsmask.f32 7946
      %vm545 = vmand %vm543, %vm544
      %v546 = vld [vmem:[#allocation2 + $0x10] sm:$0xc]
      %v547 = vsel %vm545, %v528, %v546
      %548 = vst [vmem:[#allocation2 + $0x10] sm:$0xc] %v547
      %549 = vst.msk [vmem:[#allocation2 + $0x14] sm:$0xf] %vm427, %v538
      %vm550 = vcmask 59392
      %vm551 = vmand %vm550, %vm518
      %v552 = vld [vmem:[#allocation2 + $0x18] sm:$0x7]
      %v553 = vsel %vm551, %v539, %v552
      %554 = vst [vmem:[#allocation2 + $0x18] sm:$0x7] %v553
      %v556 = vunpack.c.l.b16 %v413
      %v557 = vunpack.c.h.b16 %v413
      %v558 = vpack.c.b16 %v556, %v556
      %v559 = vpack.c.b16 %v557, %v557
      %vm560 = vsmask.f32 3328
      %vm561 = vsmask.f32 7440
      %vm562 = vmor %vm560, %vm561
      %v564 = vshll.u32 %v558, 16
      %v566 = vrot.slane %v564, 5
      %v567 = vshrl.u32 %v558, 16
      %v569 = vrot.slane %v567, 4
      %v570 = vor.u32 %v569, %v566
      %v571 = vrot.slane %v570, 4
      %v573 = vshll.u32 %v559, 16
      %v575 = vrot.slane %v573, 5
      %v576 = vsel %vm562, %v571, %v575
      %v577 = vshrl.u32 %v559, 16
      %v579 = vrot.slane %v577, 4
      %v580 = vor.u32 %v579, %v575
      %v581 = vrot.slane %v580, 4
      %vm585 = vcmask 60419
      %vm586 = vsmask.f32 7950
      %vm587 = vmand %vm585, %vm586
      %v588 = vld [vmem:[#allocation2 + $0x18] sm:$0x8]
      %v589 = vsel %vm587, %v566, %v588
      %590 = vst [vmem:[#allocation2 + $0x18] sm:$0x8] %v589
      %591 = vst.msk [vmem:[#allocation2 + $0x1c] sm:$0xf] %vm427, %v576
      %vm592 = vcmask 60416
      %vm593 = vmand %vm592, %vm560
      %v594 = vld [vmem:[#allocation2 + $0x20] sm:$0xf]
      %v595 = vsel %vm593, %v581, %v594
      %596 = vst [vmem:[#allocation2 + $0x20] sm:$0xf] %v595
      %v598 = vunpack.c.l.b16 %v414
      %v599 = vunpack.c.h.b16 %v414
      %v600 = vpack.c.b16 %v598, %v598
      %v601 = vpack.c.b16 %v599, %v599
      %vm602 = vsmask.f32 256
      %vm603 = vsmask.f32 4368
      %vm604 = vmor %vm602, %vm603
      %v606 = vshrl.u32 %v600, 16
      %v608 = vrot.slane %v606, 7
      %v609 = vshll.u32 %v600, 16
      %v611 = vor.u32 %v608, %v609
      %v612 = vrot.slane %v608, 4
      %v614 = vshrl.u32 %v601, 16
      %v616 = vrot.slane %v614, 7
      %v617 = vshll.u32 %v601, 16
      %v619 = vor.u32 %v616, %v617
      %v620 = vsel %vm604, %v612, %v619
      %v621 = vrot.slane %v616, 4
      %vm625 = vsmask.f32 7938
      %vm626 = vmand %vm592, %vm625
      %v627 = vld [vmem:[#allocation2 + $0x24] sm:$0xf]
      %v628 = vsel %vm626, %v611, %v627
      %629 = vst [vmem:[#allocation2 + $0x24] sm:$0xf] %v628
      %630 = vst.msk [vmem:[#allocation2 + $0x28] sm:$0xf] %vm427, %v620
      %vm631 = vcmask 57344
      %vm632 = vmand %vm631, %vm602
      %v633 = vld [vmem:[#allocation2 + $0x2c] sm:$0x1]
      %v634 = vsel %vm632, %v621, %v633
      %635 = vst [vmem:[#allocation2 + $0x2c] sm:$0x1] %v634
      %v637 = vunpack.c.l.b16 %v415
      %v638 = vunpack.c.h.b16 %v415
      %v639 = vpack.c.b16 %v637, %v637
      %v640 = vpack.c.b16 %v638, %v638
      %v642 = vshrl.u32 %v639, 16
      %v644 = vrot.slane %v642, 6
      %v645 = vshll.u32 %v639, 16
      %v647 = vrot.slane %v645, 7
      %v648 = vor.u32 %v644, %v647
      %v649 = vrot.slane %v648, 4
      %v651 = vshrl.u32 %v640, 16
      %v653 = vrot.slane %v651, 6
      %v654 = vshll.u32 %v640, 16
      %v656 = vrot.slane %v654, 7
      %v657 = vor.u32 %v653, %v656
      %v658 = vsel %vm478, %v649, %v657
      %v659 = vrot.slane %v657, 4
      %v663 = vld [vmem:[#allocation2 + $0x2c] sm:$0xe]
      %v664 = vsel %vm503, %v648, %v663
      %665 = vst [vmem:[#allocation2 + $0x2c] sm:$0xe] %v664
      %666 = vst.msk [vmem:[#allocation2 + $0x30] sm:$0xf] %vm427, %v658
      %v667 = vld [vmem:[#allocation2 + $0x34] sm:$0x3]
      %v668 = vsel %vm509, %v659, %v667
      %669 = vst [vmem:[#allocation2 + $0x34] sm:$0x3] %v668
      %v671 = vunpack.c.l.b16 %v416
      %v672 = vunpack.c.h.b16 %v416
      %v673 = vpack.c.b16 %v671, %v671
      %v674 = vpack.c.b16 %v672, %v672
      %v676 = vshrl.u32 %v673, 16
      %v678 = vrot.slane %v676, 5
      %v679 = vshll.u32 %v673, 16
      %v681 = vrot.slane %v679, 6
      %v682 = vor.u32 %v678, %v681
      %v683 = vrot.slane %v682, 4
      %v685 = vshrl.u32 %v674, 16
      %v687 = vrot.slane %v685, 5
      %v688 = vshll.u32 %v674, 16
      %v690 = vrot.slane %v688, 6
      %v691 = vor.u32 %v687, %v690
      %v692 = vsel %vm520, %v683, %v691
      %v693 = vrot.slane %v691, 4
      %v697 = vld [vmem:[#allocation2 + $0x34] sm:$0xc]
      %v698 = vsel %vm545, %v682, %v697
      %699 = vst [vmem:[#allocation2 + $0x34] sm:$0xc] %v698
      %700 = vst.msk [vmem:[#allocation2 + $0x38] sm:$0xf] %vm427, %v692
      %v701 = vld [vmem:[#allocation2 + $0x3c] sm:$0x7]
      %v702 = vsel %vm551, %v693, %v701
      %703 = vst [vmem:[#allocation2 + $0x3c] sm:$0x7] %v702
      %v705 = vunpack.c.l.b16 %v417
      %v706 = vunpack.c.h.b16 %v417
      %v707 = vpack.c.b16 %v705, %v705
      %v708 = vpack.c.b16 %v706, %v706
      %v710 = vshll.u32 %v707, 16
      %v712 = vrot.slane %v710, 5
      %v713 = vshrl.u32 %v707, 16
      %v715 = vrot.slane %v713, 4
      %v716 = vor.u32 %v715, %v712
      %v717 = vrot.slane %v716, 4
      %v719 = vshll.u32 %v708, 16
      %v721 = vrot.slane %v719, 5
      %v722 = vsel %vm562, %v717, %v721
      %v723 = vshrl.u32 %v708, 16
      %v725 = vrot.slane %v723, 4
      %v726 = vor.u32 %v725, %v721
      %v727 = vrot.slane %v726, 4
      %v731 = vld [vmem:[#allocation2 + $0x3c] sm:$0x8]
      %v732 = vsel %vm587, %v712, %v731
      %733 = vst [vmem:[#allocation2 + $0x3c] sm:$0x8] %v732
      %734 = vst.msk [vmem:[#allocation2 + $0x40] sm:$0xf] %vm427, %v722
      %v735 = vld [vmem:[#allocation2 + $0x44] sm:$0xf]
      %v736 = vsel %vm593, %v727, %v735
      %737 = vst [vmem:[#allocation2 + $0x44] sm:$0xf] %v736
      %v739 = vunpack.c.l.b16 %v418
      %v740 = vunpack.c.h.b16 %v418
      %v741 = vpack.c.b16 %v739, %v739
      %v742 = vpack.c.b16 %v740, %v740
      %v744 = vshrl.u32 %v741, 16
      %v746 = vrot.slane %v744, 7
      %v747 = vshll.u32 %v741, 16
      %v749 = vor.u32 %v746, %v747
      %v750 = vrot.slane %v746, 4
      %v752 = vshrl.u32 %v742, 16
      %v754 = vrot.slane %v752, 7
      %v755 = vshll.u32 %v742, 16
      %v757 = vor.u32 %v754, %v755
      %v758 = vsel %vm604, %v750, %v757
      %v759 = vrot.slane %v754, 4
      %v763 = vld [vmem:[#allocation2 + $0x48] sm:$0xf]
      %v764 = vsel %vm626, %v749, %v763
      %765 = vst [vmem:[#allocation2 + $0x48] sm:$0xf] %v764
      %766 = vst.msk [vmem:[#allocation2 + $0x4c] sm:$0xf] %vm427, %v758
      %v767 = vld [vmem:[#allocation2 + $0x50] sm:$0x1]
      %v768 = vsel %vm632, %v759, %v767
      %769 = vst [vmem:[#allocation2 + $0x50] sm:$0x1] %v768
      %v771 = vunpack.c.l.b16 %v419
      %v772 = vunpack.c.h.b16 %v419
      %v773 = vpack.c.b16 %v771, %v771
      %v774 = vpack.c.b16 %v772, %v772
      %v776 = vshrl.u32 %v773, 16
      %v778 = vrot.slane %v776, 6
      %v779 = vshll.u32 %v773, 16
      %v781 = vrot.slane %v779, 7
      %v782 = vor.u32 %v778, %v781
      %v783 = vrot.slane %v782, 4
      %v785 = vshrl.u32 %v774, 16
      %v787 = vrot.slane %v785, 6
      %v788 = vshll.u32 %v774, 16
      %v790 = vrot.slane %v788, 7
      %v791 = vor.u32 %v787, %v790
      %v792 = vsel %vm478, %v783, %v791
      %v793 = vrot.slane %v791, 4
      %v797 = vld [vmem:[#allocation2 + $0x50] sm:$0xe]
      %v798 = vsel %vm503, %v782, %v797
      %799 = vst [vmem:[#allocation2 + $0x50] sm:$0xe] %v798
      %800 = vst.msk [vmem:[#allocation2 + $0x54] sm:$0xf] %vm427, %v792
      %v801 = vld [vmem:[#allocation2 + $0x58] sm:$0x3]
      %v802 = vsel %vm509, %v793, %v801
      %803 = vst [vmem:[#allocation2 + $0x58] sm:$0x3] %v802
      %v805 = vunpack.c.l.b16 %v420
      %v806 = vunpack.c.h.b16 %v420
      %v807 = vpack.c.b16 %v805, %v805
      %v808 = vpack.c.b16 %v806, %v806
      %v810 = vshrl.u32 %v807, 16
      %v812 = vrot.slane %v810, 5
      %v813 = vshll.u32 %v807, 16
      %v815 = vrot.slane %v813, 6
      %v816 = vor.u32 %v812, %v815
      %v817 = vrot.slane %v816, 4
      %v819 = vshrl.u32 %v808, 16
      %v821 = vrot.slane %v819, 5
      %v822 = vshll.u32 %v808, 16
      %v824 = vrot.slane %v822, 6
      %v825 = vor.u32 %v821, %v824
      %v826 = vsel %vm520, %v817, %v825
      %v827 = vrot.slane %v825, 4
      %v831 = vld [vmem:[#allocation2 + $0x58] sm:$0xc]
      %v832 = vsel %vm545, %v816, %v831
      %833 = vst [vmem:[#allocation2 + $0x58] sm:$0xc] %v832
      %834 = vst.msk [vmem:[#allocation2 + $0x5c] sm:$0xf] %vm427, %v826
      %v835 = vld [vmem:[#allocation2 + $0x60] sm:$0x7]
      %v836 = vsel %vm551, %v827, %v835
      %837 = vst [vmem:[#allocation2 + $0x60] sm:$0x7] %v836
      %v839 = vunpack.c.l.b16 %v421
      %v840 = vunpack.c.h.b16 %v421
      %v841 = vpack.c.b16 %v839, %v839
      %v842 = vpack.c.b16 %v840, %v840
      %v844 = vshll.u32 %v841, 16
      %v846 = vrot.slane %v844, 5
      %v847 = vshrl.u32 %v841, 16
      %v849 = vrot.slane %v847, 4
      %v850 = vor.u32 %v849, %v846
      %v851 = vrot.slane %v850, 4
      %v853 = vshll.u32 %v842, 16
      %v855 = vrot.slane %v853, 5
      %v856 = vsel %vm562, %v851, %v855
      %v857 = vshrl.u32 %v842, 16
      %v859 = vrot.slane %v857, 4
      %v860 = vor.u32 %v859, %v855
      %v861 = vrot.slane %v860, 4
      %v865 = vld [vmem:[#allocation2 + $0x60] sm:$0x8]
      %v866 = vsel %vm587, %v846, %v865
      %867 = vst [vmem:[#allocation2 + $0x60] sm:$0x8] %v866
      %868 = vst.msk [vmem:[#allocation2 + $0x64] sm:$0xf] %vm427, %v856
      %v869 = vld [vmem:[#allocation2 + $0x68] sm:$0xf]
      %v870 = vsel %vm593, %v861, %v869
      %871 = vst [vmem:[#allocation2 + $0x68] sm:$0xf] %v870
      %v873 = vunpack.c.l.b16 %v422
      %v874 = vunpack.c.h.b16 %v422
      %v875 = vpack.c.b16 %v873, %v873
      %v876 = vpack.c.b16 %v874, %v874
      %v878 = vshrl.u32 %v875, 16
      %v880 = vrot.slane %v878, 7
      %v881 = vshll.u32 %v875, 16
      %v883 = vor.u32 %v880, %v881
      %v884 = vrot.slane %v880, 4
      %v886 = vshrl.u32 %v876, 16
      %v888 = vrot.slane %v886, 7
      %v889 = vshll.u32 %v876, 16
      %v891 = vor.u32 %v888, %v889
      %v892 = vsel %vm604, %v884, %v891
      %v893 = vrot.slane %v888, 4
      %v897 = vld [vmem:[#allocation2 + $0x6c] sm:$0xf]
      %v898 = vsel %vm626, %v883, %v897
      %899 = vst [vmem:[#allocation2 + $0x6c] sm:$0xf] %v898
      %900 = vst.msk [vmem:[#allocation2 + $0x70] sm:$0xf] %vm427, %v892
      %v901 = vld [vmem:[#allocation2 + $0x74] sm:$0x1]
      %v902 = vsel %vm632, %v893, %v901
      %903 = vst [vmem:[#allocation2 + $0x74] sm:$0x1] %v902
      %v905 = vunpack.c.l.b16 %v423
      %v906 = vunpack.c.h.b16 %v423
      %v907 = vpack.c.b16 %v905, %v905
      %v908 = vpack.c.b16 %v906, %v906
      %v910 = vshrl.u32 %v907, 16
      %v912 = vrot.slane %v910, 6
      %v913 = vshll.u32 %v907, 16
      %v915 = vrot.slane %v913, 7
      %v916 = vor.u32 %v912, %v915
      %v917 = vrot.slane %v916, 4
      %v919 = vshrl.u32 %v908, 16
      %v921 = vrot.slane %v919, 6
      %v922 = vshll.u32 %v908, 16
      %v924 = vrot.slane %v922, 7
      %v925 = vor.u32 %v921, %v924
      %v926 = vsel %vm478, %v917, %v925
      %v927 = vrot.slane %v925, 4
      %v931 = vld [vmem:[#allocation2 + $0x74] sm:$0xe]
      %v932 = vsel %vm503, %v916, %v931
      %933 = vst [vmem:[#allocation2 + $0x74] sm:$0xe] %v932
      %934 = vst.msk [vmem:[#allocation2 + $0x78] sm:$0xf] %vm427, %v926
      %v935 = vld [vmem:[#allocation2 + $0x7c] sm:$0x3]
      %v936 = vsel %vm509, %v927, %v935
      %937 = vst [vmem:[#allocation2 + $0x7c] sm:$0x3] %v936
      %v939 = vunpack.c.l.b16 %v424
      %v940 = vunpack.c.h.b16 %v424
      %v941 = vpack.c.b16 %v939, %v939
      %v942 = vpack.c.b16 %v940, %v940
      %v944 = vshrl.u32 %v941, 16
      %v946 = vrot.slane %v944, 5
      %v947 = vshll.u32 %v941, 16
      %v949 = vrot.slane %v947, 6
      %v950 = vor.u32 %v946, %v949
      %v951 = vrot.slane %v950, 4
      %v953 = vshrl.u32 %v942, 16
      %v955 = vrot.slane %v953, 5
      %v956 = vshll.u32 %v942, 16
      %v958 = vrot.slane %v956, 6
      %v959 = vor.u32 %v955, %v958
      %v960 = vsel %vm520, %v951, %v959
      %v961 = vrot.slane %v959, 4
      %v965 = vld [vmem:[#allocation2 + $0x7c] sm:$0xc]
      %v966 = vsel %vm545, %v950, %v965
      %967 = vst [vmem:[#allocation2 + $0x7c] sm:$0xc] %v966
      %968 = vst.msk [vmem:[#allocation2 + $0x80] sm:$0xf] %vm427, %v960
      %v969 = vld [vmem:[#allocation2 + $0x84] sm:$0x7]
      %v970 = vsel %vm551, %v961, %v969
      %971 = vst [vmem:[#allocation2 + $0x84] sm:$0x7] %v970
      %v973 = vunpack.c.l.b16 %v425
      %v974 = vunpack.c.h.b16 %v425
      %v975 = vpack.c.b16 %v973, %v973
      %v976 = vpack.c.b16 %v974, %v974
      %v978 = vshll.u32 %v975, 16
      %v980 = vrot.slane %v978, 5
      %v981 = vshrl.u32 %v975, 16
      %v983 = vrot.slane %v981, 4
      %v984 = vor.u32 %v983, %v980
      %v985 = vrot.slane %v984, 4
      %v987 = vshll.u32 %v976, 16
      %v989 = vrot.slane %v987, 5
      %v990 = vsel %vm562, %v985, %v989
      %v991 = vshrl.u32 %v976, 16
      %v993 = vrot.slane %v991, 4
      %v994 = vor.u32 %v993, %v989
      %v995 = vrot.slane %v994, 4
      %v999 = vld [vmem:[#allocation2 + $0x84] sm:$0x8]
      %v1000 = vsel %vm587, %v980, %v999
      %1001 = vst [vmem:[#allocation2 + $0x84] sm:$0x8] %v1000
      %1002 = vst.msk [vmem:[#allocation2 + $0x88] sm:$0xf] %vm427, %v990
      %v1003 = vld [vmem:[#allocation2 + $0x8c] sm:$0xf]
      %v1004 = vsel %vm593, %v995, %v1003
      %1005 = vst [vmem:[#allocation2 + $0x8c] sm:$0xf] %v1004
      %v1007 = vunpack.c.l.b16 %v426
      %v1008 = vunpack.c.h.b16 %v426
      %v1009 = vpack.c.b16 %v1007, %v1007
      %v1010 = vpack.c.b16 %v1008, %v1008
      %v1012 = vshrl.u32 %v1009, 16
      %v1014 = vrot.slane %v1012, 7
      %v1015 = vshll.u32 %v1009, 16
      %v1017 = vor.u32 %v1014, %v1015
      %v1018 = vrot.slane %v1014, 4
      %v1020 = vshrl.u32 %v1010, 16
      %v1022 = vrot.slane %v1020, 7
      %v1023 = vshll.u32 %v1010, 16
      %v1025 = vor.u32 %v1022, %v1023
      %v1026 = vsel %vm604, %v1018, %v1025
      %v1027 = vrot.slane %v1022, 4
      %v1031 = vld [vmem:[#allocation2 + $0x90] sm:$0xf]
      %v1032 = vsel %vm626, %v1017, %v1031
      %1033 = vst [vmem:[#allocation2 + $0x90] sm:$0xf] %v1032
      %1034 = vst.msk [vmem:[#allocation2 + $0x94] sm:$0xf] %vm427, %v1026
      %v1035 = vld [vmem:[#allocation2 + $0x98] sm:$0x1]
      %v1036 = vsel %vm632, %v1027, %v1035
      %1037 = vst [vmem:[#allocation2 + $0x98] sm:$0x1] %v1036
      %v1038 = vld [vmem:[#allocation2] sm:$0xf]
      %v1039 = vld [vmem:[#allocation2 + $0x4] sm:$0xf]
      %v1040 = vld [vmem:[#allocation2 + $0x8] sm:$0xf]
      %v1041 = vld [vmem:[#allocation2 + $0xc] sm:$0xf]
      %v1042 = vld [vmem:[#allocation2 + $0x10] sm:$0xf]
      %v1043 = vld [vmem:[#allocation2 + $0x14] sm:$0xf]
      %v1044 = vld [vmem:[#allocation2 + $0x18] sm:$0xf]
      %v1045 = vld [vmem:[#allocation2 + $0x1c] sm:$0xf]
      %v1046 = vld [vmem:[#allocation2 + $0x20] sm:$0xf]
      %v1047 = vld [vmem:[#allocation2 + $0x24] sm:$0xf]
      %v1048 = vld [vmem:[#allocation2 + $0x28] sm:$0xf]
      %v1049 = vld [vmem:[#allocation2 + $0x2c] sm:$0xf]
      %v1050 = vld [vmem:[#allocation2 + $0x30] sm:$0xf]
      %v1051 = vld [vmem:[#allocation2 + $0x34] sm:$0xf]
      %v1052 = vld [vmem:[#allocation2 + $0x38] sm:$0xf]
      %v1053 = vld [vmem:[#allocation2 + $0x3c] sm:$0xf]
      %v1054 = vld [vmem:[#allocation2 + $0x40] sm:$0xf]
      %v1055 = vld [vmem:[#allocation2 + $0x44] sm:$0xf]
      %v1056 = vld [vmem:[#allocation2 + $0x48] sm:$0xf]
      %v1057 = vld [vmem:[#allocation2 + $0x4c] sm:$0xf]
      %v1058 = vld [vmem:[#allocation2 + $0x50] sm:$0xf]
      %v1059 = vld [vmem:[#allocation2 + $0x54] sm:$0xf]
      %v1060 = vld [vmem:[#allocation2 + $0x58] sm:$0xf]
      %v1061 = vld [vmem:[#allocation2 + $0x5c] sm:$0xf]
      %v1062 = vld [vmem:[#allocation2 + $0x60] sm:$0xf]
      %v1063 = vld [vmem:[#allocation2 + $0x64] sm:$0xf]
      %v1064 = vld [vmem:[#allocation2 + $0x68] sm:$0xf]
      %v1065 = vld [vmem:[#allocation2 + $0x6c] sm:$0xf]
      %v1066 = vld [vmem:[#allocation2 + $0x70] sm:$0xf]
      %v1067 = vld [vmem:[#allocation2 + $0x74] sm:$0xf]
      %v1068 = vld [vmem:[#allocation2 + $0x78] sm:$0xf]
      %v1069 = vld [vmem:[#allocation2 + $0x7c] sm:$0xf]
      %v1070 = vld [vmem:[#allocation2 + $0x80] sm:$0xf]
      %v1071 = vld [vmem:[#allocation2 + $0x84] sm:$0xf]
      %v1072 = vld [vmem:[#allocation2 + $0x88] sm:$0xf]
      %v1073 = vld [vmem:[#allocation2 + $0x8c] sm:$0xf]
      %1074 = vst.msk [vmem:[#allocation3] sm:$0xf] %vm427, %v1038
      %1075 = vst.msk [vmem:[#allocation3 + $0x4] sm:$0xf] %vm427, %v1039
      %1076 = vst.msk [vmem:[#allocation3 + $0x8] sm:$0xf] %vm427, %v1040
      %1077 = vst.msk [vmem:[#allocation3 + $0xc] sm:$0xf] %vm427, %v1041
      %1078 = vst.msk [vmem:[#allocation3 + $0x10] sm:$0xf] %vm427, %v1042
      %1079 = vst.msk [vmem:[#allocation3 + $0x14] sm:$0xf] %vm427, %v1043
      %1080 = vst.msk [vmem:[#allocation3 + $0x18] sm:$0xf] %vm427, %v1044
      %1081 = vst.msk [vmem:[#allocation3 + $0x1c] sm:$0xf] %vm427, %v1045
      %1082 = vst.msk [vmem:[#allocation3 + $0x20] sm:$0xf] %vm427, %v1046
      %1083 = vst.msk [vmem:[#allocation3 + $0x24] sm:$0xf] %vm427, %v1047
      %1084 = vst.msk [vmem:[#allocation3 + $0x28] sm:$0xf] %vm427, %v1048
      %1085 = vst.msk [vmem:[#allocation3 + $0x2c] sm:$0xf] %vm427, %v1049
      %1086 = vst.msk [vmem:[#allocation3 + $0x30] sm:$0xf] %vm427, %v1050
      %1087 = vst.msk [vmem:[#allocation3 + $0x34] sm:$0xf] %vm427, %v1051
      %1088 = vst.msk [vmem:[#allocation3 + $0x38] sm:$0xf] %vm427, %v1052
      %1089 = vst.msk [vmem:[#allocation3 + $0x3c] sm:$0xf] %vm427, %v1053
      %1090 = vst.msk [vmem:[#allocation3 + $0x40] sm:$0xf] %vm427, %v1054
      %1091 = vst.msk [vmem:[#allocation3 + $0x44] sm:$0xf] %vm427, %v1055
      %1092 = vst.msk [vmem:[#allocation3 + $0x48] sm:$0xf] %vm427, %v1056
      %1093 = vst.msk [vmem:[#allocation3 + $0x4c] sm:$0xf] %vm427, %v1057
      %1094 = vst.msk [vmem:[#allocation3 + $0x50] sm:$0xf] %vm427, %v1058
      %1095 = vst.msk [vmem:[#allocation3 + $0x54] sm:$0xf] %vm427, %v1059
      %1096 = vst.msk [vmem:[#allocation3 + $0x58] sm:$0xf] %vm427, %v1060
      %1097 = vst.msk [vmem:[#allocation3 + $0x5c] sm:$0xf] %vm427, %v1061
      %1098 = vst.msk [vmem:[#allocation3 + $0x60] sm:$0xf] %vm427, %v1062
      %1099 = vst.msk [vmem:[#allocation3 + $0x64] sm:$0xf] %vm427, %v1063
      %1100 = vst.msk [vmem:[#allocation3 + $0x68] sm:$0xf] %vm427, %v1064
      %1101 = vst.msk [vmem:[#allocation3 + $0x6c] sm:$0xf] %vm427, %v1065
      %1102 = vst.msk [vmem:[#allocation3 + $0x70] sm:$0xf] %vm427, %v1066
      %1103 = vst.msk [vmem:[#allocation3 + $0x74] sm:$0xf] %vm427, %v1067
      %1104 = vst.msk [vmem:[#allocation3 + $0x78] sm:$0xf] %vm427, %v1068
      %1105 = vst.msk [vmem:[#allocation3 + $0x7c] sm:$0xf] %vm427, %v1069
      %1106 = vst.msk [vmem:[#allocation3 + $0x80] sm:$0xf] %vm427, %v1070
      %1107 = vst.msk [vmem:[#allocation3 + $0x84] sm:$0xf] %vm427, %v1071
      %1108 = vst.msk [vmem:[#allocation3 + $0x88] sm:$0xf] %vm427, %v1072
      %1109 = vst.msk [vmem:[#allocation3 + $0x8c] sm:$0xf] %vm427, %v1073
      %v1110 = vld [vmem:[#allocation2] sm:$0xf]
      %v1111 = vld [vmem:[#allocation2 + $0x4] sm:$0xf]
      %v1112 = vld [vmem:[#allocation2 + $0x8] sm:$0xf]
      %v1113 = vld [vmem:[#allocation2 + $0xc] sm:$0xf]
      %v1114 = vld [vmem:[#allocation2 + $0x10] sm:$0xf]
      %v1115 = vld [vmem:[#allocation2 + $0x14] sm:$0xf]
      %v1116 = vld [vmem:[#allocation2 + $0x18] sm:$0xf]
      %v1117 = vld [vmem:[#allocation2 + $0x1c] sm:$0xf]
      %v1118 = vld [vmem:[#allocation2 + $0x20] sm:$0xf]
      %v1119 = vld [vmem:[#allocation2 + $0x24] sm:$0xf]
      %v1120 = vld [vmem:[#allocation2 + $0x28] sm:$0xf]
      %v1121 = vld [vmem:[#allocation2 + $0x2c] sm:$0xf]
      %v1122 = vld [vmem:[#allocation2 + $0x30] sm:$0xf]
      %v1123 = vld [vmem:[#allocation2 + $0x34] sm:$0xf]
      %v1124 = vld [vmem:[#allocation2 + $0x38] sm:$0xf]
      %v1125 = vld [vmem:[#allocation2 + $0x3c] sm:$0xf]
      %v1126 = vld [vmem:[#allocation2 + $0x40] sm:$0xf]
      %v1127 = vld [vmem:[#allocation2 + $0x44] sm:$0xf]
      %v1128 = vld [vmem:[#allocation2 + $0x48] sm:$0xf]
      %v1129 = vld [vmem:[#allocation2 + $0x4c] sm:$0xf]
      %v1130 = vld [vmem:[#allocation2 + $0x50] sm:$0xf]
      %v1131 = vld [vmem:[#allocation2 + $0x54] sm:$0xf]
      %v1132 = vld [vmem:[#allocation2 + $0x58] sm:$0xf]
      %v1133 = vld [vmem:[#allocation2 + $0x5c] sm:$0xf]
      %v1134 = vld [vmem:[#allocation2 + $0x60] sm:$0xf]
      %v1135 = vld [vmem:[#allocation2 + $0x64] sm:$0xf]
      %v1136 = vld [vmem:[#allocation2 + $0x68] sm:$0xf]
      %v1137 = vld [vmem:[#allocation2 + $0x6c] sm:$0xf]
      %v1138 = vld [vmem:[#allocation2 + $0x70] sm:$0xf]
      %v1139 = vld [vmem:[#allocation2 + $0x74] sm:$0xf]
      %v1140 = vld [vmem:[#allocation2 + $0x78] sm:$0xf]
      %v1141 = vld [vmem:[#allocation2 + $0x7c] sm:$0xf]
      %v1142 = vld [vmem:[#allocation2 + $0x80] sm:$0xf]
      %v1143 = vld [vmem:[#allocation2 + $0x84] sm:$0xf]
      %v1144 = vld [vmem:[#allocation2 + $0x88] sm:$0xf]
      %v1145 = vld [vmem:[#allocation2 + $0x8c] sm:$0xf]
      %v1146 = vld [vmem:[#allocation2 + $0x90] sm:$0x1]
      %v1148 = vshrl.u32 %v1110, 16
      %v1150 = vrot.slane %v1148, 4
      %v1151 = vshll.u32 %v1110, 16
      %v1153 = vrot.slane %v1151, 5
      %v1154 = vor.u32 %v1150, %v1153
      %v1155 = vrot.slane %v1154, 4
      %v1157 = vshll.u32 %v1111, 16
      %v1159 = vrot.slane %v1157, 5
      %v1160 = vsel %vm562, %v1155, %v1159
      %v1161 = vshrl.u32 %v1111, 16
      %v1163 = vrot.slane %v1161, 4
      %v1164 = vor.u32 %v1163, %v1159
      %v1165 = vrot.slane %v1164, 4
      %v1167 = vshll.u32 %v1112, 16
      %v1169 = vrot.slane %v1167, 5
      %v1170 = vsel %vm562, %v1165, %v1169
      %v1171 = vshrl.u32 %v1112, 16
      %v1173 = vrot.slane %v1171, 4
      %v1174 = vor.u32 %v1173, %v1169
      %v1175 = vrot.slane %v1174, 4
      %v1177 = vshll.u32 %v1113, 16
      %v1179 = vrot.slane %v1177, 5
      %v1180 = vsel %vm562, %v1175, %v1179
      %v1181 = vshrl.u32 %v1113, 16
      %v1183 = vrot.slane %v1181, 4
      %v1184 = vor.u32 %v1183, %v1179
      %v1185 = vrot.slane %v1184, 4
      %v1187 = vshll.u32 %v1114, 16
      %v1189 = vrot.slane %v1187, 5
      %v1190 = vsel %vm562, %v1185, %v1189
      %v1191 = vshrl.u32 %v1114, 16
      %v1193 = vrot.slane %v1191, 4
      %v1194 = vor.u32 %v1193, %v1189
      %v1195 = vrot.slane %v1194, 4
      %v1197 = vshll.u32 %v1115, 16
      %v1199 = vrot.slane %v1197, 5
      %v1200 = vsel %vm562, %v1195, %v1199
      %v1201 = vshrl.u32 %v1115, 16
      %v1203 = vrot.slane %v1201, 4
      %v1204 = vor.u32 %v1203, %v1199
      %v1205 = vrot.slane %v1204, 4
      %v1207 = vshll.u32 %v1116, 16
      %v1209 = vrot.slane %v1207, 5
      %v1210 = vsel %vm562, %v1205, %v1209
      %v1211 = vshrl.u32 %v1116, 16
      %v1213 = vrot.slane %v1211, 4
      %v1214 = vor.u32 %v1213, %v1209
      %v1215 = vrot.slane %v1214, 4
      %v1217 = vshll.u32 %v1117, 16
      %v1219 = vrot.slane %v1217, 5
      %v1220 = vsel %vm562, %v1215, %v1219
      %v1221 = vshrl.u32 %v1117, 16
      %v1223 = vrot.slane %v1221, 4
      %v1224 = vor.u32 %v1223, %v1219
      %v1225 = vrot.slane %v1224, 4
      %v1227 = vshll.u32 %v1118, 16
      %v1229 = vrot.slane %v1227, 5
      %v1230 = vsel %vm562, %v1225, %v1229
      %v1231 = vshrl.u32 %v1118, 16
      %v1233 = vrot.slane %v1231, 4
      %v1234 = vor.u32 %v1233, %v1229
      %v1235 = vrot.slane %v1234, 4
      %v1237 = vshll.u32 %v1119, 16
      %v1239 = vrot.slane %v1237, 5
      %v1240 = vsel %vm562, %v1235, %v1239
      %v1241 = vshrl.u32 %v1119, 16
      %v1243 = vrot.slane %v1241, 4
      %v1244 = vor.u32 %v1243, %v1239
      %v1245 = vrot.slane %v1244, 4
      %v1247 = vshll.u32 %v1120, 16
      %v1249 = vrot.slane %v1247, 5
      %v1250 = vsel %vm562, %v1245, %v1249
      %v1251 = vshrl.u32 %v1120, 16
      %v1253 = vrot.slane %v1251, 4
      %v1254 = vor.u32 %v1253, %v1249
      %v1255 = vrot.slane %v1254, 4
      %v1257 = vshll.u32 %v1121, 16
      %v1259 = vrot.slane %v1257, 5
      %v1260 = vsel %vm562, %v1255, %v1259
      %v1261 = vshrl.u32 %v1121, 16
      %v1263 = vrot.slane %v1261, 4
      %v1264 = vor.u32 %v1263, %v1259
      %v1265 = vrot.slane %v1264, 4
      %v1267 = vshll.u32 %v1122, 16
      %v1269 = vrot.slane %v1267, 5
      %v1270 = vsel %vm562, %v1265, %v1269
      %v1271 = vshrl.u32 %v1122, 16
      %v1273 = vrot.slane %v1271, 4
      %v1274 = vor.u32 %v1273, %v1269
      %v1275 = vrot.slane %v1274, 4
      %v1277 = vshll.u32 %v1123, 16
      %v1279 = vrot.slane %v1277, 5
      %v1280 = vsel %vm562, %v1275, %v1279
      %v1281 = vshrl.u32 %v1123, 16
      %v1283 = vrot.slane %v1281, 4
      %v1284 = vor.u32 %v1283, %v1279
      %v1285 = vrot.slane %v1284, 4
      %v1287 = vshll.u32 %v1124, 16
      %v1289 = vrot.slane %v1287, 5
      %v1290 = vsel %vm562, %v1285, %v1289
      %v1291 = vshrl.u32 %v1124, 16
      %v1293 = vrot.slane %v1291, 4
      %v1294 = vor.u32 %v1293, %v1289
      %v1295 = vrot.slane %v1294, 4
      %v1297 = vshll.u32 %v1125, 16
      %v1299 = vrot.slane %v1297, 5
      %v1300 = vsel %vm562, %v1295, %v1299
      %v1301 = vshrl.u32 %v1125, 16
      %v1303 = vrot.slane %v1301, 4
      %v1304 = vor.u32 %v1303, %v1299
      %v1305 = vrot.slane %v1304, 4
      %v1307 = vshll.u32 %v1126, 16
      %v1309 = vrot.slane %v1307, 5
      %v1310 = vsel %vm562, %v1305, %v1309
      %v1311 = vshrl.u32 %v1126, 16
      %v1313 = vrot.slane %v1311, 4
      %v1314 = vor.u32 %v1313, %v1309
      %v1315 = vrot.slane %v1314, 4
      %v1317 = vshll.u32 %v1127, 16
      %v1319 = vrot.slane %v1317, 5
      %v1320 = vsel %vm562, %v1315, %v1319
      %v1321 = vshrl.u32 %v1127, 16
      %v1323 = vrot.slane %v1321, 4
      %v1324 = vor.u32 %v1323, %v1319
      %v1325 = vrot.slane %v1324, 4
      %v1327 = vshll.u32 %v1128, 16
      %v1329 = vrot.slane %v1327, 5
      %v1330 = vsel %vm562, %v1325, %v1329
      %v1331 = vshrl.u32 %v1128, 16
      %v1333 = vrot.slane %v1331, 4
      %v1334 = vor.u32 %v1333, %v1329
      %v1335 = vrot.slane %v1334, 4
      %v1337 = vshll.u32 %v1129, 16
      %v1339 = vrot.slane %v1337, 5
      %v1340 = vsel %vm562, %v1335, %v1339
      %v1341 = vshrl.u32 %v1129, 16
      %v1343 = vrot.slane %v1341, 4
      %v1344 = vor.u32 %v1343, %v1339
      %v1345 = vrot.slane %v1344, 4
      %v1347 = vshll.u32 %v1130, 16
      %v1349 = vrot.slane %v1347, 5
      %v1350 = vsel %vm562, %v1345, %v1349
      %v1351 = vshrl.u32 %v1130, 16
      %v1353 = vrot.slane %v1351, 4
      %v1354 = vor.u32 %v1353, %v1349
      %v1355 = vrot.slane %v1354, 4
      %v1357 = vshll.u32 %v1131, 16
      %v1359 = vrot.slane %v1357, 5
      %v1360 = vsel %vm562, %v1355, %v1359
      %v1361 = vshrl.u32 %v1131, 16
      %v1363 = vrot.slane %v1361, 4
      %v1364 = vor.u32 %v1363, %v1359
      %v1365 = vrot.slane %v1364, 4
      %v1367 = vshll.u32 %v1132, 16
      %v1369 = vrot.slane %v1367, 5
      %v1370 = vsel %vm562, %v1365, %v1369
      %v1371 = vshrl.u32 %v1132, 16
      %v1373 = vrot.slane %v1371, 4
      %v1374 = vor.u32 %v1373, %v1369
      %v1375 = vrot.slane %v1374, 4
      %v1377 = vshll.u32 %v1133, 16
      %v1379 = vrot.slane %v1377, 5
      %v1380 = vsel %vm562, %v1375, %v1379
      %v1381 = vshrl.u32 %v1133, 16
      %v1383 = vrot.slane %v1381, 4
      %v1384 = vor.u32 %v1383, %v1379
      %v1385 = vrot.slane %v1384, 4
      %v1387 = vshll.u32 %v1134, 16
      %v1389 = vrot.slane %v1387, 5
      %v1390 = vsel %vm562, %v1385, %v1389
      %v1391 = vshrl.u32 %v1134, 16
      %v1393 = vrot.slane %v1391, 4
      %v1394 = vor.u32 %v1393, %v1389
      %v1395 = vrot.slane %v1394, 4
      %v1397 = vshll.u32 %v1135, 16
      %v1399 = vrot.slane %v1397, 5
      %v1400 = vsel %vm562, %v1395, %v1399
      %v1401 = vshrl.u32 %v1135, 16
      %v1403 = vrot.slane %v1401, 4
      %v1404 = vor.u32 %v1403, %v1399
      %v1405 = vrot.slane %v1404, 4
      %v1407 = vshll.u32 %v1136, 16
      %v1409 = vrot.slane %v1407, 5
      %v1410 = vsel %vm562, %v1405, %v1409
      %v1411 = vshrl.u32 %v1136, 16
      %v1413 = vrot.slane %v1411, 4
      %v1414 = vor.u32 %v1413, %v1409
      %v1415 = vrot.slane %v1414, 4
      %v1417 = vshll.u32 %v1137, 16
      %v1419 = vrot.slane %v1417, 5
      %v1420 = vsel %vm562, %v1415, %v1419
      %v1421 = vshrl.u32 %v1137, 16
      %v1423 = vrot.slane %v1421, 4
      %v1424 = vor.u32 %v1423, %v1419
      %v1425 = vrot.slane %v1424, 4
      %v1427 = vshll.u32 %v1138, 16
      %v1429 = vrot.slane %v1427, 5
      %v1430 = vsel %vm562, %v1425, %v1429
      %v1431 = vshrl.u32 %v1138, 16
      %v1433 = vrot.slane %v1431, 4
      %v1434 = vor.u32 %v1433, %v1429
      %v1435 = vrot.slane %v1434, 4
      %v1437 = vshll.u32 %v1139, 16
      %v1439 = vrot.slane %v1437, 5
      %v1440 = vsel %vm562, %v1435, %v1439
      %v1441 = vshrl.u32 %v1139, 16
      %v1443 = vrot.slane %v1441, 4
      %v1444 = vor.u32 %v1443, %v1439
      %v1445 = vrot.slane %v1444, 4
      %v1447 = vshll.u32 %v1140, 16
      %v1449 = vrot.slane %v1447, 5
      %v1450 = vsel %vm562, %v1445, %v1449
      %v1451 = vshrl.u32 %v1140, 16
      %v1453 = vrot.slane %v1451, 4
      %v1454 = vor.u32 %v1453, %v1449
      %v1455 = vrot.slane %v1454, 4
      %v1457 = vshll.u32 %v1141, 16
      %v1459 = vrot.slane %v1457, 5
      %v1460 = vsel %vm562, %v1455, %v1459
      %v1461 = vshrl.u32 %v1141, 16
      %v1463 = vrot.slane %v1461, 4
      %v1464 = vor.u32 %v1463, %v1459
      %v1465 = vrot.slane %v1464, 4
      %v1467 = vshll.u32 %v1142, 16
      %v1469 = vrot.slane %v1467, 5
      %v1470 = vsel %vm562, %v1465, %v1469
      %v1471 = vshrl.u32 %v1142, 16
      %v1473 = vrot.slane %v1471, 4
      %v1474 = vor.u32 %v1473, %v1469
      %v1475 = vrot.slane %v1474, 4
      %v1477 = vshll.u32 %v1143, 16
      %v1479 = vrot.slane %v1477, 5
      %v1480 = vsel %vm562, %v1475, %v1479
      %v1481 = vshrl.u32 %v1143, 16
      %v1483 = vrot.slane %v1481, 4
      %v1484 = vor.u32 %v1483, %v1479
      %v1485 = vrot.slane %v1484, 4
      %v1487 = vshll.u32 %v1144, 16
      %v1489 = vrot.slane %v1487, 5
      %v1490 = vsel %vm562, %v1485, %v1489
      %v1491 = vshrl.u32 %v1144, 16
      %v1493 = vrot.slane %v1491, 4
      %v1494 = vor.u32 %v1493, %v1489
      %v1495 = vrot.slane %v1494, 4
      %v1497 = vshll.u32 %v1145, 16
      %v1499 = vrot.slane %v1497, 5
      %v1500 = vsel %vm562, %v1495, %v1499
      %v1501 = vshrl.u32 %v1145, 16
      %v1503 = vrot.slane %v1501, 4
      %v1504 = vor.u32 %v1503, %v1499
      %v1505 = vrot.slane %v1504, 4
      %v1507 = vshll.u32 %v1146, 16
      %v1509 = vrot.slane %v1507, 5
      %v1510 = vsel %vm562, %v1505, %v1509
      %1511 = vrot.lane.b32.xlu0 %v1160, 8
      %v1512 = vpop.permute.xlu0 %1511
      %1513 = vrot.lane.b32.xlu0 %v1170, 8
      %v1514 = vpop.permute.xlu0 %1513
      %1515 = vrot.lane.b32.xlu0 %v1180, 8
      %v1516 = vpop.permute.xlu0 %1515
      %1517 = vrot.lane.b32.xlu0 %v1190, 8
      %v1518 = vpop.permute.xlu0 %1517
      %1519 = vrot.lane.b32.xlu0 %v1200, 8
      %v1520 = vpop.permute.xlu0 %1519
      %1521 = vrot.lane.b32.xlu0 %v1210, 8
      %v1522 = vpop.permute.xlu0 %1521
      %1523 = vrot.lane.b32.xlu0 %v1220, 8
      %v1524 = vpop.permute.xlu0 %1523
      %1525 = vrot.lane.b32.xlu0 %v1230, 8
      %v1526 = vpop.permute.xlu0 %1525
      %1527 = vrot.lane.b32.xlu0 %v1240, 8
      %v1528 = vpop.permute.xlu0 %1527
      %1529 = vrot.lane.b32.xlu0 %v1250, 8
      %v1530 = vpop.permute.xlu0 %1529
      %1531 = vrot.lane.b32.xlu0 %v1260, 8
      %v1532 = vpop.permute.xlu0 %1531
      %1533 = vrot.lane.b32.xlu0 %v1270, 8
      %v1534 = vpop.permute.xlu0 %1533
      %1535 = vrot.lane.b32.xlu0 %v1280, 8
      %v1536 = vpop.permute.xlu0 %1535
      %1537 = vrot.lane.b32.xlu0 %v1290, 8
      %v1538 = vpop.permute.xlu0 %1537
      %1539 = vrot.lane.b32.xlu0 %v1300, 8
      %v1540 = vpop.permute.xlu0 %1539
      %1541 = vrot.lane.b32.xlu0 %v1310, 8
      %v1542 = vpop.permute.xlu0 %1541
      %1543 = vrot.lane.b32.xlu0 %v1320, 8
      %v1544 = vpop.permute.xlu0 %1543
      %1545 = vrot.lane.b32.xlu0 %v1330, 8
      %v1546 = vpop.permute.xlu0 %1545
      %1547 = vrot.lane.b32.xlu0 %v1340, 8
      %v1548 = vpop.permute.xlu0 %1547
      %1549 = vrot.lane.b32.xlu0 %v1350, 8
      %v1550 = vpop.permute.xlu0 %1549
      %1551 = vrot.lane.b32.xlu0 %v1360, 8
      %v1552 = vpop.permute.xlu0 %1551
      %1553 = vrot.lane.b32.xlu0 %v1370, 8
      %v1554 = vpop.permute.xlu0 %1553
      %1555 = vrot.lane.b32.xlu0 %v1380, 8
      %v1556 = vpop.permute.xlu0 %1555
      %1557 = vrot.lane.b32.xlu0 %v1390, 8
      %v1558 = vpop.permute.xlu0 %1557
      %1559 = vrot.lane.b32.xlu0 %v1400, 8
      %v1560 = vpop.permute.xlu0 %1559
      %1561 = vrot.lane.b32.xlu0 %v1410, 8
      %v1562 = vpop.permute.xlu0 %1561
      %1563 = vrot.lane.b32.xlu0 %v1420, 8
      %v1564 = vpop.permute.xlu0 %1563
      %1565 = vrot.lane.b32.xlu0 %v1430, 8
      %v1566 = vpop.permute.xlu0 %1565
      %1567 = vrot.lane.b32.xlu0 %v1440, 8
      %v1568 = vpop.permute.xlu0 %1567
      %1569 = vrot.lane.b32.xlu0 %v1450, 8
      %v1570 = vpop.permute.xlu0 %1569
      %1571 = vrot.lane.b32.xlu0 %v1460, 8
      %v1572 = vpop.permute.xlu0 %1571
      %1573 = vrot.lane.b32.xlu0 %v1470, 8
      %v1574 = vpop.permute.xlu0 %1573
      %1575 = vrot.lane.b32.xlu0 %v1480, 8
      %v1576 = vpop.permute.xlu0 %1575
      %1577 = vrot.lane.b32.xlu0 %v1490, 8
      %v1578 = vpop.permute.xlu0 %1577
      %1579 = vrot.lane.b32.xlu0 %v1500, 8
      %v1580 = vpop.permute.xlu0 %1579
      %1581 = vrot.lane.b32.xlu0 %v1510, 8
      %v1582 = vpop.permute.xlu0 %1581
      %vm1619 = vcmask 126016
      %1620 = vst.msk [vmem:[#allocation3] sm:$0xf] %vm1619, %v1512
      %1621 = vst.msk [vmem:[#allocation3 + $0x4] sm:$0xf] %vm1619, %v1514
      %1622 = vst.msk [vmem:[#allocation3 + $0x8] sm:$0xf] %vm1619, %v1516
      %1623 = vst.msk [vmem:[#allocation3 + $0xc] sm:$0xf] %vm1619, %v1518
      %1624 = vst.msk [vmem:[#allocation3 + $0x10] sm:$0xf] %vm1619, %v1520
      %1625 = vst.msk [vmem:[#allocation3 + $0x14] sm:$0xf] %vm1619, %v1522
      %1626 = vst.msk [vmem:[#allocation3 + $0x18] sm:$0xf] %vm1619, %v1524
      %1627 = vst.msk [vmem:[#allocation3 + $0x1c] sm:$0xf] %vm1619, %v1526
      %1628 = vst.msk [vmem:[#allocation3 + $0x20] sm:$0xf] %vm1619, %v1528
      %1629 = vst.msk [vmem:[#allocation3 + $0x24] sm:$0xf] %vm1619, %v1530
      %1630 = vst.msk [vmem:[#allocation3 + $0x28] sm:$0xf] %vm1619, %v1532
      %1631 = vst.msk [vmem:[#allocation3 + $0x2c] sm:$0xf] %vm1619, %v1534
      %1632 = vst.msk [vmem:[#allocation3 + $0x30] sm:$0xf] %vm1619, %v1536
      %1633 = vst.msk [vmem:[#allocation3 + $0x34] sm:$0xf] %vm1619, %v1538
      %1634 = vst.msk [vmem:[#allocation3 + $0x38] sm:$0xf] %vm1619, %v1540
      %1635 = vst.msk [vmem:[#allocation3 + $0x3c] sm:$0xf] %vm1619, %v1542
      %1636 = vst.msk [vmem:[#allocation3 + $0x40] sm:$0xf] %vm1619, %v1544
      %1637 = vst.msk [vmem:[#allocation3 + $0x44] sm:$0xf] %vm1619, %v1546
      %1638 = vst.msk [vmem:[#allocation3 + $0x48] sm:$0xf] %vm1619, %v1548
      %1639 = vst.msk [vmem:[#allocation3 + $0x4c] sm:$0xf] %vm1619, %v1550
      %1640 = vst.msk [vmem:[#allocation3 + $0x50] sm:$0xf] %vm1619, %v1552
      %1641 = vst.msk [vmem:[#allocation3 + $0x54] sm:$0xf] %vm1619, %v1554
      %1642 = vst.msk [vmem:[#allocation3 + $0x58] sm:$0xf] %vm1619, %v1556
      %1643 = vst.msk [vmem:[#allocation3 + $0x5c] sm:$0xf] %vm1619, %v1558
      %1644 = vst.msk [vmem:[#allocation3 + $0x60] sm:$0xf] %vm1619, %v1560
      %1645 = vst.msk [vmem:[#allocation3 + $0x64] sm:$0xf] %vm1619, %v1562
      %1646 = vst.msk [vmem:[#allocation3 + $0x68] sm:$0xf] %vm1619, %v1564
      %1647 = vst.msk [vmem:[#allocation3 + $0x6c] sm:$0xf] %vm1619, %v1566
      %1648 = vst.msk [vmem:[#allocation3 + $0x70] sm:$0xf] %vm1619, %v1568
      %1649 = vst.msk [vmem:[#allocation3 + $0x74] sm:$0xf] %vm1619, %v1570
      %1650 = vst.msk [vmem:[#allocation3 + $0x78] sm:$0xf] %vm1619, %v1572
      %1651 = vst.msk [vmem:[#allocation3 + $0x7c] sm:$0xf] %vm1619, %v1574
      %1652 = vst.msk [vmem:[#allocation3 + $0x80] sm:$0xf] %vm1619, %v1576
      %1653 = vst.msk [vmem:[#allocation3 + $0x84] sm:$0xf] %vm1619, %v1578
      %1654 = vst.msk [vmem:[#allocation3 + $0x88] sm:$0xf] %vm1619, %v1580
      %1655 = vst.msk [vmem:[#allocation3 + $0x8c] sm:$0xf] %vm1619, %v1582
      %v1656 = vld [vmem:[#allocation2] sm:$0xe]
      %v1657 = vld [vmem:[#allocation2 + $0x4] sm:$0xf]
      %v1658 = vld [vmem:[#allocation2 + $0x8] sm:$0xf]
      %v1659 = vld [vmem:[#allocation2 + $0xc] sm:$0xf]
      %v1660 = vld [vmem:[#allocation2 + $0x10] sm:$0xf]
      %v1661 = vld [vmem:[#allocation2 + $0x14] sm:$0xf]
      %v1662 = vld [vmem:[#allocation2 + $0x18] sm:$0xf]
      %v1663 = vld [vmem:[#allocation2 + $0x1c] sm:$0xf]
      %v1664 = vld [vmem:[#allocation2 + $0x20] sm:$0xf]
      %v1665 = vld [vmem:[#allocation2 + $0x24] sm:$0xf]
      %v1666 = vld [vmem:[#allocation2 + $0x28] sm:$0xf]
      %v1667 = vld [vmem:[#allocation2 + $0x2c] sm:$0xf]
      %v1668 = vld [vmem:[#allocation2 + $0x30] sm:$0xf]
      %v1669 = vld [vmem:[#allocation2 + $0x34] sm:$0xf]
      %v1670 = vld [vmem:[#allocation2 + $0x38] sm:$0xf]
      %v1671 = vld [vmem:[#allocation2 + $0x3c] sm:$0xf]
      %v1672 = vld [vmem:[#allocation2 + $0x40] sm:$0xf]
      %v1673 = vld [vmem:[#allocation2 + $0x44] sm:$0xf]
      %v1674 = vld [vmem:[#allocation2 + $0x48] sm:$0xf]
      %v1675 = vld [vmem:[#allocation2 + $0x4c] sm:$0xf]
      %v1676 = vld [vmem:[#allocation2 + $0x50] sm:$0xf]
      %v1677 = vld [vmem:[#allocation2 + $0x54] sm:$0xf]
      %v1678 = vld [vmem:[#allocation2 + $0x58] sm:$0xf]
      %v1679 = vld [vmem:[#allocation2 + $0x5c] sm:$0xf]
      %v1680 = vld [vmem:[#allocation2 + $0x60] sm:$0xf]
      %v1681 = vld [vmem:[#allocation2 + $0x64] sm:$0xf]
      %v1682 = vld [vmem:[#allocation2 + $0x68] sm:$0xf]
      %v1683 = vld [vmem:[#allocation2 + $0x6c] sm:$0xf]
      %v1684 = vld [vmem:[#allocation2 + $0x70] sm:$0xf]
      %v1685 = vld [vmem:[#allocation2 + $0x74] sm:$0xf]
      %v1686 = vld [vmem:[#allocation2 + $0x78] sm:$0xf]
      %v1687 = vld [vmem:[#allocation2 + $0x7c] sm:$0xf]
      %v1688 = vld [vmem:[#allocation2 + $0x80] sm:$0xf]
      %v1689 = vld [vmem:[#allocation2 + $0x84] sm:$0xf]
      %v1690 = vld [vmem:[#allocation2 + $0x88] sm:$0xf]
      %v1691 = vld [vmem:[#allocation2 + $0x8c] sm:$0xf]
      %v1692 = vld [vmem:[#allocation2 + $0x90] sm:$0x1]
      %vm1730 = vcmask 1042432
      %vm1731 = vcmask 1046532
      %vm1732 = vmor %vm1730, %vm1731
      %v1733 = vrot.slane %v1656, 5
      %v1734 = vrot.slane %v1733, 4
      %v1735 = vrot.slane %v1657, 5
      %v1736 = vsel %vm1732, %v1734, %v1735
      %v1737 = vrot.slane %v1735, 4
      %v1738 = vrot.slane %v1658, 5
      %v1739 = vsel %vm1732, %v1737, %v1738
      %v1740 = vrot.slane %v1738, 4
      %v1741 = vrot.slane %v1659, 5
      %v1742 = vsel %vm1732, %v1740, %v1741
      %v1743 = vrot.slane %v1741, 4
      %v1744 = vrot.slane %v1660, 5
      %v1745 = vsel %vm1732, %v1743, %v1744
      %v1746 = vrot.slane %v1744, 4
      %v1747 = vrot.slane %v1661, 5
      %v1748 = vsel %vm1732, %v1746, %v1747
      %v1749 = vrot.slane %v1747, 4
      %v1750 = vrot.slane %v1662, 5
      %v1751 = vsel %vm1732, %v1749, %v1750
      %v1752 = vrot.slane %v1750, 4
      %v1753 = vrot.slane %v1663, 5
      %v1754 = vsel %vm1732, %v1752, %v1753
      %v1755 = vrot.slane %v1753, 4
      %v1756 = vrot.slane %v1664, 5
      %v1757 = vsel %vm1732, %v1755, %v1756
      %v1758 = vrot.slane %v1756, 4
      %v1759 = vrot.slane %v1665, 5
      %v1760 = vsel %vm1732, %v1758, %v1759
      %v1761 = vrot.slane %v1759, 4
      %v1762 = vrot.slane %v1666, 5
      %v1763 = vsel %vm1732, %v1761, %v1762
      %v1764 = vrot.slane %v1762, 4
      %v1765 = vrot.slane %v1667, 5
      %v1766 = vsel %vm1732, %v1764, %v1765
      %v1767 = vrot.slane %v1765, 4
      %v1768 = vrot.slane %v1668, 5
      %v1769 = vsel %vm1732, %v1767, %v1768
      %v1770 = vrot.slane %v1768, 4
      %v1771 = vrot.slane %v1669, 5
      %v1772 = vsel %vm1732, %v1770, %v1771
      %v1773 = vrot.slane %v1771, 4
      %v1774 = vrot.slane %v1670, 5
      %v1775 = vsel %vm1732, %v1773, %v1774
      %v1776 = vrot.slane %v1774, 4
      %v1777 = vrot.slane %v1671, 5
      %v1778 = vsel %vm1732, %v1776, %v1777
      %v1779 = vrot.slane %v1777, 4
      %v1780 = vrot.slane %v1672, 5
      %v1781 = vsel %vm1732, %v1779, %v1780
      %v1782 = vrot.slane %v1780, 4
      %v1783 = vrot.slane %v1673, 5
      %v1784 = vsel %vm1732, %v1782, %v1783
      %v1785 = vrot.slane %v1783, 4
      %v1786 = vrot.slane %v1674, 5
      %v1787 = vsel %vm1732, %v1785, %v1786
      %v1788 = vrot.slane %v1786, 4
      %v1789 = vrot.slane %v1675, 5
      %v1790 = vsel %vm1732, %v1788, %v1789
      %v1791 = vrot.slane %v1789, 4
      %v1792 = vrot.slane %v1676, 5
      %v1793 = vsel %vm1732, %v1791, %v1792
      %v1794 = vrot.slane %v1792, 4
      %v1795 = vrot.slane %v1677, 5
      %v1796 = vsel %vm1732, %v1794, %v1795
      %v1797 = vrot.slane %v1795, 4
      %v1798 = vrot.slane %v1678, 5
      %v1799 = vsel %vm1732, %v1797, %v1798
      %v1800 = vrot.slane %v1798, 4
      %v1801 = vrot.slane %v1679, 5
      %v1802 = vsel %vm1732, %v1800, %v1801
      %v1803 = vrot.slane %v1801, 4
      %v1804 = vrot.slane %v1680, 5
      %v1805 = vsel %vm1732, %v1803, %v1804
      %v1806 = vrot.slane %v1804, 4
      %v1807 = vrot.slane %v1681, 5
      %v1808 = vsel %vm1732, %v1806, %v1807
      %v1809 = vrot.slane %v1807, 4
      %v1810 = vrot.slane %v1682, 5
      %v1811 = vsel %vm1732, %v1809, %v1810
      %v1812 = vrot.slane %v1810, 4
      %v1813 = vrot.slane %v1683, 5
      %v1814 = vsel %vm1732, %v1812, %v1813
      %v1815 = vrot.slane %v1813, 4
      %v1816 = vrot.slane %v1684, 5
      %v1817 = vsel %vm1732, %v1815, %v1816
      %v1818 = vrot.slane %v1816, 4
      %v1819 = vrot.slane %v1685, 5
      %v1820 = vsel %vm1732, %v1818, %v1819
      %v1821 = vrot.slane %v1819, 4
      %v1822 = vrot.slane %v1686, 5
      %v1823 = vsel %vm1732, %v1821, %v1822
      %v1824 = vrot.slane %v1822, 4
      %v1825 = vrot.slane %v1687, 5
      %v1826 = vsel %vm1732, %v1824, %v1825
      %v1827 = vrot.slane %v1825, 4
      %v1828 = vrot.slane %v1688, 5
      %v1829 = vsel %vm1732, %v1827, %v1828
      %v1830 = vrot.slane %v1828, 4
      %v1831 = vrot.slane %v1689, 5
      %v1832 = vsel %vm1732, %v1830, %v1831
      %v1833 = vrot.slane %v1831, 4
      %v1834 = vrot.slane %v1690, 5
      %v1835 = vsel %vm1732, %v1833, %v1834
      %v1836 = vrot.slane %v1834, 4
      %v1837 = vrot.slane %v1691, 5
      %v1838 = vsel %vm1732, %v1836, %v1837
      %v1839 = vrot.slane %v1837, 4
      %v1840 = vrot.slane %v1692, 5
      %v1841 = vsel %vm1732, %v1839, %v1840
      %1842 = vrot.lane.b32.xlu0 %v1736, 16
      %v1843 = vpop.permute.xlu0 %1842
      %1844 = vrot.lane.b32.xlu0 %v1739, 16
      %v1845 = vpop.permute.xlu0 %1844
      %1846 = vrot.lane.b32.xlu0 %v1742, 16
      %v1847 = vpop.permute.xlu0 %1846
      %1848 = vrot.lane.b32.xlu0 %v1745, 16
      %v1849 = vpop.permute.xlu0 %1848
      %1850 = vrot.lane.b32.xlu0 %v1748, 16
      %v1851 = vpop.permute.xlu0 %1850
      %1852 = vrot.lane.b32.xlu0 %v1751, 16
      %v1853 = vpop.permute.xlu0 %1852
      %1854 = vrot.lane.b32.xlu0 %v1754, 16
      %v1855 = vpop.permute.xlu0 %1854
      %1856 = vrot.lane.b32.xlu0 %v1757, 16
      %v1857 = vpop.permute.xlu0 %1856
      %1858 = vrot.lane.b32.xlu0 %v1760, 16
      %v1859 = vpop.permute.xlu0 %1858
      %1860 = vrot.lane.b32.xlu0 %v1763, 16
      %v1861 = vpop.permute.xlu0 %1860
      %1862 = vrot.lane.b32.xlu0 %v1766, 16
      %v1863 = vpop.permute.xlu0 %1862
      %1864 = vrot.lane.b32.xlu0 %v1769, 16
      %v1865 = vpop.permute.xlu0 %1864
      %1866 = vrot.lane.b32.xlu0 %v1772, 16
      %v1867 = vpop.permute.xlu0 %1866
      %1868 = vrot.lane.b32.xlu0 %v1775, 16
      %v1869 = vpop.permute.xlu0 %1868
      %1870 = vrot.lane.b32.xlu0 %v1778, 16
      %v1871 = vpop.permute.xlu0 %1870
      %1872 = vrot.lane.b32.xlu0 %v1781, 16
      %v1873 = vpop.permute.xlu0 %1872
      %1874 = vrot.lane.b32.xlu0 %v1784, 16
      %v1875 = vpop.permute.xlu0 %1874
      %1876 = vrot.lane.b32.xlu0 %v1787, 16
      %v1877 = vpop.permute.xlu0 %1876
      %1878 = vrot.lane.b32.xlu0 %v1790, 16
      %v1879 = vpop.permute.xlu0 %1878
      %1880 = vrot.lane.b32.xlu0 %v1793, 16
      %v1881 = vpop.permute.xlu0 %1880
      %1882 = vrot.lane.b32.xlu0 %v1796, 16
      %v1883 = vpop.permute.xlu0 %1882
      %1884 = vrot.lane.b32.xlu0 %v1799, 16
      %v1885 = vpop.permute.xlu0 %1884
      %1886 = vrot.lane.b32.xlu0 %v1802, 16
      %v1887 = vpop.permute.xlu0 %1886
      %1888 = vrot.lane.b32.xlu0 %v1805, 16
      %v1889 = vpop.permute.xlu0 %1888
      %1890 = vrot.lane.b32.xlu0 %v1808, 16
      %v1891 = vpop.permute.xlu0 %1890
      %1892 = vrot.lane.b32.xlu0 %v1811, 16
      %v1893 = vpop.permute.xlu0 %1892
      %1894 = vrot.lane.b32.xlu0 %v1814, 16
      %v1895 = vpop.permute.xlu0 %1894
      %1896 = vrot.lane.b32.xlu0 %v1817, 16
      %v1897 = vpop.permute.xlu0 %1896
      %1898 = vrot.lane.b32.xlu0 %v1820, 16
      %v1899 = vpop.permute.xlu0 %1898
      %1900 = vrot.lane.b32.xlu0 %v1823, 16
      %v1901 = vpop.permute.xlu0 %1900
      %1902 = vrot.lane.b32.xlu0 %v1826, 16
      %v1903 = vpop.permute.xlu0 %1902
      %1904 = vrot.lane.b32.xlu0 %v1829, 16
      %v1905 = vpop.permute.xlu0 %1904
      %1906 = vrot.lane.b32.xlu0 %v1832, 16
      %v1907 = vpop.permute.xlu0 %1906
      %1908 = vrot.lane.b32.xlu0 %v1835, 16
      %v1909 = vpop.permute.xlu0 %1908
      %1910 = vrot.lane.b32.xlu0 %v1838, 16
      %v1911 = vpop.permute.xlu0 %1910
      %1912 = vrot.lane.b32.xlu0 %v1841, 16
      %v1913 = vpop.permute.xlu0 %1912
      %vm1950 = vcmask 191616
      %1951 = vst.msk [vmem:[#allocation3] sm:$0xf] %vm1950, %v1843
      %1952 = vst.msk [vmem:[#allocation3 + $0x4] sm:$0xf] %vm1950, %v1845
      %1953 = vst.msk [vmem:[#allocation3 + $0x8] sm:$0xf] %vm1950, %v1847
      %1954 = vst.msk [vmem:[#allocation3 + $0xc] sm:$0xf] %vm1950, %v1849
      %1955 = vst.msk [vmem:[#allocation3 + $0x10] sm:$0xf] %vm1950, %v1851
      %1956 = vst.msk [vmem:[#allocation3 + $0x14] sm:$0xf] %vm1950, %v1853
      %1957 = vst.msk [vmem:[#allocation3 + $0x18] sm:$0xf] %vm1950, %v1855
      %1958 = vst.msk [vmem:[#allocation3 + $0x1c] sm:$0xf] %vm1950, %v1857
      %1959 = vst.msk [vmem:[#allocation3 + $0x20] sm:$0xf] %vm1950, %v1859
      %1960 = vst.msk [vmem:[#allocation3 + $0x24] sm:$0xf] %vm1950, %v1861
      %1961 = vst.msk [vmem:[#allocation3 + $0x28] sm:$0xf] %vm1950, %v1863
      %1962 = vst.msk [vmem:[#allocation3 + $0x2c] sm:$0xf] %vm1950, %v1865
      %1963 = vst.msk [vmem:[#allocation3 + $0x30] sm:$0xf] %vm1950, %v1867
      %1964 = vst.msk [vmem:[#allocation3 + $0x34] sm:$0xf] %vm1950, %v1869
      %1965 = vst.msk [vmem:[#allocation3 + $0x38] sm:$0xf] %vm1950, %v1871
      %1966 = vst.msk [vmem:[#allocation3 + $0x3c] sm:$0xf] %vm1950, %v1873
      %1967 = vst.msk [vmem:[#allocation3 + $0x40] sm:$0xf] %vm1950, %v1875
      %1968 = vst.msk [vmem:[#allocation3 + $0x44] sm:$0xf] %vm1950, %v1877
      %1969 = vst.msk [vmem:[#allocation3 + $0x48] sm:$0xf] %vm1950, %v1879
      %1970 = vst.msk [vmem:[#allocation3 + $0x4c] sm:$0xf] %vm1950, %v1881
      %1971 = vst.msk [vmem:[#allocation3 + $0x50] sm:$0xf] %vm1950, %v1883
      %1972 = vst.msk [vmem:[#allocation3 + $0x54] sm:$0xf] %vm1950, %v1885
      %1973 = vst.msk [vmem:[#allocation3 + $0x58] sm:$0xf] %vm1950, %v1887
      %1974 = vst.msk [vmem:[#allocation3 + $0x5c] sm:$0xf] %vm1950, %v1889
      %1975 = vst.msk [vmem:[#allocation3 + $0x60] sm:$0xf] %vm1950, %v1891
      %1976 = vst.msk [vmem:[#allocation3 + $0x64] sm:$0xf] %vm1950, %v1893
      %1977 = vst.msk [vmem:[#allocation3 + $0x68] sm:$0xf] %vm1950, %v1895
      %1978 = vst.msk [vmem:[#allocation3 + $0x6c] sm:$0xf] %vm1950, %v1897
      %1979 = vst.msk [vmem:[#allocation3 + $0x70] sm:$0xf] %vm1950, %v1899
      %1980 = vst.msk [vmem:[#allocation3 + $0x74] sm:$0xf] %vm1950, %v1901
      %1981 = vst.msk [vmem:[#allocation3 + $0x78] sm:$0xf] %vm1950, %v1903
      %1982 = vst.msk [vmem:[#allocation3 + $0x7c] sm:$0xf] %vm1950, %v1905
      %1983 = vst.msk [vmem:[#allocation3 + $0x80] sm:$0xf] %vm1950, %v1907
      %1984 = vst.msk [vmem:[#allocation3 + $0x84] sm:$0xf] %vm1950, %v1909
      %1985 = vst.msk [vmem:[#allocation3 + $0x88] sm:$0xf] %vm1950, %v1911
      %1986 = vst.msk [vmem:[#allocation3 + $0x8c] sm:$0xf] %vm1950, %v1913
      %v1987 = vld [vmem:[#allocation2 + $0x8] sm:$0xe]
      %v1988 = vld [vmem:[#allocation2 + $0xc] sm:$0xf]
      %v1989 = vld [vmem:[#allocation2 + $0x10] sm:$0xf]
      %v1990 = vld [vmem:[#allocation2 + $0x14] sm:$0xf]
      %v1991 = vld [vmem:[#allocation2 + $0x18] sm:$0xf]
      %v1992 = vld [vmem:[#allocation2 + $0x1c] sm:$0xf]
      %v1993 = vld [vmem:[#allocation2 + $0x20] sm:$0xf]
      %v1994 = vld [vmem:[#allocation2 + $0x24] sm:$0xf]
      %v1995 = vld [vmem:[#allocation2 + $0x28] sm:$0xf]
      %v1996 = vld [vmem:[#allocation2 + $0x2c] sm:$0xf]
      %v1997 = vld [vmem:[#allocation2 + $0x30] sm:$0xf]
      %v1998 = vld [vmem:[#allocation2 + $0x34] sm:$0xf]
      %v1999 = vld [vmem:[#allocation2 + $0x38] sm:$0xf]
      %v2000 = vld [vmem:[#allocation2 + $0x3c] sm:$0xf]
      %v2001 = vld [vmem:[#allocation2 + $0x40] sm:$0xf]
      %v2002 = vld [vmem:[#allocation2 + $0x44] sm:$0xf]
      %v2003 = vld [vmem:[#allocation2 + $0x48] sm:$0xf]
      %v2004 = vld [vmem:[#allocation2 + $0x4c] sm:$0xf]
      %v2005 = vld [vmem:[#allocation2 + $0x50] sm:$0xf]
      %v2006 = vld [vmem:[#allocation2 + $0x54] sm:$0xf]
      %v2007 = vld [vmem:[#allocation2 + $0x58] sm:$0xf]
      %v2008 = vld [vmem:[#allocation2 + $0x5c] sm:$0xf]
      %v2009 = vld [vmem:[#allocation2 + $0x60] sm:$0xf]
      %v2010 = vld [vmem:[#allocation2 + $0x64] sm:$0xf]
      %v2011 = vld [vmem:[#allocation2 + $0x68] sm:$0xf]
      %v2012 = vld [vmem:[#allocation2 + $0x6c] sm:$0xf]
      %v2013 = vld [vmem:[#allocation2 + $0x70] sm:$0xf]
      %v2014 = vld [vmem:[#allocation2 + $0x74] sm:$0xf]
      %v2015 = vld [vmem:[#allocation2 + $0x78] sm:$0xf]
      %v2016 = vld [vmem:[#allocation2 + $0x7c] sm:$0xf]
      %v2017 = vld [vmem:[#allocation2 + $0x80] sm:$0xf]
      %v2018 = vld [vmem:[#allocation2 + $0x84] sm:$0xf]
      %v2019 = vld [vmem:[#allocation2 + $0x88] sm:$0xf]
      %v2020 = vld [vmem:[#allocation2 + $0x8c] sm:$0xf]
      %v2021 = vld [vmem:[#allocation2 + $0x90] sm:$0xf]
      %v2022 = vld [vmem:[#allocation2 + $0x94] sm:$0xf]
      %v2023 = vld [vmem:[#allocation2 + $0x98] sm:$0x1]
      %v2061 = vrot.slane %v1987, 5
      %v2062 = vrot.slane %v2061, 4
      %v2063 = vrot.slane %v1988, 5
      %v2064 = vsel %vm1732, %v2062, %v2063
      %v2065 = vrot.slane %v2063, 4
      %v2066 = vrot.slane %v1989, 5
      %v2067 = vsel %vm1732, %v2065, %v2066
      %v2068 = vrot.slane %v2066, 4
      %v2069 = vrot.slane %v1990, 5
      %v2070 = vsel %vm1732, %v2068, %v2069
      %v2071 = vrot.slane %v2069, 4
      %v2072 = vrot.slane %v1991, 5
      %v2073 = vsel %vm1732, %v2071, %v2072
      %v2074 = vrot.slane %v2072, 4
      %v2075 = vrot.slane %v1992, 5
      %v2076 = vsel %vm1732, %v2074, %v2075
      %v2077 = vrot.slane %v2075, 4
      %v2078 = vrot.slane %v1993, 5
      %v2079 = vsel %vm1732, %v2077, %v2078
      %v2080 = vrot.slane %v2078, 4
      %v2081 = vrot.slane %v1994, 5
      %v2082 = vsel %vm1732, %v2080, %v2081
      %v2083 = vrot.slane %v2081, 4
      %v2084 = vrot.slane %v1995, 5
      %v2085 = vsel %vm1732, %v2083, %v2084
      %v2086 = vrot.slane %v2084, 4
      %v2087 = vrot.slane %v1996, 5
      %v2088 = vsel %vm1732, %v2086, %v2087
      %v2089 = vrot.slane %v2087, 4
      %v2090 = vrot.slane %v1997, 5
      %v2091 = vsel %vm1732, %v2089, %v2090
      %v2092 = vrot.slane %v2090, 4
      %v2093 = vrot.slane %v1998, 5
      %v2094 = vsel %vm1732, %v2092, %v2093
      %v2095 = vrot.slane %v2093, 4
      %v2096 = vrot.slane %v1999, 5
      %v2097 = vsel %vm1732, %v2095, %v2096
      %v2098 = vrot.slane %v2096, 4
      %v2099 = vrot.slane %v2000, 5
      %v2100 = vsel %vm1732, %v2098, %v2099
      %v2101 = vrot.slane %v2099, 4
      %v2102 = vrot.slane %v2001, 5
      %v2103 = vsel %vm1732, %v2101, %v2102
      %v2104 = vrot.slane %v2102, 4
      %v2105 = vrot.slane %v2002, 5
      %v2106 = vsel %vm1732, %v2104, %v2105
      %v2107 = vrot.slane %v2105, 4
      %v2108 = vrot.slane %v2003, 5
      %v2109 = vsel %vm1732, %v2107, %v2108
      %v2110 = vrot.slane %v2108, 4
      %v2111 = vrot.slane %v2004, 5
      %v2112 = vsel %vm1732, %v2110, %v2111
      %v2113 = vrot.slane %v2111, 4
      %v2114 = vrot.slane %v2005, 5
      %v2115 = vsel %vm1732, %v2113, %v2114
      %v2116 = vrot.slane %v2114, 4
      %v2117 = vrot.slane %v2006, 5
      %v2118 = vsel %vm1732, %v2116, %v2117
      %v2119 = vrot.slane %v2117, 4
      %v2120 = vrot.slane %v2007, 5
      %v2121 = vsel %vm1732, %v2119, %v2120
      %v2122 = vrot.slane %v2120, 4
      %v2123 = vrot.slane %v2008, 5
      %v2124 = vsel %vm1732, %v2122, %v2123
      %v2125 = vrot.slane %v2123, 4
      %v2126 = vrot.slane %v2009, 5
      %v2127 = vsel %vm1732, %v2125, %v2126
      %v2128 = vrot.slane %v2126, 4
      %v2129 = vrot.slane %v2010, 5
      %v2130 = vsel %vm1732, %v2128, %v2129
      %v2131 = vrot.slane %v2129, 4
      %v2132 = vrot.slane %v2011, 5
      %v2133 = vsel %vm1732, %v2131, %v2132
      %v2134 = vrot.slane %v2132, 4
      %v2135 = vrot.slane %v2012, 5
      %v2136 = vsel %vm1732, %v2134, %v2135
      %v2137 = vrot.slane %v2135, 4
      %v2138 = vrot.slane %v2013, 5
      %v2139 = vsel %vm1732, %v2137, %v2138
      %v2140 = vrot.slane %v2138, 4
      %v2141 = vrot.slane %v2014, 5
      %v2142 = vsel %vm1732, %v2140, %v2141
      %v2143 = vrot.slane %v2141, 4
      %v2144 = vrot.slane %v2015, 5
      %v2145 = vsel %vm1732, %v2143, %v2144
      %v2146 = vrot.slane %v2144, 4
      %v2147 = vrot.slane %v2016, 5
      %v2148 = vsel %vm1732, %v2146, %v2147
      %v2149 = vrot.slane %v2147, 4
      %v2150 = vrot.slane %v2017, 5
      %v2151 = vsel %vm1732, %v2149, %v2150
      %v2152 = vrot.slane %v2150, 4
      %v2153 = vrot.slane %v2018, 5
      %v2154 = vsel %vm1732, %v2152, %v2153
      %v2155 = vrot.slane %v2153, 4
      %v2156 = vrot.slane %v2019, 5
      %v2157 = vsel %vm1732, %v2155, %v2156
      %v2158 = vrot.slane %v2156, 4
      %v2159 = vrot.slane %v2020, 5
      %v2160 = vsel %vm1732, %v2158, %v2159
      %v2161 = vrot.slane %v2159, 4
      %v2162 = vrot.slane %v2021, 5
      %v2163 = vsel %vm1732, %v2161, %v2162
      %v2164 = vrot.slane %v2162, 4
      %v2165 = vrot.slane %v2022, 5
      %v2166 = vsel %vm1732, %v2164, %v2165
      %v2167 = vrot.slane %v2165, 4
      %v2168 = vrot.slane %v2023, 5
      %v2169 = vsel %vm1732, %v2167, %v2168
      %2170 = vrot.lane.b32.xlu0 %v2064, 24
      %v2171 = vpop.permute.xlu0 %2170
      %2172 = vrot.lane.b32.xlu0 %v2067, 24
      %v2173 = vpop.permute.xlu0 %2172
      %2174 = vrot.lane.b32.xlu0 %v2070, 24
      %v2175 = vpop.permute.xlu0 %2174
      %2176 = vrot.lane.b32.xlu0 %v2073, 24
      %v2177 = vpop.permute.xlu0 %2176
      %2178 = vrot.lane.b32.xlu0 %v2076, 24
      %v2179 = vpop.permute.xlu0 %2178
      %2180 = vrot.lane.b32.xlu0 %v2079, 24
      %v2181 = vpop.permute.xlu0 %2180
      %2182 = vrot.lane.b32.xlu0 %v2082, 24
      %v2183 = vpop.permute.xlu0 %2182
      %2184 = vrot.lane.b32.xlu0 %v2085, 24
      %v2185 = vpop.permute.xlu0 %2184
      %2186 = vrot.lane.b32.xlu0 %v2088, 24
      %v2187 = vpop.permute.xlu0 %2186
      %2188 = vrot.lane.b32.xlu0 %v2091, 24
      %v2189 = vpop.permute.xlu0 %2188
      %2190 = vrot.lane.b32.xlu0 %v2094, 24
      %v2191 = vpop.permute.xlu0 %2190
      %2192 = vrot.lane.b32.xlu0 %v2097, 24
      %v2193 = vpop.permute.xlu0 %2192
      %2194 = vrot.lane.b32.xlu0 %v2100, 24
      %v2195 = vpop.permute.xlu0 %2194
      %2196 = vrot.lane.b32.xlu0 %v2103, 24
      %v2197 = vpop.permute.xlu0 %2196
      %2198 = vrot.lane.b32.xlu0 %v2106, 24
      %v2199 = vpop.permute.xlu0 %2198
      %2200 = vrot.lane.b32.xlu0 %v2109, 24
      %v2201 = vpop.permute.xlu0 %2200
      %2202 = vrot.lane.b32.xlu0 %v2112, 24
      %v2203 = vpop.permute.xlu0 %2202
      %2204 = vrot.lane.b32.xlu0 %v2115, 24
      %v2205 = vpop.permute.xlu0 %2204
      %2206 = vrot.lane.b32.xlu0 %v2118, 24
      %v2207 = vpop.permute.xlu0 %2206
      %2208 = vrot.lane.b32.xlu0 %v2121, 24
      %v2209 = vpop.permute.xlu0 %2208
      %2210 = vrot.lane.b32.xlu0 %v2124, 24
      %v2211 = vpop.permute.xlu0 %2210
      %2212 = vrot.lane.b32.xlu0 %v2127, 24
      %v2213 = vpop.permute.xlu0 %2212
      %2214 = vrot.lane.b32.xlu0 %v2130, 24
      %v2215 = vpop.permute.xlu0 %2214
      %2216 = vrot.lane.b32.xlu0 %v2133, 24
      %v2217 = vpop.permute.xlu0 %2216
      %2218 = vrot.lane.b32.xlu0 %v2136, 24
      %v2219 = vpop.permute.xlu0 %2218
      %2220 = vrot.lane.b32.xlu0 %v2139, 24
      %v2221 = vpop.permute.xlu0 %2220
      %2222 = vrot.lane.b32.xlu0 %v2142, 24
      %v2223 = vpop.permute.xlu0 %2222
      %2224 = vrot.lane.b32.xlu0 %v2145, 24
      %v2225 = vpop.permute.xlu0 %2224
      %2226 = vrot.lane.b32.xlu0 %v2148, 24
      %v2227 = vpop.permute.xlu0 %2226
      %2228 = vrot.lane.b32.xlu0 %v2151, 24
      %v2229 = vpop.permute.xlu0 %2228
      %2230 = vrot.lane.b32.xlu0 %v2154, 24
      %v2231 = vpop.permute.xlu0 %2230
      %2232 = vrot.lane.b32.xlu0 %v2157, 24
      %v2233 = vpop.permute.xlu0 %2232
      %2234 = vrot.lane.b32.xlu0 %v2160, 24
      %v2235 = vpop.permute.xlu0 %2234
      %2236 = vrot.lane.b32.xlu0 %v2163, 24
      %v2237 = vpop.permute.xlu0 %2236
      %2238 = vrot.lane.b32.xlu0 %v2166, 24
      %v2239 = vpop.permute.xlu0 %2238
      %2240 = vrot.lane.b32.xlu0 %v2169, 24
      %v2241 = vpop.permute.xlu0 %2240
      %vm2278 = vcmask 257216
      %2279 = vst.msk [vmem:[#allocation3] sm:$0xf] %vm2278, %v2171
      %2280 = vst.msk [vmem:[#allocation3 + $0x4] sm:$0xf] %vm2278, %v2173
      %2281 = vst.msk [vmem:[#allocation3 + $0x8] sm:$0xf] %vm2278, %v2175
      %2282 = vst.msk [vmem:[#allocation3 + $0xc] sm:$0xf] %vm2278, %v2177
      %2283 = vst.msk [vmem:[#allocation3 + $0x10] sm:$0xf] %vm2278, %v2179
      %2284 = vst.msk [vmem:[#allocation3 + $0x14] sm:$0xf] %vm2278, %v2181
      %2285 = vst.msk [vmem:[#allocation3 + $0x18] sm:$0xf] %vm2278, %v2183
      %2286 = vst.msk [vmem:[#allocation3 + $0x1c] sm:$0xf] %vm2278, %v2185
      %2287 = vst.msk [vmem:[#allocation3 + $0x20] sm:$0xf] %vm2278, %v2187
      %2288 = vst.msk [vmem:[#allocation3 + $0x24] sm:$0xf] %vm2278, %v2189
      %2289 = vst.msk [vmem:[#allocation3 + $0x28] sm:$0xf] %vm2278, %v2191
      %2290 = vst.msk [vmem:[#allocation3 + $0x2c] sm:$0xf] %vm2278, %v2193
      %2291 = vst.msk [vmem:[#allocation3 + $0x30] sm:$0xf] %vm2278, %v2195
      %2292 = vst.msk [vmem:[#allocation3 + $0x34] sm:$0xf] %vm2278, %v2197
      %2293 = vst.msk [vmem:[#allocation3 + $0x38] sm:$0xf] %vm2278, %v2199
      %2294 = vst.msk [vmem:[#allocation3 + $0x3c] sm:$0xf] %vm2278, %v2201
      %2295 = vst.msk [vmem:[#allocation3 + $0x40] sm:$0xf] %vm2278, %v2203
      %2296 = vst.msk [vmem:[#allocation3 + $0x44] sm:$0xf] %vm2278, %v2205
      %2297 = vst.msk [vmem:[#allocation3 + $0x48] sm:$0xf] %vm2278, %v2207
      %2298 = vst.msk [vmem:[#allocation3 + $0x4c] sm:$0xf] %vm2278, %v2209
      %2299 = vst.msk [vmem:[#allocation3 + $0x50] sm:$0xf] %vm2278, %v2211
      %2300 = vst.msk [vmem:[#allocation3 + $0x54] sm:$0xf] %vm2278, %v2213
      %2301 = vst.msk [vmem:[#allocation3 + $0x58] sm:$0xf] %vm2278, %v2215
      %2302 = vst.msk [vmem:[#allocation3 + $0x5c] sm:$0xf] %vm2278, %v2217
      %2303 = vst.msk [vmem:[#allocation3 + $0x60] sm:$0xf] %vm2278, %v2219
      %2304 = vst.msk [vmem:[#allocation3 + $0x64] sm:$0xf] %vm2278, %v2221
      %2305 = vst.msk [vmem:[#allocation3 + $0x68] sm:$0xf] %vm2278, %v2223
      %2306 = vst.msk [vmem:[#allocation3 + $0x6c] sm:$0xf] %vm2278, %v2225
      %2307 = vst.msk [vmem:[#allocation3 + $0x70] sm:$0xf] %vm2278, %v2227
      %2308 = vst.msk [vmem:[#allocation3 + $0x74] sm:$0xf] %vm2278, %v2229
      %2309 = vst.msk [vmem:[#allocation3 + $0x78] sm:$0xf] %vm2278, %v2231
      %2310 = vst.msk [vmem:[#allocation3 + $0x7c] sm:$0xf] %vm2278, %v2233
      %2311 = vst.msk [vmem:[#allocation3 + $0x80] sm:$0xf] %vm2278, %v2235
      %2312 = vst.msk [vmem:[#allocation3 + $0x84] sm:$0xf] %vm2278, %v2237
      %2313 = vst.msk [vmem:[#allocation3 + $0x88] sm:$0xf] %vm2278, %v2239
      %2314 = vst.msk [vmem:[#allocation3 + $0x8c] sm:$0xf] %vm2278, %v2241
      %v2315 = vld [vmem:[#allocation2 + $0x8] sm:$0xe]
      %v2316 = vld [vmem:[#allocation2 + $0xc] sm:$0xf]
      %v2317 = vld [vmem:[#allocation2 + $0x10] sm:$0xf]
      %v2318 = vld [vmem:[#allocation2 + $0x14] sm:$0xf]
      %v2319 = vld [vmem:[#allocation2 + $0x18] sm:$0xf]
      %v2320 = vld [vmem:[#allocation2 + $0x1c] sm:$0xf]
      %v2321 = vld [vmem:[#allocation2 + $0x20] sm:$0xf]
      %v2322 = vld [vmem:[#allocation2 + $0x24] sm:$0xf]
      %v2323 = vld [vmem:[#allocation2 + $0x28] sm:$0xf]
      %v2324 = vld [vmem:[#allocation2 + $0x2c] sm:$0xf]
      %v2325 = vld [vmem:[#allocation2 + $0x30] sm:$0xf]
      %v2326 = vld [vmem:[#allocation2 + $0x34] sm:$0xf]
      %v2327 = vld [vmem:[#allocation2 + $0x38] sm:$0xf]
      %v2328 = vld [vmem:[#allocation2 + $0x3c] sm:$0xf]
      %v2329 = vld [vmem:[#allocation2 + $0x40] sm:$0xf]
      %v2330 = vld [vmem:[#allocation2 + $0x44] sm:$0xf]
      %v2331 = vld [vmem:[#allocation2 + $0x48] sm:$0xf]
      %v2332 = vld [vmem:[#allocation2 + $0x4c] sm:$0xf]
      %v2333 = vld [vmem:[#allocation2 + $0x50] sm:$0xf]
      %v2334 = vld [vmem:[#allocation2 + $0x54] sm:$0xf]
      %v2335 = vld [vmem:[#allocation2 + $0x58] sm:$0xf]
      %v2336 = vld [vmem:[#allocation2 + $0x5c] sm:$0xf]
      %v2337 = vld [vmem:[#allocation2 + $0x60] sm:$0xf]
      %v2338 = vld [vmem:[#allocation2 + $0x64] sm:$0xf]
      %v2339 = vld [vmem:[#allocation2 + $0x68] sm:$0xf]
      %v2340 = vld [vmem:[#allocation2 + $0x6c] sm:$0xf]
      %v2341 = vld [vmem:[#allocation2 + $0x70] sm:$0xf]
      %v2342 = vld [vmem:[#allocation2 + $0x74] sm:$0xf]
      %v2343 = vld [vmem:[#allocation2 + $0x78] sm:$0xf]
      %v2344 = vld [vmem:[#allocation2 + $0x7c] sm:$0xf]
      %v2345 = vld [vmem:[#allocation2 + $0x80] sm:$0xf]
      %v2346 = vld [vmem:[#allocation2 + $0x84] sm:$0xf]
      %v2347 = vld [vmem:[#allocation2 + $0x88] sm:$0xf]
      %v2348 = vld [vmem:[#allocation2 + $0x8c] sm:$0xf]
      %v2349 = vld [vmem:[#allocation2 + $0x90] sm:$0xf]
      %v2350 = vld [vmem:[#allocation2 + $0x94] sm:$0xf]
      %v2351 = vld [vmem:[#allocation2 + $0x98] sm:$0x3]
      %v2353 = vshrl.u32 %v2315, 16
      %v2355 = vrot.slane %v2353, 5
      %v2356 = vshll.u32 %v2315, 16
      %v2358 = vrot.slane %v2356, 6
      %v2359 = vor.u32 %v2355, %v2358
      %v2360 = vrot.slane %v2359, 4
      %v2362 = vshrl.u32 %v2316, 16
      %v2364 = vrot.slane %v2362, 5
      %v2365 = vshll.u32 %v2316, 16
      %v2367 = vrot.slane %v2365, 6
      %v2368 = vor.u32 %v2364, %v2367
      %v2369 = vsel %vm520, %v2360, %v2368
      %v2370 = vrot.slane %v2368, 4
      %v2372 = vshrl.u32 %v2317, 16
      %v2374 = vrot.slane %v2372, 5
      %v2375 = vshll.u32 %v2317, 16
      %v2377 = vrot.slane %v2375, 6
      %v2378 = vor.u32 %v2374, %v2377
      %v2379 = vsel %vm520, %v2370, %v2378
      %v2380 = vrot.slane %v2378, 4
      %v2382 = vshrl.u32 %v2318, 16
      %v2384 = vrot.slane %v2382, 5
      %v2385 = vshll.u32 %v2318, 16
      %v2387 = vrot.slane %v2385, 6
      %v2388 = vor.u32 %v2384, %v2387
      %v2389 = vsel %vm520, %v2380, %v2388
      %v2390 = vrot.slane %v2388, 4
      %v2392 = vshrl.u32 %v2319, 16
      %v2394 = vrot.slane %v2392, 5
      %v2395 = vshll.u32 %v2319, 16
      %v2397 = vrot.slane %v2395, 6
      %v2398 = vor.u32 %v2394, %v2397
      %v2399 = vsel %vm520, %v2390, %v2398
      %v2400 = vrot.slane %v2398, 4
      %v2402 = vshrl.u32 %v2320, 16
      %v2404 = vrot.slane %v2402, 5
      %v2405 = vshll.u32 %v2320, 16
      %v2407 = vrot.slane %v2405, 6
      %v2408 = vor.u32 %v2404, %v2407
      %v2409 = vsel %vm520, %v2400, %v2408
      %v2410 = vrot.slane %v2408, 4
      %v2412 = vshrl.u32 %v2321, 16
      %v2414 = vrot.slane %v2412, 5
      %v2415 = vshll.u32 %v2321, 16
      %v2417 = vrot.slane %v2415, 6
      %v2418 = vor.u32 %v2414, %v2417
      %v2419 = vsel %vm520, %v2410, %v2418
      %v2420 = vrot.slane %v2418, 4
      %v2422 = vshrl.u32 %v2322, 16
      %v2424 = vrot.slane %v2422, 5
      %v2425 = vshll.u32 %v2322, 16
      %v2427 = vrot.slane %v2425, 6
      %v2428 = vor.u32 %v2424, %v2427
      %v2429 = vsel %vm520, %v2420, %v2428
      %v2430 = vrot.slane %v2428, 4
      %v2432 = vshrl.u32 %v2323, 16
      %v2434 = vrot.slane %v2432, 5
      %v2435 = vshll.u32 %v2323, 16
      %v2437 = vrot.slane %v2435, 6
      %v2438 = vor.u32 %v2434, %v2437
      %v2439 = vsel %vm520, %v2430, %v2438
      %v2440 = vrot.slane %v2438, 4
      %v2442 = vshrl.u32 %v2324, 16
      %v2444 = vrot.slane %v2442, 5
      %v2445 = vshll.u32 %v2324, 16
      %v2447 = vrot.slane %v2445, 6
      %v2448 = vor.u32 %v2444, %v2447
      %v2449 = vsel %vm520, %v2440, %v2448
      %v2450 = vrot.slane %v2448, 4
      %v2452 = vshrl.u32 %v2325, 16
      %v2454 = vrot.slane %v2452, 5
      %v2455 = vshll.u32 %v2325, 16
      %v2457 = vrot.slane %v2455, 6
      %v2458 = vor.u32 %v2454, %v2457
      %v2459 = vsel %vm520, %v2450, %v2458
      %v2460 = vrot.slane %v2458, 4
      %v2462 = vshrl.u32 %v2326, 16
      %v2464 = vrot.slane %v2462, 5
      %v2465 = vshll.u32 %v2326, 16
      %v2467 = vrot.slane %v2465, 6
      %v2468 = vor.u32 %v2464, %v2467
      %v2469 = vsel %vm520, %v2460, %v2468
      %v2470 = vrot.slane %v2468, 4
      %v2472 = vshrl.u32 %v2327, 16
      %v2474 = vrot.slane %v2472, 5
      %v2475 = vshll.u32 %v2327, 16
      %v2477 = vrot.slane %v2475, 6
      %v2478 = vor.u32 %v2474, %v2477
      %v2479 = vsel %vm520, %v2470, %v2478
      %v2480 = vrot.slane %v2478, 4
      %v2482 = vshrl.u32 %v2328, 16
      %v2484 = vrot.slane %v2482, 5
      %v2485 = vshll.u32 %v2328, 16
      %v2487 = vrot.slane %v2485, 6
      %v2488 = vor.u32 %v2484, %v2487
      %v2489 = vsel %vm520, %v2480, %v2488
      %v2490 = vrot.slane %v2488, 4
      %v2492 = vshrl.u32 %v2329, 16
      %v2494 = vrot.slane %v2492, 5
      %v2495 = vshll.u32 %v2329, 16
      %v2497 = vrot.slane %v2495, 6
      %v2498 = vor.u32 %v2494, %v2497
      %v2499 = vsel %vm520, %v2490, %v2498
      %v2500 = vrot.slane %v2498, 4
      %v2502 = vshrl.u32 %v2330, 16
      %v2504 = vrot.slane %v2502, 5
      %v2505 = vshll.u32 %v2330, 16
      %v2507 = vrot.slane %v2505, 6
      %v2508 = vor.u32 %v2504, %v2507
      %v2509 = vsel %vm520, %v2500, %v2508
      %v2510 = vrot.slane %v2508, 4
      %v2512 = vshrl.u32 %v2331, 16
      %v2514 = vrot.slane %v2512, 5
      %v2515 = vshll.u32 %v2331, 16
      %v2517 = vrot.slane %v2515, 6
      %v2518 = vor.u32 %v2514, %v2517
      %v2519 = vsel %vm520, %v2510, %v2518
      %v2520 = vrot.slane %v2518, 4
      %v2522 = vshrl.u32 %v2332, 16
      %v2524 = vrot.slane %v2522, 5
      %v2525 = vshll.u32 %v2332, 16
      %v2527 = vrot.slane %v2525, 6
      %v2528 = vor.u32 %v2524, %v2527
      %v2529 = vsel %vm520, %v2520, %v2528
      %v2530 = vrot.slane %v2528, 4
      %v2532 = vshrl.u32 %v2333, 16
      %v2534 = vrot.slane %v2532, 5
      %v2535 = vshll.u32 %v2333, 16
      %v2537 = vrot.slane %v2535, 6
      %v2538 = vor.u32 %v2534, %v2537
      %v2539 = vsel %vm520, %v2530, %v2538
      %v2540 = vrot.slane %v2538, 4
      %v2542 = vshrl.u32 %v2334, 16
      %v2544 = vrot.slane %v2542, 5
      %v2545 = vshll.u32 %v2334, 16
      %v2547 = vrot.slane %v2545, 6
      %v2548 = vor.u32 %v2544, %v2547
      %v2549 = vsel %vm520, %v2540, %v2548
      %v2550 = vrot.slane %v2548, 4
      %v2552 = vshrl.u32 %v2335, 16
      %v2554 = vrot.slane %v2552, 5
      %v2555 = vshll.u32 %v2335, 16
      %v2557 = vrot.slane %v2555, 6
      %v2558 = vor.u32 %v2554, %v2557
      %v2559 = vsel %vm520, %v2550, %v2558
      %v2560 = vrot.slane %v2558, 4
      %v2562 = vshrl.u32 %v2336, 16
      %v2564 = vrot.slane %v2562, 5
      %v2565 = vshll.u32 %v2336, 16
      %v2567 = vrot.slane %v2565, 6
      %v2568 = vor.u32 %v2564, %v2567
      %v2569 = vsel %vm520, %v2560, %v2568
      %v2570 = vrot.slane %v2568, 4
      %v2572 = vshrl.u32 %v2337, 16
      %v2574 = vrot.slane %v2572, 5
      %v2575 = vshll.u32 %v2337, 16
      %v2577 = vrot.slane %v2575, 6
      %v2578 = vor.u32 %v2574, %v2577
      %v2579 = vsel %vm520, %v2570, %v2578
      %v2580 = vrot.slane %v2578, 4
      %v2582 = vshrl.u32 %v2338, 16
      %v2584 = vrot.slane %v2582, 5
      %v2585 = vshll.u32 %v2338, 16
      %v2587 = vrot.slane %v2585, 6
      %v2588 = vor.u32 %v2584, %v2587
      %v2589 = vsel %vm520, %v2580, %v2588
      %v2590 = vrot.slane %v2588, 4
      %v2592 = vshrl.u32 %v2339, 16
      %v2594 = vrot.slane %v2592, 5
      %v2595 = vshll.u32 %v2339, 16
      %v2597 = vrot.slane %v2595, 6
      %v2598 = vor.u32 %v2594, %v2597
      %v2599 = vsel %vm520, %v2590, %v2598
      %v2600 = vrot.slane %v2598, 4
      %v2602 = vshrl.u32 %v2340, 16
      %v2604 = vrot.slane %v2602, 5
      %v2605 = vshll.u32 %v2340, 16
      %v2607 = vrot.slane %v2605, 6
      %v2608 = vor.u32 %v2604, %v2607
      %v2609 = vsel %vm520, %v2600, %v2608
      %v2610 = vrot.slane %v2608, 4
      %v2612 = vshrl.u32 %v2341, 16
      %v2614 = vrot.slane %v2612, 5
      %v2615 = vshll.u32 %v2341, 16
      %v2617 = vrot.slane %v2615, 6
      %v2618 = vor.u32 %v2614, %v2617
      %v2619 = vsel %vm520, %v2610, %v2618
      %v2620 = vrot.slane %v2618, 4
      %v2622 = vshrl.u32 %v2342, 16
      %v2624 = vrot.slane %v2622, 5
      %v2625 = vshll.u32 %v2342, 16
      %v2627 = vrot.slane %v2625, 6
      %v2628 = vor.u32 %v2624, %v2627
      %v2629 = vsel %vm520, %v2620, %v2628
      %v2630 = vrot.slane %v2628, 4
      %v2632 = vshrl.u32 %v2343, 16
      %v2634 = vrot.slane %v2632, 5
      %v2635 = vshll.u32 %v2343, 16
      %v2637 = vrot.slane %v2635, 6
      %v2638 = vor.u32 %v2634, %v2637
      %v2639 = vsel %vm520, %v2630, %v2638
      %v2640 = vrot.slane %v2638, 4
      %v2642 = vshrl.u32 %v2344, 16
      %v2644 = vrot.slane %v2642, 5
      %v2645 = vshll.u32 %v2344, 16
      %v2647 = vrot.slane %v2645, 6
      %v2648 = vor.u32 %v2644, %v2647
      %v2649 = vsel %vm520, %v2640, %v2648
      %v2650 = vrot.slane %v2648, 4
      %v2652 = vshrl.u32 %v2345, 16
      %v2654 = vrot.slane %v2652, 5
      %v2655 = vshll.u32 %v2345, 16
      %v2657 = vrot.slane %v2655, 6
      %v2658 = vor.u32 %v2654, %v2657
      %v2659 = vsel %vm520, %v2650, %v2658
      %v2660 = vrot.slane %v2658, 4
      %v2662 = vshrl.u32 %v2346, 16
      %v2664 = vrot.slane %v2662, 5
      %v2665 = vshll.u32 %v2346, 16
      %v2667 = vrot.slane %v2665, 6
      %v2668 = vor.u32 %v2664, %v2667
      %v2669 = vsel %vm520, %v2660, %v2668
      %v2670 = vrot.slane %v2668, 4
      %v2672 = vshrl.u32 %v2347, 16
      %v2674 = vrot.slane %v2672, 5
      %v2675 = vshll.u32 %v2347, 16
      %v2677 = vrot.slane %v2675, 6
      %v2678 = vor.u32 %v2674, %v2677
      %v2679 = vsel %vm520, %v2670, %v2678
      %v2680 = vrot.slane %v2678, 4
      %v2682 = vshrl.u32 %v2348, 16
      %v2684 = vrot.slane %v2682, 5
      %v2685 = vshll.u32 %v2348, 16
      %v2687 = vrot.slane %v2685, 6
      %v2688 = vor.u32 %v2684, %v2687
      %v2689 = vsel %vm520, %v2680, %v2688
      %v2690 = vrot.slane %v2688, 4
      %v2692 = vshrl.u32 %v2349, 16
      %v2694 = vrot.slane %v2692, 5
      %v2695 = vshll.u32 %v2349, 16
      %v2697 = vrot.slane %v2695, 6
      %v2698 = vor.u32 %v2694, %v2697
      %v2699 = vsel %vm520, %v2690, %v2698
      %v2700 = vrot.slane %v2698, 4
      %v2702 = vshrl.u32 %v2350, 16
      %v2704 = vrot.slane %v2702, 5
      %v2705 = vshll.u32 %v2350, 16
      %v2707 = vrot.slane %v2705, 6
      %v2708 = vor.u32 %v2704, %v2707
      %v2709 = vsel %vm520, %v2700, %v2708
      %v2710 = vrot.slane %v2708, 4
      %v2712 = vshrl.u32 %v2351, 16
      %v2714 = vrot.slane %v2712, 5
      %v2715 = vshll.u32 %v2351, 16
      %v2717 = vrot.slane %v2715, 6
      %v2718 = vor.u32 %v2714, %v2717
      %v2719 = vsel %vm520, %v2710, %v2718
      %2720 = vrot.lane.b32.xlu0 %v2369, 32
      %v2721 = vpop.permute.xlu0 %2720
      %2722 = vrot.lane.b32.xlu0 %v2379, 32
      %v2723 = vpop.permute.xlu0 %2722
      %2724 = vrot.lane.b32.xlu0 %v2389, 32
      %v2725 = vpop.permute.xlu0 %2724
      %2726 = vrot.lane.b32.xlu0 %v2399, 32
      %v2727 = vpop.permute.xlu0 %2726
      %2728 = vrot.lane.b32.xlu0 %v2409, 32
      %v2729 = vpop.permute.xlu0 %2728
      %2730 = vrot.lane.b32.xlu0 %v2419, 32
      %v2731 = vpop.permute.xlu0 %2730
      %2732 = vrot.lane.b32.xlu0 %v2429, 32
      %v2733 = vpop.permute.xlu0 %2732
      %2734 = vrot.lane.b32.xlu0 %v2439, 32
      %v2735 = vpop.permute.xlu0 %2734
      %2736 = vrot.lane.b32.xlu0 %v2449, 32
      %v2737 = vpop.permute.xlu0 %2736
      %2738 = vrot.lane.b32.xlu0 %v2459, 32
      %v2739 = vpop.permute.xlu0 %2738
      %2740 = vrot.lane.b32.xlu0 %v2469, 32
      %v2741 = vpop.permute.xlu0 %2740
      %2742 = vrot.lane.b32.xlu0 %v2479, 32
      %v2743 = vpop.permute.xlu0 %2742
      %2744 = vrot.lane.b32.xlu0 %v2489, 32
      %v2745 = vpop.permute.xlu0 %2744
      %2746 = vrot.lane.b32.xlu0 %v2499, 32
      %v2747 = vpop.permute.xlu0 %2746
      %2748 = vrot.lane.b32.xlu0 %v2509, 32
      %v2749 = vpop.permute.xlu0 %2748
      %2750 = vrot.lane.b32.xlu0 %v2519, 32
      %v2751 = vpop.permute.xlu0 %2750
      %2752 = vrot.lane.b32.xlu0 %v2529, 32
      %v2753 = vpop.permute.xlu0 %2752
      %2754 = vrot.lane.b32.xlu0 %v2539, 32
      %v2755 = vpop.permute.xlu0 %2754
      %2756 = vrot.lane.b32.xlu0 %v2549, 32
      %v2757 = vpop.permute.xlu0 %2756
      %2758 = vrot.lane.b32.xlu0 %v2559, 32
      %v2759 = vpop.permute.xlu0 %2758
      %2760 = vrot.lane.b32.xlu0 %v2569, 32
      %v2761 = vpop.permute.xlu0 %2760
      %2762 = vrot.lane.b32.xlu0 %v2579, 32
      %v2763 = vpop.permute.xlu0 %2762
      %2764 = vrot.lane.b32.xlu0 %v2589, 32
      %v2765 = vpop.permute.xlu0 %2764
      %2766 = vrot.lane.b32.xlu0 %v2599, 32
      %v2767 = vpop.permute.xlu0 %2766
      %2768 = vrot.lane.b32.xlu0 %v2609, 32
      %v2769 = vpop.permute.xlu0 %2768
      %2770 = vrot.lane.b32.xlu0 %v2619, 32
      %v2771 = vpop.permute.xlu0 %2770
      %2772 = vrot.lane.b32.xlu0 %v2629, 32
      %v2773 = vpop.permute.xlu0 %2772
      %2774 = vrot.lane.b32.xlu0 %v2639, 32
      %v2775 = vpop.permute.xlu0 %2774
      %2776 = vrot.lane.b32.xlu0 %v2649, 32
      %v2777 = vpop.permute.xlu0 %2776
      %2778 = vrot.lane.b32.xlu0 %v2659, 32
      %v2779 = vpop.permute.xlu0 %2778
      %2780 = vrot.lane.b32.xlu0 %v2669, 32
      %v2781 = vpop.permute.xlu0 %2780
      %2782 = vrot.lane.b32.xlu0 %v2679, 32
      %v2783 = vpop.permute.xlu0 %2782
      %2784 = vrot.lane.b32.xlu0 %v2689, 32
      %v2785 = vpop.permute.xlu0 %2784
      %2786 = vrot.lane.b32.xlu0 %v2699, 32
      %v2787 = vpop.permute.xlu0 %2786
      %2788 = vrot.lane.b32.xlu0 %v2709, 32
      %v2789 = vpop.permute.xlu0 %2788
      %2790 = vrot.lane.b32.xlu0 %v2719, 32
      %v2791 = vpop.permute.xlu0 %2790
      %vm2828 = vcmask 322816
      %2829 = vst.msk [vmem:[#allocation3] sm:$0xf] %vm2828, %v2721
      %2830 = vst.msk [vmem:[#allocation3 + $0x4] sm:$0xf] %vm2828, %v2723
      %2831 = vst.msk [vmem:[#allocation3 + $0x8] sm:$0xf] %vm2828, %v2725
      %2832 = vst.msk [vmem:[#allocation3 + $0xc] sm:$0xf] %vm2828, %v2727
      %2833 = vst.msk [vmem:[#allocation3 + $0x10] sm:$0xf] %vm2828, %v2729
      %2834 = vst.msk [vmem:[#allocation3 + $0x14] sm:$0xf] %vm2828, %v2731
      %2835 = vst.msk [vmem:[#allocation3 + $0x18] sm:$0xf] %vm2828, %v2733
      %2836 = vst.msk [vmem:[#allocation3 + $0x1c] sm:$0xf] %vm2828, %v2735
      %2837 = vst.msk [vmem:[#allocation3 + $0x20] sm:$0xf] %vm2828, %v2737
      %2838 = vst.msk [vmem:[#allocation3 + $0x24] sm:$0xf] %vm2828, %v2739
      %2839 = vst.msk [vmem:[#allocation3 + $0x28] sm:$0xf] %vm2828, %v2741
      %2840 = vst.msk [vmem:[#allocation3 + $0x2c] sm:$0xf] %vm2828, %v2743
      %2841 = vst.msk [vmem:[#allocation3 + $0x30] sm:$0xf] %vm2828, %v2745
      %2842 = vst.msk [vmem:[#allocation3 + $0x34] sm:$0xf] %vm2828, %v2747
      %2843 = vst.msk [vmem:[#allocation3 + $0x38] sm:$0xf] %vm2828, %v2749
      %2844 = vst.msk [vmem:[#allocation3 + $0x3c] sm:$0xf] %vm2828, %v2751
      %2845 = vst.msk [vmem:[#allocation3 + $0x40] sm:$0xf] %vm2828, %v2753
      %2846 = vst.msk [vmem:[#allocation3 + $0x44] sm:$0xf] %vm2828, %v2755
      %2847 = vst.msk [vmem:[#allocation3 + $0x48] sm:$0xf] %vm2828, %v2757
      %2848 = vst.msk [vmem:[#allocation3 + $0x4c] sm:$0xf] %vm2828, %v2759
      %2849 = vst.msk [vmem:[#allocation3 + $0x50] sm:$0xf] %vm2828, %v2761
      %2850 = vst.msk [vmem:[#allocation3 + $0x54] sm:$0xf] %vm2828, %v2763
      %2851 = vst.msk [vmem:[#allocation3 + $0x58] sm:$0xf] %vm2828, %v2765
      %2852 = vst.msk [vmem:[#allocation3 + $0x5c] sm:$0xf] %vm2828, %v2767
      %2853 = vst.msk [vmem:[#allocation3 + $0x60] sm:$0xf] %vm2828, %v2769
      %2854 = vst.msk [vmem:[#allocation3 + $0x64] sm:$0xf] %vm2828, %v2771
      %2855 = vst.msk [vmem:[#allocation3 + $0x68] sm:$0xf] %vm2828, %v2773
      %2856 = vst.msk [vmem:[#allocation3 + $0x6c] sm:$0xf] %vm2828, %v2775
      %2857 = vst.msk [vmem:[#allocation3 + $0x70] sm:$0xf] %vm2828, %v2777
      %2858 = vst.msk [vmem:[#allocation3 + $0x74] sm:$0xf] %vm2828, %v2779
      %2859 = vst.msk [vmem:[#allocation3 + $0x78] sm:$0xf] %vm2828, %v2781
      %2860 = vst.msk [vmem:[#allocation3 + $0x7c] sm:$0xf] %vm2828, %v2783
      %2861 = vst.msk [vmem:[#allocation3 + $0x80] sm:$0xf] %vm2828, %v2785
      %2862 = vst.msk [vmem:[#allocation3 + $0x84] sm:$0xf] %vm2828, %v2787
      %2863 = vst.msk [vmem:[#allocation3 + $0x88] sm:$0xf] %vm2828, %v2789
      %2864 = vst.msk [vmem:[#allocation3 + $0x8c] sm:$0xf] %vm2828, %v2791
      %v2865 = vld [vmem:[#allocation2 + $0x8] sm:$0xc]
      %v2866 = vld [vmem:[#allocation2 + $0xc] sm:$0xf]
      %v2867 = vld [vmem:[#allocation2 + $0x10] sm:$0xf]
      %v2868 = vld [vmem:[#allocation2 + $0x14] sm:$0xf]
      %v2869 = vld [vmem:[#allocation2 + $0x18] sm:$0xf]
      %v2870 = vld [vmem:[#allocation2 + $0x1c] sm:$0xf]
      %v2871 = vld [vmem:[#allocation2 + $0x20] sm:$0xf]
      %v2872 = vld [vmem:[#allocation2 + $0x24] sm:$0xf]
      %v2873 = vld [vmem:[#allocation2 + $0x28] sm:$0xf]
      %v2874 = vld [vmem:[#allocation2 + $0x2c] sm:$0xf]
      %v2875 = vld [vmem:[#allocation2 + $0x30] sm:$0xf]
      %v2876 = vld [vmem:[#allocation2 + $0x34] sm:$0xf]
      %v2877 = vld [vmem:[#allocation2 + $0x38] sm:$0xf]
      %v2878 = vld [vmem:[#allocation2 + $0x3c] sm:$0xf]
      %v2879 = vld [vmem:[#allocation2 + $0x40] sm:$0xf]
      %v2880 = vld [vmem:[#allocation2 + $0x44] sm:$0xf]
      %v2881 = vld [vmem:[#allocation2 + $0x48] sm:$0xf]
      %v2882 = vld [vmem:[#allocation2 + $0x4c] sm:$0xf]
      %v2883 = vld [vmem:[#allocation2 + $0x50] sm:$0xf]
      %v2884 = vld [vmem:[#allocation2 + $0x54] sm:$0xf]
      %v2885 = vld [vmem:[#allocation2 + $0x58] sm:$0xf]
      %v2886 = vld [vmem:[#allocation2 + $0x5c] sm:$0xf]
      %v2887 = vld [vmem:[#allocation2 + $0x60] sm:$0xf]
      %v2888 = vld [vmem:[#allocation2 + $0x64] sm:$0xf]
      %v2889 = vld [vmem:[#allocation2 + $0x68] sm:$0xf]
      %v2890 = vld [vmem:[#allocation2 + $0x6c] sm:$0xf]
      %v2891 = vld [vmem:[#allocation2 + $0x70] sm:$0xf]
      %v2892 = vld [vmem:[#allocation2 + $0x74] sm:$0xf]
      %v2893 = vld [vmem:[#allocation2 + $0x78] sm:$0xf]
      %v2894 = vld [vmem:[#allocation2 + $0x7c] sm:$0xf]
      %v2895 = vld [vmem:[#allocation2 + $0x80] sm:$0xf]
      %v2896 = vld [vmem:[#allocation2 + $0x84] sm:$0xf]
      %v2897 = vld [vmem:[#allocation2 + $0x88] sm:$0xf]
      %v2898 = vld [vmem:[#allocation2 + $0x8c] sm:$0xf]
      %v2899 = vld [vmem:[#allocation2 + $0x90] sm:$0xf]
      %v2900 = vld [vmem:[#allocation2 + $0x94] sm:$0xf]
      %v2901 = vld [vmem:[#allocation2 + $0x98] sm:$0x3]
      %vm2939 = vcmask 1041408
      %vm2940 = vcmask 1045508
      %vm2941 = vmor %vm2939, %vm2940
      %v2942 = vrot.slane %v2865, 6
      %v2943 = vrot.slane %v2942, 4
      %v2944 = vrot.slane %v2866, 6
      %v2945 = vsel %vm2941, %v2943, %v2944
      %v2946 = vrot.slane %v2944, 4
      %v2947 = vrot.slane %v2867, 6
      %v2948 = vsel %vm2941, %v2946, %v2947
      %v2949 = vrot.slane %v2947, 4
      %v2950 = vrot.slane %v2868, 6
      %v2951 = vsel %vm2941, %v2949, %v2950
      %v2952 = vrot.slane %v2950, 4
      %v2953 = vrot.slane %v2869, 6
      %v2954 = vsel %vm2941, %v2952, %v2953
      %v2955 = vrot.slane %v2953, 4
      %v2956 = vrot.slane %v2870, 6
      %v2957 = vsel %vm2941, %v2955, %v2956
      %v2958 = vrot.slane %v2956, 4
      %v2959 = vrot.slane %v2871, 6
      %v2960 = vsel %vm2941, %v2958, %v2959
      %v2961 = vrot.slane %v2959, 4
      %v2962 = vrot.slane %v2872, 6
      %v2963 = vsel %vm2941, %v2961, %v2962
      %v2964 = vrot.slane %v2962, 4
      %v2965 = vrot.slane %v2873, 6
      %v2966 = vsel %vm2941, %v2964, %v2965
      %v2967 = vrot.slane %v2965, 4
      %v2968 = vrot.slane %v2874, 6
      %v2969 = vsel %vm2941, %v2967, %v2968
      %v2970 = vrot.slane %v2968, 4
      %v2971 = vrot.slane %v2875, 6
      %v2972 = vsel %vm2941, %v2970, %v2971
      %v2973 = vrot.slane %v2971, 4
      %v2974 = vrot.slane %v2876, 6
      %v2975 = vsel %vm2941, %v2973, %v2974
      %v2976 = vrot.slane %v2974, 4
      %v2977 = vrot.slane %v2877, 6
      %v2978 = vsel %vm2941, %v2976, %v2977
      %v2979 = vrot.slane %v2977, 4
      %v2980 = vrot.slane %v2878, 6
      %v2981 = vsel %vm2941, %v2979, %v2980
      %v2982 = vrot.slane %v2980, 4
      %v2983 = vrot.slane %v2879, 6
      %v2984 = vsel %vm2941, %v2982, %v2983
      %v2985 = vrot.slane %v2983, 4
      %v2986 = vrot.slane %v2880, 6
      %v2987 = vsel %vm2941, %v2985, %v2986
      %v2988 = vrot.slane %v2986, 4
      %v2989 = vrot.slane %v2881, 6
      %v2990 = vsel %vm2941, %v2988, %v2989
      %v2991 = vrot.slane %v2989, 4
      %v2992 = vrot.slane %v2882, 6
      %v2993 = vsel %vm2941, %v2991, %v2992
      %v2994 = vrot.slane %v2992, 4
      %v2995 = vrot.slane %v2883, 6
      %v2996 = vsel %vm2941, %v2994, %v2995
      %v2997 = vrot.slane %v2995, 4
      %v2998 = vrot.slane %v2884, 6
      %v2999 = vsel %vm2941, %v2997, %v2998
      %v3000 = vrot.slane %v2998, 4
      %v3001 = vrot.slane %v2885, 6
      %v3002 = vsel %vm2941, %v3000, %v3001
      %v3003 = vrot.slane %v3001, 4
      %v3004 = vrot.slane %v2886, 6
      %v3005 = vsel %vm2941, %v3003, %v3004
      %v3006 = vrot.slane %v3004, 4
      %v3007 = vrot.slane %v2887, 6
      %v3008 = vsel %vm2941, %v3006, %v3007
      %v3009 = vrot.slane %v3007, 4
      %v3010 = vrot.slane %v2888, 6
      %v3011 = vsel %vm2941, %v3009, %v3010
      %v3012 = vrot.slane %v3010, 4
      %v3013 = vrot.slane %v2889, 6
      %v3014 = vsel %vm2941, %v3012, %v3013
      %v3015 = vrot.slane %v3013, 4
      %v3016 = vrot.slane %v2890, 6
      %v3017 = vsel %vm2941, %v3015, %v3016
      %v3018 = vrot.slane %v3016, 4
      %v3019 = vrot.slane %v2891, 6
      %v3020 = vsel %vm2941, %v3018, %v3019
      %v3021 = vrot.slane %v3019, 4
      %v3022 = vrot.slane %v2892, 6
      %v3023 = vsel %vm2941, %v3021, %v3022
      %v3024 = vrot.slane %v3022, 4
      %v3025 = vrot.slane %v2893, 6
      %v3026 = vsel %vm2941, %v3024, %v3025
      %v3027 = vrot.slane %v3025, 4
      %v3028 = vrot.slane %v2894, 6
      %v3029 = vsel %vm2941, %v3027, %v3028
      %v3030 = vrot.slane %v3028, 4
      %v3031 = vrot.slane %v2895, 6
      %v3032 = vsel %vm2941, %v3030, %v3031
      %v3033 = vrot.slane %v3031, 4
      %v3034 = vrot.slane %v2896, 6
      %v3035 = vsel %vm2941, %v3033, %v3034
      %v3036 = vrot.slane %v3034, 4
      %v3037 = vrot.slane %v2897, 6
      %v3038 = vsel %vm2941, %v3036, %v3037
      %v3039 = vrot.slane %v3037, 4
      %v3040 = vrot.slane %v2898, 6
      %v3041 = vsel %vm2941, %v3039, %v3040
      %v3042 = vrot.slane %v3040, 4
      %v3043 = vrot.slane %v2899, 6
      %v3044 = vsel %vm2941, %v3042, %v3043
      %v3045 = vrot.slane %v3043, 4
      %v3046 = vrot.slane %v2900, 6
      %v3047 = vsel %vm2941, %v3045, %v3046
      %v3048 = vrot.slane %v3046, 4
      %v3049 = vrot.slane %v2901, 6
      %v3050 = vsel %vm2941, %v3048, %v3049
      %3051 = vrot.lane.b32.xlu0 %v2945, 40
      %v3052 = vpop.permute.xlu0 %3051
      %3053 = vrot.lane.b32.xlu0 %v2948, 40
      %v3054 = vpop.permute.xlu0 %3053
      %3055 = vrot.lane.b32.xlu0 %v2951, 40
      %v3056 = vpop.permute.xlu0 %3055
      %3057 = vrot.lane.b32.xlu0 %v2954, 40
      %v3058 = vpop.permute.xlu0 %3057
      %3059 = vrot.lane.b32.xlu0 %v2957, 40
      %v3060 = vpop.permute.xlu0 %3059
      %3061 = vrot.lane.b32.xlu0 %v2960, 40
      %v3062 = vpop.permute.xlu0 %3061
      %3063 = vrot.lane.b32.xlu0 %v2963, 40
      %v3064 = vpop.permute.xlu0 %3063
      %3065 = vrot.lane.b32.xlu0 %v2966, 40
      %v3066 = vpop.permute.xlu0 %3065
      %3067 = vrot.lane.b32.xlu0 %v2969, 40
      %v3068 = vpop.permute.xlu0 %3067
      %3069 = vrot.lane.b32.xlu0 %v2972, 40
      %v3070 = vpop.permute.xlu0 %3069
      %3071 = vrot.lane.b32.xlu0 %v2975, 40
      %v3072 = vpop.permute.xlu0 %3071
      %3073 = vrot.lane.b32.xlu0 %v2978, 40
      %v3074 = vpop.permute.xlu0 %3073
      %3075 = vrot.lane.b32.xlu0 %v2981, 40
      %v3076 = vpop.permute.xlu0 %3075
      %3077 = vrot.lane.b32.xlu0 %v2984, 40
      %v3078 = vpop.permute.xlu0 %3077
      %3079 = vrot.lane.b32.xlu0 %v2987, 40
      %v3080 = vpop.permute.xlu0 %3079
      %3081 = vrot.lane.b32.xlu0 %v2990, 40
      %v3082 = vpop.permute.xlu0 %3081
      %3083 = vrot.lane.b32.xlu0 %v2993, 40
      %v3084 = vpop.permute.xlu0 %3083
      %3085 = vrot.lane.b32.xlu0 %v2996, 40
      %v3086 = vpop.permute.xlu0 %3085
      %3087 = vrot.lane.b32.xlu0 %v2999, 40
      %v3088 = vpop.permute.xlu0 %3087
      %3089 = vrot.lane.b32.xlu0 %v3002, 40
      %v3090 = vpop.permute.xlu0 %3089
      %3091 = vrot.lane.b32.xlu0 %v3005, 40
      %v3092 = vpop.permute.xlu0 %3091
      %3093 = vrot.lane.b32.xlu0 %v3008, 40
      %v3094 = vpop.permute.xlu0 %3093
      %3095 = vrot.lane.b32.xlu0 %v3011, 40
      %v3096 = vpop.permute.xlu0 %3095
      %3097 = vrot.lane.b32.xlu0 %v3014, 40
      %v3098 = vpop.permute.xlu0 %3097
      %3099 = vrot.lane.b32.xlu0 %v3017, 40
      %v3100 = vpop.permute.xlu0 %3099
      %3101 = vrot.lane.b32.xlu0 %v3020, 40
      %v3102 = vpop.permute.xlu0 %3101
      %3103 = vrot.lane.b32.xlu0 %v3023, 40
      %v3104 = vpop.permute.xlu0 %3103
      %3105 = vrot.lane.b32.xlu0 %v3026, 40
      %v3106 = vpop.permute.xlu0 %3105
      %3107 = vrot.lane.b32.xlu0 %v3029, 40
      %v3108 = vpop.permute.xlu0 %3107
      %3109 = vrot.lane.b32.xlu0 %v3032, 40
      %v3110 = vpop.permute.xlu0 %3109
      %3111 = vrot.lane.b32.xlu0 %v3035, 40
      %v3112 = vpop.permute.xlu0 %3111
      %3113 = vrot.lane.b32.xlu0 %v3038, 40
      %v3114 = vpop.permute.xlu0 %3113
      %3115 = vrot.lane.b32.xlu0 %v3041, 40
      %v3116 = vpop.permute.xlu0 %3115
      %3117 = vrot.lane.b32.xlu0 %v3044, 40
      %v3118 = vpop.permute.xlu0 %3117
      %3119 = vrot.lane.b32.xlu0 %v3047, 40
      %v3120 = vpop.permute.xlu0 %3119
      %3121 = vrot.lane.b32.xlu0 %v3050, 40
      %v3122 = vpop.permute.xlu0 %3121
      %vm3159 = vcmask 388416
      %3160 = vst.msk [vmem:[#allocation3] sm:$0xf] %vm3159, %v3052
      %3161 = vst.msk [vmem:[#allocation3 + $0x4] sm:$0xf] %vm3159, %v3054
      %3162 = vst.msk [vmem:[#allocation3 + $0x8] sm:$0xf] %vm3159, %v3056
      %3163 = vst.msk [vmem:[#allocation3 + $0xc] sm:$0xf] %vm3159, %v3058
      %3164 = vst.msk [vmem:[#allocation3 + $0x10] sm:$0xf] %vm3159, %v3060
      %3165 = vst.msk [vmem:[#allocation3 + $0x14] sm:$0xf] %vm3159, %v3062
      %3166 = vst.msk [vmem:[#allocation3 + $0x18] sm:$0xf] %vm3159, %v3064
      %3167 = vst.msk [vmem:[#allocation3 + $0x1c] sm:$0xf] %vm3159, %v3066
      %3168 = vst.msk [vmem:[#allocation3 + $0x20] sm:$0xf] %vm3159, %v3068
      %3169 = vst.msk [vmem:[#allocation3 + $0x24] sm:$0xf] %vm3159, %v3070
      %3170 = vst.msk [vmem:[#allocation3 + $0x28] sm:$0xf] %vm3159, %v3072
      %3171 = vst.msk [vmem:[#allocation3 + $0x2c] sm:$0xf] %vm3159, %v3074
      %3172 = vst.msk [vmem:[#allocation3 + $0x30] sm:$0xf] %vm3159, %v3076
      %3173 = vst.msk [vmem:[#allocation3 + $0x34] sm:$0xf] %vm3159, %v3078
      %3174 = vst.msk [vmem:[#allocation3 + $0x38] sm:$0xf] %vm3159, %v3080
      %3175 = vst.msk [vmem:[#allocation3 + $0x3c] sm:$0xf] %vm3159, %v3082
      %3176 = vst.msk [vmem:[#allocation3 + $0x40] sm:$0xf] %vm3159, %v3084
      %3177 = vst.msk [vmem:[#allocation3 + $0x44] sm:$0xf] %vm3159, %v3086
      %3178 = vst.msk [vmem:[#allocation3 + $0x48] sm:$0xf] %vm3159, %v3088
      %3179 = vst.msk [vmem:[#allocation3 + $0x4c] sm:$0xf] %vm3159, %v3090
      %3180 = vst.msk [vmem:[#allocation3 + $0x50] sm:$0xf] %vm3159, %v3092
      %3181 = vst.msk [vmem:[#allocation3 + $0x54] sm:$0xf] %vm3159, %v3094
      %3182 = vst.msk [vmem:[#allocation3 + $0x58] sm:$0xf] %vm3159, %v3096
      %3183 = vst.msk [vmem:[#allocation3 + $0x5c] sm:$0xf] %vm3159, %v3098
      %3184 = vst.msk [vmem:[#allocation3 + $0x60] sm:$0xf] %vm3159, %v3100
      %3185 = vst.msk [vmem:[#allocation3 + $0x64] sm:$0xf] %vm3159, %v3102
      %3186 = vst.msk [vmem:[#allocation3 + $0x68] sm:$0xf] %vm3159, %v3104
      %3187 = vst.msk [vmem:[#allocation3 + $0x6c] sm:$0xf] %vm3159, %v3106
      %3188 = vst.msk [vmem:[#allocation3 + $0x70] sm:$0xf] %vm3159, %v3108
      %3189 = vst.msk [vmem:[#allocation3 + $0x74] sm:$0xf] %vm3159, %v3110
      %3190 = vst.msk [vmem:[#allocation3 + $0x78] sm:$0xf] %vm3159, %v3112
      %3191 = vst.msk [vmem:[#allocation3 + $0x7c] sm:$0xf] %vm3159, %v3114
      %3192 = vst.msk [vmem:[#allocation3 + $0x80] sm:$0xf] %vm3159, %v3116
      %3193 = vst.msk [vmem:[#allocation3 + $0x84] sm:$0xf] %vm3159, %v3118
      %3194 = vst.msk [vmem:[#allocation3 + $0x88] sm:$0xf] %vm3159, %v3120
      %3195 = vst.msk [vmem:[#allocation3 + $0x8c] sm:$0xf] %vm3159, %v3122
      %v3196 = vld [vmem:[#allocation2 + $0x10] sm:$0xc]
      %v3197 = vld [vmem:[#allocation2 + $0x14] sm:$0xf]
      %v3198 = vld [vmem:[#allocation2 + $0x18] sm:$0xf]
      %v3199 = vld [vmem:[#allocation2 + $0x1c] sm:$0xf]
      %v3200 = vld [vmem:[#allocation2 + $0x20] sm:$0xf]
      %v3201 = vld [vmem:[#allocation2 + $0x24] sm:$0xf]
      %v3202 = vld [vmem:[#allocation2 + $0x28] sm:$0xf]
      %v3203 = vld [vmem:[#allocation2 + $0x2c] sm:$0xf]
      %v3204 = vld [vmem:[#allocation2 + $0x30] sm:$0xf]
      %v3205 = vld [vmem:[#allocation2 + $0x34] sm:$0xf]
      %v3206 = vld [vmem:[#allocation2 + $0x38] sm:$0xf]
      %v3207 = vld [vmem:[#allocation2 + $0x3c] sm:$0xf]
      %v3208 = vld [vmem:[#allocation2 + $0x40] sm:$0xf]
      %v3209 = vld [vmem:[#allocation2 + $0x44] sm:$0xf]
      %v3210 = vld [vmem:[#allocation2 + $0x48] sm:$0xf]
      %v3211 = vld [vmem:[#allocation2 + $0x4c] sm:$0xf]
      %v3212 = vld [vmem:[#allocation2 + $0x50] sm:$0xf]
      %v3213 = vld [vmem:[#allocation2 + $0x54] sm:$0xf]
      %v3214 = vld [vmem:[#allocation2 + $0x58] sm:$0xf]
      %v3215 = vld [vmem:[#allocation2 + $0x5c] sm:$0xf]
      %v3216 = vld [vmem:[#allocation2 + $0x60] sm:$0xf]
      %v3217 = vld [vmem:[#allocation2 + $0x64] sm:$0xf]
      %v3218 = vld [vmem:[#allocation2 + $0x68] sm:$0xf]
      %v3219 = vld [vmem:[#allocation2 + $0x6c] sm:$0xf]
      %v3220 = vld [vmem:[#allocation2 + $0x70] sm:$0xf]
      %v3221 = vld [vmem:[#allocation2 + $0x74] sm:$0xf]
      %v3222 = vld [vmem:[#allocation2 + $0x78] sm:$0xf]
      %v3223 = vld [vmem:[#allocation2 + $0x7c] sm:$0xf]
      %v3224 = vld [vmem:[#allocation2 + $0x80] sm:$0xf]
      %v3225 = vld [vmem:[#allocation2 + $0x84] sm:$0xf]
      %v3226 = vld [vmem:[#allocation2 + $0x88] sm:$0xf]
      %v3227 = vld [vmem:[#allocation2 + $0x8c] sm:$0xf]
      %v3228 = vld [vmem:[#allocation2 + $0x90] sm:$0xf]
      %v3229 = vld [vmem:[#allocation2 + $0x94] sm:$0xf]
      %v3230 = vld [vmem:[#allocation2 + $0x98] sm:$0xf]
      %v3231 = vld [vmem:[#allocation2 + $0x9c] sm:$0xf]
      %v3232 = vld [vmem:[#allocation2 + $0xa0] sm:$0x3]
      %v3270 = vrot.slane %v3196, 6
      %v3271 = vrot.slane %v3270, 4
      %v3272 = vrot.slane %v3197, 6
      %v3273 = vsel %vm2941, %v3271, %v3272
      %v3274 = vrot.slane %v3272, 4
      %v3275 = vrot.slane %v3198, 6
      %v3276 = vsel %vm2941, %v3274, %v3275
      %v3277 = vrot.slane %v3275, 4
      %v3278 = vrot.slane %v3199, 6
      %v3279 = vsel %vm2941, %v3277, %v3278
      %v3280 = vrot.slane %v3278, 4
      %v3281 = vrot.slane %v3200, 6
      %v3282 = vsel %vm2941, %v3280, %v3281
      %v3283 = vrot.slane %v3281, 4
      %v3284 = vrot.slane %v3201, 6
      %v3285 = vsel %vm2941, %v3283, %v3284
      %v3286 = vrot.slane %v3284, 4
      %v3287 = vrot.slane %v3202, 6
      %v3288 = vsel %vm2941, %v3286, %v3287
      %v3289 = vrot.slane %v3287, 4
      %v3290 = vrot.slane %v3203, 6
      %v3291 = vsel %vm2941, %v3289, %v3290
      %v3292 = vrot.slane %v3290, 4
      %v3293 = vrot.slane %v3204, 6
      %v3294 = vsel %vm2941, %v3292, %v3293
      %v3295 = vrot.slane %v3293, 4
      %v3296 = vrot.slane %v3205, 6
      %v3297 = vsel %vm2941, %v3295, %v3296
      %v3298 = vrot.slane %v3296, 4
      %v3299 = vrot.slane %v3206, 6
      %v3300 = vsel %vm2941, %v3298, %v3299
      %v3301 = vrot.slane %v3299, 4
      %v3302 = vrot.slane %v3207, 6
      %v3303 = vsel %vm2941, %v3301, %v3302
      %v3304 = vrot.slane %v3302, 4
      %v3305 = vrot.slane %v3208, 6
      %v3306 = vsel %vm2941, %v3304, %v3305
      %v3307 = vrot.slane %v3305, 4
      %v3308 = vrot.slane %v3209, 6
      %v3309 = vsel %vm2941, %v3307, %v3308
      %v3310 = vrot.slane %v3308, 4
      %v3311 = vrot.slane %v3210, 6
      %v3312 = vsel %vm2941, %v3310, %v3311
      %v3313 = vrot.slane %v3311, 4
      %v3314 = vrot.slane %v3211, 6
      %v3315 = vsel %vm2941, %v3313, %v3314
      %v3316 = vrot.slane %v3314, 4
      %v3317 = vrot.slane %v3212, 6
      %v3318 = vsel %vm2941, %v3316, %v3317
      %v3319 = vrot.slane %v3317, 4
      %v3320 = vrot.slane %v3213, 6
      %v3321 = vsel %vm2941, %v3319, %v3320
      %v3322 = vrot.slane %v3320, 4
      %v3323 = vrot.slane %v3214, 6
      %v3324 = vsel %vm2941, %v3322, %v3323
      %v3325 = vrot.slane %v3323, 4
      %v3326 = vrot.slane %v3215, 6
      %v3327 = vsel %vm2941, %v3325, %v3326
      %v3328 = vrot.slane %v3326, 4
      %v3329 = vrot.slane %v3216, 6
      %v3330 = vsel %vm2941, %v3328, %v3329
      %v3331 = vrot.slane %v3329, 4
      %v3332 = vrot.slane %v3217, 6
      %v3333 = vsel %vm2941, %v3331, %v3332
      %v3334 = vrot.slane %v3332, 4
      %v3335 = vrot.slane %v3218, 6
      %v3336 = vsel %vm2941, %v3334, %v3335
      %v3337 = vrot.slane %v3335, 4
      %v3338 = vrot.slane %v3219, 6
      %v3339 = vsel %vm2941, %v3337, %v3338
      %v3340 = vrot.slane %v3338, 4
      %v3341 = vrot.slane %v3220, 6
      %v3342 = vsel %vm2941, %v3340, %v3341
      %v3343 = vrot.slane %v3341, 4
      %v3344 = vrot.slane %v3221, 6
      %v3345 = vsel %vm2941, %v3343, %v3344
      %v3346 = vrot.slane %v3344, 4
      %v3347 = vrot.slane %v3222, 6
      %v3348 = vsel %vm2941, %v3346, %v3347
      %v3349 = vrot.slane %v3347, 4
      %v3350 = vrot.slane %v3223, 6
      %v3351 = vsel %vm2941, %v3349, %v3350
      %v3352 = vrot.slane %v3350, 4
      %v3353 = vrot.slane %v3224, 6
      %v3354 = vsel %vm2941, %v3352, %v3353
      %v3355 = vrot.slane %v3353, 4
      %v3356 = vrot.slane %v3225, 6
      %v3357 = vsel %vm2941, %v3355, %v3356
      %v3358 = vrot.slane %v3356, 4
      %v3359 = vrot.slane %v3226, 6
      %v3360 = vsel %vm2941, %v3358, %v3359
      %v3361 = vrot.slane %v3359, 4
      %v3362 = vrot.slane %v3227, 6
      %v3363 = vsel %vm2941, %v3361, %v3362
      %v3364 = vrot.slane %v3362, 4
      %v3365 = vrot.slane %v3228, 6
      %v3366 = vsel %vm2941, %v3364, %v3365
      %v3367 = vrot.slane %v3365, 4
      %v3368 = vrot.slane %v3229, 6
      %v3369 = vsel %vm2941, %v3367, %v3368
      %v3370 = vrot.slane %v3368, 4
      %v3371 = vrot.slane %v3230, 6
      %v3372 = vsel %vm2941, %v3370, %v3371
      %v3373 = vrot.slane %v3371, 4
      %v3374 = vrot.slane %v3231, 6
      %v3375 = vsel %vm2941, %v3373, %v3374
      %v3376 = vrot.slane %v3374, 4
      %v3377 = vrot.slane %v3232, 6
      %v3378 = vsel %vm2941, %v3376, %v3377
      %3379 = vrot.lane.b32.xlu0 %v3273, 48
      %v3380 = vpop.permute.xlu0 %3379
      %3381 = vrot.lane.b32.xlu0 %v3276, 48
      %v3382 = vpop.permute.xlu0 %3381
      %3383 = vrot.lane.b32.xlu0 %v3279, 48
      %v3384 = vpop.permute.xlu0 %3383
      %3385 = vrot.lane.b32.xlu0 %v3282, 48
      %v3386 = vpop.permute.xlu0 %3385
      %3387 = vrot.lane.b32.xlu0 %v3285, 48
      %v3388 = vpop.permute.xlu0 %3387
      %3389 = vrot.lane.b32.xlu0 %v3288, 48
      %v3390 = vpop.permute.xlu0 %3389
      %3391 = vrot.lane.b32.xlu0 %v3291, 48
      %v3392 = vpop.permute.xlu0 %3391
      %3393 = vrot.lane.b32.xlu0 %v3294, 48
      %v3394 = vpop.permute.xlu0 %3393
      %3395 = vrot.lane.b32.xlu0 %v3297, 48
      %v3396 = vpop.permute.xlu0 %3395
      %3397 = vrot.lane.b32.xlu0 %v3300, 48
      %v3398 = vpop.permute.xlu0 %3397
      %3399 = vrot.lane.b32.xlu0 %v3303, 48
      %v3400 = vpop.permute.xlu0 %3399
      %3401 = vrot.lane.b32.xlu0 %v3306, 48
      %v3402 = vpop.permute.xlu0 %3401
      %3403 = vrot.lane.b32.xlu0 %v3309, 48
      %v3404 = vpop.permute.xlu0 %3403
      %3405 = vrot.lane.b32.xlu0 %v3312, 48
      %v3406 = vpop.permute.xlu0 %3405
      %3407 = vrot.lane.b32.xlu0 %v3315, 48
      %v3408 = vpop.permute.xlu0 %3407
      %3409 = vrot.lane.b32.xlu0 %v3318, 48
      %v3410 = vpop.permute.xlu0 %3409
      %3411 = vrot.lane.b32.xlu0 %v3321, 48
      %v3412 = vpop.permute.xlu0 %3411
      %3413 = vrot.lane.b32.xlu0 %v3324, 48
      %v3414 = vpop.permute.xlu0 %3413
      %3415 = vrot.lane.b32.xlu0 %v3327, 48
      %v3416 = vpop.permute.xlu0 %3415
      %3417 = vrot.lane.b32.xlu0 %v3330, 48
      %v3418 = vpop.permute.xlu0 %3417
      %3419 = vrot.lane.b32.xlu0 %v3333, 48
      %v3420 = vpop.permute.xlu0 %3419
      %3421 = vrot.lane.b32.xlu0 %v3336, 48
      %v3422 = vpop.permute.xlu0 %3421
      %3423 = vrot.lane.b32.xlu0 %v3339, 48
      %v3424 = vpop.permute.xlu0 %3423
      %3425 = vrot.lane.b32.xlu0 %v3342, 48
      %v3426 = vpop.permute.xlu0 %3425
      %3427 = vrot.lane.b32.xlu0 %v3345, 48
      %v3428 = vpop.permute.xlu0 %3427
      %3429 = vrot.lane.b32.xlu0 %v3348, 48
      %v3430 = vpop.permute.xlu0 %3429
      %3431 = vrot.lane.b32.xlu0 %v3351, 48
      %v3432 = vpop.permute.xlu0 %3431
      %3433 = vrot.lane.b32.xlu0 %v3354, 48
      %v3434 = vpop.permute.xlu0 %3433
      %3435 = vrot.lane.b32.xlu0 %v3357, 48
      %v3436 = vpop.permute.xlu0 %3435
      %3437 = vrot.lane.b32.xlu0 %v3360, 48
      %v3438 = vpop.permute.xlu0 %3437
      %3439 = vrot.lane.b32.xlu0 %v3363, 48
      %v3440 = vpop.permute.xlu0 %3439
      %3441 = vrot.lane.b32.xlu0 %v3366, 48
      %v3442 = vpop.permute.xlu0 %3441
      %3443 = vrot.lane.b32.xlu0 %v3369, 48
      %v3444 = vpop.permute.xlu0 %3443
      %3445 = vrot.lane.b32.xlu0 %v3372, 48
      %v3446 = vpop.permute.xlu0 %3445
      %3447 = vrot.lane.b32.xlu0 %v3375, 48
      %v3448 = vpop.permute.xlu0 %3447
      %3449 = vrot.lane.b32.xlu0 %v3378, 48
      %v3450 = vpop.permute.xlu0 %3449
      %vm3487 = vcmask 454016
      %3488 = vst.msk [vmem:[#allocation3] sm:$0xf] %vm3487, %v3380
      %3489 = vst.msk [vmem:[#allocation3 + $0x4] sm:$0xf] %vm3487, %v3382
      %3490 = vst.msk [vmem:[#allocation3 + $0x8] sm:$0xf] %vm3487, %v3384
      %3491 = vst.msk [vmem:[#allocation3 + $0xc] sm:$0xf] %vm3487, %v3386
      %3492 = vst.msk [vmem:[#allocation3 + $0x10] sm:$0xf] %vm3487, %v3388
      %3493 = vst.msk [vmem:[#allocation3 + $0x14] sm:$0xf] %vm3487, %v3390
      %3494 = vst.msk [vmem:[#allocation3 + $0x18] sm:$0xf] %vm3487, %v3392
      %3495 = vst.msk [vmem:[#allocation3 + $0x1c] sm:$0xf] %vm3487, %v3394
      %3496 = vst.msk [vmem:[#allocation3 + $0x20] sm:$0xf] %vm3487, %v3396
      %3497 = vst.msk [vmem:[#allocation3 + $0x24] sm:$0xf] %vm3487, %v3398
      %3498 = vst.msk [vmem:[#allocation3 + $0x28] sm:$0xf] %vm3487, %v3400
      %3499 = vst.msk [vmem:[#allocation3 + $0x2c] sm:$0xf] %vm3487, %v3402
      %3500 = vst.msk [vmem:[#allocation3 + $0x30] sm:$0xf] %vm3487, %v3404
      %3501 = vst.msk [vmem:[#allocation3 + $0x34] sm:$0xf] %vm3487, %v3406
      %3502 = vst.msk [vmem:[#allocation3 + $0x38] sm:$0xf] %vm3487, %v3408
      %3503 = vst.msk [vmem:[#allocation3 + $0x3c] sm:$0xf] %vm3487, %v3410
      %3504 = vst.msk [vmem:[#allocation3 + $0x40] sm:$0xf] %vm3487, %v3412
      %3505 = vst.msk [vmem:[#allocation3 + $0x44] sm:$0xf] %vm3487, %v3414
      %3506 = vst.msk [vmem:[#allocation3 + $0x48] sm:$0xf] %vm3487, %v3416
      %3507 = vst.msk [vmem:[#allocation3 + $0x4c] sm:$0xf] %vm3487, %v3418
      %3508 = vst.msk [vmem:[#allocation3 + $0x50] sm:$0xf] %vm3487, %v3420
      %3509 = vst.msk [vmem:[#allocation3 + $0x54] sm:$0xf] %vm3487, %v3422
      %3510 = vst.msk [vmem:[#allocation3 + $0x58] sm:$0xf] %vm3487, %v3424
      %3511 = vst.msk [vmem:[#allocation3 + $0x5c] sm:$0xf] %vm3487, %v3426
      %3512 = vst.msk [vmem:[#allocation3 + $0x60] sm:$0xf] %vm3487, %v3428
      %3513 = vst.msk [vmem:[#allocation3 + $0x64] sm:$0xf] %vm3487, %v3430
      %3514 = vst.msk [vmem:[#allocation3 + $0x68] sm:$0xf] %vm3487, %v3432
      %3515 = vst.msk [vmem:[#allocation3 + $0x6c] sm:$0xf] %vm3487, %v3434
      %3516 = vst.msk [vmem:[#allocation3 + $0x70] sm:$0xf] %vm3487, %v3436
      %3517 = vst.msk [vmem:[#allocation3 + $0x74] sm:$0xf] %vm3487, %v3438
      %3518 = vst.msk [vmem:[#allocation3 + $0x78] sm:$0xf] %vm3487, %v3440
      %3519 = vst.msk [vmem:[#allocation3 + $0x7c] sm:$0xf] %vm3487, %v3442
      %3520 = vst.msk [vmem:[#allocation3 + $0x80] sm:$0xf] %vm3487, %v3444
      %3521 = vst.msk [vmem:[#allocation3 + $0x84] sm:$0xf] %vm3487, %v3446
      %3522 = vst.msk [vmem:[#allocation3 + $0x88] sm:$0xf] %vm3487, %v3448
      %3523 = vst.msk [vmem:[#allocation3 + $0x8c] sm:$0xf] %vm3487, %v3450
      %v3524 = vld [vmem:[#allocation2 + $0x10] sm:$0xc]
      %v3525 = vld [vmem:[#allocation2 + $0x14] sm:$0xf]
      %v3526 = vld [vmem:[#allocation2 + $0x18] sm:$0xf]
      %v3527 = vld [vmem:[#allocation2 + $0x1c] sm:$0xf]
      %v3528 = vld [vmem:[#allocation2 + $0x20] sm:$0xf]
      %v3529 = vld [vmem:[#allocation2 + $0x24] sm:$0xf]
      %v3530 = vld [vmem:[#allocation2 + $0x28] sm:$0xf]
      %v3531 = vld [vmem:[#allocation2 + $0x2c] sm:$0xf]
      %v3532 = vld [vmem:[#allocation2 + $0x30] sm:$0xf]
      %v3533 = vld [vmem:[#allocation2 + $0x34] sm:$0xf]
      %v3534 = vld [vmem:[#allocation2 + $0x38] sm:$0xf]
      %v3535 = vld [vmem:[#allocation2 + $0x3c] sm:$0xf]
      %v3536 = vld [vmem:[#allocation2 + $0x40] sm:$0xf]
      %v3537 = vld [vmem:[#allocation2 + $0x44] sm:$0xf]
      %v3538 = vld [vmem:[#allocation2 + $0x48] sm:$0xf]
      %v3539 = vld [vmem:[#allocation2 + $0x4c] sm:$0xf]
      %v3540 = vld [vmem:[#allocation2 + $0x50] sm:$0xf]
      %v3541 = vld [vmem:[#allocation2 + $0x54] sm:$0xf]
      %v3542 = vld [vmem:[#allocation2 + $0x58] sm:$0xf]
      %v3543 = vld [vmem:[#allocation2 + $0x5c] sm:$0xf]
      %v3544 = vld [vmem:[#allocation2 + $0x60] sm:$0xf]
      %v3545 = vld [vmem:[#allocation2 + $0x64] sm:$0xf]
      %v3546 = vld [vmem:[#allocation2 + $0x68] sm:$0xf]
      %v3547 = vld [vmem:[#allocation2 + $0x6c] sm:$0xf]
      %v3548 = vld [vmem:[#allocation2 + $0x70] sm:$0xf]
      %v3549 = vld [vmem:[#allocation2 + $0x74] sm:$0xf]
      %v3550 = vld [vmem:[#allocation2 + $0x78] sm:$0xf]
      %v3551 = vld [vmem:[#allocation2 + $0x7c] sm:$0xf]
      %v3552 = vld [vmem:[#allocation2 + $0x80] sm:$0xf]
      %v3553 = vld [vmem:[#allocation2 + $0x84] sm:$0xf]
      %v3554 = vld [vmem:[#allocation2 + $0x88] sm:$0xf]
      %v3555 = vld [vmem:[#allocation2 + $0x8c] sm:$0xf]
      %v3556 = vld [vmem:[#allocation2 + $0x90] sm:$0xf]
      %v3557 = vld [vmem:[#allocation2 + $0x94] sm:$0xf]
      %v3558 = vld [vmem:[#allocation2 + $0x98] sm:$0xf]
      %v3559 = vld [vmem:[#allocation2 + $0x9c] sm:$0xf]
      %v3560 = vld [vmem:[#allocation2 + $0xa0] sm:$0x7]
      %v3562 = vshrl.u32 %v3524, 16
      %v3564 = vrot.slane %v3562, 6
      %v3565 = vshll.u32 %v3524, 16
      %v3567 = vrot.slane %v3565, 7
      %v3568 = vor.u32 %v3564, %v3567
      %v3569 = vrot.slane %v3568, 4
      %v3571 = vshrl.u32 %v3525, 16
      %v3573 = vrot.slane %v3571, 6
      %v3574 = vshll.u32 %v3525, 16
      %v3576 = vrot.slane %v3574, 7
      %v3577 = vor.u32 %v3573, %v3576
      %v3578 = vsel %vm478, %v3569, %v3577
      %v3579 = vrot.slane %v3577, 4
      %v3581 = vshrl.u32 %v3526, 16
      %v3583 = vrot.slane %v3581, 6
      %v3584 = vshll.u32 %v3526, 16
      %v3586 = vrot.slane %v3584, 7
      %v3587 = vor.u32 %v3583, %v3586
      %v3588 = vsel %vm478, %v3579, %v3587
      %v3589 = vrot.slane %v3587, 4
      %v3591 = vshrl.u32 %v3527, 16
      %v3593 = vrot.slane %v3591, 6
      %v3594 = vshll.u32 %v3527, 16
      %v3596 = vrot.slane %v3594, 7
      %v3597 = vor.u32 %v3593, %v3596
      %v3598 = vsel %vm478, %v3589, %v3597
      %v3599 = vrot.slane %v3597, 4
      %v3601 = vshrl.u32 %v3528, 16
      %v3603 = vrot.slane %v3601, 6
      %v3604 = vshll.u32 %v3528, 16
      %v3606 = vrot.slane %v3604, 7
      %v3607 = vor.u32 %v3603, %v3606
      %v3608 = vsel %vm478, %v3599, %v3607
      %v3609 = vrot.slane %v3607, 4
      %v3611 = vshrl.u32 %v3529, 16
      %v3613 = vrot.slane %v3611, 6
      %v3614 = vshll.u32 %v3529, 16
      %v3616 = vrot.slane %v3614, 7
      %v3617 = vor.u32 %v3613, %v3616
      %v3618 = vsel %vm478, %v3609, %v3617
      %v3619 = vrot.slane %v3617, 4
      %v3621 = vshrl.u32 %v3530, 16
      %v3623 = vrot.slane %v3621, 6
      %v3624 = vshll.u32 %v3530, 16
      %v3626 = vrot.slane %v3624, 7
      %v3627 = vor.u32 %v3623, %v3626
      %v3628 = vsel %vm478, %v3619, %v3627
      %v3629 = vrot.slane %v3627, 4
      %v3631 = vshrl.u32 %v3531, 16
      %v3633 = vrot.slane %v3631, 6
      %v3634 = vshll.u32 %v3531, 16
      %v3636 = vrot.slane %v3634, 7
      %v3637 = vor.u32 %v3633, %v3636
      %v3638 = vsel %vm478, %v3629, %v3637
      %v3639 = vrot.slane %v3637, 4
      %v3641 = vshrl.u32 %v3532, 16
      %v3643 = vrot.slane %v3641, 6
      %v3644 = vshll.u32 %v3532, 16
      %v3646 = vrot.slane %v3644, 7
      %v3647 = vor.u32 %v3643, %v3646
      %v3648 = vsel %vm478, %v3639, %v3647
      %v3649 = vrot.slane %v3647, 4
      %v3651 = vshrl.u32 %v3533, 16
      %v3653 = vrot.slane %v3651, 6
      %v3654 = vshll.u32 %v3533, 16
      %v3656 = vrot.slane %v3654, 7
      %v3657 = vor.u32 %v3653, %v3656
      %v3658 = vsel %vm478, %v3649, %v3657
      %v3659 = vrot.slane %v3657, 4
      %v3661 = vshrl.u32 %v3534, 16
      %v3663 = vrot.slane %v3661, 6
      %v3664 = vshll.u32 %v3534, 16
      %v3666 = vrot.slane %v3664, 7
      %v3667 = vor.u32 %v3663, %v3666
      %v3668 = vsel %vm478, %v3659, %v3667
      %v3669 = vrot.slane %v3667, 4
      %v3671 = vshrl.u32 %v3535, 16
      %v3673 = vrot.slane %v3671, 6
      %v3674 = vshll.u32 %v3535, 16
      %v3676 = vrot.slane %v3674, 7
      %v3677 = vor.u32 %v3673, %v3676
      %v3678 = vsel %vm478, %v3669, %v3677
      %v3679 = vrot.slane %v3677, 4
      %v3681 = vshrl.u32 %v3536, 16
      %v3683 = vrot.slane %v3681, 6
      %v3684 = vshll.u32 %v3536, 16
      %v3686 = vrot.slane %v3684, 7
      %v3687 = vor.u32 %v3683, %v3686
      %v3688 = vsel %vm478, %v3679, %v3687
      %v3689 = vrot.slane %v3687, 4
      %v3691 = vshrl.u32 %v3537, 16
      %v3693 = vrot.slane %v3691, 6
      %v3694 = vshll.u32 %v3537, 16
      %v3696 = vrot.slane %v3694, 7
      %v3697 = vor.u32 %v3693, %v3696
      %v3698 = vsel %vm478, %v3689, %v3697
      %v3699 = vrot.slane %v3697, 4
      %v3701 = vshrl.u32 %v3538, 16
      %v3703 = vrot.slane %v3701, 6
      %v3704 = vshll.u32 %v3538, 16
      %v3706 = vrot.slane %v3704, 7
      %v3707 = vor.u32 %v3703, %v3706
      %v3708 = vsel %vm478, %v3699, %v3707
      %v3709 = vrot.slane %v3707, 4
      %v3711 = vshrl.u32 %v3539, 16
      %v3713 = vrot.slane %v3711, 6
      %v3714 = vshll.u32 %v3539, 16
      %v3716 = vrot.slane %v3714, 7
      %v3717 = vor.u32 %v3713, %v3716
      %v3718 = vsel %vm478, %v3709, %v3717
      %v3719 = vrot.slane %v3717, 4
      %v3721 = vshrl.u32 %v3540, 16
      %v3723 = vrot.slane %v3721, 6
      %v3724 = vshll.u32 %v3540, 16
      %v3726 = vrot.slane %v3724, 7
      %v3727 = vor.u32 %v3723, %v3726
      %v3728 = vsel %vm478, %v3719, %v3727
      %v3729 = vrot.slane %v3727, 4
      %v3731 = vshrl.u32 %v3541, 16
      %v3733 = vrot.slane %v3731, 6
      %v3734 = vshll.u32 %v3541, 16
      %v3736 = vrot.slane %v3734, 7
      %v3737 = vor.u32 %v3733, %v3736
      %v3738 = vsel %vm478, %v3729, %v3737
      %v3739 = vrot.slane %v3737, 4
      %v3741 = vshrl.u32 %v3542, 16
      %v3743 = vrot.slane %v3741, 6
      %v3744 = vshll.u32 %v3542, 16
      %v3746 = vrot.slane %v3744, 7
      %v3747 = vor.u32 %v3743, %v3746
      %v3748 = vsel %vm478, %v3739, %v3747
      %v3749 = vrot.slane %v3747, 4
      %v3751 = vshrl.u32 %v3543, 16
      %v3753 = vrot.slane %v3751, 6
      %v3754 = vshll.u32 %v3543, 16
      %v3756 = vrot.slane %v3754, 7
      %v3757 = vor.u32 %v3753, %v3756
      %v3758 = vsel %vm478, %v3749, %v3757
      %v3759 = vrot.slane %v3757, 4
      %v3761 = vshrl.u32 %v3544, 16
      %v3763 = vrot.slane %v3761, 6
      %v3764 = vshll.u32 %v3544, 16
      %v3766 = vrot.slane %v3764, 7
      %v3767 = vor.u32 %v3763, %v3766
      %v3768 = vsel %vm478, %v3759, %v3767
      %v3769 = vrot.slane %v3767, 4
      %v3771 = vshrl.u32 %v3545, 16
      %v3773 = vrot.slane %v3771, 6
      %v3774 = vshll.u32 %v3545, 16
      %v3776 = vrot.slane %v3774, 7
      %v3777 = vor.u32 %v3773, %v3776
      %v3778 = vsel %vm478, %v3769, %v3777
      %v3779 = vrot.slane %v3777, 4
      %v3781 = vshrl.u32 %v3546, 16
      %v3783 = vrot.slane %v3781, 6
      %v3784 = vshll.u32 %v3546, 16
      %v3786 = vrot.slane %v3784, 7
      %v3787 = vor.u32 %v3783, %v3786
      %v3788 = vsel %vm478, %v3779, %v3787
      %v3789 = vrot.slane %v3787, 4
      %v3791 = vshrl.u32 %v3547, 16
      %v3793 = vrot.slane %v3791, 6
      %v3794 = vshll.u32 %v3547, 16
      %v3796 = vrot.slane %v3794, 7
      %v3797 = vor.u32 %v3793, %v3796
      %v3798 = vsel %vm478, %v3789, %v3797
      %v3799 = vrot.slane %v3797, 4
      %v3801 = vshrl.u32 %v3548, 16
      %v3803 = vrot.slane %v3801, 6
      %v3804 = vshll.u32 %v3548, 16
      %v3806 = vrot.slane %v3804, 7
      %v3807 = vor.u32 %v3803, %v3806
      %v3808 = vsel %vm478, %v3799, %v3807
      %v3809 = vrot.slane %v3807, 4
      %v3811 = vshrl.u32 %v3549, 16
      %v3813 = vrot.slane %v3811, 6
      %v3814 = vshll.u32 %v3549, 16
      %v3816 = vrot.slane %v3814, 7
      %v3817 = vor.u32 %v3813, %v3816
      %v3818 = vsel %vm478, %v3809, %v3817
      %v3819 = vrot.slane %v3817, 4
      %v3821 = vshrl.u32 %v3550, 16
      %v3823 = vrot.slane %v3821, 6
      %v3824 = vshll.u32 %v3550, 16
      %v3826 = vrot.slane %v3824, 7
      %v3827 = vor.u32 %v3823, %v3826
      %v3828 = vsel %vm478, %v3819, %v3827
      %v3829 = vrot.slane %v3827, 4
      %v3831 = vshrl.u32 %v3551, 16
      %v3833 = vrot.slane %v3831, 6
      %v3834 = vshll.u32 %v3551, 16
      %v3836 = vrot.slane %v3834, 7
      %v3837 = vor.u32 %v3833, %v3836
      %v3838 = vsel %vm478, %v3829, %v3837
      %v3839 = vrot.slane %v3837, 4
      %v3841 = vshrl.u32 %v3552, 16
      %v3843 = vrot.slane %v3841, 6
      %v3844 = vshll.u32 %v3552, 16
      %v3846 = vrot.slane %v3844, 7
      %v3847 = vor.u32 %v3843, %v3846
      %v3848 = vsel %vm478, %v3839, %v3847
      %v3849 = vrot.slane %v3847, 4
      %v3851 = vshrl.u32 %v3553, 16
      %v3853 = vrot.slane %v3851, 6
      %v3854 = vshll.u32 %v3553, 16
      %v3856 = vrot.slane %v3854, 7
      %v3857 = vor.u32 %v3853, %v3856
      %v3858 = vsel %vm478, %v3849, %v3857
      %v3859 = vrot.slane %v3857, 4
      %v3861 = vshrl.u32 %v3554, 16
      %v3863 = vrot.slane %v3861, 6
      %v3864 = vshll.u32 %v3554, 16
      %v3866 = vrot.slane %v3864, 7
      %v3867 = vor.u32 %v3863, %v3866
      %v3868 = vsel %vm478, %v3859, %v3867
      %v3869 = vrot.slane %v3867, 4
      %v3871 = vshrl.u32 %v3555, 16
      %v3873 = vrot.slane %v3871, 6
      %v3874 = vshll.u32 %v3555, 16
      %v3876 = vrot.slane %v3874, 7
      %v3877 = vor.u32 %v3873, %v3876
      %v3878 = vsel %vm478, %v3869, %v3877
      %v3879 = vrot.slane %v3877, 4
      %v3881 = vshrl.u32 %v3556, 16
      %v3883 = vrot.slane %v3881, 6
      %v3884 = vshll.u32 %v3556, 16
      %v3886 = vrot.slane %v3884, 7
      %v3887 = vor.u32 %v3883, %v3886
      %v3888 = vsel %vm478, %v3879, %v3887
      %v3889 = vrot.slane %v3887, 4
      %v3891 = vshrl.u32 %v3557, 16
      %v3893 = vrot.slane %v3891, 6
      %v3894 = vshll.u32 %v3557, 16
      %v3896 = vrot.slane %v3894, 7
      %v3897 = vor.u32 %v3893, %v3896
      %v3898 = vsel %vm478, %v3889, %v3897
      %v3899 = vrot.slane %v3897, 4
      %v3901 = vshrl.u32 %v3558, 16
      %v3903 = vrot.slane %v3901, 6
      %v3904 = vshll.u32 %v3558, 16
      %v3906 = vrot.slane %v3904, 7
      %v3907 = vor.u32 %v3903, %v3906
      %v3908 = vsel %vm478, %v3899, %v3907
      %v3909 = vrot.slane %v3907, 4
      %v3911 = vshrl.u32 %v3559, 16
      %v3913 = vrot.slane %v3911, 6
      %v3914 = vshll.u32 %v3559, 16
      %v3916 = vrot.slane %v3914, 7
      %v3917 = vor.u32 %v3913, %v3916
      %v3918 = vsel %vm478, %v3909, %v3917
      %v3919 = vrot.slane %v3917, 4
      %v3921 = vshrl.u32 %v3560, 16
      %v3923 = vrot.slane %v3921, 6
      %v3924 = vshll.u32 %v3560, 16
      %v3926 = vrot.slane %v3924, 7
      %v3927 = vor.u32 %v3923, %v3926
      %v3928 = vsel %vm478, %v3919, %v3927
      %3929 = vrot.lane.b32.xlu0 %v3578, 56
      %v3930 = vpop.permute.xlu0 %3929
      %3931 = vrot.lane.b32.xlu0 %v3588, 56
      %v3932 = vpop.permute.xlu0 %3931
      %3933 = vrot.lane.b32.xlu0 %v3598, 56
      %v3934 = vpop.permute.xlu0 %3933
      %3935 = vrot.lane.b32.xlu0 %v3608, 56
      %v3936 = vpop.permute.xlu0 %3935
      %3937 = vrot.lane.b32.xlu0 %v3618, 56
      %v3938 = vpop.permute.xlu0 %3937
      %3939 = vrot.lane.b32.xlu0 %v3628, 56
      %v3940 = vpop.permute.xlu0 %3939
      %3941 = vrot.lane.b32.xlu0 %v3638, 56
      %v3942 = vpop.permute.xlu0 %3941
      %3943 = vrot.lane.b32.xlu0 %v3648, 56
      %v3944 = vpop.permute.xlu0 %3943
      %3945 = vrot.lane.b32.xlu0 %v3658, 56
      %v3946 = vpop.permute.xlu0 %3945
      %3947 = vrot.lane.b32.xlu0 %v3668, 56
      %v3948 = vpop.permute.xlu0 %3947
      %3949 = vrot.lane.b32.xlu0 %v3678, 56
      %v3950 = vpop.permute.xlu0 %3949
      %3951 = vrot.lane.b32.xlu0 %v3688, 56
      %v3952 = vpop.permute.xlu0 %3951
      %3953 = vrot.lane.b32.xlu0 %v3698, 56
      %v3954 = vpop.permute.xlu0 %3953
      %3955 = vrot.lane.b32.xlu0 %v3708, 56
      %v3956 = vpop.permute.xlu0 %3955
      %3957 = vrot.lane.b32.xlu0 %v3718, 56
      %v3958 = vpop.permute.xlu0 %3957
      %3959 = vrot.lane.b32.xlu0 %v3728, 56
      %v3960 = vpop.permute.xlu0 %3959
      %3961 = vrot.lane.b32.xlu0 %v3738, 56
      %v3962 = vpop.permute.xlu0 %3961
      %3963 = vrot.lane.b32.xlu0 %v3748, 56
      %v3964 = vpop.permute.xlu0 %3963
      %3965 = vrot.lane.b32.xlu0 %v3758, 56
      %v3966 = vpop.permute.xlu0 %3965
      %3967 = vrot.lane.b32.xlu0 %v3768, 56
      %v3968 = vpop.permute.xlu0 %3967
      %3969 = vrot.lane.b32.xlu0 %v3778, 56
      %v3970 = vpop.permute.xlu0 %3969
      %3971 = vrot.lane.b32.xlu0 %v3788, 56
      %v3972 = vpop.permute.xlu0 %3971
      %3973 = vrot.lane.b32.xlu0 %v3798, 56
      %v3974 = vpop.permute.xlu0 %3973
      %3975 = vrot.lane.b32.xlu0 %v3808, 56
      %v3976 = vpop.permute.xlu0 %3975
      %3977 = vrot.lane.b32.xlu0 %v3818, 56
      %v3978 = vpop.permute.xlu0 %3977
      %3979 = vrot.lane.b32.xlu0 %v3828, 56
      %v3980 = vpop.permute.xlu0 %3979
      %3981 = vrot.lane.b32.xlu0 %v3838, 56
      %v3982 = vpop.permute.xlu0 %3981
      %3983 = vrot.lane.b32.xlu0 %v3848, 56
      %v3984 = vpop.permute.xlu0 %3983
      %3985 = vrot.lane.b32.xlu0 %v3858, 56
      %v3986 = vpop.permute.xlu0 %3985
      %3987 = vrot.lane.b32.xlu0 %v3868, 56
      %v3988 = vpop.permute.xlu0 %3987
      %3989 = vrot.lane.b32.xlu0 %v3878, 56
      %v3990 = vpop.permute.xlu0 %3989
      %3991 = vrot.lane.b32.xlu0 %v3888, 56
      %v3992 = vpop.permute.xlu0 %3991
      %3993 = vrot.lane.b32.xlu0 %v3898, 56
      %v3994 = vpop.permute.xlu0 %3993
      %3995 = vrot.lane.b32.xlu0 %v3908, 56
      %v3996 = vpop.permute.xlu0 %3995
      %3997 = vrot.lane.b32.xlu0 %v3918, 56
      %v3998 = vpop.permute.xlu0 %3997
      %3999 = vrot.lane.b32.xlu0 %v3928, 56
      %v4000 = vpop.permute.xlu0 %3999
      %vm4037 = vcmask 519616
      %4038 = vst.msk [vmem:[#allocation3] sm:$0xf] %vm4037, %v3930
      %4039 = vst.msk [vmem:[#allocation3 + $0x4] sm:$0xf] %vm4037, %v3932
      %4040 = vst.msk [vmem:[#allocation3 + $0x8] sm:$0xf] %vm4037, %v3934
      %4041 = vst.msk [vmem:[#allocation3 + $0xc] sm:$0xf] %vm4037, %v3936
      %4042 = vst.msk [vmem:[#allocation3 + $0x10] sm:$0xf] %vm4037, %v3938
      %4043 = vst.msk [vmem:[#allocation3 + $0x14] sm:$0xf] %vm4037, %v3940
      %4044 = vst.msk [vmem:[#allocation3 + $0x18] sm:$0xf] %vm4037, %v3942
      %4045 = vst.msk [vmem:[#allocation3 + $0x1c] sm:$0xf] %vm4037, %v3944
      %4046 = vst.msk [vmem:[#allocation3 + $0x20] sm:$0xf] %vm4037, %v3946
      %4047 = vst.msk [vmem:[#allocation3 + $0x24] sm:$0xf] %vm4037, %v3948
      %4048 = vst.msk [vmem:[#allocation3 + $0x28] sm:$0xf] %vm4037, %v3950
      %4049 = vst.msk [vmem:[#allocation3 + $0x2c] sm:$0xf] %vm4037, %v3952
      %4050 = vst.msk [vmem:[#allocation3 + $0x30] sm:$0xf] %vm4037, %v3954
      %4051 = vst.msk [vmem:[#allocation3 + $0x34] sm:$0xf] %vm4037, %v3956
      %4052 = vst.msk [vmem:[#allocation3 + $0x38] sm:$0xf] %vm4037, %v3958
      %4053 = vst.msk [vmem:[#allocation3 + $0x3c] sm:$0xf] %vm4037, %v3960
      %4054 = vst.msk [vmem:[#allocation3 + $0x40] sm:$0xf] %vm4037, %v3962
      %4055 = vst.msk [vmem:[#allocation3 + $0x44] sm:$0xf] %vm4037, %v3964
      %4056 = vst.msk [vmem:[#allocation3 + $0x48] sm:$0xf] %vm4037, %v3966
      %4057 = vst.msk [vmem:[#allocation3 + $0x4c] sm:$0xf] %vm4037, %v3968
      %4058 = vst.msk [vmem:[#allocation3 + $0x50] sm:$0xf] %vm4037, %v3970
      %4059 = vst.msk [vmem:[#allocation3 + $0x54] sm:$0xf] %vm4037, %v3972
      %4060 = vst.msk [vmem:[#allocation3 + $0x58] sm:$0xf] %vm4037, %v3974
      %4061 = vst.msk [vmem:[#allocation3 + $0x5c] sm:$0xf] %vm4037, %v3976
      %4062 = vst.msk [vmem:[#allocation3 + $0x60] sm:$0xf] %vm4037, %v3978
      %4063 = vst.msk [vmem:[#allocation3 + $0x64] sm:$0xf] %vm4037, %v3980
      %4064 = vst.msk [vmem:[#allocation3 + $0x68] sm:$0xf] %vm4037, %v3982
      %4065 = vst.msk [vmem:[#allocation3 + $0x6c] sm:$0xf] %vm4037, %v3984
      %4066 = vst.msk [vmem:[#allocation3 + $0x70] sm:$0xf] %vm4037, %v3986
      %4067 = vst.msk [vmem:[#allocation3 + $0x74] sm:$0xf] %vm4037, %v3988
      %4068 = vst.msk [vmem:[#allocation3 + $0x78] sm:$0xf] %vm4037, %v3990
      %4069 = vst.msk [vmem:[#allocation3 + $0x7c] sm:$0xf] %vm4037, %v3992
      %4070 = vst.msk [vmem:[#allocation3 + $0x80] sm:$0xf] %vm4037, %v3994
      %4071 = vst.msk [vmem:[#allocation3 + $0x84] sm:$0xf] %vm4037, %v3996
      %4072 = vst.msk [vmem:[#allocation3 + $0x88] sm:$0xf] %vm4037, %v3998
      %4073 = vst.msk [vmem:[#allocation3 + $0x8c] sm:$0xf] %vm4037, %v4000
      %v4074 = vld [vmem:[#allocation2 + $0x10] sm:$0x8]
      %v4075 = vld [vmem:[#allocation2 + $0x14] sm:$0xf]
      %v4076 = vld [vmem:[#allocation2 + $0x18] sm:$0xf]
      %v4077 = vld [vmem:[#allocation2 + $0x1c] sm:$0xf]
      %v4078 = vld [vmem:[#allocation2 + $0x20] sm:$0xf]
      %v4079 = vld [vmem:[#allocation2 + $0x24] sm:$0xf]
      %v4080 = vld [vmem:[#allocation2 + $0x28] sm:$0xf]
      %v4081 = vld [vmem:[#allocation2 + $0x2c] sm:$0xf]
      %v4082 = vld [vmem:[#allocation2 + $0x30] sm:$0xf]
      %v4083 = vld [vmem:[#allocation2 + $0x34] sm:$0xf]
      %v4084 = vld [vmem:[#allocation2 + $0x38] sm:$0xf]
      %v4085 = vld [vmem:[#allocation2 + $0x3c] sm:$0xf]
      %v4086 = vld [vmem:[#allocation2 + $0x40] sm:$0xf]
      %v4087 = vld [vmem:[#allocation2 + $0x44] sm:$0xf]
      %v4088 = vld [vmem:[#allocation2 + $0x48] sm:$0xf]
      %v4089 = vld [vmem:[#allocation2 + $0x4c] sm:$0xf]
      %v4090 = vld [vmem:[#allocation2 + $0x50] sm:$0xf]
      %v4091 = vld [vmem:[#allocation2 + $0x54] sm:$0xf]
      %v4092 = vld [vmem:[#allocation2 + $0x58] sm:$0xf]
      %v4093 = vld [vmem:[#allocation2 + $0x5c] sm:$0xf]
      %v4094 = vld [vmem:[#allocation2 + $0x60] sm:$0xf]
      %v4095 = vld [vmem:[#allocation2 + $0x64] sm:$0xf]
      %v4096 = vld [vmem:[#allocation2 + $0x68] sm:$0xf]
      %v4097 = vld [vmem:[#allocation2 + $0x6c] sm:$0xf]
      %v4098 = vld [vmem:[#allocation2 + $0x70] sm:$0xf]
      %v4099 = vld [vmem:[#allocation2 + $0x74] sm:$0xf]
      %v4100 = vld [vmem:[#allocation2 + $0x78] sm:$0xf]
      %v4101 = vld [vmem:[#allocation2 + $0x7c] sm:$0xf]
      %v4102 = vld [vmem:[#allocation2 + $0x80] sm:$0xf]
      %v4103 = vld [vmem:[#allocation2 + $0x84] sm:$0xf]
      %v4104 = vld [vmem:[#allocation2 + $0x88] sm:$0xf]
      %v4105 = vld [vmem:[#allocation2 + $0x8c] sm:$0xf]
      %v4106 = vld [vmem:[#allocation2 + $0x90] sm:$0xf]
      %v4107 = vld [vmem:[#allocation2 + $0x94] sm:$0xf]
      %v4108 = vld [vmem:[#allocation2 + $0x98] sm:$0xf]
      %v4109 = vld [vmem:[#allocation2 + $0x9c] sm:$0xf]
      %v4110 = vld [vmem:[#allocation2 + $0xa0] sm:$0x7]
      %vm4148 = vcmask 1040384
      %vm4149 = vcmask 1044484
      %vm4150 = vmor %vm4148, %vm4149
      %v4151 = vrot.slane %v4074, 7
      %v4152 = vrot.slane %v4151, 4
      %v4153 = vrot.slane %v4075, 7
      %v4154 = vsel %vm4150, %v4152, %v4153
      %v4155 = vrot.slane %v4153, 4
      %v4156 = vrot.slane %v4076, 7
      %v4157 = vsel %vm4150, %v4155, %v4156
      %v4158 = vrot.slane %v4156, 4
      %v4159 = vrot.slane %v4077, 7
      %v4160 = vsel %vm4150, %v4158, %v4159
      %v4161 = vrot.slane %v4159, 4
      %v4162 = vrot.slane %v4078, 7
      %v4163 = vsel %vm4150, %v4161, %v4162
      %v4164 = vrot.slane %v4162, 4
      %v4165 = vrot.slane %v4079, 7
      %v4166 = vsel %vm4150, %v4164, %v4165
      %v4167 = vrot.slane %v4165, 4
      %v4168 = vrot.slane %v4080, 7
      %v4169 = vsel %vm4150, %v4167, %v4168
      %v4170 = vrot.slane %v4168, 4
      %v4171 = vrot.slane %v4081, 7
      %v4172 = vsel %vm4150, %v4170, %v4171
      %v4173 = vrot.slane %v4171, 4
      %v4174 = vrot.slane %v4082, 7
      %v4175 = vsel %vm4150, %v4173, %v4174
      %v4176 = vrot.slane %v4174, 4
      %v4177 = vrot.slane %v4083, 7
      %v4178 = vsel %vm4150, %v4176, %v4177
      %v4179 = vrot.slane %v4177, 4
      %v4180 = vrot.slane %v4084, 7
      %v4181 = vsel %vm4150, %v4179, %v4180
      %v4182 = vrot.slane %v4180, 4
      %v4183 = vrot.slane %v4085, 7
      %v4184 = vsel %vm4150, %v4182, %v4183
      %v4185 = vrot.slane %v4183, 4
      %v4186 = vrot.slane %v4086, 7
      %v4187 = vsel %vm4150, %v4185, %v4186
      %v4188 = vrot.slane %v4186, 4
      %v4189 = vrot.slane %v4087, 7
      %v4190 = vsel %vm4150, %v4188, %v4189
      %v4191 = vrot.slane %v4189, 4
      %v4192 = vrot.slane %v4088, 7
      %v4193 = vsel %vm4150, %v4191, %v4192
      %v4194 = vrot.slane %v4192, 4
      %v4195 = vrot.slane %v4089, 7
      %v4196 = vsel %vm4150, %v4194, %v4195
      %v4197 = vrot.slane %v4195, 4
      %v4198 = vrot.slane %v4090, 7
      %v4199 = vsel %vm4150, %v4197, %v4198
      %v4200 = vrot.slane %v4198, 4
      %v4201 = vrot.slane %v4091, 7
      %v4202 = vsel %vm4150, %v4200, %v4201
      %v4203 = vrot.slane %v4201, 4
      %v4204 = vrot.slane %v4092, 7
      %v4205 = vsel %vm4150, %v4203, %v4204
      %v4206 = vrot.slane %v4204, 4
      %v4207 = vrot.slane %v4093, 7
      %v4208 = vsel %vm4150, %v4206, %v4207
      %v4209 = vrot.slane %v4207, 4
      %v4210 = vrot.slane %v4094, 7
      %v4211 = vsel %vm4150, %v4209, %v4210
      %v4212 = vrot.slane %v4210, 4
      %v4213 = vrot.slane %v4095, 7
      %v4214 = vsel %vm4150, %v4212, %v4213
      %v4215 = vrot.slane %v4213, 4
      %v4216 = vrot.slane %v4096, 7
      %v4217 = vsel %vm4150, %v4215, %v4216
      %v4218 = vrot.slane %v4216, 4
      %v4219 = vrot.slane %v4097, 7
      %v4220 = vsel %vm4150, %v4218, %v4219
      %v4221 = vrot.slane %v4219, 4
      %v4222 = vrot.slane %v4098, 7
      %v4223 = vsel %vm4150, %v4221, %v4222
      %v4224 = vrot.slane %v4222, 4
      %v4225 = vrot.slane %v4099, 7
      %v4226 = vsel %vm4150, %v4224, %v4225
      %v4227 = vrot.slane %v4225, 4
      %v4228 = vrot.slane %v4100, 7
      %v4229 = vsel %vm4150, %v4227, %v4228
      %v4230 = vrot.slane %v4228, 4
      %v4231 = vrot.slane %v4101, 7
      %v4232 = vsel %vm4150, %v4230, %v4231
      %v4233 = vrot.slane %v4231, 4
      %v4234 = vrot.slane %v4102, 7
      %v4235 = vsel %vm4150, %v4233, %v4234
      %v4236 = vrot.slane %v4234, 4
      %v4237 = vrot.slane %v4103, 7
      %v4238 = vsel %vm4150, %v4236, %v4237
      %v4239 = vrot.slane %v4237, 4
      %v4240 = vrot.slane %v4104, 7
      %v4241 = vsel %vm4150, %v4239, %v4240
      %v4242 = vrot.slane %v4240, 4
      %v4243 = vrot.slane %v4105, 7
      %v4244 = vsel %vm4150, %v4242, %v4243
      %v4245 = vrot.slane %v4243, 4
      %v4246 = vrot.slane %v4106, 7
      %v4247 = vsel %vm4150, %v4245, %v4246
      %v4248 = vrot.slane %v4246, 4
      %v4249 = vrot.slane %v4107, 7
      %v4250 = vsel %vm4150, %v4248, %v4249
      %v4251 = vrot.slane %v4249, 4
      %v4252 = vrot.slane %v4108, 7
      %v4253 = vsel %vm4150, %v4251, %v4252
      %v4254 = vrot.slane %v4252, 4
      %v4255 = vrot.slane %v4109, 7
      %v4256 = vsel %vm4150, %v4254, %v4255
      %v4257 = vrot.slane %v4255, 4
      %v4258 = vrot.slane %v4110, 7
      %v4259 = vsel %vm4150, %v4257, %v4258
      %4260 = vrot.lane.b32.xlu0 %v4154, 64
      %v4261 = vpop.permute.xlu0 %4260
      %4262 = vrot.lane.b32.xlu0 %v4157, 64
      %v4263 = vpop.permute.xlu0 %4262
      %4264 = vrot.lane.b32.xlu0 %v4160, 64
      %v4265 = vpop.permute.xlu0 %4264
      %4266 = vrot.lane.b32.xlu0 %v4163, 64
      %v4267 = vpop.permute.xlu0 %4266
      %4268 = vrot.lane.b32.xlu0 %v4166, 64
      %v4269 = vpop.permute.xlu0 %4268
      %4270 = vrot.lane.b32.xlu0 %v4169, 64
      %v4271 = vpop.permute.xlu0 %4270
      %4272 = vrot.lane.b32.xlu0 %v4172, 64
      %v4273 = vpop.permute.xlu0 %4272
      %4274 = vrot.lane.b32.xlu0 %v4175, 64
      %v4275 = vpop.permute.xlu0 %4274
      %4276 = vrot.lane.b32.xlu0 %v4178, 64
      %v4277 = vpop.permute.xlu0 %4276
      %4278 = vrot.lane.b32.xlu0 %v4181, 64
      %v4279 = vpop.permute.xlu0 %4278
      %4280 = vrot.lane.b32.xlu0 %v4184, 64
      %v4281 = vpop.permute.xlu0 %4280
      %4282 = vrot.lane.b32.xlu0 %v4187, 64
      %v4283 = vpop.permute.xlu0 %4282
      %4284 = vrot.lane.b32.xlu0 %v4190, 64
      %v4285 = vpop.permute.xlu0 %4284
      %4286 = vrot.lane.b32.xlu0 %v4193, 64
      %v4287 = vpop.permute.xlu0 %4286
      %4288 = vrot.lane.b32.xlu0 %v4196, 64
      %v4289 = vpop.permute.xlu0 %4288
      %4290 = vrot.lane.b32.xlu0 %v4199, 64
      %v4291 = vpop.permute.xlu0 %4290
      %4292 = vrot.lane.b32.xlu0 %v4202, 64
      %v4293 = vpop.permute.xlu0 %4292
      %4294 = vrot.lane.b32.xlu0 %v4205, 64
      %v4295 = vpop.permute.xlu0 %4294
      %4296 = vrot.lane.b32.xlu0 %v4208, 64
      %v4297 = vpop.permute.xlu0 %4296
      %4298 = vrot.lane.b32.xlu0 %v4211, 64
      %v4299 = vpop.permute.xlu0 %4298
      %4300 = vrot.lane.b32.xlu0 %v4214, 64
      %v4301 = vpop.permute.xlu0 %4300
      %4302 = vrot.lane.b32.xlu0 %v4217, 64
      %v4303 = vpop.permute.xlu0 %4302
      %4304 = vrot.lane.b32.xlu0 %v4220, 64
      %v4305 = vpop.permute.xlu0 %4304
      %4306 = vrot.lane.b32.xlu0 %v4223, 64
      %v4307 = vpop.permute.xlu0 %4306
      %4308 = vrot.lane.b32.xlu0 %v4226, 64
      %v4309 = vpop.permute.xlu0 %4308
      %4310 = vrot.lane.b32.xlu0 %v4229, 64
      %v4311 = vpop.permute.xlu0 %4310
      %4312 = vrot.lane.b32.xlu0 %v4232, 64
      %v4313 = vpop.permute.xlu0 %4312
      %4314 = vrot.lane.b32.xlu0 %v4235, 64
      %v4315 = vpop.permute.xlu0 %4314
      %4316 = vrot.lane.b32.xlu0 %v4238, 64
      %v4317 = vpop.permute.xlu0 %4316
      %4318 = vrot.lane.b32.xlu0 %v4241, 64
      %v4319 = vpop.permute.xlu0 %4318
      %4320 = vrot.lane.b32.xlu0 %v4244, 64
      %v4321 = vpop.permute.xlu0 %4320
      %4322 = vrot.lane.b32.xlu0 %v4247, 64
      %v4323 = vpop.permute.xlu0 %4322
      %4324 = vrot.lane.b32.xlu0 %v4250, 64
      %v4325 = vpop.permute.xlu0 %4324
      %4326 = vrot.lane.b32.xlu0 %v4253, 64
      %v4327 = vpop.permute.xlu0 %4326
      %4328 = vrot.lane.b32.xlu0 %v4256, 64
      %v4329 = vpop.permute.xlu0 %4328
      %4330 = vrot.lane.b32.xlu0 %v4259, 64
      %v4331 = vpop.permute.xlu0 %4330
      %vm4368 = vcmask 585216
      %4369 = vst.msk [vmem:[#allocation3] sm:$0xf] %vm4368, %v4261
      %4370 = vst.msk [vmem:[#allocation3 + $0x4] sm:$0xf] %vm4368, %v4263
      %4371 = vst.msk [vmem:[#allocation3 + $0x8] sm:$0xf] %vm4368, %v4265
      %4372 = vst.msk [vmem:[#allocation3 + $0xc] sm:$0xf] %vm4368, %v4267
      %4373 = vst.msk [vmem:[#allocation3 + $0x10] sm:$0xf] %vm4368, %v4269
      %4374 = vst.msk [vmem:[#allocation3 + $0x14] sm:$0xf] %vm4368, %v4271
      %4375 = vst.msk [vmem:[#allocation3 + $0x18] sm:$0xf] %vm4368, %v4273
      %4376 = vst.msk [vmem:[#allocation3 + $0x1c] sm:$0xf] %vm4368, %v4275
      %4377 = vst.msk [vmem:[#allocation3 + $0x20] sm:$0xf] %vm4368, %v4277
      %4378 = vst.msk [vmem:[#allocation3 + $0x24] sm:$0xf] %vm4368, %v4279
      %4379 = vst.msk [vmem:[#allocation3 + $0x28] sm:$0xf] %vm4368, %v4281
      %4380 = vst.msk [vmem:[#allocation3 + $0x2c] sm:$0xf] %vm4368, %v4283
      %4381 = vst.msk [vmem:[#allocation3 + $0x30] sm:$0xf] %vm4368, %v4285
      %4382 = vst.msk [vmem:[#allocation3 + $0x34] sm:$0xf] %vm4368, %v4287
      %4383 = vst.msk [vmem:[#allocation3 + $0x38] sm:$0xf] %vm4368, %v4289
      %4384 = vst.msk [vmem:[#allocation3 + $0x3c] sm:$0xf] %vm4368, %v4291
      %4385 = vst.msk [vmem:[#allocation3 + $0x40] sm:$0xf] %vm4368, %v4293
      %4386 = vst.msk [vmem:[#allocation3 + $0x44] sm:$0xf] %vm4368, %v4295
      %4387 = vst.msk [vmem:[#allocation3 + $0x48] sm:$0xf] %vm4368, %v4297
      %4388 = vst.msk [vmem:[#allocation3 + $0x4c] sm:$0xf] %vm4368, %v4299
      %4389 = vst.msk [vmem:[#allocation3 + $0x50] sm:$0xf] %vm4368, %v4301
      %4390 = vst.msk [vmem:[#allocation3 + $0x54] sm:$0xf] %vm4368, %v4303
      %4391 = vst.msk [vmem:[#allocation3 + $0x58] sm:$0xf] %vm4368, %v4305
      %4392 = vst.msk [vmem:[#allocation3 + $0x5c] sm:$0xf] %vm4368, %v4307
      %4393 = vst.msk [vmem:[#allocation3 + $0x60] sm:$0xf] %vm4368, %v4309
      %4394 = vst.msk [vmem:[#allocation3 + $0x64] sm:$0xf] %vm4368, %v4311
      %4395 = vst.msk [vmem:[#allocation3 + $0x68] sm:$0xf] %vm4368, %v4313
      %4396 = vst.msk [vmem:[#allocation3 + $0x6c] sm:$0xf] %vm4368, %v4315
      %4397 = vst.msk [vmem:[#allocation3 + $0x70] sm:$0xf] %vm4368, %v4317
      %4398 = vst.msk [vmem:[#allocation3 + $0x74] sm:$0xf] %vm4368, %v4319
      %4399 = vst.msk [vmem:[#allocation3 + $0x78] sm:$0xf] %vm4368, %v4321
      %4400 = vst.msk [vmem:[#allocation3 + $0x7c] sm:$0xf] %vm4368, %v4323
      %4401 = vst.msk [vmem:[#allocation3 + $0x80] sm:$0xf] %vm4368, %v4325
      %4402 = vst.msk [vmem:[#allocation3 + $0x84] sm:$0xf] %vm4368, %v4327
      %4403 = vst.msk [vmem:[#allocation3 + $0x88] sm:$0xf] %vm4368, %v4329
      %4404 = vst.msk [vmem:[#allocation3 + $0x8c] sm:$0xf] %vm4368, %v4331
      %v4405 = vld [vmem:[#allocation3] sm:$0xf]
      %v4406 = vld [vmem:[#allocation3 + $0x4] sm:$0xf]
      %v4407 = vld [vmem:[#allocation3 + $0x8] sm:$0xf]
      %v4408 = vld [vmem:[#allocation3 + $0xc] sm:$0xf]
      %v4409 = vld [vmem:[#allocation3 + $0x10] sm:$0xf]
      %v4410 = vld [vmem:[#allocation3 + $0x14] sm:$0xf]
      %v4411 = vld [vmem:[#allocation3 + $0x18] sm:$0xf]
      %v4412 = vld [vmem:[#allocation3 + $0x1c] sm:$0xf]
      %v4413 = vld [vmem:[#allocation3 + $0x20] sm:$0xf]
      %v4414 = vld [vmem:[#allocation3 + $0x24] sm:$0xf]
      %v4415 = vld [vmem:[#allocation3 + $0x28] sm:$0xf]
      %v4416 = vld [vmem:[#allocation3 + $0x2c] sm:$0xf]
      %v4417 = vld [vmem:[#allocation3 + $0x30] sm:$0xf]
      %v4418 = vld [vmem:[#allocation3 + $0x34] sm:$0xf]
      %v4419 = vld [vmem:[#allocation3 + $0x38] sm:$0xf]
      %v4420 = vld [vmem:[#allocation3 + $0x3c] sm:$0xf]
      %v4421 = vld [vmem:[#allocation3 + $0x40] sm:$0xf]
      %v4422 = vld [vmem:[#allocation3 + $0x44] sm:$0xf]
      %v4423 = vld [vmem:[#allocation3 + $0x48] sm:$0xf]
      %v4424 = vld [vmem:[#allocation3 + $0x4c] sm:$0xf]
      %v4425 = vld [vmem:[#allocation3 + $0x50] sm:$0xf]
      %v4426 = vld [vmem:[#allocation3 + $0x54] sm:$0xf]
      %v4427 = vld [vmem:[#allocation3 + $0x58] sm:$0xf]
      %v4428 = vld [vmem:[#allocation3 + $0x5c] sm:$0xf]
      %v4429 = vld [vmem:[#allocation3 + $0x60] sm:$0xf]
      %v4430 = vld [vmem:[#allocation3 + $0x64] sm:$0xf]
      %v4431 = vld [vmem:[#allocation3 + $0x68] sm:$0xf]
      %v4432 = vld [vmem:[#allocation3 + $0x6c] sm:$0xf]
      %v4433 = vld [vmem:[#allocation3 + $0x70] sm:$0xf]
      %v4434 = vld [vmem:[#allocation3 + $0x74] sm:$0xf]
      %v4435 = vld [vmem:[#allocation3 + $0x78] sm:$0xf]
      %v4436 = vld [vmem:[#allocation3 + $0x7c] sm:$0xf]
      %v4437 = vld [vmem:[#allocation3 + $0x80] sm:$0xf]
      %v4438 = vld [vmem:[#allocation3 + $0x84] sm:$0xf]
      %v4439 = vld [vmem:[#allocation3 + $0x88] sm:$0xf]
      %v4440 = vld [vmem:[#allocation3 + $0x8c] sm:$0xf]
      %v4441 = vld [vmem:[%s3] sm:$0xf]
      %v4442 = vld [vmem:[%s3 + $0x4] sm:$0xf]
      %v4443 = vld [vmem:[%s3 + $0x8] sm:$0xf]
      %v4444 = vld [vmem:[%s3 + $0xc] sm:$0xf]
      %v4445 = vld [vmem:[%s3 + $0x10] sm:$0xf]
      %v4446 = vld [vmem:[%s3 + $0x14] sm:$0xf]
      %v4447 = vld [vmem:[%s3 + $0x18] sm:$0xf]
      %v4448 = vld [vmem:[%s3 + $0x1c] sm:$0xf]
      %v4449 = vld [vmem:[%s3 + $0x20] sm:$0xf]
      %v4486 = vunpack.c.l.b16 %v4405
      %v4487 = vunpack.c.l.b16 %v4406
      %v4488 = vunpack.c.l.b16 %v4407
      %v4489 = vunpack.c.l.b16 %v4408
      %v4490 = vunpack.c.l.b16 %v4409
      %v4491 = vunpack.c.l.b16 %v4410
      %v4492 = vunpack.c.l.b16 %v4411
      %v4493 = vunpack.c.l.b16 %v4412
      %v4494 = vunpack.c.l.b16 %v4413
      %v4495 = vunpack.c.l.b16 %v4414
      %v4496 = vunpack.c.l.b16 %v4415
      %v4497 = vunpack.c.l.b16 %v4416
      %v4498 = vunpack.c.l.b16 %v4417
      %v4499 = vunpack.c.l.b16 %v4418
      %v4500 = vunpack.c.l.b16 %v4419
      %v4501 = vunpack.c.l.b16 %v4420
      %v4502 = vunpack.c.l.b16 %v4421
      %v4503 = vunpack.c.l.b16 %v4422
      %v4504 = vunpack.c.l.b16 %v4423
      %v4505 = vunpack.c.l.b16 %v4424
      %v4506 = vunpack.c.l.b16 %v4425
      %v4507 = vunpack.c.l.b16 %v4426
      %v4508 = vunpack.c.l.b16 %v4427
      %v4509 = vunpack.c.l.b16 %v4428
      %v4510 = vunpack.c.l.b16 %v4429
      %v4511 = vunpack.c.l.b16 %v4430
      %v4512 = vunpack.c.l.b16 %v4431
      %v4513 = vunpack.c.l.b16 %v4432
      %v4514 = vunpack.c.l.b16 %v4433
      %v4515 = vunpack.c.l.b16 %v4434
      %v4516 = vunpack.c.l.b16 %v4435
      %v4517 = vunpack.c.l.b16 %v4436
      %v4518 = vunpack.c.l.b16 %v4437
      %v4519 = vunpack.c.l.b16 %v4438
      %v4520 = vunpack.c.l.b16 %v4439
      %v4521 = vunpack.c.l.b16 %v4440
      %v4522 = vpack.c.b16 %v4487, %v4486
      %v4523 = vpack.c.b16 %v4489, %v4488
      %v4524 = vpack.c.b16 %v4491, %v4490
      %v4525 = vpack.c.b16 %v4493, %v4492
      %v4526 = vpack.c.b16 %v4495, %v4494
      %v4527 = vpack.c.b16 %v4497, %v4496
      %v4528 = vpack.c.b16 %v4499, %v4498
      %v4529 = vpack.c.b16 %v4501, %v4500
      %v4530 = vpack.c.b16 %v4503, %v4502
      %v4531 = vpack.c.b16 %v4505, %v4504
      %v4532 = vpack.c.b16 %v4507, %v4506
      %v4533 = vpack.c.b16 %v4509, %v4508
      %v4534 = vpack.c.b16 %v4511, %v4510
      %v4535 = vpack.c.b16 %v4513, %v4512
      %v4536 = vpack.c.b16 %v4515, %v4514
      %v4537 = vpack.c.b16 %v4517, %v4516
      %v4538 = vpack.c.b16 %v4519, %v4518
      %v4539 = vpack.c.b16 %v4521, %v4520
      %v4549 = vunpack.c.l.b16 %v4441
      %v4550 = vunpack.c.l.b16 %v4442
      %v4551 = vunpack.c.l.b16 %v4443
      %v4552 = vunpack.c.l.b16 %v4444
      %v4553 = vunpack.c.l.b16 %v4445
      %v4554 = vunpack.c.l.b16 %v4446
      %v4555 = vunpack.c.l.b16 %v4447
      %v4556 = vunpack.c.l.b16 %v4448
      %v4557 = vunpack.c.l.b16 %v4449
      %v4558 = vpack.c.b16 %v4550, %v4549
      %v4559 = vpack.c.b16 %v4552, %v4551
      %v4560 = vpack.c.b16 %v4554, %v4553
      %v4561 = vpack.c.b16 %v4556, %v4555
      %v4562 = vpack.c.b16 %v4557, %v4557
      %vm4567 = vcmask 588800
      %v4569 = vsel %vm4567, %v4522, 0
      %v4572 = vsel %vm4567, %v4523, 0
      %v4575 = vsel %vm4567, %v4524, 0
      %v4578 = vsel %vm4567, %v4525, 0
      %v4581 = vsel %vm4567, %v4526, 0
      %v4584 = vsel %vm4567, %v4527, 0
      %v4587 = vsel %vm4567, %v4528, 0
      %v4590 = vsel %vm4567, %v4529, 0
      %v4593 = vsel %vm4567, %v4530, 0
      %v4596 = vsel %vm4567, %v4531, 0
      %v4599 = vsel %vm4567, %v4532, 0
      %v4602 = vsel %vm4567, %v4533, 0
      %v4605 = vsel %vm4567, %v4534, 0
      %v4608 = vsel %vm4567, %v4535, 0
      %v4611 = vsel %vm4567, %v4536, 0
      %v4614 = vsel %vm4567, %v4537, 0
      %v4617 = vsel %vm4567, %v4538, 0
      %v4620 = vsel %vm4567, %v4539, 0
      %vm4622 = vcmask 1043456
      %v4624 = vsel %vm4622, %v4562, 0
      %4626 = vmatprep.subr.bf16.mxu0 0
      %4627 = vmatpush1.bf16.msra.mxu0 0
      %4628 = vmatprep.subr.bf16.mxu0 0
      %4629 = vmatpush1.bf16.msra.mxu0 0
      %4630 = vmatprep.subr.bf16.mxu0 0
      %4631 = vmatpush1.bf16.msra.mxu0 0
      %4632 = vmatprep.subr.bf16.mxu0 0
      %4633 = vmatpush1.bf16.msra.mxu0 %v4624
      %4634 = vmatprep.subr.bf16.mxu0 0
      %4635 = vmatpush1.bf16.msra.mxu0 %v4561
      %4636 = vmatprep.subr.bf16.mxu0 0
      %4637 = vmatpush1.bf16.msra.mxu0 %v4560
      %4638 = vmatprep.subr.bf16.mxu0 0
      %4639 = vmatpush1.bf16.msra.mxu0 %v4559
      %4640 = vmatprep.subr.bf16.mxu0 0
      %4641 = vmatpush1.bf16.msra.mxu0 %v4558
      %4642 = vmatprep.subr.bf16.mxu0 0
      %4643 = vmatpush2.bf16.msra.mxu0 0
      %4644 = vmatprep.subr.bf16.mxu0 0
      %4645 = vmatpush2.bf16.msra.mxu0 0
      %4646 = vmatprep.subr.bf16.mxu0 0
      %4647 = vmatpush2.bf16.msra.mxu0 0
      %4648 = vmatprep.subr.bf16.mxu0 0
      %4649 = vmatpush2.bf16.msra.mxu0 0
      %4650 = vmatprep.subr.bf16.mxu0 0
      %4651 = vmatpush2.bf16.msra.mxu0 0
      %4652 = vmatprep.subr.bf16.mxu0 0
      %4653 = vmatpush2.bf16.msra.mxu0 0
      %4654 = vmatprep.subr.bf16.mxu0 0
      %4655 = vmatpush2.bf16.msra.mxu0 0
      %4656 = vmatprep.subr.bf16.mxu0 0
      %4657 = vmatpush2.bf16.msra.mxu0 0
      %4658 = vmatprep.mubr.bf16.mxu0 0
      %4659 = vmatmul.mubr.bf16.gmra.mxu0 %v4569
      %v4660 = vpop.f32.mrf.mxu0
      %v4661 = vadd.f32 0.0, %v4660
      %v4662 = vpop.f32.mrf.mxu0
      %v4663 = vpop.f32.mrf.mxu0
      %v4664 = vadd.f32 0.0, %v4663
      %v4665 = vpop.f32.mrf.mxu0
      %4666 = vmatprep.mubr.bf16.mxu0 0
      %4667 = vmatmul.mubr.bf16.gmra.mxu0 %v4572
      %v4668 = vpop.f32.mrf.mxu0
      %v4669 = vadd.f32 0.0, %v4668
      %v4670 = vpop.f32.mrf.mxu0
      %v4671 = vpop.f32.mrf.mxu0
      %v4672 = vadd.f32 0.0, %v4671
      %v4673 = vpop.f32.mrf.mxu0
      %4674 = vmatprep.mubr.bf16.mxu0 0
      %4675 = vmatmul.mubr.bf16.gmra.mxu0 %v4575
      %v4676 = vpop.f32.mrf.mxu0
      %v4677 = vadd.f32 0.0, %v4676
      %v4678 = vpop.f32.mrf.mxu0
      %v4679 = vpop.f32.mrf.mxu0
      %v4680 = vadd.f32 0.0, %v4679
      %v4681 = vpop.f32.mrf.mxu0
      %4682 = vmatprep.mubr.bf16.mxu0 0
      %4683 = vmatmul.mubr.bf16.gmra.mxu0 %v4578
      %v4684 = vpop.f32.mrf.mxu0
      %v4685 = vadd.f32 0.0, %v4684
      %v4686 = vpop.f32.mrf.mxu0
      %v4687 = vpop.f32.mrf.mxu0
      %v4688 = vadd.f32 0.0, %v4687
      %v4689 = vpop.f32.mrf.mxu0
      %4690 = vmatprep.mubr.bf16.mxu0 0
      %4691 = vmatmul.mubr.bf16.gmra.mxu0 %v4581
      %v4692 = vpop.f32.mrf.mxu0
      %v4693 = vadd.f32 0.0, %v4692
      %v4694 = vpop.f32.mrf.mxu0
      %v4695 = vpop.f32.mrf.mxu0
      %v4696 = vadd.f32 0.0, %v4695
      %v4697 = vpop.f32.mrf.mxu0
      %4698 = vmatprep.mubr.bf16.mxu0 0
      %4699 = vmatmul.mubr.bf16.gmra.mxu0 %v4584
      %v4700 = vpop.f32.mrf.mxu0
      %v4701 = vadd.f32 0.0, %v4700
      %v4702 = vpop.f32.mrf.mxu0
      %v4703 = vpop.f32.mrf.mxu0
      %v4704 = vadd.f32 0.0, %v4703
      %v4705 = vpop.f32.mrf.mxu0
      %4706 = vmatprep.mubr.bf16.mxu0 0
      %4707 = vmatmul.mubr.bf16.gmra.mxu0 %v4587
      %v4708 = vpop.f32.mrf.mxu0
      %v4709 = vadd.f32 0.0, %v4708
      %v4710 = vpop.f32.mrf.mxu0
      %v4711 = vpop.f32.mrf.mxu0
      %v4712 = vadd.f32 0.0, %v4711
      %v4713 = vpop.f32.mrf.mxu0
      %4714 = vmatprep.mubr.bf16.mxu0 0
      %4715 = vmatmul.mubr.bf16.gmra.mxu0 %v4590
      %v4716 = vpop.f32.mrf.mxu0
      %v4717 = vadd.f32 0.0, %v4716
      %v4718 = vpop.f32.mrf.mxu0
      %v4719 = vpop.f32.mrf.mxu0
      %v4720 = vadd.f32 0.0, %v4719
      %v4721 = vpop.f32.mrf.mxu0
      %4722 = vmatprep.mubr.bf16.mxu0 0
      %4723 = vmatmul.mubr.bf16.gmra.mxu0 %v4593
      %v4724 = vpop.f32.mrf.mxu0
      %v4725 = vadd.f32 0.0, %v4724
      %v4726 = vpop.f32.mrf.mxu0
      %v4727 = vpop.f32.mrf.mxu0
      %v4728 = vadd.f32 0.0, %v4727
      %v4729 = vpop.f32.mrf.mxu0
      %4730 = vmatprep.mubr.bf16.mxu0 0
      %4731 = vmatmul.mubr.bf16.gmra.mxu0 %v4596
      %v4732 = vpop.f32.mrf.mxu0
      %v4733 = vadd.f32 0.0, %v4732
      %v4734 = vpop.f32.mrf.mxu0
      %v4735 = vpop.f32.mrf.mxu0
      %v4736 = vadd.f32 0.0, %v4735
      %v4737 = vpop.f32.mrf.mxu0
      %4738 = vmatprep.mubr.bf16.mxu0 0
      %4739 = vmatmul.mubr.bf16.gmra.mxu0 %v4599
      %v4740 = vpop.f32.mrf.mxu0
      %v4741 = vadd.f32 0.0, %v4740
      %v4742 = vpop.f32.mrf.mxu0
      %v4743 = vpop.f32.mrf.mxu0
      %v4744 = vadd.f32 0.0, %v4743
      %v4745 = vpop.f32.mrf.mxu0
      %4746 = vmatprep.mubr.bf16.mxu0 0
      %4747 = vmatmul.mubr.bf16.gmra.mxu0 %v4602
      %v4748 = vpop.f32.mrf.mxu0
      %v4749 = vadd.f32 0.0, %v4748
      %v4750 = vpop.f32.mrf.mxu0
      %v4751 = vpop.f32.mrf.mxu0
      %v4752 = vadd.f32 0.0, %v4751
      %v4753 = vpop.f32.mrf.mxu0
      %4754 = vmatprep.mubr.bf16.mxu0 0
      %4755 = vmatmul.mubr.bf16.gmra.mxu0 %v4605
      %v4756 = vpop.f32.mrf.mxu0
      %v4757 = vadd.f32 0.0, %v4756
      %v4758 = vpop.f32.mrf.mxu0
      %v4759 = vpop.f32.mrf.mxu0
      %v4760 = vadd.f32 0.0, %v4759
      %v4761 = vpop.f32.mrf.mxu0
      %4762 = vmatprep.mubr.bf16.mxu0 0
      %4763 = vmatmul.mubr.bf16.gmra.mxu0 %v4608
      %v4764 = vpop.f32.mrf.mxu0
      %v4765 = vadd.f32 0.0, %v4764
      %v4766 = vpop.f32.mrf.mxu0
      %v4767 = vpop.f32.mrf.mxu0
      %v4768 = vadd.f32 0.0, %v4767
      %v4769 = vpop.f32.mrf.mxu0
      %4770 = vmatprep.mubr.bf16.mxu0 0
      %4771 = vmatmul.mubr.bf16.gmra.mxu0 %v4611
      %v4772 = vpop.f32.mrf.mxu0
      %v4773 = vadd.f32 0.0, %v4772
      %v4774 = vpop.f32.mrf.mxu0
      %v4775 = vpop.f32.mrf.mxu0
      %v4776 = vadd.f32 0.0, %v4775
      %v4777 = vpop.f32.mrf.mxu0
      %4778 = vmatprep.mubr.bf16.mxu0 0
      %4779 = vmatmul.mubr.bf16.gmra.mxu0 %v4614
      %v4780 = vpop.f32.mrf.mxu0
      %v4781 = vadd.f32 0.0, %v4780
      %v4782 = vpop.f32.mrf.mxu0
      %v4783 = vpop.f32.mrf.mxu0
      %v4784 = vadd.f32 0.0, %v4783
      %v4785 = vpop.f32.mrf.mxu0
      %4786 = vmatprep.mubr.bf16.mxu0 0
      %4787 = vmatmul.mubr.bf16.gmra.mxu0 %v4617
      %v4788 = vpop.f32.mrf.mxu0
      %v4789 = vadd.f32 0.0, %v4788
      %v4790 = vpop.f32.mrf.mxu0
      %v4791 = vpop.f32.mrf.mxu0
      %v4792 = vadd.f32 0.0, %v4791
      %v4793 = vpop.f32.mrf.mxu0
      %4794 = vmatprep.mubr.bf16.mxu0 0
      %4795 = vmatmul.mubr.bf16.gmra.mxu0 %v4620
      %v4796 = vpop.f32.mrf.mxu0
      %v4797 = vadd.f32 0.0, %v4796
      %v4798 = vpop.f32.mrf.mxu0
      %v4799 = vpop.f32.mrf.mxu0
      %v4800 = vadd.f32 0.0, %v4799
      %v4801 = vpop.f32.mrf.mxu0
      %4802 = vdwg.mxu0
      %vm4806 = vcmask 1045504
      %v4807 = vrot.slane %v4669, 2
      %v4808 = vrot.slane %v4672, 2
      %v4809 = vsel %vm4806, %v4807, %v4808
      %v4810 = vrot.slane %v4677, 2
      %v4811 = vsel %vm4806, %v4808, %v4810
      %v4816 = vrot.slane %v4677, 4
      %v4817 = vrot.slane %v4680, 4
      %v4818 = vsel %vm4622, %v4816, %v4817
      %v4819 = vrot.slane %v4685, 4
      %v4820 = vsel %vm4622, %v4817, %v4819
      %vm4825 = vcmask 1041408
      %v4826 = vrot.slane %v4685, 6
      %v4827 = vrot.slane %v4688, 6
      %v4828 = vsel %vm4825, %v4826, %v4827
      %v4829 = vrot.slane %v4693, 6
      %v4830 = vsel %vm4825, %v4827, %v4829
      %v4836 = vrot.slane %v4704, 2
      %v4837 = vrot.slane %v4709, 2
      %v4838 = vsel %vm4806, %v4836, %v4837
      %v4839 = vrot.slane %v4712, 2
      %v4840 = vsel %vm4806, %v4837, %v4839
      %v4845 = vrot.slane %v4712, 4
      %v4846 = vrot.slane %v4717, 4
      %v4847 = vsel %vm4622, %v4845, %v4846
      %v4848 = vrot.slane %v4720, 4
      %v4849 = vsel %vm4622, %v4846, %v4848
      %v4854 = vrot.slane %v4720, 6
      %v4855 = vrot.slane %v4725, 6
      %v4856 = vsel %vm4825, %v4854, %v4855
      %v4857 = vrot.slane %v4728, 6
      %v4858 = vsel %vm4825, %v4855, %v4857
      %v4864 = vrot.slane %v4741, 2
      %v4865 = vrot.slane %v4744, 2
      %v4866 = vsel %vm4806, %v4864, %v4865
      %v4867 = vrot.slane %v4749, 2
      %v4868 = vsel %vm4806, %v4865, %v4867
      %v4873 = vrot.slane %v4749, 4
      %v4874 = vrot.slane %v4752, 4
      %v4875 = vsel %vm4622, %v4873, %v4874
      %v4876 = vrot.slane %v4757, 4
      %v4877 = vsel %vm4622, %v4874, %v4876
      %v4882 = vrot.slane %v4757, 6
      %v4883 = vrot.slane %v4760, 6
      %v4884 = vsel %vm4825, %v4882, %v4883
      %v4885 = vrot.slane %v4765, 6
      %v4886 = vsel %vm4825, %v4883, %v4885
      %v4892 = vrot.slane %v4776, 2
      %v4893 = vrot.slane %v4781, 2
      %v4894 = vsel %vm4806, %v4892, %v4893
      %v4895 = vrot.slane %v4784, 2
      %v4896 = vsel %vm4806, %v4893, %v4895
      %v4901 = vrot.slane %v4784, 4
      %v4902 = vrot.slane %v4789, 4
      %v4903 = vsel %vm4622, %v4901, %v4902
      %v4904 = vrot.slane %v4792, 4
      %v4905 = vsel %vm4622, %v4902, %v4904
      %v4910 = vrot.slane %v4792, 6
      %v4911 = vrot.slane %v4797, 6
      %v4912 = vsel %vm4825, %v4910, %v4911
      %v4913 = vrot.slane %v4800, 6
      %v4914 = vsel %vm4825, %v4911, %v4913
      %v4917 = vpack.c.bf16 %v4664, %v4661
      %v4918 = vpack.c.bf16 %v4811, %v4809
      %v4919 = vpack.c.bf16 %v4820, %v4818
      %v4920 = vpack.c.bf16 %v4830, %v4828
      %v4921 = vpack.c.bf16 %v4701, %v4696
      %v4922 = vpack.c.bf16 %v4840, %v4838
      %v4923 = vpack.c.bf16 %v4849, %v4847
      %v4924 = vpack.c.bf16 %v4858, %v4856
      %v4925 = vpack.c.bf16 %v4736, %v4733
      %v4926 = vpack.c.bf16 %v4868, %v4866
      %v4927 = vpack.c.bf16 %v4877, %v4875
      %v4928 = vpack.c.bf16 %v4886, %v4884
      %v4929 = vpack.c.bf16 %v4773, %v4768
      %v4930 = vpack.c.bf16 %v4896, %v4894
      %v4931 = vpack.c.bf16 %v4905, %v4903
      %v4932 = vpack.c.bf16 %v4914, %v4912
      %v4949 = vunpack.c.l.b16 %v4917
      %v4950 = vunpack.c.h.b16 %v4917
      %v4951 = vunpack.c.l.b16 %v4918
      %v4952 = vunpack.c.h.b16 %v4918
      %v4953 = vunpack.c.l.b16 %v4919
      %v4954 = vunpack.c.h.b16 %v4919
      %v4955 = vunpack.c.l.b16 %v4920
      %v4956 = vunpack.c.h.b16 %v4920
      %v4957 = vunpack.c.l.b16 %v4921
      %v4958 = vunpack.c.h.b16 %v4921
      %v4959 = vunpack.c.l.b16 %v4922
      %v4960 = vunpack.c.h.b16 %v4922
      %v4961 = vunpack.c.l.b16 %v4923
      %v4962 = vunpack.c.h.b16 %v4923
      %v4963 = vunpack.c.l.b16 %v4924
      %v4964 = vunpack.c.h.b16 %v4924
      %v4965 = vunpack.c.l.b16 %v4925
      %v4966 = vunpack.c.h.b16 %v4925
      %v4967 = vunpack.c.l.b16 %v4926
      %v4968 = vunpack.c.h.b16 %v4926
      %v4969 = vunpack.c.l.b16 %v4927
      %v4970 = vunpack.c.h.b16 %v4927
      %v4971 = vunpack.c.l.b16 %v4928
      %v4972 = vunpack.c.h.b16 %v4928
      %v4973 = vunpack.c.l.b16 %v4929
      %v4974 = vunpack.c.h.b16 %v4929
      %v4975 = vunpack.c.l.b16 %v4930
      %v4976 = vunpack.c.h.b16 %v4930
      %v4977 = vunpack.c.l.b16 %v4931
      %v4978 = vunpack.c.h.b16 %v4931
      %v4979 = vunpack.c.l.b16 %v4932
      %v4980 = vunpack.c.h.b16 %v4932
      %v4981 = vpack.c.b16 %v4949, %v4949
      %v4982 = vpack.c.b16 %v4950, %v4950
      %v4983 = vpack.c.b16 %v4951, %v4951
      %v4984 = vpack.c.b16 %v4952, %v4952
      %v4985 = vpack.c.b16 %v4953, %v4953
      %v4986 = vpack.c.b16 %v4954, %v4954
      %v4987 = vpack.c.b16 %v4955, %v4955
      %v4988 = vpack.c.b16 %v4956, %v4956
      %v4989 = vpack.c.b16 %v4957, %v4957
      %v4990 = vpack.c.b16 %v4958, %v4958
      %v4991 = vpack.c.b16 %v4959, %v4959
      %v4992 = vpack.c.b16 %v4960, %v4960
      %v4993 = vpack.c.b16 %v4961, %v4961
      %v4994 = vpack.c.b16 %v4962, %v4962
      %v4995 = vpack.c.b16 %v4963, %v4963
      %v4996 = vpack.c.b16 %v4964, %v4964
      %v4997 = vpack.c.b16 %v4965, %v4965
      %v4998 = vpack.c.b16 %v4966, %v4966
      %v4999 = vpack.c.b16 %v4967, %v4967
      %v5000 = vpack.c.b16 %v4968, %v4968
      %v5001 = vpack.c.b16 %v4969, %v4969
      %v5002 = vpack.c.b16 %v4970, %v4970
      %v5003 = vpack.c.b16 %v4971, %v4971
      %v5004 = vpack.c.b16 %v4972, %v4972
      %v5005 = vpack.c.b16 %v4973, %v4973
      %v5006 = vpack.c.b16 %v4974, %v4974
      %v5007 = vpack.c.b16 %v4975, %v4975
      %v5008 = vpack.c.b16 %v4976, %v4976
      %v5009 = vpack.c.b16 %v4977, %v4977
      %v5010 = vpack.c.b16 %v4978, %v4978
      %v5011 = vpack.c.b16 %v4979, %v4979
      %v5012 = vpack.c.b16 %v4980, %v4980
      %5045 = vst.msk [vmem:[%s231] sm:$0xf] %vm427, %v4981
      %5046 = vst.msk [vmem:[%s231 + $0x4] sm:$0xf] %vm427, %v4982
      %5047 = vst.msk [vmem:[%s231 + $0x8] sm:$0xf] %vm427, %v4983
      %5048 = vst.msk [vmem:[%s231 + $0xc] sm:$0xf] %vm427, %v4984
      %5049 = vst.msk [vmem:[%s231 + $0x10] sm:$0xf] %vm427, %v4985
      %5050 = vst.msk [vmem:[%s231 + $0x14] sm:$0xf] %vm427, %v4986
      %5051 = vst.msk [vmem:[%s231 + $0x18] sm:$0xf] %vm427, %v4987
      %5052 = vst.msk [vmem:[%s231 + $0x1c] sm:$0xf] %vm427, %v4988
      %5053 = vst.msk [vmem:[%s231 + $0x20] sm:$0xf] %vm427, %v4989
      %5054 = vst.msk [vmem:[%s231 + $0x24] sm:$0xf] %vm427, %v4990
      %5055 = vst.msk [vmem:[%s231 + $0x28] sm:$0xf] %vm427, %v4991
      %5056 = vst.msk [vmem:[%s231 + $0x2c] sm:$0xf] %vm427, %v4992
      %5057 = vst.msk [vmem:[%s231 + $0x30] sm:$0xf] %vm427, %v4993
      %5058 = vst.msk [vmem:[%s231 + $0x34] sm:$0xf] %vm427, %v4994
      %5059 = vst.msk [vmem:[%s231 + $0x38] sm:$0xf] %vm427, %v4995
      %5060 = vst.msk [vmem:[%s231 + $0x3c] sm:$0xf] %vm427, %v4996
      %5061 = vst.msk [vmem:[%s231 + $0x40] sm:$0xf] %vm427, %v4997
      %5062 = vst.msk [vmem:[%s231 + $0x44] sm:$0xf] %vm427, %v4998
      %5063 = vst.msk [vmem:[%s231 + $0x48] sm:$0xf] %vm427, %v4999
      %5064 = vst.msk [vmem:[%s231 + $0x4c] sm:$0xf] %vm427, %v5000
      %5065 = vst.msk [vmem:[%s231 + $0x50] sm:$0xf] %vm427, %v5001
      %5066 = vst.msk [vmem:[%s231 + $0x54] sm:$0xf] %vm427, %v5002
      %5067 = vst.msk [vmem:[%s231 + $0x58] sm:$0xf] %vm427, %v5003
      %5068 = vst.msk [vmem:[%s231 + $0x5c] sm:$0xf] %vm427, %v5004
      %5069 = vst.msk [vmem:[%s231 + $0x60] sm:$0xf] %vm427, %v5005
      %5070 = vst.msk [vmem:[%s231 + $0x64] sm:$0xf] %vm427, %v5006
      %5071 = vst.msk [vmem:[%s231 + $0x68] sm:$0xf] %vm427, %v5007
      %5072 = vst.msk [vmem:[%s231 + $0x6c] sm:$0xf] %vm427, %v5008
      %5073 = vst.msk [vmem:[%s231 + $0x70] sm:$0xf] %vm427, %v5009
      %5074 = vst.msk [vmem:[%s231 + $0x74] sm:$0xf] %vm427, %v5010
      %5075 = vst.msk [vmem:[%s231 + $0x78] sm:$0xf] %vm427, %v5011
      %5076 = vst.msk [vmem:[%s231 + $0x7c] sm:$0xf] %vm427, %v5012
      %vm5077 = vcmask 64512
      %v5078 = vsel %vm5077, %v4661, 0.0
      %v5079 = vsel %vm5077, %v4664, 0.0
      %v5080 = vadd.f32 %v5078, %v5079
      %v5081 = vsel %vm5077, %v4809, 0.0
      %v5082 = vadd.f32 %v5080, %v5081
      %v5083 = vsel %vm5077, %v4811, 0.0
      %v5084 = vadd.f32 %v5082, %v5083
      %v5085 = vsel %vm5077, %v4818, 0.0
      %v5086 = vadd.f32 %v5084, %v5085
      %v5087 = vsel %vm5077, %v4820, 0.0
      %v5088 = vadd.f32 %v5086, %v5087
      %v5089 = vsel %vm5077, %v4828, 0.0
      %v5090 = vadd.f32 %v5088, %v5089
      %v5091 = vsel %vm5077, %v4830, 0.0
      %v5092 = vadd.f32 %v5090, %v5091
      %v5093 = vsel %vm5077, %v4696, 0.0
      %v5094 = vadd.f32 %v5092, %v5093
      %v5095 = vsel %vm5077, %v4701, 0.0
      %v5096 = vadd.f32 %v5094, %v5095
      %v5097 = vsel %vm5077, %v4838, 0.0
      %v5098 = vadd.f32 %v5096, %v5097
      %v5099 = vsel %vm5077, %v4840, 0.0
      %v5100 = vadd.f32 %v5098, %v5099
      %v5101 = vsel %vm5077, %v4847, 0.0
      %v5102 = vadd.f32 %v5100, %v5101
      %v5103 = vsel %vm5077, %v4849, 0.0
      %v5104 = vadd.f32 %v5102, %v5103
      %v5105 = vsel %vm5077, %v4856, 0.0
      %v5106 = vadd.f32 %v5104, %v5105
      %v5107 = vsel %vm5077, %v4858, 0.0
      %v5108 = vadd.f32 %v5106, %v5107
      %v5109 = vsel %vm5077, %v4733, 0.0
      %v5110 = vadd.f32 %v5108, %v5109
      %v5111 = vsel %vm5077, %v4736, 0.0
      %v5112 = vadd.f32 %v5110, %v5111
      %v5113 = vsel %vm5077, %v4866, 0.0
      %v5114 = vadd.f32 %v5112, %v5113
      %v5115 = vsel %vm5077, %v4868, 0.0
      %v5116 = vadd.f32 %v5114, %v5115
      %v5117 = vsel %vm5077, %v4875, 0.0
      %v5118 = vadd.f32 %v5116, %v5117
      %v5119 = vsel %vm5077, %v4877, 0.0
      %v5120 = vadd.f32 %v5118, %v5119
      %v5121 = vsel %vm5077, %v4884, 0.0
      %v5122 = vadd.f32 %v5120, %v5121
      %v5123 = vsel %vm5077, %v4886, 0.0
      %v5124 = vadd.f32 %v5122, %v5123
      %v5125 = vsel %vm5077, %v4768, 0.0
      %v5126 = vadd.f32 %v5124, %v5125
      %v5127 = vsel %vm5077, %v4773, 0.0
      %v5128 = vadd.f32 %v5126, %v5127
      %v5129 = vsel %vm5077, %v4894, 0.0
      %v5130 = vadd.f32 %v5128, %v5129
      %v5131 = vsel %vm5077, %v4896, 0.0
      %v5132 = vadd.f32 %v5130, %v5131
      %v5133 = vsel %vm5077, %v4903, 0.0
      %v5134 = vadd.f32 %v5132, %v5133
      %v5135 = vsel %vm5077, %v4905, 0.0
      %v5136 = vadd.f32 %v5134, %v5135
      %v5137 = vsel %vm5077, %v4912, 0.0
      %v5138 = vadd.f32 %v5136, %v5137
      %v5139 = vsel %vm5077, %v4914, 0.0
      %v5140 = vadd.f32 %v5138, %v5139
      %v5141 = vrot.slane %v5140, 4
      %v5142 = vadd.f32 %v5140, %v5141
      %v5143 = vrot.slane %v5142, 2
      %v5144 = vadd.f32 %v5142, %v5143
      %v5145 = vrot.slane %v5144, 1
      %v5146 = vadd.f32 %v5144, %v5145
      %vm5147 = vcmask 57344
      %5148 = vst.msk [vmem:[%s235] sm:$0x1] %vm5147, %v5146
      %v5149 = vmul.f32 %v4661, %v4661
      %v5150 = vmul.f32 %v4664, %v4664
      %v5151 = vmul.f32 %v4809, %v4809
      %v5152 = vmul.f32 %v4811, %v4811
      %v5153 = vmul.f32 %v4818, %v4818
      %v5154 = vmul.f32 %v4820, %v4820
      %v5155 = vmul.f32 %v4828, %v4828
      %v5156 = vmul.f32 %v4830, %v4830
      %v5157 = vmul.f32 %v4696, %v4696
      %v5158 = vmul.f32 %v4701, %v4701
      %v5159 = vmul.f32 %v4838, %v4838
      %v5160 = vmul.f32 %v4840, %v4840
      %v5161 = vmul.f32 %v4847, %v4847
      %v5162 = vmul.f32 %v4849, %v4849
      %v5163 = vmul.f32 %v4856, %v4856
      %v5164 = vmul.f32 %v4858, %v4858
      %v5165 = vmul.f32 %v4733, %v4733
      %v5166 = vmul.f32 %v4736, %v4736
      %v5167 = vmul.f32 %v4866, %v4866
      %v5168 = vmul.f32 %v4868, %v4868
      %v5169 = vmul.f32 %v4875, %v4875
      %v5170 = vmul.f32 %v4877, %v4877
      %v5171 = vmul.f32 %v4884, %v4884
      %v5172 = vmul.f32 %v4886, %v4886
      %v5173 = vmul.f32 %v4768, %v4768
      %v5174 = vmul.f32 %v4773, %v4773
      %v5175 = vmul.f32 %v4894, %v4894
      %v5176 = vmul.f32 %v4896, %v4896
      %v5177 = vmul.f32 %v4903, %v4903
      %v5178 = vmul.f32 %v4905, %v4905
      %v5179 = vmul.f32 %v4912, %v4912
      %v5180 = vmul.f32 %v4914, %v4914
      %v5181 = vsel %vm5077, %v5149, 0.0
      %v5182 = vsel %vm5077, %v5150, 0.0
      %v5183 = vadd.f32 %v5181, %v5182
      %v5184 = vsel %vm5077, %v5151, 0.0
      %v5185 = vadd.f32 %v5183, %v5184
      %v5186 = vsel %vm5077, %v5152, 0.0
      %v5187 = vadd.f32 %v5185, %v5186
      %v5188 = vsel %vm5077, %v5153, 0.0
      %v5189 = vadd.f32 %v5187, %v5188
      %v5190 = vsel %vm5077, %v5154, 0.0
      %v5191 = vadd.f32 %v5189, %v5190
      %v5192 = vsel %vm5077, %v5155, 0.0
      %v5193 = vadd.f32 %v5191, %v5192
      %v5194 = vsel %vm5077, %v5156, 0.0
      %v5195 = vadd.f32 %v5193, %v5194
      %v5196 = vsel %vm5077, %v5157, 0.0
      %v5197 = vadd.f32 %v5195, %v5196
      %v5198 = vsel %vm5077, %v5158, 0.0
      %v5199 = vadd.f32 %v5197, %v5198
      %v5200 = vsel %vm5077, %v5159, 0.0
      %v5201 = vadd.f32 %v5199, %v5200
      %v5202 = vsel %vm5077, %v5160, 0.0
      %v5203 = vadd.f32 %v5201, %v5202
      %v5204 = vsel %vm5077, %v5161, 0.0
      %v5205 = vadd.f32 %v5203, %v5204
      %v5206 = vsel %vm5077, %v5162, 0.0
      %v5207 = vadd.f32 %v5205, %v5206
      %v5208 = vsel %vm5077, %v5163, 0.0
      %v5209 = vadd.f32 %v5207, %v5208
      %v5210 = vsel %vm5077, %v5164, 0.0
      %v5211 = vadd.f32 %v5209, %v5210
      %v5212 = vsel %vm5077, %v5165, 0.0
      %v5213 = vadd.f32 %v5211, %v5212
      %v5214 = vsel %vm5077, %v5166, 0.0
      %v5215 = vadd.f32 %v5213, %v5214
      %v5216 = vsel %vm5077, %v5167, 0.0
      %v5217 = vadd.f32 %v5215, %v5216
      %v5218 = vsel %vm5077, %v5168, 0.0
      %v5219 = vadd.f32 %v5217, %v5218
      %v5220 = vsel %vm5077, %v5169, 0.0
      %v5221 = vadd.f32 %v5219, %v5220
      %v5222 = vsel %vm5077, %v5170, 0.0
      %v5223 = vadd.f32 %v5221, %v5222
      %v5224 = vsel %vm5077, %v5171, 0.0
      %v5225 = vadd.f32 %v5223, %v5224
      %v5226 = vsel %vm5077, %v5172, 0.0
      %v5227 = vadd.f32 %v5225, %v5226
      %v5228 = vsel %vm5077, %v5173, 0.0
      %v5229 = vadd.f32 %v5227, %v5228
      %v5230 = vsel %vm5077, %v5174, 0.0
      %v5231 = vadd.f32 %v5229, %v5230
      %v5232 = vsel %vm5077, %v5175, 0.0
      %v5233 = vadd.f32 %v5231, %v5232
      %v5234 = vsel %vm5077, %v5176, 0.0
      %v5235 = vadd.f32 %v5233, %v5234
      %v5236 = vsel %vm5077, %v5177, 0.0
      %v5237 = vadd.f32 %v5235, %v5236
      %v5238 = vsel %vm5077, %v5178, 0.0
      %v5239 = vadd.f32 %v5237, %v5238
      %v5240 = vsel %vm5077, %v5179, 0.0
      %v5241 = vadd.f32 %v5239, %v5240
      %v5242 = vsel %vm5077, %v5180, 0.0
      %v5243 = vadd.f32 %v5241, %v5242
      %v5244 = vrot.slane %v5243, 4
      %v5245 = vadd.f32 %v5243, %v5244
      %v5246 = vrot.slane %v5245, 2
      %v5247 = vadd.f32 %v5245, %v5246
      %v5248 = vrot.slane %v5247, 1
      %v5249 = vadd.f32 %v5247, %v5248
      %5250 = vst.msk [vmem:[%s235 + $0x1] sm:$0x1] %vm5147, %v5249
      %p5251 = scmp.lt.s32.totalorder %s17, 1
      %s5252 = scalar_select %p5251, %s17, 1
      %s5253 = smul.addr %s5252, 32
      %s5254 = smul.addr %s5253, 4
      %s5255 = scalar_lea.vmem %s4, %s5254
      %p5256 = scmp.lt.s32.totalorder %s17, 1
      %s5257 = scalar_select %p5256, %s17, 1
      %s5258 = smul.addr %s5257, 2
      %s5259 = scalar_lea.vmem %s5, %s5258
      // Predicated region
      $region37: #{_lambda_.5} parent=35 // pred_check
        %p5260 = pneg %p124
      $region38: #{_lambda_.5} parent=35 // pred_check_branch
        %5262 = sbr.rel (%p5260) target = $region40
      $region39: #{_lambda_.5} parent=35 // pred_region
        _
      $region40: #{_lambda_.5} parent=35 // pred_fallthru
        _
      // Predicated region
      $region41: #{_lambda_.5} parent=35 // pred_check
        %p5263 = pneg %p150
      $region42: #{_lambda_.5} parent=35 // pred_check_branch
        %5265 = sbr.rel (%p5263) target = $region44
      $region43: #{_lambda_.5} parent=35 // pred_region
        _
      $region44: #{_lambda_.5} parent=35 // pred_fallthru
        _
    $region36: #{_lambda_.5} parent=5 // pred_fallthru
      _
    %p5266 = scmp.le.s32.totalorder 2, %s12
    // Predicated region
    $region45: #{_lambda_.5} parent=5 // pred_check
      %p5267 = pneg %p5266
    $region46: #{_lambda_.5} parent=5 // pred_check_branch
      %5269 = sbr.rel (%p5267) target = $region48
    $region47: #{_lambda_.5} parent=5 // pred_region
      %s5270 = ssub.s32 %s12, 2
      // Predicated region
      $region49: #{_lambda_.5} parent=47 // pred_check
        %p5271 = pneg %p130
      $region50: #{_lambda_.5} parent=47 // pred_check_branch
        %5273 = sbr.rel (%p5271) target = $region52
      $region51: #{_lambda_.5} parent=47 // pred_region
        %p5274 = scmp.lt.s32.totalorder %s18, 1
        %s5275 = scalar_select %p5274, %s18, 1
        %s5276 = smul.addr %s5275, 32
        %s5277 = smul.addr %s5276, 4
        %s5278 = scalar_lea.vmem %s4, %s5277
      $region52: #{_lambda_.5} parent=47 // pred_fallthru
        _
      // Predicated region
      $region53: #{_lambda_.5} parent=47 // pred_check
        %p5279 = pneg %p156
      $region54: #{_lambda_.5} parent=47 // pred_check_branch
        %5281 = sbr.rel (%p5279) target = $region56
      $region55: #{_lambda_.5} parent=47 // pred_region
        %p5282 = scmp.lt.s32.totalorder %s18, 1
        %s5283 = scalar_select %p5282, %s18, 1
        %s5284 = smul.addr %s5283, 2
        %s5285 = scalar_lea.vmem %s5, %s5284
      $region56: #{_lambda_.5} parent=47 // pred_fallthru
        _
    $region48: #{_lambda_.5} parent=5 // pred_fallthru
      _
  $region6: #{_lambda_.5} parent=0 // loop_footer
    %s16 = sadd.s32 1, %s12
  $region7: #{_lambda_.5} parent=0 // loop_footer_branch
    %11 = sbr.rel target = $region3
  $region8: #{_lambda_.5} parent=0 // loop_exit
    _

</llo_original>
